<compile_context>
chip_gen: v7x
topology: tpu7x:2x2x1
jax: 0.10.0
libtpu: 0.0.40
codegen_flags: <defaults>
</compile_context>

<pallas_src>
import math
import numpy as np
import jax
import jax.numpy as jnp
from jax.experimental import pallas as pl
from jax.experimental.pallas import tpu as pltpu

# ----------------------------- configuration -----------------------------
HIDDEN = 32          # transformer.d_model
NHEADS = 4
HEAD_DIM = HIDDEN // NHEADS
DIM_FF = 64
ACTION_DIM = 8
NUM_QUERIES = 8      # action-chunk length
N_LOWDIM = 2         # n_lowdim_input
N_PERCEPTION = 3     # n_perception_input
LATENT_DIM = 32      # fixed in the module
ENCODER_INPUT = ("lowdim", "perception")
N_ENC_INPUTS = (N_LOWDIM if "lowdim" in ENCODER_INPUT else 0) + \
               (N_PERCEPTION if "perception" in ENCODER_INPUT else 0)
N_DEC_INPUTS = N_LOWDIM + N_PERCEPTION
L_ENC = 1 + N_ENC_INPUTS + NUM_QUERIES     # CVAE encoder sequence length (=14)
L_MEM = 2 + N_DEC_INPUTS                   # transformer memory length (=7)
BATCH = 2

# per-head lane mask [H, D]: row h is 1 on columns [h*HEAD_DIM, (h+1)*HEAD_DIM)
_HEAD_MASK_NP = np.kron(np.eye(NHEADS, dtype=np.float32),
                        np.ones((1, HEAD_DIM), dtype=np.float32))


# ------------------------ in-kernel building blocks ------------------------
def _lin(x, p, relu=False):
    """x: [L, K] @ p['w']: [K, N] + p['b']: [1, N], optional fused ReLU."""
    y = jnp.dot(x, p["w"][...], preferred_element_type=jnp.float32) + p["b"][...]
    return jnp.maximum(y, 0.0) if relu else y


def _ln(x, g_ref, b_ref):
    mean = jnp.mean(x, axis=-1, keepdims=True)
    xc = x - mean
    var = jnp.mean(xc * xc, axis=-1, keepdims=True)
    return xc * jax.lax.rsqrt(var + 1e-5) * g_ref[...] + b_ref[...]


def _mha(p, hm_ref, x_q, x_k, x_v, key_mask=None):
    """nn.MultiheadAttention semantics for one batch element.

    x_q: [Lq, D], x_k/x_v: [Lk, D].  Heads are handled with lane masks so no
    reshape/transpose of activations is needed; head outputs land directly in
    their final lane positions.
    """
    wqkv = p["wqkv"][...]                  # [D, 3D] packed q|k|v projection
    bqkv = p["bqkv"][...]                  # [1, 3D]
    if x_q is x_k:                         # self-attention: q,k share the input
        qk = jnp.dot(x_q, wqkv[:, : 2 * HIDDEN],
                     preferred_element_type=jnp.float32) + bqkv[:, : 2 * HIDDEN]
        q, k = qk[:, :HIDDEN], qk[:, HIDDEN: 2 * HIDDEN]
    else:
        q = jnp.dot(x_q, wqkv[:, :HIDDEN],
                    preferred_element_type=jnp.float32) + bqkv[:, :HIDDEN]
        k = jnp.dot(x_k, wqkv[:, HIDDEN: 2 * HIDDEN],
                    preferred_element_type=jnp.float32) + bqkv[:, HIDDEN: 2 * HIDDEN]
    v = jnp.dot(x_v, wqkv[:, 2 * HIDDEN:],
                preferred_element_type=jnp.float32) + bqkv[:, 2 * HIDDEN:]
    q = q * (1.0 / math.sqrt(HEAD_DIM))

    out = jnp.zeros((x_q.shape[0], HIDDEN), jnp.float32)
    for h in range(NHEADS):                # static unroll over 4 heads
        mh = hm_ref[h:h + 1, :]            # [1, D] 0/1 lane mask
        # (q*mh) . k  ==  q_h . k_h  (other heads' lanes contribute 0)
        s = jnp.dot(q * mh, k.T, preferred_element_type=jnp.float32)   # [Lq, Lk]
        if key_mask is not None:
            s = s + key_mask               # [1, Lk] additive key-padding mask
        s = s - jnp.max(s, axis=-1, keepdims=True)
        e = jnp.exp(s)
        a = e / jnp.sum(e, axis=-1, keepdims=True)
        # a @ (v*mh) places head h's output in its own lanes; sum over heads
        out = out + jnp.dot(a, v * mh, preferred_element_type=jnp.float32)
    return jnp.dot(out, p["wo"][...], preferred_element_type=jnp.float32) + p["bo"][...]


def _encoder_layer(p, hm_ref, src, pos, key_mask):
    """Post-norm DETR TransformerEncoderLayer (dropout = identity)."""
    q_in = src + pos
    src2 = _mha(p["self_attn"], hm_ref, q_in, q_in, src, key_mask)
    src = _ln(src + src2, p["norm1_g"], p["norm1_b"])
    ff = _lin(_lin(src, p["ff1"], relu=True), p["ff2"])
    return _ln(src + ff, p["norm2_g"], p["norm2_b"])


def _decoder_layer(p, hm_ref, tgt, memory, pos, query_pos):
    """Post-norm DETR TransformerDecoderLayer (dropout = identity)."""
    q_in = tgt + query_pos
    tgt2 = _mha(p["self_attn"], hm_ref, q_in, q_in, tgt, None)
    tgt = _ln(tgt + tgt2, p["norm1_g"], p["norm1_b"])
    tgt2 = _mha(p["cross_attn"], hm_ref, tgt + query_pos, memory + pos, memory, None)
    tgt = _ln(tgt + tgt2, p["norm2_g"], p["norm2_b"])
    ff = _lin(_lin(tgt, p["ff1"], relu=True), p["ff2"])
    return _ln(tgt + ff, p["norm3_g"], p["norm3_b"])


# ----------------------------- fused kernel -----------------------------
def _make_kernel(treedef, n_params, is_training):
    """One grid step == one batch element; everything stays in VMEM."""

    def kernel(*refs):
        pp = jax.tree_util.tree_unflatten(treedef, refs[:n_params])
        rest = refs[n_params:]
        if is_training:
            (hm_ref, lowdim_ref, perc_ref, task_ref, act_ref, kmask_ref, eps_ref,
             a_hat_ref, pad_hat_ref, mu_ref, logvar_ref, enc_scr, mem_scr) = rest
        else:
            (hm_ref, lowdim_ref, perc_ref, task_ref,
             a_hat_ref, pad_hat_ref, mem_scr) = rest

        lowdim = lowdim_ref[0]             # [N_LOWDIM, D]
        perc = perc_ref[0]                 # [N_PERCEPTION, D]
        task = task_ref[0]                 # [1, D]

        if is_training:
            # ----------------------- CVAE encoder -----------------------
            action_embed = _lin(act_ref[0], pp["encoder_action_proj"])   # [nq, D]
            enc_scr[0:1, :] = pp["cls_embed"][...]
            off = 1
            if "lowdim" in ENCODER_INPUT:
                enc_scr[off:off + N_LOWDIM, :] = lowdim
                off += N_LOWDIM
            if "perception" in ENCODER_INPUT:
                enc_scr[off:off + N_PERCEPTION, :] = perc
                off += N_PERCEPTION
            enc_scr[off:off + NUM_QUERIES, :] = action_embed
            src = enc_scr[...]                                           # [L_ENC, D]
            pos = pp["pos_table"][...]                                   # [L_ENC, D]
            kmask = kmask_ref[0]                                         # [1, L_ENC]
            for lp in pp["cvae_encoder"]:
                src = _encoder_layer(lp, hm_ref, src, pos, kmask)

            cls_out = src[0:1, :]                                        # [1, D]
            latent_info = _lin(cls_out, pp["latent_proj"])               # [1, 2*latent]
            mu = latent_info[:, :LATENT_DIM]
            logvar = latent_info[:, LATENT_DIM:]
            mu_ref[0] = mu
            logvar_ref[0] = logvar
            latent_sample = mu + jnp.exp(0.5 * logvar) * eps_ref[0]      # reparametrize
            latent_input = _lin(latent_sample, pp["latent_out_proj"])    # [1, D]
        else:
            # latent_sample == 0  =>  latent_out_proj(0) == its bias
            latent_input = pp["latent_out_proj"]["b"][...]               # [1, D]

        # ----------------------- DETR transformer -----------------------
        mem_scr[0:1, :] = task
        mem_scr[1:2, :] = latent_input
        mem_scr[2:2 + N_LOWDIM, :] = lowdim
        mem_scr[2 + N_LOWDIM:L_MEM, :] = perc
        memory = mem_scr[...]                                            # [L_MEM, D]
        input_pos = pp["additional_pos_embed"][...]                      # [L_MEM, D]
        query_pos = pp["query_embed"][...]                               # [nq, D]

        for lp in pp["trans_encoder"]:
            memory = _encoder_layer(lp, hm_ref, memory, input_pos, None)

        tgt = jnp.zeros((NUM_QUERIES, HIDDEN), jnp.float32)
        for lp in pp["trans_decoder"]:
            tgt = _decoder_layer(lp, hm_ref, tgt, memory, input_pos, query_pos)

        # hs = transformer(...)[0]: decoder output after final decoder LayerNorm
        hs = _ln(tgt, pp["dec_norm_g"], pp["dec_norm_b"])                # [nq, D]
        a_hat_ref[0] = _lin(hs, pp["action_head"])                       # [nq, A]
        pad_hat_ref[0] = _lin(hs, pp["is_pad_head"])                     # [nq, 1]

    return kernel


# ----------------------------- DETRVAE forward -----------------------------
def detr_vae_forward(params, lowdim_encodings, perception_encodings, task_emb,
                     actions=None, is_pad=None, *, eps_key=None):
    bs = lowdim_encodings.shape[0]
    is_training = actions is not None

    leaves, treedef = jax.tree_util.tree_flatten(params)
    n_params = len(leaves)
    assert all(l.ndim == 2 for l in leaves)
    # full-array blocks for every parameter; constant index_map => DMA'd once
    param_specs = [pl.BlockSpec(tuple(l.shape), lambda i: (0, 0)) for l in leaves]

    head_mask = jnp.asarray(_HEAD_MASK_NP)                    # [H, D]
    lowdim = lowdim_encodings.astype(jnp.float32)
    perception = perception_encodings.astype(jnp.float32)
    task3 = task_emb.astype(jnp.float32).reshape(bs, 1, HIDDEN)

    common_inputs = (head_mask, lowdim, perception, task3)
    common_specs = [
        pl.BlockSpec((NHEADS, HIDDEN), lambda i: (0, 0)),
        pl.BlockSpec((1, N_LOWDIM, HIDDEN), lambda i: (i, 0, 0)),
        pl.BlockSpec((1, N_PERCEPTION, HIDDEN), lambda i: (i, 0, 0)),
        pl.BlockSpec((1, 1, HIDDEN), lambda i: (i, 0, 0)),
    ]
    head_shapes = (
        jax.ShapeDtypeStruct((bs, NUM_QUERIES, ACTION_DIM), jnp.float32),
        jax.ShapeDtypeStruct((bs, NUM_QUERIES, 1), jnp.float32),
    )
    head_specs = (
        pl.BlockSpec((1, NUM_QUERIES, ACTION_DIM), lambda i: (i, 0, 0)),
        pl.BlockSpec((1, NUM_QUERIES, 1), lambda i: (i, 0, 0)),
    )
    cparams = pltpu.CompilerParams(dimension_semantics=("parallel",))

    if is_training:
        cls_joint_is_pad = jnp.zeros((bs, 1 + N_ENC_INPUTS), dtype=bool)
        is_pad_full = jnp.concatenate([cls_joint_is_pad, is_pad], axis=1)  # [B, L_ENC]
        key_mask = jnp.where(is_pad_full, -1e30, 0.0).astype(jnp.float32)
        key_mask = key_mask.reshape(bs, 1, L_ENC)
        eps = jax.random.normal(eps_key, (bs, 1, LATENT_DIM), jnp.float32)

        inputs = common_inputs + (actions.astype(jnp.float32), key_mask, eps)
        in_specs = param_specs + common_specs + [
            pl.BlockSpec((1, NUM_QUERIES, ACTION_DIM), lambda i: (i, 0, 0)),
            pl.BlockSpec((1, 1, L_ENC), lambda i: (i, 0, 0)),
            pl.BlockSpec((1, 1, LATENT_DIM), lambda i: (i, 0, 0)),
        ]
        out_shape = head_shapes + (
            jax.ShapeDtypeStruct((bs, 1, LATENT_DIM), jnp.float32),
            jax.ShapeDtypeStruct((bs, 1, LATENT_DIM), jnp.float32),
        )
        out_specs = head_specs + (
            pl.BlockSpec((1, 1, LATENT_DIM), lambda i: (i, 0, 0)),
            pl.BlockSpec((1, 1, LATENT_DIM), lambda i: (i, 0, 0)),
        )
        scratch = [pltpu.VMEM((L_ENC, HIDDEN), jnp.float32),
                   pltpu.VMEM((L_MEM, HIDDEN), jnp.float32)]
        a_hat, is_pad_hat, mu3, logvar3 = pl.pallas_call(
            _make_kernel(treedef, n_params, True),
            out_shape=out_shape,
            grid=(bs,),
            in_specs=in_specs,
            out_specs=out_specs,
            scratch_shapes=scratch,
            compiler_params=cparams,
        )(*leaves, *inputs)
        return a_hat, is_pad_hat, (mu3.reshape(bs, LATENT_DIM),
                                   logvar3.reshape(bs, LATENT_DIM))

    scratch = [pltpu.VMEM((L_MEM, HIDDEN), jnp.float32)]
    a_hat, is_pad_hat = pl.pallas_call(
        _make_kernel(treedef, n_params, False),
        out_shape=head_shapes,
        grid=(bs,),
        in_specs=param_specs + common_specs,
        out_specs=head_specs,
        scratch_shapes=scratch,
        compiler_params=cparams,
    )(*leaves, *common_inputs)
    return a_hat, is_pad_hat, (None, None)


# ----------------------------- parameter init -----------------------------
def get_sinusoid_encoding_table(n_position, d_hid):
    def get_position_angle_vec(position):
        return [position / np.power(10000, 2 * (hid_j // 2) / d_hid)
                for hid_j in range(d_hid)]
    table = np.array([get_position_angle_vec(pos_i) for pos_i in range(n_position)])
    table[:, 0::2] = np.sin(table[:, 0::2])
    table[:, 1::2] = np.cos(table[:, 1::2])
    return jnp.asarray(table, dtype=jnp.float32)          # [n_position, d_hid]


def init_linear(key, din, dout, scale=0.1):
    k1, k2 = jax.random.split(key)
    return {"w": scale * jax.random.normal(k1, (din, dout), jnp.float32),
            "b": scale * jax.random.normal(k2, (1, dout), jnp.float32)}


def init_mha(key, D, scale=0.1):
    k1, k2 = jax.random.split(key)
    qkv = init_linear(k1, D, 3 * D, scale)                 # packed q|k|v projection
    out = init_linear(k2, D, D, scale)
    return {"wqkv": qkv["w"], "bqkv": qkv["b"], "wo": out["w"], "bo": out["b"]}


def _norm(D):
    return jnp.ones((1, D), jnp.float32), jnp.zeros((1, D), jnp.float32)


def init_enc_layer(key, D, dff, scale=0.1):
    ks = jax.random.split(key, 3)
    n1g, n1b = _norm(D)
    n2g, n2b = _norm(D)
    return {"self_attn": init_mha(ks[0], D, scale),
            "ff1": init_linear(ks[1], D, dff, scale),
            "ff2": init_linear(ks[2], dff, D, scale),
            "norm1_g": n1g, "norm1_b": n1b,
            "norm2_g": n2g, "norm2_b": n2b}


def init_dec_layer(key, D, dff, scale=0.1):
    ks = jax.random.split(key, 4)
    n1g, n1b = _norm(D)
    n2g, n2b = _norm(D)
    n3g, n3b = _norm(D)
    return {"self_attn": init_mha(ks[0], D, scale),
            "cross_attn": init_mha(ks[1], D, scale),
            "ff1": init_linear(ks[2], D, dff, scale),
            "ff2": init_linear(ks[3], dff, D, scale),
            "norm1_g": n1g, "norm1_b": n1b,
            "norm2_g": n2g, "norm2_b": n2b,
            "norm3_g": n3g, "norm3_b": n3b}


def init_params(key):
    ks = jax.random.split(key, 11)
    dng, dnb = _norm(HIDDEN)
    return {
        "action_head": init_linear(ks[0], HIDDEN, ACTION_DIM),
        "is_pad_head": init_linear(ks[1], HIDDEN, 1),
        "query_embed": 0.1 * jax.random.normal(ks[2], (NUM_QUERIES, HIDDEN), jnp.float32),
        "cls_embed": 0.1 * jax.random.normal(ks[3], (1, HIDDEN), jnp.float32),
        "encoder_action_proj": init_linear(ks[4], ACTION_DIM, HIDDEN),
        "latent_proj": init_linear(ks[5], HIDDEN, LATENT_DIM * 2),
        "latent_out_proj": init_linear(ks[6], LATENT_DIM, HIDDEN),
        "additional_pos_embed": 0.1 * jax.random.normal(
            ks[7], (2 + N_DEC_INPUTS, HIDDEN), jnp.float32),
        "pos_table": get_sinusoid_encoding_table(L_ENC, HIDDEN),
        "cvae_encoder": [init_enc_layer(ks[8], HIDDEN, DIM_FF)],
        "trans_encoder": [init_enc_layer(ks[9], HIDDEN, DIM_FF)],
        "trans_decoder": [init_dec_layer(ks[10], HIDDEN, DIM_FF)],
        "dec_norm_g": dng, "dec_norm_b": dnb,
    }


# ----------------------------- main -----------------------------
if __name__ == "__main__":
    key = jax.random.PRNGKey(0)
    kp, kl, kper, kt, ka, keps = jax.random.split(key, 6)

    params = init_params(kp)

    lowdim_encodings = jax.random.normal(kl, (BATCH, N_LOWDIM, HIDDEN), jnp.float32)
    perception_encodings = jax.random.normal(kper, (BATCH, N_PERCEPTION, HIDDEN), jnp.float32)
    task_emb = jax.random.normal(kt, (BATCH, HIDDEN), jnp.float32)
    actions = jax.random.normal(ka, (BATCH, NUM_QUERIES, ACTION_DIM), jnp.float32)
    is_pad = jnp.zeros((BATCH, NUM_QUERIES), dtype=bool).at[:, NUM_QUERIES - 2:].set(True)

    # training path (actions provided): CVAE encoder + reparametrize + transformer
    train_fwd = jax.jit(lambda p, ld, pc, te, ac, ip, k: detr_vae_forward(
        p, ld, pc, te, actions=ac, is_pad=ip, eps_key=k))
    a_hat, is_pad_hat, (mu, logvar) = train_fwd(
        params, lowdim_encodings, perception_encodings, task_emb, actions, is_pad, keps)
    jax.block_until_ready((a_hat, is_pad_hat, mu, logvar))

    assert a_hat.shape == (BATCH, NUM_QUERIES, ACTION_DIM)
    assert is_pad_hat.shape == (BATCH, NUM_QUERIES, 1)
    assert mu.shape == (BATCH, LATENT_DIM) and logvar.shape == (BATCH, LATENT_DIM)
    assert jnp.all(jnp.isfinite(a_hat)) and jnp.all(jnp.isfinite(is_pad_hat))
    assert jnp.all(jnp.isfinite(mu)) and jnp.all(jnp.isfinite(logvar))

    # inference path (actions=None): zero latent, no CVAE encoder, mu/logvar None
    eval_fwd = jax.jit(lambda p, ld, pc, te: detr_vae_forward(p, ld, pc, te))
    a_hat_e, is_pad_hat_e, (mu_e, logvar_e) = eval_fwd(
        params, lowdim_encodings, perception_encodings, task_emb)
    jax.block_until_ready((a_hat_e, is_pad_hat_e))
    assert a_hat_e.shape == (BATCH, NUM_QUERIES, ACTION_DIM)
    assert mu_e is None and logvar_e is None
    assert jnp.all(jnp.isfinite(a_hat_e)) and jnp.all(jnp.isfinite(is_pad_hat_e))

    print("KERNEL_OK")
</pallas_src>

<mosaic_0001>
module attributes {stable_mosaic.version = 11 : i64} {
  func.func @kernel(%arg0: i32, %arg1: memref<1x8xf32, #tpu.memory_space<vmem>>, %arg2: memref<32x8xf32, #tpu.memory_space<vmem>>, %arg3: memref<7x32xf32, #tpu.memory_space<vmem>>, %arg4: memref<1x32xf32, #tpu.memory_space<vmem>>, %arg5: memref<1x64xf32, #tpu.memory_space<vmem>>, %arg6: memref<32x64xf32, #tpu.memory_space<vmem>>, %arg7: memref<1x32xf32, #tpu.memory_space<vmem>>, %arg8: memref<64x32xf32, #tpu.memory_space<vmem>>, %arg9: memref<1x32xf32, #tpu.memory_space<vmem>>, %arg10: memref<1x32xf32, #tpu.memory_space<vmem>>, %arg11: memref<1x32xf32, #tpu.memory_space<vmem>>, %arg12: memref<1x32xf32, #tpu.memory_space<vmem>>, %arg13: memref<1x32xf32, #tpu.memory_space<vmem>>, %arg14: memref<1x96xf32, #tpu.memory_space<vmem>>, %arg15: memref<32x32xf32, #tpu.memory_space<vmem>>, %arg16: memref<32x96xf32, #tpu.memory_space<vmem>>, %arg17: memref<1x32xf32, #tpu.memory_space<vmem>>, %arg18: memref<1x32xf32, #tpu.memory_space<vmem>>, %arg19: memref<1x32xf32, #tpu.memory_space<vmem>>, %arg20: memref<8x32xf32, #tpu.memory_space<vmem>>, %arg21: memref<1x1xf32, #tpu.memory_space<vmem>>, %arg22: memref<32x1xf32, #tpu.memory_space<vmem>>, %arg23: memref<1x32xf32, #tpu.memory_space<vmem>>, %arg24: memref<32x32xf32, #tpu.memory_space<vmem>>, %arg25: memref<1x64xf32, #tpu.memory_space<vmem>>, %arg26: memref<32x64xf32, #tpu.memory_space<vmem>>, %arg27: memref<14x32xf32, #tpu.memory_space<vmem>>, %arg28: memref<8x32xf32, #tpu.memory_space<vmem>>, %arg29: memref<1x32xf32, #tpu.memory_space<vmem>>, %arg30: memref<1x96xf32, #tpu.memory_space<vmem>>, %arg31: memref<32x32xf32, #tpu.memory_space<vmem>>, %arg32: memref<32x96xf32, #tpu.memory_space<vmem>>, %arg33: memref<1x64xf32, #tpu.memory_space<vmem>>, %arg34: memref<32x64xf32, #tpu.memory_space<vmem>>, %arg35: memref<1x32xf32, #tpu.memory_space<vmem>>, %arg36: memref<64x32xf32, #tpu.memory_space<vmem>>, %arg37: memref<1x32xf32, #tpu.memory_space<vmem>>, %arg38: memref<1x32xf32, #tpu.memory_space<vmem>>, %arg39: memref<1x32xf32, #tpu.memory_space<vmem>>, %arg40: memref<1x32xf32, #tpu.memory_space<vmem>>, %arg41: memref<1x32xf32, #tpu.memory_space<vmem>>, %arg42: memref<1x32xf32, #tpu.memory_space<vmem>>, %arg43: memref<1x32xf32, #tpu.memory_space<vmem>>, %arg44: memref<1x96xf32, #tpu.memory_space<vmem>>, %arg45: memref<32x32xf32, #tpu.memory_space<vmem>>, %arg46: memref<32x96xf32, #tpu.memory_space<vmem>>, %arg47: memref<1x64xf32, #tpu.memory_space<vmem>>, %arg48: memref<32x64xf32, #tpu.memory_space<vmem>>, %arg49: memref<1x32xf32, #tpu.memory_space<vmem>>, %arg50: memref<64x32xf32, #tpu.memory_space<vmem>>, %arg51: memref<1x32xf32, #tpu.memory_space<vmem>>, %arg52: memref<1x32xf32, #tpu.memory_space<vmem>>, %arg53: memref<1x32xf32, #tpu.memory_space<vmem>>, %arg54: memref<1x32xf32, #tpu.memory_space<vmem>>, %arg55: memref<1x32xf32, #tpu.memory_space<vmem>>, %arg56: memref<1x96xf32, #tpu.memory_space<vmem>>, %arg57: memref<32x32xf32, #tpu.memory_space<vmem>>, %arg58: memref<32x96xf32, #tpu.memory_space<vmem>>, %arg59: memref<4x32xf32, #tpu.memory_space<vmem>>, %arg60: memref<1x2x32xf32, #tpu.memory_space<vmem>>, %arg61: memref<1x3x32xf32, #tpu.memory_space<vmem>>, %arg62: memref<1x1x32xf32, #tpu.memory_space<vmem>>, %arg63: memref<1x8x8xf32, #tpu.memory_space<vmem>>, %arg64: memref<1x1x14xf32, #tpu.memory_space<vmem>>, %arg65: memref<1x1x32xf32, #tpu.memory_space<vmem>>, %arg66: memref<1x8x8xf32, #tpu.memory_space<vmem>>, %arg67: memref<1x8x1xf32, #tpu.memory_space<vmem>>, %arg68: memref<1x1x32xf32, #tpu.memory_space<vmem>>, %arg69: memref<1x1x32xf32, #tpu.memory_space<vmem>>, %arg70: memref<14x32xf32, #tpu.memory_space<vmem>>, %arg71: memref<7x32xf32, #tpu.memory_space<vmem>>) attributes {dimension_semantics = [#tpu.dimension_semantics<parallel>], iteration_bounds = array<i64: 2>, scalar_prefetch = 0 : i64, scratch_operands = 2 : i64, tpu.core_type = #tpu.core_type<tc>, window_params = [{pipeline_mode = #tpu.pipeline_mode<synchronous>, transform_indices = @transform_0, window_bounds = array<i64: 1, 8>}, {pipeline_mode = #tpu.pipeline_mode<synchronous>, transform_indices = @transform_1, window_bounds = array<i64: 32, 8>}, {pipeline_mode = #tpu.pipeline_mode<synchronous>, transform_indices = @transform_2, window_bounds = array<i64: 7, 32>}, {pipeline_mode = #tpu.pipeline_mode<synchronous>, transform_indices = @transform_3, window_bounds = array<i64: 1, 32>}, {pipeline_mode = #tpu.pipeline_mode<synchronous>, transform_indices = @transform_4, window_bounds = array<i64: 1, 64>}, {pipeline_mode = #tpu.pipeline_mode<synchronous>, transform_indices = @transform_5, window_bounds = array<i64: 32, 64>}, {pipeline_mode = #tpu.pipeline_mode<synchronous>, transform_indices = @transform_6, window_bounds = array<i64: 1, 32>}, {pipeline_mode = #tpu.pipeline_mode<synchronous>, transform_indices = @transform_7, window_bounds = array<i64: 64, 32>}, {pipeline_mode = #tpu.pipeline_mode<synchronous>, transform_indices = @transform_8, window_bounds = array<i64: 1, 32>}, {pipeline_mode = #tpu.pipeline_mode<synchronous>, transform_indices = @transform_9, window_bounds = array<i64: 1, 32>}, {pipeline_mode = #tpu.pipeline_mode<synchronous>, transform_indices = @transform_10, window_bounds = array<i64: 1, 32>}, {pipeline_mode = #tpu.pipeline_mode<synchronous>, transform_indices = @transform_11, window_bounds = array<i64: 1, 32>}, {pipeline_mode = #tpu.pipeline_mode<synchronous>, transform_indices = @transform_12, window_bounds = array<i64: 1, 32>}, {pipeline_mode = #tpu.pipeline_mode<synchronous>, transform_indices = @transform_13, window_bounds = array<i64: 1, 96>}, {pipeline_mode = #tpu.pipeline_mode<synchronous>, transform_indices = @transform_14, window_bounds = array<i64: 32, 32>}, {pipeline_mode = #tpu.pipeline_mode<synchronous>, transform_indices = @transform_15, window_bounds = array<i64: 32, 96>}, {pipeline_mode = #tpu.pipeline_mode<synchronous>, transform_indices = @transform_16, window_bounds = array<i64: 1, 32>}, {pipeline_mode = #tpu.pipeline_mode<synchronous>, transform_indices = @transform_17, window_bounds = array<i64: 1, 32>}, {pipeline_mode = #tpu.pipeline_mode<synchronous>, transform_indices = @transform_18, window_bounds = array<i64: 1, 32>}, {pipeline_mode = #tpu.pipeline_mode<synchronous>, transform_indices = @transform_19, window_bounds = array<i64: 8, 32>}, {pipeline_mode = #tpu.pipeline_mode<synchronous>, transform_indices = @transform_20, window_bounds = array<i64: 1, 1>}, {pipeline_mode = #tpu.pipeline_mode<synchronous>, transform_indices = @transform_21, window_bounds = array<i64: 32, 1>}, {pipeline_mode = #tpu.pipeline_mode<synchronous>, transform_indices = @transform_22, window_bounds = array<i64: 1, 32>}, {pipeline_mode = #tpu.pipeline_mode<synchronous>, transform_indices = @transform_23, window_bounds = array<i64: 32, 32>}, {pipeline_mode = #tpu.pipeline_mode<synchronous>, transform_indices = @transform_24, window_bounds = array<i64: 1, 64>}, {pipeline_mode = #tpu.pipeline_mode<synchronous>, transform_indices = @transform_25, window_bounds = array<i64: 32, 64>}, {pipeline_mode = #tpu.pipeline_mode<synchronous>, transform_indices = @transform_26, window_bounds = array<i64: 14, 32>}, {pipeline_mode = #tpu.pipeline_mode<synchronous>, transform_indices = @transform_27, window_bounds = array<i64: 8, 32>}, {pipeline_mode = #tpu.pipeline_mode<synchronous>, transform_indices = @transform_28, window_bounds = array<i64: 1, 32>}, {pipeline_mode = #tpu.pipeline_mode<synchronous>, transform_indices = @transform_29, window_bounds = array<i64: 1, 96>}, {pipeline_mode = #tpu.pipeline_mode<synchronous>, transform_indices = @transform_30, window_bounds = array<i64: 32, 32>}, {pipeline_mode = #tpu.pipeline_mode<synchronous>, transform_indices = @transform_31, window_bounds = array<i64: 32, 96>}, {pipeline_mode = #tpu.pipeline_mode<synchronous>, transform_indices = @transform_32, window_bounds = array<i64: 1, 64>}, {pipeline_mode = #tpu.pipeline_mode<synchronous>, transform_indices = @transform_33, window_bounds = array<i64: 32, 64>}, {pipeline_mode = #tpu.pipeline_mode<synchronous>, transform_indices = @transform_34, window_bounds = array<i64: 1, 32>}, {pipeline_mode = #tpu.pipeline_mode<synchronous>, transform_indices = @transform_35, window_bounds = array<i64: 64, 32>}, {pipeline_mode = #tpu.pipeline_mode<synchronous>, transform_indices = @transform_36, window_bounds = array<i64: 1, 32>}, {pipeline_mode = #tpu.pipeline_mode<synchronous>, transform_indices = @transform_37, window_bounds = array<i64: 1, 32>}, {pipeline_mode = #tpu.pipeline_mode<synchronous>, transform_indices = @transform_38, window_bounds = array<i64: 1, 32>}, {pipeline_mode = #tpu.pipeline_mode<synchronous>, transform_indices = @transform_39, window_bounds = array<i64: 1, 32>}, {pipeline_mode = #tpu.pipeline_mode<synchronous>, transform_indices = @transform_40, window_bounds = array<i64: 1, 32>}, {pipeline_mode = #tpu.pipeline_mode<synchronous>, transform_indices = @transform_41, window_bounds = array<i64: 1, 32>}, {pipeline_mode = #tpu.pipeline_mode<synchronous>, transform_indices = @transform_42, window_bounds = array<i64: 1, 32>}, {pipeline_mode = #tpu.pipeline_mode<synchronous>, transform_indices = @transform_43, window_bounds = array<i64: 1, 96>}, {pipeline_mode = #tpu.pipeline_mode<synchronous>, transform_indices = @transform_44, window_bounds = array<i64: 32, 32>}, {pipeline_mode = #tpu.pipeline_mode<synchronous>, transform_indices = @transform_45, window_bounds = array<i64: 32, 96>}, {pipeline_mode = #tpu.pipeline_mode<synchronous>, transform_indices = @transform_46, window_bounds = array<i64: 1, 64>}, {pipeline_mode = #tpu.pipeline_mode<synchronous>, transform_indices = @transform_47, window_bounds = array<i64: 32, 64>}, {pipeline_mode = #tpu.pipeline_mode<synchronous>, transform_indices = @transform_48, window_bounds = array<i64: 1, 32>}, {pipeline_mode = #tpu.pipeline_mode<synchronous>, transform_indices = @transform_49, window_bounds = array<i64: 64, 32>}, {pipeline_mode = #tpu.pipeline_mode<synchronous>, transform_indices = @transform_50, window_bounds = array<i64: 1, 32>}, {pipeline_mode = #tpu.pipeline_mode<synchronous>, transform_indices = @transform_51, window_bounds = array<i64: 1, 32>}, {pipeline_mode = #tpu.pipeline_mode<synchronous>, transform_indices = @transform_52, window_bounds = array<i64: 1, 32>}, {pipeline_mode = #tpu.pipeline_mode<synchronous>, transform_indices = @transform_53, window_bounds = array<i64: 1, 32>}, {pipeline_mode = #tpu.pipeline_mode<synchronous>, transform_indices = @transform_54, window_bounds = array<i64: 1, 32>}, {pipeline_mode = #tpu.pipeline_mode<synchronous>, transform_indices = @transform_55, window_bounds = array<i64: 1, 96>}, {pipeline_mode = #tpu.pipeline_mode<synchronous>, transform_indices = @transform_56, window_bounds = array<i64: 32, 32>}, {pipeline_mode = #tpu.pipeline_mode<synchronous>, transform_indices = @transform_57, window_bounds = array<i64: 32, 96>}, {pipeline_mode = #tpu.pipeline_mode<synchronous>, transform_indices = @transform_58, window_bounds = array<i64: 4, 32>}, {transform_indices = @transform_59, window_bounds = array<i64: 1, 2, 32>}, {transform_indices = @transform_60, window_bounds = array<i64: 1, 3, 32>}, {transform_indices = @transform_61, window_bounds = array<i64: 1, 1, 32>}, {transform_indices = @transform_62, window_bounds = array<i64: 1, 8, 8>}, {transform_indices = @transform_63, window_bounds = array<i64: 1, 1, 14>}, {transform_indices = @transform_64, window_bounds = array<i64: 1, 1, 32>}, {transform_indices = @transform_65, window_bounds = array<i64: 1, 8, 8>}, {transform_indices = @transform_66, window_bounds = array<i64: 1, 8, 1>}, {transform_indices = @transform_67, window_bounds = array<i64: 1, 1, 32>}, {transform_indices = @transform_68, window_bounds = array<i64: 1, 1, 32>}]} {
    %c0 = arith.constant 0 : index
    %c0_0 = arith.constant 0 : index
    %c0_1 = arith.constant 0 : index
    %0 = vector.load %arg60[%c0, %c0_0, %c0_1] : memref<1x2x32xf32, #tpu.memory_space<vmem>>, vector<1x2x32xf32>
    %1 = vector.shape_cast %0 : vector<1x2x32xf32> to vector<2x32xf32>
    %c0_2 = arith.constant 0 : index
    %c0_3 = arith.constant 0 : index
    %c0_4 = arith.constant 0 : index
    %2 = vector.load %arg61[%c0_2, %c0_3, %c0_4] : memref<1x3x32xf32, #tpu.memory_space<vmem>>, vector<1x3x32xf32>
    %3 = vector.shape_cast %2 : vector<1x3x32xf32> to vector<3x32xf32>
    %c0_5 = arith.constant 0 : index
    %c0_6 = arith.constant 0 : index
    %c0_7 = arith.constant 0 : index
    %4 = vector.load %arg62[%c0_5, %c0_6, %c0_7] : memref<1x1x32xf32, #tpu.memory_space<vmem>>, vector<1x1x32xf32>
    %5 = vector.shape_cast %4 : vector<1x1x32xf32> to vector<1x32xf32>
    %c0_8 = arith.constant 0 : index
    %c0_9 = arith.constant 0 : index
    %c0_10 = arith.constant 0 : index
    %6 = vector.load %arg63[%c0_8, %c0_9, %c0_10] : memref<1x8x8xf32, #tpu.memory_space<vmem>>, vector<1x8x8xf32>
    %7 = vector.shape_cast %6 : vector<1x8x8xf32> to vector<8x8xf32>
    %c0_11 = arith.constant 0 : index
    %c0_12 = arith.constant 0 : index
    %8 = vector.load %arg20[%c0_11, %c0_12] : memref<8x32xf32, #tpu.memory_space<vmem>>, vector<8x32xf32>
    %cst = arith.constant dense<0.000000e+00> : vector<8x32xf32>
    %9 = tpu.matmul %7, %8, %cst {dimension_numbers = #tpu.dot_dimension_numbers<[1], [0], [0], [1], [0, 0, 1, 1], [], []>} : vector<8x8xf32>, vector<8x32xf32>, vector<8x32xf32> -> vector<8x32xf32>
    %c0_13 = arith.constant 0 : index
    %c0_14 = arith.constant 0 : index
    %10 = vector.load %arg19[%c0_13, %c0_14] : memref<1x32xf32, #tpu.memory_space<vmem>>, vector<1x32xf32>
    %11 = vector.broadcast %10 : vector<1x32xf32> to vector<8x32xf32>
    %12 = arith.addf %9, %11 : vector<8x32xf32>
    %c0_15 = arith.constant 0 : index
    %c0_16 = arith.constant 0 : index
    %13 = vector.load %arg4[%c0_15, %c0_16] : memref<1x32xf32, #tpu.memory_space<vmem>>, vector<1x32xf32>
    %c0_17 = arith.constant 0 : index
    %c0_18 = arith.constant 0 : index
    %14 = vector.load %arg70[%c0_17, %c0_18] : memref<14x32xf32, #tpu.memory_space<vmem>>, vector<1x32xf32>
    tpu.vector_store %arg70[%c0_17, %c0_18], %13 {strides = array<i32>} : memref<14x32xf32, #tpu.memory_space<vmem>>, vector<1x32xf32>,
    %c1 = arith.constant 1 : index
    %c0_19 = arith.constant 0 : index
    %15 = vector.load %arg70[%c1, %c0_19] : memref<14x32xf32, #tpu.memory_space<vmem>>, vector<2x32xf32>
    tpu.vector_store %arg70[%c1, %c0_19], %1 {strides = array<i32>} : memref<14x32xf32, #tpu.memory_space<vmem>>, vector<2x32xf32>,
    %c3 = arith.constant 3 : index
    %c0_20 = arith.constant 0 : index
    %16 = vector.load %arg70[%c3, %c0_20] : memref<14x32xf32, #tpu.memory_space<vmem>>, vector<3x32xf32>
    tpu.vector_store %arg70[%c3, %c0_20], %3 {strides = array<i32>} : memref<14x32xf32, #tpu.memory_space<vmem>>, vector<3x32xf32>,
    %c6 = arith.constant 6 : index
    %c0_21 = arith.constant 0 : index
    %17 = vector.load %arg70[%c6, %c0_21] : memref<14x32xf32, #tpu.memory_space<vmem>>, vector<8x32xf32>
    tpu.vector_store %arg70[%c6, %c0_21], %12 {strides = array<i32>} : memref<14x32xf32, #tpu.memory_space<vmem>>, vector<8x32xf32>,
    %c0_22 = arith.constant 0 : index
    %c0_23 = arith.constant 0 : index
    %18 = vector.load %arg70[%c0_22, %c0_23] : memref<14x32xf32, #tpu.memory_space<vmem>>, vector<14x32xf32>
    %c0_24 = arith.constant 0 : index
    %c0_25 = arith.constant 0 : index
    %19 = vector.load %arg27[%c0_24, %c0_25] : memref<14x32xf32, #tpu.memory_space<vmem>>, vector<14x32xf32>
    %c0_26 = arith.constant 0 : index
    %c0_27 = arith.constant 0 : index
    %c0_28 = arith.constant 0 : index
    %20 = vector.load %arg64[%c0_26, %c0_27, %c0_28] : memref<1x1x14xf32, #tpu.memory_space<vmem>>, vector<1x1x14xf32>
    %21 = vector.shape_cast %20 : vector<1x1x14xf32> to vector<1x14xf32>
    %22 = arith.addf %18, %19 : vector<14x32xf32>
    %c0_29 = arith.constant 0 : index
    %c0_30 = arith.constant 0 : index
    %23 = vector.load %arg16[%c0_29, %c0_30] : memref<32x96xf32, #tpu.memory_space<vmem>>, vector<32x96xf32>
    %c0_31 = arith.constant 0 : index
    %c0_32 = arith.constant 0 : index
    %24 = vector.load %arg14[%c0_31, %c0_32] : memref<1x96xf32, #tpu.memory_space<vmem>>, vector<1x96xf32>
    %25 = vector.extract_strided_slice %23 {offsets = [0, 0], sizes = [32, 64], strides = [1, 1]} : vector<32x96xf32> to vector<32x64xf32>
    %cst_33 = arith.constant dense<0.000000e+00> : vector<14x64xf32>
    %26 = tpu.matmul %22, %25, %cst_33 {dimension_numbers = #tpu.dot_dimension_numbers<[1], [0], [0], [1], [0, 0, 1, 1], [], []>} : vector<14x32xf32>, vector<32x64xf32>, vector<14x64xf32> -> vector<14x64xf32>
    %27 = vector.extract_strided_slice %24 {offsets = [0, 0], sizes = [1, 64], strides = [1, 1]} : vector<1x96xf32> to vector<1x64xf32>
    %28 = vector.broadcast %27 : vector<1x64xf32> to vector<14x64xf32>
    %29 = arith.addf %26, %28 : vector<14x64xf32>
    %30 = vector.extract_strided_slice %29 {offsets = [0, 0], sizes = [14, 32], strides = [1, 1]} : vector<14x64xf32> to vector<14x32xf32>
    %31 = vector.extract_strided_slice %29 {offsets = [0, 32], sizes = [14, 32], strides = [1, 1]} : vector<14x64xf32> to vector<14x32xf32>
    %32 = vector.extract_strided_slice %23 {offsets = [0, 64], sizes = [32, 32], strides = [1, 1]} : vector<32x96xf32> to vector<32x32xf32>
    %cst_34 = arith.constant dense<0.000000e+00> : vector<14x32xf32>
    %33 = tpu.matmul %18, %32, %cst_34 {dimension_numbers = #tpu.dot_dimension_numbers<[1], [0], [0], [1], [0, 0, 1, 1], [], []>} : vector<14x32xf32>, vector<32x32xf32>, vector<14x32xf32> -> vector<14x32xf32>
    %34 = vector.extract_strided_slice %24 {offsets = [0, 64], sizes = [1, 32], strides = [1, 1]} : vector<1x96xf32> to vector<1x32xf32>
    %35 = vector.broadcast %34 : vector<1x32xf32> to vector<14x32xf32>
    %36 = arith.addf %33, %35 : vector<14x32xf32>
    %cst_35 = arith.constant 0.353553385 : f32
    %37 = vector.broadcast %cst_35 : f32 to vector<14x32xf32>
    %38 = arith.mulf %30, %37 : vector<14x32xf32>
    %cst_36 = arith.constant 0.000000e+00 : f32
    %39 = vector.broadcast %cst_36 : f32 to vector<14x32xf32>
    %c0_37 = arith.constant 0 : index
    %c0_38 = arith.constant 0 : index
    %40 = vector.load %arg59[%c0_37, %c0_38] : memref<4x32xf32, #tpu.memory_space<vmem>>, vector<1x32xf32>
    %41 = vector.broadcast %40 : vector<1x32xf32> to vector<14x32xf32>
    %42 = arith.mulf %38, %41 : vector<14x32xf32>
    %43 = tpu.transpose %31, [1, 0] : vector<14x32xf32> -> vector<32x14xf32>
    %cst_39 = arith.constant dense<0.000000e+00> : vector<14x14xf32>
    %44 = tpu.matmul %42, %43, %cst_39 {dimension_numbers = #tpu.dot_dimension_numbers<[1], [0], [0], [1], [0, 0, 1, 1], [], []>} : vector<14x32xf32>, vector<32x14xf32>, vector<14x14xf32> -> vector<14x14xf32>
    %45 = vector.broadcast %21 : vector<1x14xf32> to vector<14x14xf32>
    %46 = arith.addf %44, %45 : vector<14x14xf32>
    %cst_40 = arith.constant dense<0xFF800000> : vector<14xf32>
    %47 = vector.multi_reduction <maximumf>, %46, %cst_40 [1] : vector<14x14xf32> to vector<14xf32>
    %48 = vector.shape_cast %47 : vector<14xf32> to vector<14x1xf32>
    %49 = vector.broadcast %48 : vector<14x1xf32> to vector<14x14xf32>
    %50 = arith.subf %46, %49 : vector<14x14xf32>
    %51 = math.exp %50 : vector<14x14xf32>
    %cst_41 = arith.constant dense<0.000000e+00> : vector<14xf32>
    %52 = vector.multi_reduction <add>, %51, %cst_41 [1] : vector<14x14xf32> to vector<14xf32>
    %53 = vector.shape_cast %52 : vector<14xf32> to vector<14x1xf32>
    %54 = vector.broadcast %53 : vector<14x1xf32> to vector<14x14xf32>
    %55 = arith.divf %51, %54 : vector<14x14xf32>
    %56 = vector.broadcast %40 : vector<1x32xf32> to vector<14x32xf32>
    %57 = arith.mulf %36, %56 : vector<14x32xf32>
    %cst_42 = arith.constant dense<0.000000e+00> : vector<14x32xf32>
    %58 = tpu.matmul %55, %57, %cst_42 {dimension_numbers = #tpu.dot_dimension_numbers<[1], [0], [0], [1], [0, 0, 1, 1], [], []>} : vector<14x14xf32>, vector<14x32xf32>, vector<14x32xf32> -> vector<14x32xf32>
    %59 = arith.addf %39, %58 : vector<14x32xf32>
    %c1_43 = arith.constant 1 : index
    %c0_44 = arith.constant 0 : index
    %60 = vector.load %arg59[%c1_43, %c0_44] : memref<4x32xf32, #tpu.memory_space<vmem>>, vector<1x32xf32>
    %61 = vector.broadcast %60 : vector<1x32xf32> to vector<14x32xf32>
    %62 = arith.mulf %38, %61 : vector<14x32xf32>
    %63 = tpu.transpose %31, [1, 0] : vector<14x32xf32> -> vector<32x14xf32>
    %cst_45 = arith.constant dense<0.000000e+00> : vector<14x14xf32>
    %64 = tpu.matmul %62, %63, %cst_45 {dimension_numbers = #tpu.dot_dimension_numbers<[1], [0], [0], [1], [0, 0, 1, 1], [], []>} : vector<14x32xf32>, vector<32x14xf32>, vector<14x14xf32> -> vector<14x14xf32>
    %65 = vector.broadcast %21 : vector<1x14xf32> to vector<14x14xf32>
    %66 = arith.addf %64, %65 : vector<14x14xf32>
    %cst_46 = arith.constant dense<0xFF800000> : vector<14xf32>
    %67 = vector.multi_reduction <maximumf>, %66, %cst_46 [1] : vector<14x14xf32> to vector<14xf32>
    %68 = vector.shape_cast %67 : vector<14xf32> to vector<14x1xf32>
    %69 = vector.broadcast %68 : vector<14x1xf32> to vector<14x14xf32>
    %70 = arith.subf %66, %69 : vector<14x14xf32>
    %71 = math.exp %70 : vector<14x14xf32>
    %cst_47 = arith.constant dense<0.000000e+00> : vector<14xf32>
    %72 = vector.multi_reduction <add>, %71, %cst_47 [1] : vector<14x14xf32> to vector<14xf32>
    %73 = vector.shape_cast %72 : vector<14xf32> to vector<14x1xf32>
    %74 = vector.broadcast %73 : vector<14x1xf32> to vector<14x14xf32>
    %75 = arith.divf %71, %74 : vector<14x14xf32>
    %76 = vector.broadcast %60 : vector<1x32xf32> to vector<14x32xf32>
    %77 = arith.mulf %36, %76 : vector<14x32xf32>
    %cst_48 = arith.constant dense<0.000000e+00> : vector<14x32xf32>
    %78 = tpu.matmul %75, %77, %cst_48 {dimension_numbers = #tpu.dot_dimension_numbers<[1], [0], [0], [1], [0, 0, 1, 1], [], []>} : vector<14x14xf32>, vector<14x32xf32>, vector<14x32xf32> -> vector<14x32xf32>
    %79 = arith.addf %59, %78 : vector<14x32xf32>
    %c2 = arith.constant 2 : index
    %c0_49 = arith.constant 0 : index
    %80 = vector.load %arg59[%c2, %c0_49] : memref<4x32xf32, #tpu.memory_space<vmem>>, vector<1x32xf32>
    %81 = vector.broadcast %80 : vector<1x32xf32> to vector<14x32xf32>
    %82 = arith.mulf %38, %81 : vector<14x32xf32>
    %83 = tpu.transpose %31, [1, 0] : vector<14x32xf32> -> vector<32x14xf32>
    %cst_50 = arith.constant dense<0.000000e+00> : vector<14x14xf32>
    %84 = tpu.matmul %82, %83, %cst_50 {dimension_numbers = #tpu.dot_dimension_numbers<[1], [0], [0], [1], [0, 0, 1, 1], [], []>} : vector<14x32xf32>, vector<32x14xf32>, vector<14x14xf32> -> vector<14x14xf32>
    %85 = vector.broadcast %21 : vector<1x14xf32> to vector<14x14xf32>
    %86 = arith.addf %84, %85 : vector<14x14xf32>
    %cst_51 = arith.constant dense<0xFF800000> : vector<14xf32>
    %87 = vector.multi_reduction <maximumf>, %86, %cst_51 [1] : vector<14x14xf32> to vector<14xf32>
    %88 = vector.shape_cast %87 : vector<14xf32> to vector<14x1xf32>
    %89 = vector.broadcast %88 : vector<14x1xf32> to vector<14x14xf32>
    %90 = arith.subf %86, %89 : vector<14x14xf32>
    %91 = math.exp %90 : vector<14x14xf32>
    %cst_52 = arith.constant dense<0.000000e+00> : vector<14xf32>
    %92 = vector.multi_reduction <add>, %91, %cst_52 [1] : vector<14x14xf32> to vector<14xf32>
    %93 = vector.shape_cast %92 : vector<14xf32> to vector<14x1xf32>
    %94 = vector.broadcast %93 : vector<14x1xf32> to vector<14x14xf32>
    %95 = arith.divf %91, %94 : vector<14x14xf32>
    %96 = vector.broadcast %80 : vector<1x32xf32> to vector<14x32xf32>
    %97 = arith.mulf %36, %96 : vector<14x32xf32>
    %cst_53 = arith.constant dense<0.000000e+00> : vector<14x32xf32>
    %98 = tpu.matmul %95, %97, %cst_53 {dimension_numbers = #tpu.dot_dimension_numbers<[1], [0], [0], [1], [0, 0, 1, 1], [], []>} : vector<14x14xf32>, vector<14x32xf32>, vector<14x32xf32> -> vector<14x32xf32>
    %99 = arith.addf %79, %98 : vector<14x32xf32>
    %c3_54 = arith.constant 3 : index
    %c0_55 = arith.constant 0 : index
    %100 = vector.load %arg59[%c3_54, %c0_55] : memref<4x32xf32, #tpu.memory_space<vmem>>, vector<1x32xf32>
    %101 = vector.broadcast %100 : vector<1x32xf32> to vector<14x32xf32>
    %102 = arith.mulf %38, %101 : vector<14x32xf32>
    %103 = tpu.transpose %31, [1, 0] : vector<14x32xf32> -> vector<32x14xf32>
    %cst_56 = arith.constant dense<0.000000e+00> : vector<14x14xf32>
    %104 = tpu.matmul %102, %103, %cst_56 {dimension_numbers = #tpu.dot_dimension_numbers<[1], [0], [0], [1], [0, 0, 1, 1], [], []>} : vector<14x32xf32>, vector<32x14xf32>, vector<14x14xf32> -> vector<14x14xf32>
    %105 = vector.broadcast %21 : vector<1x14xf32> to vector<14x14xf32>
    %106 = arith.addf %104, %105 : vector<14x14xf32>
    %cst_57 = arith.constant dense<0xFF800000> : vector<14xf32>
    %107 = vector.multi_reduction <maximumf>, %106, %cst_57 [1] : vector<14x14xf32> to vector<14xf32>
    %108 = vector.shape_cast %107 : vector<14xf32> to vector<14x1xf32>
    %109 = vector.broadcast %108 : vector<14x1xf32> to vector<14x14xf32>
    %110 = arith.subf %106, %109 : vector<14x14xf32>
    %111 = math.exp %110 : vector<14x14xf32>
    %cst_58 = arith.constant dense<0.000000e+00> : vector<14xf32>
    %112 = vector.multi_reduction <add>, %111, %cst_58 [1] : vector<14x14xf32> to vector<14xf32>
    %113 = vector.shape_cast %112 : vector<14xf32> to vector<14x1xf32>
    %114 = vector.broadcast %113 : vector<14x1xf32> to vector<14x14xf32>
    %115 = arith.divf %111, %114 : vector<14x14xf32>
    %116 = vector.broadcast %100 : vector<1x32xf32> to vector<14x32xf32>
    %117 = arith.mulf %36, %116 : vector<14x32xf32>
    %cst_59 = arith.constant dense<0.000000e+00> : vector<14x32xf32>
    %118 = tpu.matmul %115, %117, %cst_59 {dimension_numbers = #tpu.dot_dimension_numbers<[1], [0], [0], [1], [0, 0, 1, 1], [], []>} : vector<14x14xf32>, vector<14x32xf32>, vector<14x32xf32> -> vector<14x32xf32>
    %119 = arith.addf %99, %118 : vector<14x32xf32>
    %c0_60 = arith.constant 0 : index
    %c0_61 = arith.constant 0 : index
    %120 = vector.load %arg15[%c0_60, %c0_61] : memref<32x32xf32, #tpu.memory_space<vmem>>, vector<32x32xf32>
    %cst_62 = arith.constant dense<0.000000e+00> : vector<14x32xf32>
    %121 = tpu.matmul %119, %120, %cst_62 {dimension_numbers = #tpu.dot_dimension_numbers<[1], [0], [0], [1], [0, 0, 1, 1], [], []>} : vector<14x32xf32>, vector<32x32xf32>, vector<14x32xf32> -> vector<14x32xf32>
    %c0_63 = arith.constant 0 : index
    %c0_64 = arith.constant 0 : index
    %122 = vector.load %arg13[%c0_63, %c0_64] : memref<1x32xf32, #tpu.memory_space<vmem>>, vector<1x32xf32>
    %123 = vector.broadcast %122 : vector<1x32xf32> to vector<14x32xf32>
    %124 = arith.addf %121, %123 : vector<14x32xf32>
    %125 = arith.addf %18, %124 : vector<14x32xf32>
    %cst_65 = arith.constant dense<0.000000e+00> : vector<14xf32>
    %126 = vector.multi_reduction <add>, %125, %cst_65 [1] : vector<14x32xf32> to vector<14xf32>
    %127 = vector.shape_cast %126 : vector<14xf32> to vector<14x1xf32>
    %cst_66 = arith.constant 3.200000e+01 : f32
    %128 = vector.broadcast %cst_66 : f32 to vector<14x1xf32>
    %129 = arith.divf %127, %128 : vector<14x1xf32>
    %130 = vector.broadcast %129 : vector<14x1xf32> to vector<14x32xf32>
    %131 = arith.subf %125, %130 : vector<14x32xf32>
    %132 = arith.mulf %131, %131 : vector<14x32xf32>
    %cst_67 = arith.constant dense<0.000000e+00> : vector<14xf32>
    %133 = vector.multi_reduction <add>, %132, %cst_67 [1] : vector<14x32xf32> to vector<14xf32>
    %134 = vector.shape_cast %133 : vector<14xf32> to vector<14x1xf32>
    %cst_68 = arith.constant 3.200000e+01 : f32
    %135 = vector.broadcast %cst_68 : f32 to vector<14x1xf32>
    %136 = arith.divf %134, %135 : vector<14x1xf32>
    %cst_69 = arith.constant 9.99999974E-6 : f32
    %137 = vector.broadcast %cst_69 : f32 to vector<14x1xf32>
    %138 = arith.addf %136, %137 : vector<14x1xf32>
    %139 = math.rsqrt %138 : vector<14x1xf32>
    %140 = vector.broadcast %139 : vector<14x1xf32> to vector<14x32xf32>
    %141 = arith.mulf %131, %140 : vector<14x32xf32>
    %c0_70 = arith.constant 0 : index
    %c0_71 = arith.constant 0 : index
    %142 = vector.load %arg10[%c0_70, %c0_71] : memref<1x32xf32, #tpu.memory_space<vmem>>, vector<1x32xf32>
    %143 = vector.broadcast %142 : vector<1x32xf32> to vector<14x32xf32>
    %144 = arith.mulf %141, %143 : vector<14x32xf32>
    %c0_72 = arith.constant 0 : index
    %c0_73 = arith.constant 0 : index
    %145 = vector.load %arg9[%c0_72, %c0_73] : memref<1x32xf32, #tpu.memory_space<vmem>>, vector<1x32xf32>
    %146 = vector.broadcast %145 : vector<1x32xf32> to vector<14x32xf32>
    %147 = arith.addf %144, %146 : vector<14x32xf32>
    %c0_74 = arith.constant 0 : index
    %c0_75 = arith.constant 0 : index
    %148 = vector.load %arg6[%c0_74, %c0_75] : memref<32x64xf32, #tpu.memory_space<vmem>>, vector<32x64xf32>
    %cst_76 = arith.constant dense<0.000000e+00> : vector<14x64xf32>
    %149 = tpu.matmul %147, %148, %cst_76 {dimension_numbers = #tpu.dot_dimension_numbers<[1], [0], [0], [1], [0, 0, 1, 1], [], []>} : vector<14x32xf32>, vector<32x64xf32>, vector<14x64xf32> -> vector<14x64xf32>
    %c0_77 = arith.constant 0 : index
    %c0_78 = arith.constant 0 : index
    %150 = vector.load %arg5[%c0_77, %c0_78] : memref<1x64xf32, #tpu.memory_space<vmem>>, vector<1x64xf32>
    %151 = vector.broadcast %150 : vector<1x64xf32> to vector<14x64xf32>
    %152 = arith.addf %149, %151 : vector<14x64xf32>
    %cst_79 = arith.constant 0.000000e+00 : f32
    %153 = vector.broadcast %cst_79 : f32 to vector<14x64xf32>
    %154 = arith.maximumf %152, %153 : vector<14x64xf32>
    %c0_80 = arith.constant 0 : index
    %c0_81 = arith.constant 0 : index
    %155 = vector.load %arg8[%c0_80, %c0_81] : memref<64x32xf32, #tpu.memory_space<vmem>>, vector<64x32xf32>
    %cst_82 = arith.constant dense<0.000000e+00> : vector<14x32xf32>
    %156 = tpu.matmul %154, %155, %cst_82 {dimension_numbers = #tpu.dot_dimension_numbers<[1], [0], [0], [1], [0, 0, 1, 1], [], []>} : vector<14x64xf32>, vector<64x32xf32>, vector<14x32xf32> -> vector<14x32xf32>
    %c0_83 = arith.constant 0 : index
    %c0_84 = arith.constant 0 : index
    %157 = vector.load %arg7[%c0_83, %c0_84] : memref<1x32xf32, #tpu.memory_space<vmem>>, vector<1x32xf32>
    %158 = vector.broadcast %157 : vector<1x32xf32> to vector<14x32xf32>
    %159 = arith.addf %156, %158 : vector<14x32xf32>
    %160 = arith.addf %147, %159 : vector<14x32xf32>
    %cst_85 = arith.constant dense<0.000000e+00> : vector<14xf32>
    %161 = vector.multi_reduction <add>, %160, %cst_85 [1] : vector<14x32xf32> to vector<14xf32>
    %162 = vector.shape_cast %161 : vector<14xf32> to vector<14x1xf32>
    %cst_86 = arith.constant 3.200000e+01 : f32
    %163 = vector.broadcast %cst_86 : f32 to vector<14x1xf32>
    %164 = arith.divf %162, %163 : vector<14x1xf32>
    %165 = vector.broadcast %164 : vector<14x1xf32> to vector<14x32xf32>
    %166 = arith.subf %160, %165 : vector<14x32xf32>
    %167 = arith.mulf %166, %166 : vector<14x32xf32>
    %cst_87 = arith.constant dense<0.000000e+00> : vector<14xf32>
    %168 = vector.multi_reduction <add>, %167, %cst_87 [1] : vector<14x32xf32> to vector<14xf32>
    %169 = vector.shape_cast %168 : vector<14xf32> to vector<14x1xf32>
    %cst_88 = arith.constant 3.200000e+01 : f32
    %170 = vector.broadcast %cst_88 : f32 to vector<14x1xf32>
    %171 = arith.divf %169, %170 : vector<14x1xf32>
    %cst_89 = arith.constant 9.99999974E-6 : f32
    %172 = vector.broadcast %cst_89 : f32 to vector<14x1xf32>
    %173 = arith.addf %171, %172 : vector<14x1xf32>
    %174 = math.rsqrt %173 : vector<14x1xf32>
    %175 = vector.broadcast %174 : vector<14x1xf32> to vector<14x32xf32>
    %176 = arith.mulf %166, %175 : vector<14x32xf32>
    %c0_90 = arith.constant 0 : index
    %c0_91 = arith.constant 0 : index
    %177 = vector.load %arg12[%c0_90, %c0_91] : memref<1x32xf32, #tpu.memory_space<vmem>>, vector<1x32xf32>
    %178 = vector.broadcast %177 : vector<1x32xf32> to vector<14x32xf32>
    %179 = arith.mulf %176, %178 : vector<14x32xf32>
    %c0_92 = arith.constant 0 : index
    %c0_93 = arith.constant 0 : index
    %180 = vector.load %arg11[%c0_92, %c0_93] : memref<1x32xf32, #tpu.memory_space<vmem>>, vector<1x32xf32>
    %181 = vector.broadcast %180 : vector<1x32xf32> to vector<14x32xf32>
    %182 = arith.addf %179, %181 : vector<14x32xf32>
    %183 = vector.extract_strided_slice %182 {offsets = [0, 0], sizes = [1, 32], strides = [1, 1]} : vector<14x32xf32> to vector<1x32xf32>
    %c0_94 = arith.constant 0 : index
    %c0_95 = arith.constant 0 : index
    %184 = vector.load %arg26[%c0_94, %c0_95] : memref<32x64xf32, #tpu.memory_space<vmem>>, vector<32x64xf32>
    %cst_96 = arith.constant dense<0.000000e+00> : vector<1x64xf32>
    %185 = tpu.matmul %183, %184, %cst_96 {dimension_numbers = #tpu.dot_dimension_numbers<[1], [0], [0], [1], [0, 0, 1, 1], [], []>} : vector<1x32xf32>, vector<32x64xf32>, vector<1x64xf32> -> vector<1x64xf32>
    %c0_97 = arith.constant 0 : index
    %c0_98 = arith.constant 0 : index
    %186 = vector.load %arg25[%c0_97, %c0_98] : memref<1x64xf32, #tpu.memory_space<vmem>>, vector<1x64xf32>
    %187 = arith.addf %185, %186 : vector<1x64xf32>
    %188 = vector.extract_strided_slice %187 {offsets = [0, 0], sizes = [1, 32], strides = [1, 1]} : vector<1x64xf32> to vector<1x32xf32>
    %189 = vector.extract_strided_slice %187 {offsets = [0, 32], sizes = [1, 32], strides = [1, 1]} : vector<1x64xf32> to vector<1x32xf32>
    %c0_99 = arith.constant 0 : index
    %c0_100 = arith.constant 0 : index
    %c0_101 = arith.constant 0 : index
    %190 = vector.load %arg68[%c0_99, %c0_100, %c0_101] : memref<1x1x32xf32, #tpu.memory_space<vmem>>, vector<1x1x32xf32>
    %191 = vector.shape_cast %190 : vector<1x1x32xf32> to vector<1x32xf32>
    %192 = vector.shape_cast %188 : vector<1x32xf32> to vector<1x1x32xf32>
    tpu.vector_store %arg68[%c0_99, %c0_100, %c0_101], %192 {strides = array<i32>} : memref<1x1x32xf32, #tpu.memory_space<vmem>>, vector<1x1x32xf32>,
    %c0_102 = arith.constant 0 : index
    %c0_103 = arith.constant 0 : index
    %c0_104 = arith.constant 0 : index
    %193 = vector.load %arg69[%c0_102, %c0_103, %c0_104] : memref<1x1x32xf32, #tpu.memory_space<vmem>>, vector<1x1x32xf32>
    %194 = vector.shape_cast %193 : vector<1x1x32xf32> to vector<1x32xf32>
    %195 = vector.shape_cast %189 : vector<1x32xf32> to vector<1x1x32xf32>
    tpu.vector_store %arg69[%c0_102, %c0_103, %c0_104], %195 {strides = array<i32>} : memref<1x1x32xf32, #tpu.memory_space<vmem>>, vector<1x1x32xf32>,
    %cst_105 = arith.constant 5.000000e-01 : f32
    %196 = vector.broadcast %cst_105 : f32 to vector<1x32xf32>
    %197 = arith.mulf %196, %189 : vector<1x32xf32>
    %198 = math.exp %197 : vector<1x32xf32>
    %c0_106 = arith.constant 0 : index
    %c0_107 = arith.constant 0 : index
    %c0_108 = arith.constant 0 : index
    %199 = vector.load %arg65[%c0_106, %c0_107, %c0_108] : memref<1x1x32xf32, #tpu.memory_space<vmem>>, vector<1x1x32xf32>
    %200 = vector.shape_cast %199 : vector<1x1x32xf32> to vector<1x32xf32>
    %201 = arith.mulf %198, %200 : vector<1x32xf32>
    %202 = arith.addf %188, %201 : vector<1x32xf32>
    %c0_109 = arith.constant 0 : index
    %c0_110 = arith.constant 0 : index
    %203 = vector.load %arg24[%c0_109, %c0_110] : memref<32x32xf32, #tpu.memory_space<vmem>>, vector<32x32xf32>
    %cst_111 = arith.constant dense<0.000000e+00> : vector<1x32xf32>
    %204 = tpu.matmul %202, %203, %cst_111 {dimension_numbers = #tpu.dot_dimension_numbers<[1], [0], [0], [1], [0, 0, 1, 1], [], []>} : vector<1x32xf32>, vector<32x32xf32>, vector<1x32xf32> -> vector<1x32xf32>
    %c0_112 = arith.constant 0 : index
    %c0_113 = arith.constant 0 : index
    %205 = vector.load %arg23[%c0_112, %c0_113] : memref<1x32xf32, #tpu.memory_space<vmem>>, vector<1x32xf32>
    %206 = arith.addf %204, %205 : vector<1x32xf32>
    %c0_114 = arith.constant 0 : index
    %c0_115 = arith.constant 0 : index
    %207 = vector.load %arg71[%c0_114, %c0_115] : memref<7x32xf32, #tpu.memory_space<vmem>>, vector<1x32xf32>
    tpu.vector_store %arg71[%c0_114, %c0_115], %5 {strides = array<i32>} : memref<7x32xf32, #tpu.memory_space<vmem>>, vector<1x32xf32>,
    %c1_116 = arith.constant 1 : index
    %c0_117 = arith.constant 0 : index
    %208 = vector.load %arg71[%c1_116, %c0_117] : memref<7x32xf32, #tpu.memory_space<vmem>>, vector<1x32xf32>
    tpu.vector_store %arg71[%c1_116, %c0_117], %206 {strides = array<i32>} : memref<7x32xf32, #tpu.memory_space<vmem>>, vector<1x32xf32>,
    %c2_118 = arith.constant 2 : index
    %c0_119 = arith.constant 0 : index
    %209 = vector.load %arg71[%c2_118, %c0_119] : memref<7x32xf32, #tpu.memory_space<vmem>>, vector<2x32xf32>
    tpu.vector_store %arg71[%c2_118, %c0_119], %1 {strides = array<i32>} : memref<7x32xf32, #tpu.memory_space<vmem>>, vector<2x32xf32>,
    %c4 = arith.constant 4 : index
    %c0_120 = arith.constant 0 : index
    %210 = vector.load %arg71[%c4, %c0_120] : memref<7x32xf32, #tpu.memory_space<vmem>>, vector<3x32xf32>
    tpu.vector_store %arg71[%c4, %c0_120], %3 {strides = array<i32>} : memref<7x32xf32, #tpu.memory_space<vmem>>, vector<3x32xf32>,
    %c0_121 = arith.constant 0 : index
    %c0_122 = arith.constant 0 : index
    %211 = vector.load %arg71[%c0_121, %c0_122] : memref<7x32xf32, #tpu.memory_space<vmem>>, vector<7x32xf32>
    %c0_123 = arith.constant 0 : index
    %c0_124 = arith.constant 0 : index
    %212 = vector.load %arg3[%c0_123, %c0_124] : memref<7x32xf32, #tpu.memory_space<vmem>>, vector<7x32xf32>
    %c0_125 = arith.constant 0 : index
    %c0_126 = arith.constant 0 : index
    %213 = vector.load %arg28[%c0_125, %c0_126] : memref<8x32xf32, #tpu.memory_space<vmem>>, vector<8x32xf32>
    %214 = arith.addf %211, %212 : vector<7x32xf32>
    %c0_127 = arith.constant 0 : index
    %c0_128 = arith.constant 0 : index
    %215 = vector.load %arg58[%c0_127, %c0_128] : memref<32x96xf32, #tpu.memory_space<vmem>>, vector<32x96xf32>
    %c0_129 = arith.constant 0 : index
    %c0_130 = arith.constant 0 : index
    %216 = vector.load %arg56[%c0_129, %c0_130] : memref<1x96xf32, #tpu.memory_space<vmem>>, vector<1x96xf32>
    %217 = vector.extract_strided_slice %215 {offsets = [0, 0], sizes = [32, 64], strides = [1, 1]} : vector<32x96xf32> to vector<32x64xf32>
    %cst_131 = arith.constant dense<0.000000e+00> : vector<7x64xf32>
    %218 = tpu.matmul %214, %217, %cst_131 {dimension_numbers = #tpu.dot_dimension_numbers<[1], [0], [0], [1], [0, 0, 1, 1], [], []>} : vector<7x32xf32>, vector<32x64xf32>, vector<7x64xf32> -> vector<7x64xf32>
    %219 = vector.extract_strided_slice %216 {offsets = [0, 0], sizes = [1, 64], strides = [1, 1]} : vector<1x96xf32> to vector<1x64xf32>
    %220 = vector.broadcast %219 : vector<1x64xf32> to vector<7x64xf32>
    %221 = arith.addf %218, %220 : vector<7x64xf32>
    %222 = vector.extract_strided_slice %221 {offsets = [0, 0], sizes = [7, 32], strides = [1, 1]} : vector<7x64xf32> to vector<7x32xf32>
    %223 = vector.extract_strided_slice %221 {offsets = [0, 32], sizes = [7, 32], strides = [1, 1]} : vector<7x64xf32> to vector<7x32xf32>
    %224 = vector.extract_strided_slice %215 {offsets = [0, 64], sizes = [32, 32], strides = [1, 1]} : vector<32x96xf32> to vector<32x32xf32>
    %cst_132 = arith.constant dense<0.000000e+00> : vector<7x32xf32>
    %225 = tpu.matmul %211, %224, %cst_132 {dimension_numbers = #tpu.dot_dimension_numbers<[1], [0], [0], [1], [0, 0, 1, 1], [], []>} : vector<7x32xf32>, vector<32x32xf32>, vector<7x32xf32> -> vector<7x32xf32>
    %226 = vector.extract_strided_slice %216 {offsets = [0, 64], sizes = [1, 32], strides = [1, 1]} : vector<1x96xf32> to vector<1x32xf32>
    %227 = vector.broadcast %226 : vector<1x32xf32> to vector<7x32xf32>
    %228 = arith.addf %225, %227 : vector<7x32xf32>
    %cst_133 = arith.constant 0.353553385 : f32
    %229 = vector.broadcast %cst_133 : f32 to vector<7x32xf32>
    %230 = arith.mulf %222, %229 : vector<7x32xf32>
    %cst_134 = arith.constant 0.000000e+00 : f32
    %231 = vector.broadcast %cst_134 : f32 to vector<7x32xf32>
    %c0_135 = arith.constant 0 : index
    %c0_136 = arith.constant 0 : index
    %232 = vector.load %arg59[%c0_135, %c0_136] : memref<4x32xf32, #tpu.memory_space<vmem>>, vector<1x32xf32>
    %233 = vector.broadcast %232 : vector<1x32xf32> to vector<7x32xf32>
    %234 = arith.mulf %230, %233 : vector<7x32xf32>
    %235 = tpu.transpose %223, [1, 0] : vector<7x32xf32> -> vector<32x7xf32>
    %cst_137 = arith.constant dense<0.000000e+00> : vector<7x7xf32>
    %236 = tpu.matmul %234, %235, %cst_137 {dimension_numbers = #tpu.dot_dimension_numbers<[1], [0], [0], [1], [0, 0, 1, 1], [], []>} : vector<7x32xf32>, vector<32x7xf32>, vector<7x7xf32> -> vector<7x7xf32>
    %cst_138 = arith.constant dense<0xFF800000> : vector<7xf32>
    %237 = vector.multi_reduction <maximumf>, %236, %cst_138 [1] : vector<7x7xf32> to vector<7xf32>
    %238 = vector.shape_cast %237 : vector<7xf32> to vector<7x1xf32>
    %239 = vector.broadcast %238 : vector<7x1xf32> to vector<7x7xf32>
    %240 = arith.subf %236, %239 : vector<7x7xf32>
    %241 = math.exp %240 : vector<7x7xf32>
    %cst_139 = arith.constant dense<0.000000e+00> : vector<7xf32>
    %242 = vector.multi_reduction <add>, %241, %cst_139 [1] : vector<7x7xf32> to vector<7xf32>
    %243 = vector.shape_cast %242 : vector<7xf32> to vector<7x1xf32>
    %244 = vector.broadcast %243 : vector<7x1xf32> to vector<7x7xf32>
    %245 = arith.divf %241, %244 : vector<7x7xf32>
    %246 = vector.broadcast %232 : vector<1x32xf32> to vector<7x32xf32>
    %247 = arith.mulf %228, %246 : vector<7x32xf32>
    %cst_140 = arith.constant dense<0.000000e+00> : vector<7x32xf32>
    %248 = tpu.matmul %245, %247, %cst_140 {dimension_numbers = #tpu.dot_dimension_numbers<[1], [0], [0], [1], [0, 0, 1, 1], [], []>} : vector<7x7xf32>, vector<7x32xf32>, vector<7x32xf32> -> vector<7x32xf32>
    %249 = arith.addf %231, %248 : vector<7x32xf32>
    %c1_141 = arith.constant 1 : index
    %c0_142 = arith.constant 0 : index
    %250 = vector.load %arg59[%c1_141, %c0_142] : memref<4x32xf32, #tpu.memory_space<vmem>>, vector<1x32xf32>
    %251 = vector.broadcast %250 : vector<1x32xf32> to vector<7x32xf32>
    %252 = arith.mulf %230, %251 : vector<7x32xf32>
    %253 = tpu.transpose %223, [1, 0] : vector<7x32xf32> -> vector<32x7xf32>
    %cst_143 = arith.constant dense<0.000000e+00> : vector<7x7xf32>
    %254 = tpu.matmul %252, %253, %cst_143 {dimension_numbers = #tpu.dot_dimension_numbers<[1], [0], [0], [1], [0, 0, 1, 1], [], []>} : vector<7x32xf32>, vector<32x7xf32>, vector<7x7xf32> -> vector<7x7xf32>
    %cst_144 = arith.constant dense<0xFF800000> : vector<7xf32>
    %255 = vector.multi_reduction <maximumf>, %254, %cst_144 [1] : vector<7x7xf32> to vector<7xf32>
    %256 = vector.shape_cast %255 : vector<7xf32> to vector<7x1xf32>
    %257 = vector.broadcast %256 : vector<7x1xf32> to vector<7x7xf32>
    %258 = arith.subf %254, %257 : vector<7x7xf32>
    %259 = math.exp %258 : vector<7x7xf32>
    %cst_145 = arith.constant dense<0.000000e+00> : vector<7xf32>
    %260 = vector.multi_reduction <add>, %259, %cst_145 [1] : vector<7x7xf32> to vector<7xf32>
    %261 = vector.shape_cast %260 : vector<7xf32> to vector<7x1xf32>
    %262 = vector.broadcast %261 : vector<7x1xf32> to vector<7x7xf32>
    %263 = arith.divf %259, %262 : vector<7x7xf32>
    %264 = vector.broadcast %250 : vector<1x32xf32> to vector<7x32xf32>
    %265 = arith.mulf %228, %264 : vector<7x32xf32>
    %cst_146 = arith.constant dense<0.000000e+00> : vector<7x32xf32>
    %266 = tpu.matmul %263, %265, %cst_146 {dimension_numbers = #tpu.dot_dimension_numbers<[1], [0], [0], [1], [0, 0, 1, 1], [], []>} : vector<7x7xf32>, vector<7x32xf32>, vector<7x32xf32> -> vector<7x32xf32>
    %267 = arith.addf %249, %266 : vector<7x32xf32>
    %c2_147 = arith.constant 2 : index
    %c0_148 = arith.constant 0 : index
    %268 = vector.load %arg59[%c2_147, %c0_148] : memref<4x32xf32, #tpu.memory_space<vmem>>, vector<1x32xf32>
    %269 = vector.broadcast %268 : vector<1x32xf32> to vector<7x32xf32>
    %270 = arith.mulf %230, %269 : vector<7x32xf32>
    %271 = tpu.transpose %223, [1, 0] : vector<7x32xf32> -> vector<32x7xf32>
    %cst_149 = arith.constant dense<0.000000e+00> : vector<7x7xf32>
    %272 = tpu.matmul %270, %271, %cst_149 {dimension_numbers = #tpu.dot_dimension_numbers<[1], [0], [0], [1], [0, 0, 1, 1], [], []>} : vector<7x32xf32>, vector<32x7xf32>, vector<7x7xf32> -> vector<7x7xf32>
    %cst_150 = arith.constant dense<0xFF800000> : vector<7xf32>
    %273 = vector.multi_reduction <maximumf>, %272, %cst_150 [1] : vector<7x7xf32> to vector<7xf32>
    %274 = vector.shape_cast %273 : vector<7xf32> to vector<7x1xf32>
    %275 = vector.broadcast %274 : vector<7x1xf32> to vector<7x7xf32>
    %276 = arith.subf %272, %275 : vector<7x7xf32>
    %277 = math.exp %276 : vector<7x7xf32>
    %cst_151 = arith.constant dense<0.000000e+00> : vector<7xf32>
    %278 = vector.multi_reduction <add>, %277, %cst_151 [1] : vector<7x7xf32> to vector<7xf32>
    %279 = vector.shape_cast %278 : vector<7xf32> to vector<7x1xf32>
    %280 = vector.broadcast %279 : vector<7x1xf32> to vector<7x7xf32>
    %281 = arith.divf %277, %280 : vector<7x7xf32>
    %282 = vector.broadcast %268 : vector<1x32xf32> to vector<7x32xf32>
    %283 = arith.mulf %228, %282 : vector<7x32xf32>
    %cst_152 = arith.constant dense<0.000000e+00> : vector<7x32xf32>
    %284 = tpu.matmul %281, %283, %cst_152 {dimension_numbers = #tpu.dot_dimension_numbers<[1], [0], [0], [1], [0, 0, 1, 1], [], []>} : vector<7x7xf32>, vector<7x32xf32>, vector<7x32xf32> -> vector<7x32xf32>
    %285 = arith.addf %267, %284 : vector<7x32xf32>
    %c3_153 = arith.constant 3 : index
    %c0_154 = arith.constant 0 : index
    %286 = vector.load %arg59[%c3_153, %c0_154] : memref<4x32xf32, #tpu.memory_space<vmem>>, vector<1x32xf32>
    %287 = vector.broadcast %286 : vector<1x32xf32> to vector<7x32xf32>
    %288 = arith.mulf %230, %287 : vector<7x32xf32>
    %289 = tpu.transpose %223, [1, 0] : vector<7x32xf32> -> vector<32x7xf32>
    %cst_155 = arith.constant dense<0.000000e+00> : vector<7x7xf32>
    %290 = tpu.matmul %288, %289, %cst_155 {dimension_numbers = #tpu.dot_dimension_numbers<[1], [0], [0], [1], [0, 0, 1, 1], [], []>} : vector<7x32xf32>, vector<32x7xf32>, vector<7x7xf32> -> vector<7x7xf32>
    %cst_156 = arith.constant dense<0xFF800000> : vector<7xf32>
    %291 = vector.multi_reduction <maximumf>, %290, %cst_156 [1] : vector<7x7xf32> to vector<7xf32>
    %292 = vector.shape_cast %291 : vector<7xf32> to vector<7x1xf32>
    %293 = vector.broadcast %292 : vector<7x1xf32> to vector<7x7xf32>
    %294 = arith.subf %290, %293 : vector<7x7xf32>
    %295 = math.exp %294 : vector<7x7xf32>
    %cst_157 = arith.constant dense<0.000000e+00> : vector<7xf32>
    %296 = vector.multi_reduction <add>, %295, %cst_157 [1] : vector<7x7xf32> to vector<7xf32>
    %297 = vector.shape_cast %296 : vector<7xf32> to vector<7x1xf32>
    %298 = vector.broadcast %297 : vector<7x1xf32> to vector<7x7xf32>
    %299 = arith.divf %295, %298 : vector<7x7xf32>
    %300 = vector.broadcast %286 : vector<1x32xf32> to vector<7x32xf32>
    %301 = arith.mulf %228, %300 : vector<7x32xf32>
    %cst_158 = arith.constant dense<0.000000e+00> : vector<7x32xf32>
    %302 = tpu.matmul %299, %301, %cst_158 {dimension_numbers = #tpu.dot_dimension_numbers<[1], [0], [0], [1], [0, 0, 1, 1], [], []>} : vector<7x7xf32>, vector<7x32xf32>, vector<7x32xf32> -> vector<7x32xf32>
    %303 = arith.addf %285, %302 : vector<7x32xf32>
    %c0_159 = arith.constant 0 : index
    %c0_160 = arith.constant 0 : index
    %304 = vector.load %arg57[%c0_159, %c0_160] : memref<32x32xf32, #tpu.memory_space<vmem>>, vector<32x32xf32>
    %cst_161 = arith.constant dense<0.000000e+00> : vector<7x32xf32>
    %305 = tpu.matmul %303, %304, %cst_161 {dimension_numbers = #tpu.dot_dimension_numbers<[1], [0], [0], [1], [0, 0, 1, 1], [], []>} : vector<7x32xf32>, vector<32x32xf32>, vector<7x32xf32> -> vector<7x32xf32>
    %c0_162 = arith.constant 0 : index
    %c0_163 = arith.constant 0 : index
    %306 = vector.load %arg55[%c0_162, %c0_163] : memref<1x32xf32, #tpu.memory_space<vmem>>, vector<1x32xf32>
    %307 = vector.broadcast %306 : vector<1x32xf32> to vector<7x32xf32>
    %308 = arith.addf %305, %307 : vector<7x32xf32>
    %309 = arith.addf %211, %308 : vector<7x32xf32>
    %cst_164 = arith.constant dense<0.000000e+00> : vector<7xf32>
    %310 = vector.multi_reduction <add>, %309, %cst_164 [1] : vector<7x32xf32> to vector<7xf32>
    %311 = vector.shape_cast %310 : vector<7xf32> to vector<7x1xf32>
    %cst_165 = arith.constant 3.200000e+01 : f32
    %312 = vector.broadcast %cst_165 : f32 to vector<7x1xf32>
    %313 = arith.divf %311, %312 : vector<7x1xf32>
    %314 = vector.broadcast %313 : vector<7x1xf32> to vector<7x32xf32>
    %315 = arith.subf %309, %314 : vector<7x32xf32>
    %316 = arith.mulf %315, %315 : vector<7x32xf32>
    %cst_166 = arith.constant dense<0.000000e+00> : vector<7xf32>
    %317 = vector.multi_reduction <add>, %316, %cst_166 [1] : vector<7x32xf32> to vector<7xf32>
    %318 = vector.shape_cast %317 : vector<7xf32> to vector<7x1xf32>
    %cst_167 = arith.constant 3.200000e+01 : f32
    %319 = vector.broadcast %cst_167 : f32 to vector<7x1xf32>
    %320 = arith.divf %318, %319 : vector<7x1xf32>
    %cst_168 = arith.constant 9.99999974E-6 : f32
    %321 = vector.broadcast %cst_168 : f32 to vector<7x1xf32>
    %322 = arith.addf %320, %321 : vector<7x1xf32>
    %323 = math.rsqrt %322 : vector<7x1xf32>
    %324 = vector.broadcast %323 : vector<7x1xf32> to vector<7x32xf32>
    %325 = arith.mulf %315, %324 : vector<7x32xf32>
    %c0_169 = arith.constant 0 : index
    %c0_170 = arith.constant 0 : index
    %326 = vector.load %arg52[%c0_169, %c0_170] : memref<1x32xf32, #tpu.memory_space<vmem>>, vector<1x32xf32>
    %327 = vector.broadcast %326 : vector<1x32xf32> to vector<7x32xf32>
    %328 = arith.mulf %325, %327 : vector<7x32xf32>
    %c0_171 = arith.constant 0 : index
    %c0_172 = arith.constant 0 : index
    %329 = vector.load %arg51[%c0_171, %c0_172] : memref<1x32xf32, #tpu.memory_space<vmem>>, vector<1x32xf32>
    %330 = vector.broadcast %329 : vector<1x32xf32> to vector<7x32xf32>
    %331 = arith.addf %328, %330 : vector<7x32xf32>
    %c0_173 = arith.constant 0 : index
    %c0_174 = arith.constant 0 : index
    %332 = vector.load %arg48[%c0_173, %c0_174] : memref<32x64xf32, #tpu.memory_space<vmem>>, vector<32x64xf32>
    %cst_175 = arith.constant dense<0.000000e+00> : vector<7x64xf32>
    %333 = tpu.matmul %331, %332, %cst_175 {dimension_numbers = #tpu.dot_dimension_numbers<[1], [0], [0], [1], [0, 0, 1, 1], [], []>} : vector<7x32xf32>, vector<32x64xf32>, vector<7x64xf32> -> vector<7x64xf32>
    %c0_176 = arith.constant 0 : index
    %c0_177 = arith.constant 0 : index
    %334 = vector.load %arg47[%c0_176, %c0_177] : memref<1x64xf32, #tpu.memory_space<vmem>>, vector<1x64xf32>
    %335 = vector.broadcast %334 : vector<1x64xf32> to vector<7x64xf32>
    %336 = arith.addf %333, %335 : vector<7x64xf32>
    %cst_178 = arith.constant 0.000000e+00 : f32
    %337 = vector.broadcast %cst_178 : f32 to vector<7x64xf32>
    %338 = arith.maximumf %336, %337 : vector<7x64xf32>
    %c0_179 = arith.constant 0 : index
    %c0_180 = arith.constant 0 : index
    %339 = vector.load %arg50[%c0_179, %c0_180] : memref<64x32xf32, #tpu.memory_space<vmem>>, vector<64x32xf32>
    %cst_181 = arith.constant dense<0.000000e+00> : vector<7x32xf32>
    %340 = tpu.matmul %338, %339, %cst_181 {dimension_numbers = #tpu.dot_dimension_numbers<[1], [0], [0], [1], [0, 0, 1, 1], [], []>} : vector<7x64xf32>, vector<64x32xf32>, vector<7x32xf32> -> vector<7x32xf32>
    %c0_182 = arith.constant 0 : index
    %c0_183 = arith.constant 0 : index
    %341 = vector.load %arg49[%c0_182, %c0_183] : memref<1x32xf32, #tpu.memory_space<vmem>>, vector<1x32xf32>
    %342 = vector.broadcast %341 : vector<1x32xf32> to vector<7x32xf32>
    %343 = arith.addf %340, %342 : vector<7x32xf32>
    %344 = arith.addf %331, %343 : vector<7x32xf32>
    %cst_184 = arith.constant dense<0.000000e+00> : vector<7xf32>
    %345 = vector.multi_reduction <add>, %344, %cst_184 [1] : vector<7x32xf32> to vector<7xf32>
    %346 = vector.shape_cast %345 : vector<7xf32> to vector<7x1xf32>
    %cst_185 = arith.constant 3.200000e+01 : f32
    %347 = vector.broadcast %cst_185 : f32 to vector<7x1xf32>
    %348 = arith.divf %346, %347 : vector<7x1xf32>
    %349 = vector.broadcast %348 : vector<7x1xf32> to vector<7x32xf32>
    %350 = arith.subf %344, %349 : vector<7x32xf32>
    %351 = arith.mulf %350, %350 : vector<7x32xf32>
    %cst_186 = arith.constant dense<0.000000e+00> : vector<7xf32>
    %352 = vector.multi_reduction <add>, %351, %cst_186 [1] : vector<7x32xf32> to vector<7xf32>
    %353 = vector.shape_cast %352 : vector<7xf32> to vector<7x1xf32>
    %cst_187 = arith.constant 3.200000e+01 : f32
    %354 = vector.broadcast %cst_187 : f32 to vector<7x1xf32>
    %355 = arith.divf %353, %354 : vector<7x1xf32>
    %cst_188 = arith.constant 9.99999974E-6 : f32
    %356 = vector.broadcast %cst_188 : f32 to vector<7x1xf32>
    %357 = arith.addf %355, %356 : vector<7x1xf32>
    %358 = math.rsqrt %357 : vector<7x1xf32>
    %359 = vector.broadcast %358 : vector<7x1xf32> to vector<7x32xf32>
    %360 = arith.mulf %350, %359 : vector<7x32xf32>
    %c0_189 = arith.constant 0 : index
    %c0_190 = arith.constant 0 : index
    %361 = vector.load %arg54[%c0_189, %c0_190] : memref<1x32xf32, #tpu.memory_space<vmem>>, vector<1x32xf32>
    %362 = vector.broadcast %361 : vector<1x32xf32> to vector<7x32xf32>
    %363 = arith.mulf %360, %362 : vector<7x32xf32>
    %c0_191 = arith.constant 0 : index
    %c0_192 = arith.constant 0 : index
    %364 = vector.load %arg53[%c0_191, %c0_192] : memref<1x32xf32, #tpu.memory_space<vmem>>, vector<1x32xf32>
    %365 = vector.broadcast %364 : vector<1x32xf32> to vector<7x32xf32>
    %366 = arith.addf %363, %365 : vector<7x32xf32>
    %cst_193 = arith.constant 0.000000e+00 : f32
    %367 = vector.broadcast %cst_193 : f32 to vector<8x32xf32>
    %368 = arith.addf %367, %213 : vector<8x32xf32>
    %c0_194 = arith.constant 0 : index
    %c0_195 = arith.constant 0 : index
    %369 = vector.load %arg46[%c0_194, %c0_195] : memref<32x96xf32, #tpu.memory_space<vmem>>, vector<32x96xf32>
    %c0_196 = arith.constant 0 : index
    %c0_197 = arith.constant 0 : index
    %370 = vector.load %arg44[%c0_196, %c0_197] : memref<1x96xf32, #tpu.memory_space<vmem>>, vector<1x96xf32>
    %371 = vector.extract_strided_slice %369 {offsets = [0, 0], sizes = [32, 64], strides = [1, 1]} : vector<32x96xf32> to vector<32x64xf32>
    %cst_198 = arith.constant dense<0.000000e+00> : vector<8x64xf32>
    %372 = tpu.matmul %368, %371, %cst_198 {dimension_numbers = #tpu.dot_dimension_numbers<[1], [0], [0], [1], [0, 0, 1, 1], [], []>} : vector<8x32xf32>, vector<32x64xf32>, vector<8x64xf32> -> vector<8x64xf32>
    %373 = vector.extract_strided_slice %370 {offsets = [0, 0], sizes = [1, 64], strides = [1, 1]} : vector<1x96xf32> to vector<1x64xf32>
    %374 = vector.broadcast %373 : vector<1x64xf32> to vector<8x64xf32>
    %375 = arith.addf %372, %374 : vector<8x64xf32>
    %376 = vector.extract_strided_slice %375 {offsets = [0, 0], sizes = [8, 32], strides = [1, 1]} : vector<8x64xf32> to vector<8x32xf32>
    %377 = vector.extract_strided_slice %375 {offsets = [0, 32], sizes = [8, 32], strides = [1, 1]} : vector<8x64xf32> to vector<8x32xf32>
    %378 = vector.extract_strided_slice %369 {offsets = [0, 64], sizes = [32, 32], strides = [1, 1]} : vector<32x96xf32> to vector<32x32xf32>
    %cst_199 = arith.constant dense<0.000000e+00> : vector<8x32xf32>
    %379 = tpu.matmul %367, %378, %cst_199 {dimension_numbers = #tpu.dot_dimension_numbers<[1], [0], [0], [1], [0, 0, 1, 1], [], []>} : vector<8x32xf32>, vector<32x32xf32>, vector<8x32xf32> -> vector<8x32xf32>
    %380 = vector.extract_strided_slice %370 {offsets = [0, 64], sizes = [1, 32], strides = [1, 1]} : vector<1x96xf32> to vector<1x32xf32>
    %381 = vector.broadcast %380 : vector<1x32xf32> to vector<8x32xf32>
    %382 = arith.addf %379, %381 : vector<8x32xf32>
    %cst_200 = arith.constant 0.353553385 : f32
    %383 = vector.broadcast %cst_200 : f32 to vector<8x32xf32>
    %384 = arith.mulf %376, %383 : vector<8x32xf32>
    %cst_201 = arith.constant 0.000000e+00 : f32
    %385 = vector.broadcast %cst_201 : f32 to vector<8x32xf32>
    %c0_202 = arith.constant 0 : index
    %c0_203 = arith.constant 0 : index
    %386 = vector.load %arg59[%c0_202, %c0_203] : memref<4x32xf32, #tpu.memory_space<vmem>>, vector<1x32xf32>
    %387 = vector.broadcast %386 : vector<1x32xf32> to vector<8x32xf32>
    %388 = arith.mulf %384, %387 : vector<8x32xf32>
    %389 = tpu.transpose %377, [1, 0] : vector<8x32xf32> -> vector<32x8xf32>
    %cst_204 = arith.constant dense<0.000000e+00> : vector<8x8xf32>
    %390 = tpu.matmul %388, %389, %cst_204 {dimension_numbers = #tpu.dot_dimension_numbers<[1], [0], [0], [1], [0, 0, 1, 1], [], []>} : vector<8x32xf32>, vector<32x8xf32>, vector<8x8xf32> -> vector<8x8xf32>
    %cst_205 = arith.constant dense<0xFF800000> : vector<8xf32>
    %391 = vector.multi_reduction <maximumf>, %390, %cst_205 [1] : vector<8x8xf32> to vector<8xf32>
    %392 = vector.shape_cast %391 : vector<8xf32> to vector<8x1xf32>
    %393 = vector.broadcast %392 : vector<8x1xf32> to vector<8x8xf32>
    %394 = arith.subf %390, %393 : vector<8x8xf32>
    %395 = math.exp %394 : vector<8x8xf32>
    %cst_206 = arith.constant dense<0.000000e+00> : vector<8xf32>
    %396 = vector.multi_reduction <add>, %395, %cst_206 [1] : vector<8x8xf32> to vector<8xf32>
    %397 = vector.shape_cast %396 : vector<8xf32> to vector<8x1xf32>
    %398 = vector.broadcast %397 : vector<8x1xf32> to vector<8x8xf32>
    %399 = arith.divf %395, %398 : vector<8x8xf32>
    %400 = vector.broadcast %386 : vector<1x32xf32> to vector<8x32xf32>
    %401 = arith.mulf %382, %400 : vector<8x32xf32>
    %cst_207 = arith.constant dense<0.000000e+00> : vector<8x32xf32>
    %402 = tpu.matmul %399, %401, %cst_207 {dimension_numbers = #tpu.dot_dimension_numbers<[1], [0], [0], [1], [0, 0, 1, 1], [], []>} : vector<8x8xf32>, vector<8x32xf32>, vector<8x32xf32> -> vector<8x32xf32>
    %403 = arith.addf %385, %402 : vector<8x32xf32>
    %c1_208 = arith.constant 1 : index
    %c0_209 = arith.constant 0 : index
    %404 = vector.load %arg59[%c1_208, %c0_209] : memref<4x32xf32, #tpu.memory_space<vmem>>, vector<1x32xf32>
    %405 = vector.broadcast %404 : vector<1x32xf32> to vector<8x32xf32>
    %406 = arith.mulf %384, %405 : vector<8x32xf32>
    %407 = tpu.transpose %377, [1, 0] : vector<8x32xf32> -> vector<32x8xf32>
    %cst_210 = arith.constant dense<0.000000e+00> : vector<8x8xf32>
    %408 = tpu.matmul %406, %407, %cst_210 {dimension_numbers = #tpu.dot_dimension_numbers<[1], [0], [0], [1], [0, 0, 1, 1], [], []>} : vector<8x32xf32>, vector<32x8xf32>, vector<8x8xf32> -> vector<8x8xf32>
    %cst_211 = arith.constant dense<0xFF800000> : vector<8xf32>
    %409 = vector.multi_reduction <maximumf>, %408, %cst_211 [1] : vector<8x8xf32> to vector<8xf32>
    %410 = vector.shape_cast %409 : vector<8xf32> to vector<8x1xf32>
    %411 = vector.broadcast %410 : vector<8x1xf32> to vector<8x8xf32>
    %412 = arith.subf %408, %411 : vector<8x8xf32>
    %413 = math.exp %412 : vector<8x8xf32>
    %cst_212 = arith.constant dense<0.000000e+00> : vector<8xf32>
    %414 = vector.multi_reduction <add>, %413, %cst_212 [1] : vector<8x8xf32> to vector<8xf32>
    %415 = vector.shape_cast %414 : vector<8xf32> to vector<8x1xf32>
    %416 = vector.broadcast %415 : vector<8x1xf32> to vector<8x8xf32>
    %417 = arith.divf %413, %416 : vector<8x8xf32>
    %418 = vector.broadcast %404 : vector<1x32xf32> to vector<8x32xf32>
    %419 = arith.mulf %382, %418 : vector<8x32xf32>
    %cst_213 = arith.constant dense<0.000000e+00> : vector<8x32xf32>
    %420 = tpu.matmul %417, %419, %cst_213 {dimension_numbers = #tpu.dot_dimension_numbers<[1], [0], [0], [1], [0, 0, 1, 1], [], []>} : vector<8x8xf32>, vector<8x32xf32>, vector<8x32xf32> -> vector<8x32xf32>
    %421 = arith.addf %403, %420 : vector<8x32xf32>
    %c2_214 = arith.constant 2 : index
    %c0_215 = arith.constant 0 : index
    %422 = vector.load %arg59[%c2_214, %c0_215] : memref<4x32xf32, #tpu.memory_space<vmem>>, vector<1x32xf32>
    %423 = vector.broadcast %422 : vector<1x32xf32> to vector<8x32xf32>
    %424 = arith.mulf %384, %423 : vector<8x32xf32>
    %425 = tpu.transpose %377, [1, 0] : vector<8x32xf32> -> vector<32x8xf32>
    %cst_216 = arith.constant dense<0.000000e+00> : vector<8x8xf32>
    %426 = tpu.matmul %424, %425, %cst_216 {dimension_numbers = #tpu.dot_dimension_numbers<[1], [0], [0], [1], [0, 0, 1, 1], [], []>} : vector<8x32xf32>, vector<32x8xf32>, vector<8x8xf32> -> vector<8x8xf32>
    %cst_217 = arith.constant dense<0xFF800000> : vector<8xf32>
    %427 = vector.multi_reduction <maximumf>, %426, %cst_217 [1] : vector<8x8xf32> to vector<8xf32>
    %428 = vector.shape_cast %427 : vector<8xf32> to vector<8x1xf32>
    %429 = vector.broadcast %428 : vector<8x1xf32> to vector<8x8xf32>
    %430 = arith.subf %426, %429 : vector<8x8xf32>
    %431 = math.exp %430 : vector<8x8xf32>
    %cst_218 = arith.constant dense<0.000000e+00> : vector<8xf32>
    %432 = vector.multi_reduction <add>, %431, %cst_218 [1] : vector<8x8xf32> to vector<8xf32>
    %433 = vector.shape_cast %432 : vector<8xf32> to vector<8x1xf32>
    %434 = vector.broadcast %433 : vector<8x1xf32> to vector<8x8xf32>
    %435 = arith.divf %431, %434 : vector<8x8xf32>
    %436 = vector.broadcast %422 : vector<1x32xf32> to vector<8x32xf32>
    %437 = arith.mulf %382, %436 : vector<8x32xf32>
    %cst_219 = arith.constant dense<0.000000e+00> : vector<8x32xf32>
    %438 = tpu.matmul %435, %437, %cst_219 {dimension_numbers = #tpu.dot_dimension_numbers<[1], [0], [0], [1], [0, 0, 1, 1], [], []>} : vector<8x8xf32>, vector<8x32xf32>, vector<8x32xf32> -> vector<8x32xf32>
    %439 = arith.addf %421, %438 : vector<8x32xf32>
    %c3_220 = arith.constant 3 : index
    %c0_221 = arith.constant 0 : index
    %440 = vector.load %arg59[%c3_220, %c0_221] : memref<4x32xf32, #tpu.memory_space<vmem>>, vector<1x32xf32>
    %441 = vector.broadcast %440 : vector<1x32xf32> to vector<8x32xf32>
    %442 = arith.mulf %384, %441 : vector<8x32xf32>
    %443 = tpu.transpose %377, [1, 0] : vector<8x32xf32> -> vector<32x8xf32>
    %cst_222 = arith.constant dense<0.000000e+00> : vector<8x8xf32>
    %444 = tpu.matmul %442, %443, %cst_222 {dimension_numbers = #tpu.dot_dimension_numbers<[1], [0], [0], [1], [0, 0, 1, 1], [], []>} : vector<8x32xf32>, vector<32x8xf32>, vector<8x8xf32> -> vector<8x8xf32>
    %cst_223 = arith.constant dense<0xFF800000> : vector<8xf32>
    %445 = vector.multi_reduction <maximumf>, %444, %cst_223 [1] : vector<8x8xf32> to vector<8xf32>
    %446 = vector.shape_cast %445 : vector<8xf32> to vector<8x1xf32>
    %447 = vector.broadcast %446 : vector<8x1xf32> to vector<8x8xf32>
    %448 = arith.subf %444, %447 : vector<8x8xf32>
    %449 = math.exp %448 : vector<8x8xf32>
    %cst_224 = arith.constant dense<0.000000e+00> : vector<8xf32>
    %450 = vector.multi_reduction <add>, %449, %cst_224 [1] : vector<8x8xf32> to vector<8xf32>
    %451 = vector.shape_cast %450 : vector<8xf32> to vector<8x1xf32>
    %452 = vector.broadcast %451 : vector<8x1xf32> to vector<8x8xf32>
    %453 = arith.divf %449, %452 : vector<8x8xf32>
    %454 = vector.broadcast %440 : vector<1x32xf32> to vector<8x32xf32>
    %455 = arith.mulf %382, %454 : vector<8x32xf32>
    %cst_225 = arith.constant dense<0.000000e+00> : vector<8x32xf32>
    %456 = tpu.matmul %453, %455, %cst_225 {dimension_numbers = #tpu.dot_dimension_numbers<[1], [0], [0], [1], [0, 0, 1, 1], [], []>} : vector<8x8xf32>, vector<8x32xf32>, vector<8x32xf32> -> vector<8x32xf32>
    %457 = arith.addf %439, %456 : vector<8x32xf32>
    %c0_226 = arith.constant 0 : index
    %c0_227 = arith.constant 0 : index
    %458 = vector.load %arg45[%c0_226, %c0_227] : memref<32x32xf32, #tpu.memory_space<vmem>>, vector<32x32xf32>
    %cst_228 = arith.constant dense<0.000000e+00> : vector<8x32xf32>
    %459 = tpu.matmul %457, %458, %cst_228 {dimension_numbers = #tpu.dot_dimension_numbers<[1], [0], [0], [1], [0, 0, 1, 1], [], []>} : vector<8x32xf32>, vector<32x32xf32>, vector<8x32xf32> -> vector<8x32xf32>
    %c0_229 = arith.constant 0 : index
    %c0_230 = arith.constant 0 : index
    %460 = vector.load %arg43[%c0_229, %c0_230] : memref<1x32xf32, #tpu.memory_space<vmem>>, vector<1x32xf32>
    %461 = vector.broadcast %460 : vector<1x32xf32> to vector<8x32xf32>
    %462 = arith.addf %459, %461 : vector<8x32xf32>
    %463 = arith.addf %367, %462 : vector<8x32xf32>
    %cst_231 = arith.constant dense<0.000000e+00> : vector<8xf32>
    %464 = vector.multi_reduction <add>, %463, %cst_231 [1] : vector<8x32xf32> to vector<8xf32>
    %465 = vector.shape_cast %464 : vector<8xf32> to vector<8x1xf32>
    %cst_232 = arith.constant 3.200000e+01 : f32
    %466 = vector.broadcast %cst_232 : f32 to vector<8x1xf32>
    %467 = arith.divf %465, %466 : vector<8x1xf32>
    %468 = vector.broadcast %467 : vector<8x1xf32> to vector<8x32xf32>
    %469 = arith.subf %463, %468 : vector<8x32xf32>
    %470 = arith.mulf %469, %469 : vector<8x32xf32>
    %cst_233 = arith.constant dense<0.000000e+00> : vector<8xf32>
    %471 = vector.multi_reduction <add>, %470, %cst_233 [1] : vector<8x32xf32> to vector<8xf32>
    %472 = vector.shape_cast %471 : vector<8xf32> to vector<8x1xf32>
    %cst_234 = arith.constant 3.200000e+01 : f32
    %473 = vector.broadcast %cst_234 : f32 to vector<8x1xf32>
    %474 = arith.divf %472, %473 : vector<8x1xf32>
    %cst_235 = arith.constant 9.99999974E-6 : f32
    %475 = vector.broadcast %cst_235 : f32 to vector<8x1xf32>
    %476 = arith.addf %474, %475 : vector<8x1xf32>
    %477 = math.rsqrt %476 : vector<8x1xf32>
    %478 = vector.broadcast %477 : vector<8x1xf32> to vector<8x32xf32>
    %479 = arith.mulf %469, %478 : vector<8x32xf32>
    %c0_236 = arith.constant 0 : index
    %c0_237 = arith.constant 0 : index
    %480 = vector.load %arg38[%c0_236, %c0_237] : memref<1x32xf32, #tpu.memory_space<vmem>>, vector<1x32xf32>
    %481 = vector.broadcast %480 : vector<1x32xf32> to vector<8x32xf32>
    %482 = arith.mulf %479, %481 : vector<8x32xf32>
    %c0_238 = arith.constant 0 : index
    %c0_239 = arith.constant 0 : index
    %483 = vector.load %arg37[%c0_238, %c0_239] : memref<1x32xf32, #tpu.memory_space<vmem>>, vector<1x32xf32>
    %484 = vector.broadcast %483 : vector<1x32xf32> to vector<8x32xf32>
    %485 = arith.addf %482, %484 : vector<8x32xf32>
    %486 = arith.addf %485, %213 : vector<8x32xf32>
    %487 = arith.addf %366, %212 : vector<7x32xf32>
    %c0_240 = arith.constant 0 : index
    %c0_241 = arith.constant 0 : index
    %488 = vector.load %arg32[%c0_240, %c0_241] : memref<32x96xf32, #tpu.memory_space<vmem>>, vector<32x96xf32>
    %c0_242 = arith.constant 0 : index
    %c0_243 = arith.constant 0 : index
    %489 = vector.load %arg30[%c0_242, %c0_243] : memref<1x96xf32, #tpu.memory_space<vmem>>, vector<1x96xf32>
    %490 = vector.extract_strided_slice %488 {offsets = [0, 0], sizes = [32, 32], strides = [1, 1]} : vector<32x96xf32> to vector<32x32xf32>
    %cst_244 = arith.constant dense<0.000000e+00> : vector<8x32xf32>
    %491 = tpu.matmul %486, %490, %cst_244 {dimension_numbers = #tpu.dot_dimension_numbers<[1], [0], [0], [1], [0, 0, 1, 1], [], []>} : vector<8x32xf32>, vector<32x32xf32>, vector<8x32xf32> -> vector<8x32xf32>
    %492 = vector.extract_strided_slice %489 {offsets = [0, 0], sizes = [1, 32], strides = [1, 1]} : vector<1x96xf32> to vector<1x32xf32>
    %493 = vector.broadcast %492 : vector<1x32xf32> to vector<8x32xf32>
    %494 = arith.addf %491, %493 : vector<8x32xf32>
    %495 = vector.extract_strided_slice %488 {offsets = [0, 32], sizes = [32, 32], strides = [1, 1]} : vector<32x96xf32> to vector<32x32xf32>
    %cst_245 = arith.constant dense<0.000000e+00> : vector<7x32xf32>
    %496 = tpu.matmul %487, %495, %cst_245 {dimension_numbers = #tpu.dot_dimension_numbers<[1], [0], [0], [1], [0, 0, 1, 1], [], []>} : vector<7x32xf32>, vector<32x32xf32>, vector<7x32xf32> -> vector<7x32xf32>
    %497 = vector.extract_strided_slice %489 {offsets = [0, 32], sizes = [1, 32], strides = [1, 1]} : vector<1x96xf32> to vector<1x32xf32>
    %498 = vector.broadcast %497 : vector<1x32xf32> to vector<7x32xf32>
    %499 = arith.addf %496, %498 : vector<7x32xf32>
    %500 = vector.extract_strided_slice %488 {offsets = [0, 64], sizes = [32, 32], strides = [1, 1]} : vector<32x96xf32> to vector<32x32xf32>
    %cst_246 = arith.constant dense<0.000000e+00> : vector<7x32xf32>
    %501 = tpu.matmul %366, %500, %cst_246 {dimension_numbers = #tpu.dot_dimension_numbers<[1], [0], [0], [1], [0, 0, 1, 1], [], []>} : vector<7x32xf32>, vector<32x32xf32>, vector<7x32xf32> -> vector<7x32xf32>
    %502 = vector.extract_strided_slice %489 {offsets = [0, 64], sizes = [1, 32], strides = [1, 1]} : vector<1x96xf32> to vector<1x32xf32>
    %503 = vector.broadcast %502 : vector<1x32xf32> to vector<7x32xf32>
    %504 = arith.addf %501, %503 : vector<7x32xf32>
    %cst_247 = arith.constant 0.353553385 : f32
    %505 = vector.broadcast %cst_247 : f32 to vector<8x32xf32>
    %506 = arith.mulf %494, %505 : vector<8x32xf32>
    %cst_248 = arith.constant 0.000000e+00 : f32
    %507 = vector.broadcast %cst_248 : f32 to vector<8x32xf32>
    %c0_249 = arith.constant 0 : index
    %c0_250 = arith.constant 0 : index
    %508 = vector.load %arg59[%c0_249, %c0_250] : memref<4x32xf32, #tpu.memory_space<vmem>>, vector<1x32xf32>
    %509 = vector.broadcast %508 : vector<1x32xf32> to vector<8x32xf32>
    %510 = arith.mulf %506, %509 : vector<8x32xf32>
    %511 = tpu.transpose %499, [1, 0] : vector<7x32xf32> -> vector<32x7xf32>
    %cst_251 = arith.constant dense<0.000000e+00> : vector<8x7xf32>
    %512 = tpu.matmul %510, %511, %cst_251 {dimension_numbers = #tpu.dot_dimension_numbers<[1], [0], [0], [1], [0, 0, 1, 1], [], []>} : vector<8x32xf32>, vector<32x7xf32>, vector<8x7xf32> -> vector<8x7xf32>
    %cst_252 = arith.constant dense<0xFF800000> : vector<8xf32>
    %513 = vector.multi_reduction <maximumf>, %512, %cst_252 [1] : vector<8x7xf32> to vector<8xf32>
    %514 = vector.shape_cast %513 : vector<8xf32> to vector<8x1xf32>
    %515 = vector.broadcast %514 : vector<8x1xf32> to vector<8x7xf32>
    %516 = arith.subf %512, %515 : vector<8x7xf32>
    %517 = math.exp %516 : vector<8x7xf32>
    %cst_253 = arith.constant dense<0.000000e+00> : vector<8xf32>
    %518 = vector.multi_reduction <add>, %517, %cst_253 [1] : vector<8x7xf32> to vector<8xf32>
    %519 = vector.shape_cast %518 : vector<8xf32> to vector<8x1xf32>
    %520 = vector.broadcast %519 : vector<8x1xf32> to vector<8x7xf32>
    %521 = arith.divf %517, %520 : vector<8x7xf32>
    %522 = vector.broadcast %508 : vector<1x32xf32> to vector<7x32xf32>
    %523 = arith.mulf %504, %522 : vector<7x32xf32>
    %cst_254 = arith.constant dense<0.000000e+00> : vector<8x32xf32>
    %524 = tpu.matmul %521, %523, %cst_254 {dimension_numbers = #tpu.dot_dimension_numbers<[1], [0], [0], [1], [0, 0, 1, 1], [], []>} : vector<8x7xf32>, vector<7x32xf32>, vector<8x32xf32> -> vector<8x32xf32>
    %525 = arith.addf %507, %524 : vector<8x32xf32>
    %c1_255 = arith.constant 1 : index
    %c0_256 = arith.constant 0 : index
    %526 = vector.load %arg59[%c1_255, %c0_256] : memref<4x32xf32, #tpu.memory_space<vmem>>, vector<1x32xf32>
    %527 = vector.broadcast %526 : vector<1x32xf32> to vector<8x32xf32>
    %528 = arith.mulf %506, %527 : vector<8x32xf32>
    %529 = tpu.transpose %499, [1, 0] : vector<7x32xf32> -> vector<32x7xf32>
    %cst_257 = arith.constant dense<0.000000e+00> : vector<8x7xf32>
    %530 = tpu.matmul %528, %529, %cst_257 {dimension_numbers = #tpu.dot_dimension_numbers<[1], [0], [0], [1], [0, 0, 1, 1], [], []>} : vector<8x32xf32>, vector<32x7xf32>, vector<8x7xf32> -> vector<8x7xf32>
    %cst_258 = arith.constant dense<0xFF800000> : vector<8xf32>
    %531 = vector.multi_reduction <maximumf>, %530, %cst_258 [1] : vector<8x7xf32> to vector<8xf32>
    %532 = vector.shape_cast %531 : vector<8xf32> to vector<8x1xf32>
    %533 = vector.broadcast %532 : vector<8x1xf32> to vector<8x7xf32>
    %534 = arith.subf %530, %533 : vector<8x7xf32>
    %535 = math.exp %534 : vector<8x7xf32>
    %cst_259 = arith.constant dense<0.000000e+00> : vector<8xf32>
    %536 = vector.multi_reduction <add>, %535, %cst_259 [1] : vector<8x7xf32> to vector<8xf32>
    %537 = vector.shape_cast %536 : vector<8xf32> to vector<8x1xf32>
    %538 = vector.broadcast %537 : vector<8x1xf32> to vector<8x7xf32>
    %539 = arith.divf %535, %538 : vector<8x7xf32>
    %540 = vector.broadcast %526 : vector<1x32xf32> to vector<7x32xf32>
    %541 = arith.mulf %504, %540 : vector<7x32xf32>
    %cst_260 = arith.constant dense<0.000000e+00> : vector<8x32xf32>
    %542 = tpu.matmul %539, %541, %cst_260 {dimension_numbers = #tpu.dot_dimension_numbers<[1], [0], [0], [1], [0, 0, 1, 1], [], []>} : vector<8x7xf32>, vector<7x32xf32>, vector<8x32xf32> -> vector<8x32xf32>
    %543 = arith.addf %525, %542 : vector<8x32xf32>
    %c2_261 = arith.constant 2 : index
    %c0_262 = arith.constant 0 : index
    %544 = vector.load %arg59[%c2_261, %c0_262] : memref<4x32xf32, #tpu.memory_space<vmem>>, vector<1x32xf32>
    %545 = vector.broadcast %544 : vector<1x32xf32> to vector<8x32xf32>
    %546 = arith.mulf %506, %545 : vector<8x32xf32>
    %547 = tpu.transpose %499, [1, 0] : vector<7x32xf32> -> vector<32x7xf32>
    %cst_263 = arith.constant dense<0.000000e+00> : vector<8x7xf32>
    %548 = tpu.matmul %546, %547, %cst_263 {dimension_numbers = #tpu.dot_dimension_numbers<[1], [0], [0], [1], [0, 0, 1, 1], [], []>} : vector<8x32xf32>, vector<32x7xf32>, vector<8x7xf32> -> vector<8x7xf32>
    %cst_264 = arith.constant dense<0xFF800000> : vector<8xf32>
    %549 = vector.multi_reduction <maximumf>, %548, %cst_264 [1] : vector<8x7xf32> to vector<8xf32>
    %550 = vector.shape_cast %549 : vector<8xf32> to vector<8x1xf32>
    %551 = vector.broadcast %550 : vector<8x1xf32> to vector<8x7xf32>
    %552 = arith.subf %548, %551 : vector<8x7xf32>
    %553 = math.exp %552 : vector<8x7xf32>
    %cst_265 = arith.constant dense<0.000000e+00> : vector<8xf32>
    %554 = vector.multi_reduction <add>, %553, %cst_265 [1] : vector<8x7xf32> to vector<8xf32>
    %555 = vector.shape_cast %554 : vector<8xf32> to vector<8x1xf32>
    %556 = vector.broadcast %555 : vector<8x1xf32> to vector<8x7xf32>
    %557 = arith.divf %553, %556 : vector<8x7xf32>
    %558 = vector.broadcast %544 : vector<1x32xf32> to vector<7x32xf32>
    %559 = arith.mulf %504, %558 : vector<7x32xf32>
    %cst_266 = arith.constant dense<0.000000e+00> : vector<8x32xf32>
    %560 = tpu.matmul %557, %559, %cst_266 {dimension_numbers = #tpu.dot_dimension_numbers<[1], [0], [0], [1], [0, 0, 1, 1], [], []>} : vector<8x7xf32>, vector<7x32xf32>, vector<8x32xf32> -> vector<8x32xf32>
    %561 = arith.addf %543, %560 : vector<8x32xf32>
    %c3_267 = arith.constant 3 : index
    %c0_268 = arith.constant 0 : index
    %562 = vector.load %arg59[%c3_267, %c0_268] : memref<4x32xf32, #tpu.memory_space<vmem>>, vector<1x32xf32>
    %563 = vector.broadcast %562 : vector<1x32xf32> to vector<8x32xf32>
    %564 = arith.mulf %506, %563 : vector<8x32xf32>
    %565 = tpu.transpose %499, [1, 0] : vector<7x32xf32> -> vector<32x7xf32>
    %cst_269 = arith.constant dense<0.000000e+00> : vector<8x7xf32>
    %566 = tpu.matmul %564, %565, %cst_269 {dimension_numbers = #tpu.dot_dimension_numbers<[1], [0], [0], [1], [0, 0, 1, 1], [], []>} : vector<8x32xf32>, vector<32x7xf32>, vector<8x7xf32> -> vector<8x7xf32>
    %cst_270 = arith.constant dense<0xFF800000> : vector<8xf32>
    %567 = vector.multi_reduction <maximumf>, %566, %cst_270 [1] : vector<8x7xf32> to vector<8xf32>
    %568 = vector.shape_cast %567 : vector<8xf32> to vector<8x1xf32>
    %569 = vector.broadcast %568 : vector<8x1xf32> to vector<8x7xf32>
    %570 = arith.subf %566, %569 : vector<8x7xf32>
    %571 = math.exp %570 : vector<8x7xf32>
    %cst_271 = arith.constant dense<0.000000e+00> : vector<8xf32>
    %572 = vector.multi_reduction <add>, %571, %cst_271 [1] : vector<8x7xf32> to vector<8xf32>
    %573 = vector.shape_cast %572 : vector<8xf32> to vector<8x1xf32>
    %574 = vector.broadcast %573 : vector<8x1xf32> to vector<8x7xf32>
    %575 = arith.divf %571, %574 : vector<8x7xf32>
    %576 = vector.broadcast %562 : vector<1x32xf32> to vector<7x32xf32>
    %577 = arith.mulf %504, %576 : vector<7x32xf32>
    %cst_272 = arith.constant dense<0.000000e+00> : vector<8x32xf32>
    %578 = tpu.matmul %575, %577, %cst_272 {dimension_numbers = #tpu.dot_dimension_numbers<[1], [0], [0], [1], [0, 0, 1, 1], [], []>} : vector<8x7xf32>, vector<7x32xf32>, vector<8x32xf32> -> vector<8x32xf32>
    %579 = arith.addf %561, %578 : vector<8x32xf32>
    %c0_273 = arith.constant 0 : index
    %c0_274 = arith.constant 0 : index
    %580 = vector.load %arg31[%c0_273, %c0_274] : memref<32x32xf32, #tpu.memory_space<vmem>>, vector<32x32xf32>
    %cst_275 = arith.constant dense<0.000000e+00> : vector<8x32xf32>
    %581 = tpu.matmul %579, %580, %cst_275 {dimension_numbers = #tpu.dot_dimension_numbers<[1], [0], [0], [1], [0, 0, 1, 1], [], []>} : vector<8x32xf32>, vector<32x32xf32>, vector<8x32xf32> -> vector<8x32xf32>
    %c0_276 = arith.constant 0 : index
    %c0_277 = arith.constant 0 : index
    %582 = vector.load %arg29[%c0_276, %c0_277] : memref<1x32xf32, #tpu.memory_space<vmem>>, vector<1x32xf32>
    %583 = vector.broadcast %582 : vector<1x32xf32> to vector<8x32xf32>
    %584 = arith.addf %581, %583 : vector<8x32xf32>
    %585 = arith.addf %485, %584 : vector<8x32xf32>
    %cst_278 = arith.constant dense<0.000000e+00> : vector<8xf32>
    %586 = vector.multi_reduction <add>, %585, %cst_278 [1] : vector<8x32xf32> to vector<8xf32>
    %587 = vector.shape_cast %586 : vector<8xf32> to vector<8x1xf32>
    %cst_279 = arith.constant 3.200000e+01 : f32
    %588 = vector.broadcast %cst_279 : f32 to vector<8x1xf32>
    %589 = arith.divf %587, %588 : vector<8x1xf32>
    %590 = vector.broadcast %589 : vector<8x1xf32> to vector<8x32xf32>
    %591 = arith.subf %585, %590 : vector<8x32xf32>
    %592 = arith.mulf %591, %591 : vector<8x32xf32>
    %cst_280 = arith.constant dense<0.000000e+00> : vector<8xf32>
    %593 = vector.multi_reduction <add>, %592, %cst_280 [1] : vector<8x32xf32> to vector<8xf32>
    %594 = vector.shape_cast %593 : vector<8xf32> to vector<8x1xf32>
    %cst_281 = arith.constant 3.200000e+01 : f32
    %595 = vector.broadcast %cst_281 : f32 to vector<8x1xf32>
    %596 = arith.divf %594, %595 : vector<8x1xf32>
    %cst_282 = arith.constant 9.99999974E-6 : f32
    %597 = vector.broadcast %cst_282 : f32 to vector<8x1xf32>
    %598 = arith.addf %596, %597 : vector<8x1xf32>
    %599 = math.rsqrt %598 : vector<8x1xf32>
    %600 = vector.broadcast %599 : vector<8x1xf32> to vector<8x32xf32>
    %601 = arith.mulf %591, %600 : vector<8x32xf32>
    %c0_283 = arith.constant 0 : index
    %c0_284 = arith.constant 0 : index
    %602 = vector.load %arg40[%c0_283, %c0_284] : memref<1x32xf32, #tpu.memory_space<vmem>>, vector<1x32xf32>
    %603 = vector.broadcast %602 : vector<1x32xf32> to vector<8x32xf32>
    %604 = arith.mulf %601, %603 : vector<8x32xf32>
    %c0_285 = arith.constant 0 : index
    %c0_286 = arith.constant 0 : index
    %605 = vector.load %arg39[%c0_285, %c0_286] : memref<1x32xf32, #tpu.memory_space<vmem>>, vector<1x32xf32>
    %606 = vector.broadcast %605 : vector<1x32xf32> to vector<8x32xf32>
    %607 = arith.addf %604, %606 : vector<8x32xf32>
    %c0_287 = arith.constant 0 : index
    %c0_288 = arith.constant 0 : index
    %608 = vector.load %arg34[%c0_287, %c0_288] : memref<32x64xf32, #tpu.memory_space<vmem>>, vector<32x64xf32>
    %cst_289 = arith.constant dense<0.000000e+00> : vector<8x64xf32>
    %609 = tpu.matmul %607, %608, %cst_289 {dimension_numbers = #tpu.dot_dimension_numbers<[1], [0], [0], [1], [0, 0, 1, 1], [], []>} : vector<8x32xf32>, vector<32x64xf32>, vector<8x64xf32> -> vector<8x64xf32>
    %c0_290 = arith.constant 0 : index
    %c0_291 = arith.constant 0 : index
    %610 = vector.load %arg33[%c0_290, %c0_291] : memref<1x64xf32, #tpu.memory_space<vmem>>, vector<1x64xf32>
    %611 = vector.broadcast %610 : vector<1x64xf32> to vector<8x64xf32>
    %612 = arith.addf %609, %611 : vector<8x64xf32>
    %cst_292 = arith.constant 0.000000e+00 : f32
    %613 = vector.broadcast %cst_292 : f32 to vector<8x64xf32>
    %614 = arith.maximumf %612, %613 : vector<8x64xf32>
    %c0_293 = arith.constant 0 : index
    %c0_294 = arith.constant 0 : index
    %615 = vector.load %arg36[%c0_293, %c0_294] : memref<64x32xf32, #tpu.memory_space<vmem>>, vector<64x32xf32>
    %cst_295 = arith.constant dense<0.000000e+00> : vector<8x32xf32>
    %616 = tpu.matmul %614, %615, %cst_295 {dimension_numbers = #tpu.dot_dimension_numbers<[1], [0], [0], [1], [0, 0, 1, 1], [], []>} : vector<8x64xf32>, vector<64x32xf32>, vector<8x32xf32> -> vector<8x32xf32>
    %c0_296 = arith.constant 0 : index
    %c0_297 = arith.constant 0 : index
    %617 = vector.load %arg35[%c0_296, %c0_297] : memref<1x32xf32, #tpu.memory_space<vmem>>, vector<1x32xf32>
    %618 = vector.broadcast %617 : vector<1x32xf32> to vector<8x32xf32>
    %619 = arith.addf %616, %618 : vector<8x32xf32>
    %620 = arith.addf %607, %619 : vector<8x32xf32>
    %cst_298 = arith.constant dense<0.000000e+00> : vector<8xf32>
    %621 = vector.multi_reduction <add>, %620, %cst_298 [1] : vector<8x32xf32> to vector<8xf32>
    %622 = vector.shape_cast %621 : vector<8xf32> to vector<8x1xf32>
    %cst_299 = arith.constant 3.200000e+01 : f32
    %623 = vector.broadcast %cst_299 : f32 to vector<8x1xf32>
    %624 = arith.divf %622, %623 : vector<8x1xf32>
    %625 = vector.broadcast %624 : vector<8x1xf32> to vector<8x32xf32>
    %626 = arith.subf %620, %625 : vector<8x32xf32>
    %627 = arith.mulf %626, %626 : vector<8x32xf32>
    %cst_300 = arith.constant dense<0.000000e+00> : vector<8xf32>
    %628 = vector.multi_reduction <add>, %627, %cst_300 [1] : vector<8x32xf32> to vector<8xf32>
    %629 = vector.shape_cast %628 : vector<8xf32> to vector<8x1xf32>
    %cst_301 = arith.constant 3.200000e+01 : f32
    %630 = vector.broadcast %cst_301 : f32 to vector<8x1xf32>
    %631 = arith.divf %629, %630 : vector<8x1xf32>
    %cst_302 = arith.constant 9.99999974E-6 : f32
    %632 = vector.broadcast %cst_302 : f32 to vector<8x1xf32>
    %633 = arith.addf %631, %632 : vector<8x1xf32>
    %634 = math.rsqrt %633 : vector<8x1xf32>
    %635 = vector.broadcast %634 : vector<8x1xf32> to vector<8x32xf32>
    %636 = arith.mulf %626, %635 : vector<8x32xf32>
    %c0_303 = arith.constant 0 : index
    %c0_304 = arith.constant 0 : index
    %637 = vector.load %arg42[%c0_303, %c0_304] : memref<1x32xf32, #tpu.memory_space<vmem>>, vector<1x32xf32>
    %638 = vector.broadcast %637 : vector<1x32xf32> to vector<8x32xf32>
    %639 = arith.mulf %636, %638 : vector<8x32xf32>
    %c0_305 = arith.constant 0 : index
    %c0_306 = arith.constant 0 : index
    %640 = vector.load %arg41[%c0_305, %c0_306] : memref<1x32xf32, #tpu.memory_space<vmem>>, vector<1x32xf32>
    %641 = vector.broadcast %640 : vector<1x32xf32> to vector<8x32xf32>
    %642 = arith.addf %639, %641 : vector<8x32xf32>
    %cst_307 = arith.constant dense<0.000000e+00> : vector<8xf32>
    %643 = vector.multi_reduction <add>, %642, %cst_307 [1] : vector<8x32xf32> to vector<8xf32>
    %644 = vector.shape_cast %643 : vector<8xf32> to vector<8x1xf32>
    %cst_308 = arith.constant 3.200000e+01 : f32
    %645 = vector.broadcast %cst_308 : f32 to vector<8x1xf32>
    %646 = arith.divf %644, %645 : vector<8x1xf32>
    %647 = vector.broadcast %646 : vector<8x1xf32> to vector<8x32xf32>
    %648 = arith.subf %642, %647 : vector<8x32xf32>
    %649 = arith.mulf %648, %648 : vector<8x32xf32>
    %cst_309 = arith.constant dense<0.000000e+00> : vector<8xf32>
    %650 = vector.multi_reduction <add>, %649, %cst_309 [1] : vector<8x32xf32> to vector<8xf32>
    %651 = vector.shape_cast %650 : vector<8xf32> to vector<8x1xf32>
    %cst_310 = arith.constant 3.200000e+01 : f32
    %652 = vector.broadcast %cst_310 : f32 to vector<8x1xf32>
    %653 = arith.divf %651, %652 : vector<8x1xf32>
    %cst_311 = arith.constant 9.99999974E-6 : f32
    %654 = vector.broadcast %cst_311 : f32 to vector<8x1xf32>
    %655 = arith.addf %653, %654 : vector<8x1xf32>
    %656 = math.rsqrt %655 : vector<8x1xf32>
    %657 = vector.broadcast %656 : vector<8x1xf32> to vector<8x32xf32>
    %658 = arith.mulf %648, %657 : vector<8x32xf32>
    %c0_312 = arith.constant 0 : index
    %c0_313 = arith.constant 0 : index
    %659 = vector.load %arg18[%c0_312, %c0_313] : memref<1x32xf32, #tpu.memory_space<vmem>>, vector<1x32xf32>
    %660 = vector.broadcast %659 : vector<1x32xf32> to vector<8x32xf32>
    %661 = arith.mulf %658, %660 : vector<8x32xf32>
    %c0_314 = arith.constant 0 : index
    %c0_315 = arith.constant 0 : index
    %662 = vector.load %arg17[%c0_314, %c0_315] : memref<1x32xf32, #tpu.memory_space<vmem>>, vector<1x32xf32>
    %663 = vector.broadcast %662 : vector<1x32xf32> to vector<8x32xf32>
    %664 = arith.addf %661, %663 : vector<8x32xf32>
    %c0_316 = arith.constant 0 : index
    %c0_317 = arith.constant 0 : index
    %665 = vector.load %arg2[%c0_316, %c0_317] : memref<32x8xf32, #tpu.memory_space<vmem>>, vector<32x8xf32>
    %cst_318 = arith.constant dense<0.000000e+00> : vector<8x8xf32>
    %666 = tpu.matmul %664, %665, %cst_318 {dimension_numbers = #tpu.dot_dimension_numbers<[1], [0], [0], [1], [0, 0, 1, 1], [], []>} : vector<8x32xf32>, vector<32x8xf32>, vector<8x8xf32> -> vector<8x8xf32>
    %c0_319 = arith.constant 0 : index
    %c0_320 = arith.constant 0 : index
    %667 = vector.load %arg1[%c0_319, %c0_320] : memref<1x8xf32, #tpu.memory_space<vmem>>, vector<1x8xf32>
    %668 = vector.broadcast %667 : vector<1x8xf32> to vector<8x8xf32>
    %669 = arith.addf %666, %668 : vector<8x8xf32>
    %c0_321 = arith.constant 0 : index
    %c0_322 = arith.constant 0 : index
    %c0_323 = arith.constant 0 : index
    %670 = vector.load %arg66[%c0_321, %c0_322, %c0_323] : memref<1x8x8xf32, #tpu.memory_space<vmem>>, vector<1x8x8xf32>
    %671 = vector.shape_cast %670 : vector<1x8x8xf32> to vector<8x8xf32>
    %672 = vector.shape_cast %669 : vector<8x8xf32> to vector<1x8x8xf32>
    tpu.vector_store %arg66[%c0_321, %c0_322, %c0_323], %672 {strides = array<i32>} : memref<1x8x8xf32, #tpu.memory_space<vmem>>, vector<1x8x8xf32>,
    %c0_324 = arith.constant 0 : index
    %c0_325 = arith.constant 0 : index
    %673 = vector.load %arg22[%c0_324, %c0_325] : memref<32x1xf32, #tpu.memory_space<vmem>>, vector<32x1xf32>
    %cst_326 = arith.constant dense<0.000000e+00> : vector<8x1xf32>
    %674 = tpu.matmul %664, %673, %cst_326 {dimension_numbers = #tpu.dot_dimension_numbers<[1], [0], [0], [1], [0, 0, 1, 1], [], []>} : vector<8x32xf32>, vector<32x1xf32>, vector<8x1xf32> -> vector<8x1xf32>
    %c0_327 = arith.constant 0 : index
    %c0_328 = arith.constant 0 : index
    %675 = vector.load %arg21[%c0_327, %c0_328] : memref<1x1xf32, #tpu.memory_space<vmem>>, vector<1x1xf32>
    %676 = vector.broadcast %675 : vector<1x1xf32> to vector<8x1xf32>
    %677 = arith.addf %674, %676 : vector<8x1xf32>
    %c0_329 = arith.constant 0 : index
    %c0_330 = arith.constant 0 : index
    %c0_331 = arith.constant 0 : index
    %678 = vector.load %arg67[%c0_329, %c0_330, %c0_331] : memref<1x8x1xf32, #tpu.memory_space<vmem>>, vector<1x8x1xf32>
    %679 = vector.shape_cast %678 : vector<1x8x1xf32> to vector<8x1xf32>
    %680 = vector.shape_cast %677 : vector<8x1xf32> to vector<1x8x1xf32>
    tpu.vector_store %arg67[%c0_329, %c0_330, %c0_331], %680 {strides = array<i32>} : memref<1x8x1xf32, #tpu.memory_space<vmem>>, vector<1x8x1xf32>,
    return
  }
  func.func @transform_0(%arg0: i32) -> (i32, i32) {
    %c0_i32 = arith.constant 0 : i32
    %c0_i32_0 = arith.constant 0 : i32
    %c0_i32_1 = arith.constant 0 : i32
    return %c0_i32, %c0_i32_0 : i32, i32
  }
  func.func @transform_1(%arg0: i32) -> (i32, i32) {
    %c0_i32 = arith.constant 0 : i32
    %c0_i32_0 = arith.constant 0 : i32
    %c0_i32_1 = arith.constant 0 : i32
    return %c0_i32, %c0_i32_0 : i32, i32
  }
  func.func @transform_2(%arg0: i32) -> (i32, i32) {
    %c0_i32 = arith.constant 0 : i32
    %c0_i32_0 = arith.constant 0 : i32
    %c0_i32_1 = arith.constant 0 : i32
    return %c0_i32, %c0_i32_0 : i32, i32
  }
  func.func @transform_3(%arg0: i32) -> (i32, i32) {
    %c0_i32 = arith.constant 0 : i32
    %c0_i32_0 = arith.constant 0 : i32
    %c0_i32_1 = arith.constant 0 : i32
    return %c0_i32, %c0_i32_0 : i32, i32
  }
  func.func @transform_4(%arg0: i32) -> (i32, i32) {
    %c0_i32 = arith.constant 0 : i32
    %c0_i32_0 = arith.constant 0 : i32
    %c0_i32_1 = arith.constant 0 : i32
    return %c0_i32, %c0_i32_0 : i32, i32
  }
  func.func @transform_5(%arg0: i32) -> (i32, i32) {
    %c0_i32 = arith.constant 0 : i32
    %c0_i32_0 = arith.constant 0 : i32
    %c0_i32_1 = arith.constant 0 : i32
    return %c0_i32, %c0_i32_0 : i32, i32
  }
  func.func @transform_6(%arg0: i32) -> (i32, i32) {
    %c0_i32 = arith.constant 0 : i32
    %c0_i32_0 = arith.constant 0 : i32
    %c0_i32_1 = arith.constant 0 : i32
    return %c0_i32, %c0_i32_0 : i32, i32
  }
  func.func @transform_7(%arg0: i32) -> (i32, i32) {
    %c0_i32 = arith.constant 0 : i32
    %c0_i32_0 = arith.constant 0 : i32
    %c0_i32_1 = arith.constant 0 : i32
    return %c0_i32, %c0_i32_0 : i32, i32
  }
  func.func @transform_8(%arg0: i32) -> (i32, i32) {
    %c0_i32 = arith.constant 0 : i32
    %c0_i32_0 = arith.constant 0 : i32
    %c0_i32_1 = arith.constant 0 : i32
    return %c0_i32, %c0_i32_0 : i32, i32
  }
  func.func @transform_9(%arg0: i32) -> (i32, i32) {
    %c0_i32 = arith.constant 0 : i32
    %c0_i32_0 = arith.constant 0 : i32
    %c0_i32_1 = arith.constant 0 : i32
    return %c0_i32, %c0_i32_0 : i32, i32
  }
  func.func @transform_10(%arg0: i32) -> (i32, i32) {
    %c0_i32 = arith.constant 0 : i32
    %c0_i32_0 = arith.constant 0 : i32
    %c0_i32_1 = arith.constant 0 : i32
    return %c0_i32, %c0_i32_0 : i32, i32
  }
  func.func @transform_11(%arg0: i32) -> (i32, i32) {
    %c0_i32 = arith.constant 0 : i32
    %c0_i32_0 = arith.constant 0 : i32
    %c0_i32_1 = arith.constant 0 : i32
    return %c0_i32, %c0_i32_0 : i32, i32
  }
  func.func @transform_12(%arg0: i32) -> (i32, i32) {
    %c0_i32 = arith.constant 0 : i32
    %c0_i32_0 = arith.constant 0 : i32
    %c0_i32_1 = arith.constant 0 : i32
    return %c0_i32, %c0_i32_0 : i32, i32
  }
  func.func @transform_13(%arg0: i32) -> (i32, i32) {
    %c0_i32 = arith.constant 0 : i32
    %c0_i32_0 = arith.constant 0 : i32
    %c0_i32_1 = arith.constant 0 : i32
    return %c0_i32, %c0_i32_0 : i32, i32
  }
  func.func @transform_14(%arg0: i32) -> (i32, i32) {
    %c0_i32 = arith.constant 0 : i32
    %c0_i32_0 = arith.constant 0 : i32
    %c0_i32_1 = arith.constant 0 : i32
    return %c0_i32, %c0_i32_0 : i32, i32
  }
  func.func @transform_15(%arg0: i32) -> (i32, i32) {
    %c0_i32 = arith.constant 0 : i32
    %c0_i32_0 = arith.constant 0 : i32
    %c0_i32_1 = arith.constant 0 : i32
    return %c0_i32, %c0_i32_0 : i32, i32
  }
  func.func @transform_16(%arg0: i32) -> (i32, i32) {
    %c0_i32 = arith.constant 0 : i32
    %c0_i32_0 = arith.constant 0 : i32
    %c0_i32_1 = arith.constant 0 : i32
    return %c0_i32, %c0_i32_0 : i32, i32
  }
  func.func @transform_17(%arg0: i32) -> (i32, i32) {
    %c0_i32 = arith.constant 0 : i32
    %c0_i32_0 = arith.constant 0 : i32
    %c0_i32_1 = arith.constant 0 : i32
    return %c0_i32, %c0_i32_0 : i32, i32
  }
  func.func @transform_18(%arg0: i32) -> (i32, i32) {
    %c0_i32 = arith.constant 0 : i32
    %c0_i32_0 = arith.constant 0 : i32
    %c0_i32_1 = arith.constant 0 : i32
    return %c0_i32, %c0_i32_0 : i32, i32
  }
  func.func @transform_19(%arg0: i32) -> (i32, i32) {
    %c0_i32 = arith.constant 0 : i32
    %c0_i32_0 = arith.constant 0 : i32
    %c0_i32_1 = arith.constant 0 : i32
    return %c0_i32, %c0_i32_0 : i32, i32
  }
  func.func @transform_20(%arg0: i32) -> (i32, i32) {
    %c0_i32 = arith.constant 0 : i32
    %c0_i32_0 = arith.constant 0 : i32
    %c0_i32_1 = arith.constant 0 : i32
    return %c0_i32, %c0_i32_0 : i32, i32
  }
  func.func @transform_21(%arg0: i32) -> (i32, i32) {
    %c0_i32 = arith.constant 0 : i32
    %c0_i32_0 = arith.constant 0 : i32
    %c0_i32_1 = arith.constant 0 : i32
    return %c0_i32, %c0_i32_0 : i32, i32
  }
  func.func @transform_22(%arg0: i32) -> (i32, i32) {
    %c0_i32 = arith.constant 0 : i32
    %c0_i32_0 = arith.constant 0 : i32
    %c0_i32_1 = arith.constant 0 : i32
    return %c0_i32, %c0_i32_0 : i32, i32
  }
  func.func @transform_23(%arg0: i32) -> (i32, i32) {
    %c0_i32 = arith.constant 0 : i32
    %c0_i32_0 = arith.constant 0 : i32
    %c0_i32_1 = arith.constant 0 : i32
    return %c0_i32, %c0_i32_0 : i32, i32
  }
  func.func @transform_24(%arg0: i32) -> (i32, i32) {
    %c0_i32 = arith.constant 0 : i32
    %c0_i32_0 = arith.constant 0 : i32
    %c0_i32_1 = arith.constant 0 : i32
    return %c0_i32, %c0_i32_0 : i32, i32
  }
  func.func @transform_25(%arg0: i32) -> (i32, i32) {
    %c0_i32 = arith.constant 0 : i32
    %c0_i32_0 = arith.constant 0 : i32
    %c0_i32_1 = arith.constant 0 : i32
    return %c0_i32, %c0_i32_0 : i32, i32
  }
  func.func @transform_26(%arg0: i32) -> (i32, i32) {
    %c0_i32 = arith.constant 0 : i32
    %c0_i32_0 = arith.constant 0 : i32
    %c0_i32_1 = arith.constant 0 : i32
    return %c0_i32, %c0_i32_0 : i32, i32
  }
  func.func @transform_27(%arg0: i32) -> (i32, i32) {
    %c0_i32 = arith.constant 0 : i32
    %c0_i32_0 = arith.constant 0 : i32
    %c0_i32_1 = arith.constant 0 : i32
    return %c0_i32, %c0_i32_0 : i32, i32
  }
  func.func @transform_28(%arg0: i32) -> (i32, i32) {
    %c0_i32 = arith.constant 0 : i32
    %c0_i32_0 = arith.constant 0 : i32
    %c0_i32_1 = arith.constant 0 : i32
    return %c0_i32, %c0_i32_0 : i32, i32
  }
  func.func @transform_29(%arg0: i32) -> (i32, i32) {
    %c0_i32 = arith.constant 0 : i32
    %c0_i32_0 = arith.constant 0 : i32
    %c0_i32_1 = arith.constant 0 : i32
    return %c0_i32, %c0_i32_0 : i32, i32
  }
  func.func @transform_30(%arg0: i32) -> (i32, i32) {
    %c0_i32 = arith.constant 0 : i32
    %c0_i32_0 = arith.constant 0 : i32
    %c0_i32_1 = arith.constant 0 : i32
    return %c0_i32, %c0_i32_0 : i32, i32
  }
  func.func @transform_31(%arg0: i32) -> (i32, i32) {
    %c0_i32 = arith.constant 0 : i32
    %c0_i32_0 = arith.constant 0 : i32
    %c0_i32_1 = arith.constant 0 : i32
    return %c0_i32, %c0_i32_0 : i32, i32
  }
  func.func @transform_32(%arg0: i32) -> (i32, i32) {
    %c0_i32 = arith.constant 0 : i32
    %c0_i32_0 = arith.constant 0 : i32
    %c0_i32_1 = arith.constant 0 : i32
    return %c0_i32, %c0_i32_0 : i32, i32
  }
  func.func @transform_33(%arg0: i32) -> (i32, i32) {
    %c0_i32 = arith.constant 0 : i32
    %c0_i32_0 = arith.constant 0 : i32
    %c0_i32_1 = arith.constant 0 : i32
    return %c0_i32, %c0_i32_0 : i32, i32
  }
  func.func @transform_34(%arg0: i32) -> (i32, i32) {
    %c0_i32 = arith.constant 0 : i32
    %c0_i32_0 = arith.constant 0 : i32
    %c0_i32_1 = arith.constant 0 : i32
    return %c0_i32, %c0_i32_0 : i32, i32
  }
  func.func @transform_35(%arg0: i32) -> (i32, i32) {
    %c0_i32 = arith.constant 0 : i32
    %c0_i32_0 = arith.constant 0 : i32
    %c0_i32_1 = arith.constant 0 : i32
    return %c0_i32, %c0_i32_0 : i32, i32
  }
  func.func @transform_36(%arg0: i32) -> (i32, i32) {
    %c0_i32 = arith.constant 0 : i32
    %c0_i32_0 = arith.constant 0 : i32
    %c0_i32_1 = arith.constant 0 : i32
    return %c0_i32, %c0_i32_0 : i32, i32
  }
  func.func @transform_37(%arg0: i32) -> (i32, i32) {
    %c0_i32 = arith.constant 0 : i32
    %c0_i32_0 = arith.constant 0 : i32
    %c0_i32_1 = arith.constant 0 : i32
    return %c0_i32, %c0_i32_0 : i32, i32
  }
  func.func @transform_38(%arg0: i32) -> (i32, i32) {
    %c0_i32 = arith.constant 0 : i32
    %c0_i32_0 = arith.constant 0 : i32
    %c0_i32_1 = arith.constant 0 : i32
    return %c0_i32, %c0_i32_0 : i32, i32
  }
  func.func @transform_39(%arg0: i32) -> (i32, i32) {
    %c0_i32 = arith.constant 0 : i32
    %c0_i32_0 = arith.constant 0 : i32
    %c0_i32_1 = arith.constant 0 : i32
    return %c0_i32, %c0_i32_0 : i32, i32
  }
  func.func @transform_40(%arg0: i32) -> (i32, i32) {
    %c0_i32 = arith.constant 0 : i32
    %c0_i32_0 = arith.constant 0 : i32
    %c0_i32_1 = arith.constant 0 : i32
    return %c0_i32, %c0_i32_0 : i32, i32
  }
  func.func @transform_41(%arg0: i32) -> (i32, i32) {
    %c0_i32 = arith.constant 0 : i32
    %c0_i32_0 = arith.constant 0 : i32
    %c0_i32_1 = arith.constant 0 : i32
    return %c0_i32, %c0_i32_0 : i32, i32
  }
  func.func @transform_42(%arg0: i32) -> (i32, i32) {
    %c0_i32 = arith.constant 0 : i32
    %c0_i32_0 = arith.constant 0 : i32
    %c0_i32_1 = arith.constant 0 : i32
    return %c0_i32, %c0_i32_0 : i32, i32
  }
  func.func @transform_43(%arg0: i32) -> (i32, i32) {
    %c0_i32 = arith.constant 0 : i32
    %c0_i32_0 = arith.constant 0 : i32
    %c0_i32_1 = arith.constant 0 : i32
    return %c0_i32, %c0_i32_0 : i32, i32
  }
  func.func @transform_44(%arg0: i32) -> (i32, i32) {
    %c0_i32 = arith.constant 0 : i32
    %c0_i32_0 = arith.constant 0 : i32
    %c0_i32_1 = arith.constant 0 : i32
    return %c0_i32, %c0_i32_0 : i32, i32
  }
  func.func @transform_45(%arg0: i32) -> (i32, i32) {
    %c0_i32 = arith.constant 0 : i32
    %c0_i32_0 = arith.constant 0 : i32
    %c0_i32_1 = arith.constant 0 : i32
    return %c0_i32, %c0_i32_0 : i32, i32
  }
  func.func @transform_46(%arg0: i32) -> (i32, i32) {
    %c0_i32 = arith.constant 0 : i32
    %c0_i32_0 = arith.constant 0 : i32
    %c0_i32_1 = arith.constant 0 : i32
    return %c0_i32, %c0_i32_0 : i32, i32
  }
  func.func @transform_47(%arg0: i32) -> (i32, i32) {
    %c0_i32 = arith.constant 0 : i32
    %c0_i32_0 = arith.constant 0 : i32
    %c0_i32_1 = arith.constant 0 : i32
    return %c0_i32, %c0_i32_0 : i32, i32
  }
  func.func @transform_48(%arg0: i32) -> (i32, i32) {
    %c0_i32 = arith.constant 0 : i32
    %c0_i32_0 = arith.constant 0 : i32
    %c0_i32_1 = arith.constant 0 : i32
    return %c0_i32, %c0_i32_0 : i32, i32
  }
  func.func @transform_49(%arg0: i32) -> (i32, i32) {
    %c0_i32 = arith.constant 0 : i32
    %c0_i32_0 = arith.constant 0 : i32
    %c0_i32_1 = arith.constant 0 : i32
    return %c0_i32, %c0_i32_0 : i32, i32
  }
  func.func @transform_50(%arg0: i32) -> (i32, i32) {
    %c0_i32 = arith.constant 0 : i32
    %c0_i32_0 = arith.constant 0 : i32
    %c0_i32_1 = arith.constant 0 : i32
    return %c0_i32, %c0_i32_0 : i32, i32
  }
  func.func @transform_51(%arg0: i32) -> (i32, i32) {
    %c0_i32 = arith.constant 0 : i32
    %c0_i32_0 = arith.constant 0 : i32
    %c0_i32_1 = arith.constant 0 : i32
    return %c0_i32, %c0_i32_0 : i32, i32
  }
  func.func @transform_52(%arg0: i32) -> (i32, i32) {
    %c0_i32 = arith.constant 0 : i32
    %c0_i32_0 = arith.constant 0 : i32
    %c0_i32_1 = arith.constant 0 : i32
    return %c0_i32, %c0_i32_0 : i32, i32
  }
  func.func @transform_53(%arg0: i32) -> (i32, i32) {
    %c0_i32 = arith.constant 0 : i32
    %c0_i32_0 = arith.constant 0 : i32
    %c0_i32_1 = arith.constant 0 : i32
    return %c0_i32, %c0_i32_0 : i32, i32
  }
  func.func @transform_54(%arg0: i32) -> (i32, i32) {
    %c0_i32 = arith.constant 0 : i32
    %c0_i32_0 = arith.constant 0 : i32
    %c0_i32_1 = arith.constant 0 : i32
    return %c0_i32, %c0_i32_0 : i32, i32
  }
  func.func @transform_55(%arg0: i32) -> (i32, i32) {
    %c0_i32 = arith.constant 0 : i32
    %c0_i32_0 = arith.constant 0 : i32
    %c0_i32_1 = arith.constant 0 : i32
    return %c0_i32, %c0_i32_0 : i32, i32
  }
  func.func @transform_56(%arg0: i32) -> (i32, i32) {
    %c0_i32 = arith.constant 0 : i32
    %c0_i32_0 = arith.constant 0 : i32
    %c0_i32_1 = arith.constant 0 : i32
    return %c0_i32, %c0_i32_0 : i32, i32
  }
  func.func @transform_57(%arg0: i32) -> (i32, i32) {
    %c0_i32 = arith.constant 0 : i32
    %c0_i32_0 = arith.constant 0 : i32
    %c0_i32_1 = arith.constant 0 : i32
    return %c0_i32, %c0_i32_0 : i32, i32
  }
  func.func @transform_58(%arg0: i32) -> (i32, i32) {
    %c0_i32 = arith.constant 0 : i32
    %c0_i32_0 = arith.constant 0 : i32
    %c0_i32_1 = arith.constant 0 : i32
    return %c0_i32, %c0_i32_0 : i32, i32
  }
  func.func @transform_59(%arg0: i32) -> (i32, i32, i32) {
    %c0_i32 = arith.constant 0 : i32
    %c0_i32_0 = arith.constant 0 : i32
    %c0_i32_1 = arith.constant 0 : i32
    return %arg0, %c0_i32, %c0_i32_0 : i32, i32, i32
  }
  func.func @transform_60(%arg0: i32) -> (i32, i32, i32) {
    %c0_i32 = arith.constant 0 : i32
    %c0_i32_0 = arith.constant 0 : i32
    %c0_i32_1 = arith.constant 0 : i32
    return %arg0, %c0_i32, %c0_i32_0 : i32, i32, i32
  }
  func.func @transform_61(%arg0: i32) -> (i32, i32, i32) {
    %c0_i32 = arith.constant 0 : i32
    %c0_i32_0 = arith.constant 0 : i32
    %c0_i32_1 = arith.constant 0 : i32
    return %arg0, %c0_i32, %c0_i32_0 : i32, i32, i32
  }
  func.func @transform_62(%arg0: i32) -> (i32, i32, i32) {
    %c0_i32 = arith.constant 0 : i32
    %c0_i32_0 = arith.constant 0 : i32
    %c0_i32_1 = arith.constant 0 : i32
    return %arg0, %c0_i32, %c0_i32_0 : i32, i32, i32
  }
  func.func @transform_63(%arg0: i32) -> (i32, i32, i32) {
    %c0_i32 = arith.constant 0 : i32
    %c0_i32_0 = arith.constant 0 : i32
    %c0_i32_1 = arith.constant 0 : i32
    return %arg0, %c0_i32, %c0_i32_0 : i32, i32, i32
  }
  func.func @transform_64(%arg0: i32) -> (i32, i32, i32) {
    %c0_i32 = arith.constant 0 : i32
    %c0_i32_0 = arith.constant 0 : i32
    %c0_i32_1 = arith.constant 0 : i32
    return %arg0, %c0_i32, %c0_i32_0 : i32, i32, i32
  }
  func.func @transform_65(%arg0: i32) -> (i32, i32, i32) {
    %c0_i32 = arith.constant 0 : i32
    %c0_i32_0 = arith.constant 0 : i32
    %c0_i32_1 = arith.constant 0 : i32
    return %arg0, %c0_i32, %c0_i32_0 : i32, i32, i32
  }
  func.func @transform_66(%arg0: i32) -> (i32, i32, i32) {
    %c0_i32 = arith.constant 0 : i32
    %c0_i32_0 = arith.constant 0 : i32
    %c0_i32_1 = arith.constant 0 : i32
    return %arg0, %c0_i32, %c0_i32_0 : i32, i32, i32
  }
  func.func @transform_67(%arg0: i32) -> (i32, i32, i32) {
    %c0_i32 = arith.constant 0 : i32
    %c0_i32_0 = arith.constant 0 : i32
    %c0_i32_1 = arith.constant 0 : i32
    return %arg0, %c0_i32, %c0_i32_0 : i32, i32, i32
  }
  func.func @transform_68(%arg0: i32) -> (i32, i32, i32) {
    %c0_i32 = arith.constant 0 : i32
    %c0_i32_0 = arith.constant 0 : i32
    %c0_i32_1 = arith.constant 0 : i32
    return %arg0, %c0_i32, %c0_i32_0 : i32, i32, i32
  }
}

</mosaic_0001>

<llo_original>
// kernel: _lambda_.1
$region0: #{_lambda_.1}
  #allocation0 [shape = 'u32[]', space=smem, size = 0x4, offset = 0x4, fixed_abs, tag = 'smem constant byte address 0x4 - core index']
  #allocation1 [shape = 'u32[144,128]{1,0:T(1,128)}', space=vmem, size = 0x12000, scoped, tag = 'internal scratch']
  #allocation2 [shape = 'f32[14,32]{1,0:T(8,128)}', space=vmem, size = 0x2000, scoped, tag = 'scratch operand']
  #allocation3 [shape = 'f32[7,32]{1,0:T(8,128)}', space=vmem, size = 0x1000, scoped, tag = 'scratch operand']
  #allocation4 [shape = 'f32[1,1]{1,0:T(1,128)S(1)}', space=vmem, size = 0x200, scoped, tag = 'scoped memory for _lambda_.1']
  %s0 = inlined_call_operand.smem [shape: u32[69], index: -1, kind: input, shape index: {}]
  %s1 = sld [smem:[%s0]]
  %s2 = scalar_lea.smem %s0, 1
  %s3 = sld [smem:[%s2]]
  %s4 = scalar_lea.smem %s0, 2
  %s5 = sld [smem:[%s4]]
  %s6 = scalar_lea.smem %s0, 3
  %s7 = sld [smem:[%s6]]
  %s8 = scalar_lea.smem %s0, 4
  %s9 = sld [smem:[%s8]]
  %s10 = scalar_lea.smem %s0, 5
  %s11 = sld [smem:[%s10]]
  %s12 = scalar_lea.smem %s0, 6
  %s13 = sld [smem:[%s12]]
  %s14 = scalar_lea.smem %s0, 7
  %s15 = sld [smem:[%s14]]
  %s16 = scalar_lea.smem %s0, 8
  %s17 = sld [smem:[%s16]]
  %s18 = scalar_lea.smem %s0, 9
  %s19 = sld [smem:[%s18]]
  %s20 = scalar_lea.smem %s0, 10
  %s21 = sld [smem:[%s20]]
  %s22 = scalar_lea.smem %s0, 11
  %s23 = sld [smem:[%s22]]
  %s24 = scalar_lea.smem %s0, 12
  %s25 = sld [smem:[%s24]]
  %s26 = scalar_lea.smem %s0, 13
  %s27 = sld [smem:[%s26]]
  %s28 = scalar_lea.smem %s0, 14
  %s29 = sld [smem:[%s28]]
  %s30 = scalar_lea.smem %s0, 15
  %s31 = sld [smem:[%s30]]
  %s32 = scalar_lea.smem %s0, 16
  %s33 = sld [smem:[%s32]]
  %s34 = scalar_lea.smem %s0, 17
  %s35 = sld [smem:[%s34]]
  %s36 = scalar_lea.smem %s0, 18
  %s37 = sld [smem:[%s36]]
  %s38 = scalar_lea.smem %s0, 19
  %s39 = sld [smem:[%s38]]
  %s40 = scalar_lea.smem %s0, 20
  %s41 = sld [smem:[%s40]]
  %s42 = scalar_lea.smem %s0, 21
  %s43 = sld [smem:[%s42]]
  %s44 = scalar_lea.smem %s0, 22
  %s45 = sld [smem:[%s44]]
  %s46 = scalar_lea.smem %s0, 23
  %s47 = sld [smem:[%s46]]
  %s48 = scalar_lea.smem %s0, 24
  %s49 = sld [smem:[%s48]]
  %s50 = scalar_lea.smem %s0, 25
  %s51 = sld [smem:[%s50]]
  %s52 = scalar_lea.smem %s0, 26
  %s53 = sld [smem:[%s52]]
  %s54 = scalar_lea.smem %s0, 27
  %s55 = sld [smem:[%s54]]
  %s56 = scalar_lea.smem %s0, 28
  %s57 = sld [smem:[%s56]]
  %s58 = scalar_lea.smem %s0, 29
  %s59 = sld [smem:[%s58]]
  %s60 = scalar_lea.smem %s0, 30
  %s61 = sld [smem:[%s60]]
  %s62 = scalar_lea.smem %s0, 31
  %s63 = sld [smem:[%s62]]
  %s64 = scalar_lea.smem %s0, 32
  %s65 = sld [smem:[%s64]]
  %s66 = scalar_lea.smem %s0, 33
  %s67 = sld [smem:[%s66]]
  %s68 = scalar_lea.smem %s0, 34
  %s69 = sld [smem:[%s68]]
  %s70 = scalar_lea.smem %s0, 35
  %s71 = sld [smem:[%s70]]
  %s72 = scalar_lea.smem %s0, 36
  %s73 = sld [smem:[%s72]]
  %s74 = scalar_lea.smem %s0, 37
  %s75 = sld [smem:[%s74]]
  %s76 = scalar_lea.smem %s0, 38
  %s77 = sld [smem:[%s76]]
  %s78 = scalar_lea.smem %s0, 39
  %s79 = sld [smem:[%s78]]
  %s80 = scalar_lea.smem %s0, 40
  %s81 = sld [smem:[%s80]]
  %s82 = scalar_lea.smem %s0, 41
  %s83 = sld [smem:[%s82]]
  %s84 = scalar_lea.smem %s0, 42
  %s85 = sld [smem:[%s84]]
  %s86 = scalar_lea.smem %s0, 43
  %s87 = sld [smem:[%s86]]
  %s88 = scalar_lea.smem %s0, 44
  %s89 = sld [smem:[%s88]]
  %s90 = scalar_lea.smem %s0, 45
  %s91 = sld [smem:[%s90]]
  %s92 = scalar_lea.smem %s0, 46
  %s93 = sld [smem:[%s92]]
  %s94 = scalar_lea.smem %s0, 47
  %s95 = sld [smem:[%s94]]
  %s96 = scalar_lea.smem %s0, 48
  %s97 = sld [smem:[%s96]]
  %s98 = scalar_lea.smem %s0, 49
  %s99 = sld [smem:[%s98]]
  %s100 = scalar_lea.smem %s0, 50
  %s101 = sld [smem:[%s100]]
  %s102 = scalar_lea.smem %s0, 51
  %s103 = sld [smem:[%s102]]
  %s104 = scalar_lea.smem %s0, 52
  %s105 = sld [smem:[%s104]]
  %s106 = scalar_lea.smem %s0, 53
  %s107 = sld [smem:[%s106]]
  %s108 = scalar_lea.smem %s0, 54
  %s109 = sld [smem:[%s108]]
  %s110 = scalar_lea.smem %s0, 55
  %s111 = sld [smem:[%s110]]
  %s112 = scalar_lea.smem %s0, 56
  %s113 = sld [smem:[%s112]]
  %s114 = scalar_lea.smem %s0, 57
  %s115 = sld [smem:[%s114]]
  %s116 = scalar_lea.smem %s0, 58
  %s117 = sld [smem:[%s116]]
  %s118 = scalar_lea.smem %s0, 59
  %s119 = sld [smem:[%s118]]
  %s120 = scalar_lea.smem %s0, 60
  %s121 = sld [smem:[%s120]]
  %s122 = scalar_lea.smem %s0, 61
  %s123 = sld [smem:[%s122]]
  %s124 = scalar_lea.smem %s0, 62
  %s125 = sld [smem:[%s124]]
  %s126 = scalar_lea.smem %s0, 63
  %s127 = sld [smem:[%s126]]
  %s128 = scalar_lea.smem %s0, 64
  %s129 = sld [smem:[%s128]]
  %s130 = scalar_lea.smem %s0, 65
  %s131 = sld [smem:[%s130]]
  %s132 = scalar_lea.smem %s0, 66
  %s133 = sld [smem:[%s132]]
  %s134 = scalar_lea.smem %s0, 67
  %s135 = sld [smem:[%s134]]
  %s136 = scalar_lea.smem %s0, 68
  %s137 = sld [smem:[%s136]]
  %138 = xla_tuple %s131, %s133, %s135, %s137
  %s139 = sld [smem:[#allocation0]]
  $region401: #{_lambda_.1} parent=0
    _
  %s141 = ssub.s32 1, %s139
  %s142 = scalar_select 0, %s141, %s139
  %v143 = vstv %s41
  %144 = vst [vmem:[#allocation4] sm:$0x1] %v143
  $region1: #{_lambda_.1} parent=0
    #allocation5 [shape = 'u8[512]{0}', space=vmem, size = 0x400, scoped, tag = 'input window, operand 0, single buffered']
    #allocation6 [shape = 's32[2]{0}', space=sflag, size = 0x8, scoped, tag = 'scoped memory for _lambda_.1']
    #allocation7 [shape = 's32[2]{0}', space=sflag, size = 0x8, scoped, tag = 'scoped memory for _lambda_.1']
    #allocation8 [shape = 'u8[4096]{0}', space=vmem, size = 0x1000, scoped, tag = 'input window, operand 2, single buffered']
    #allocation9 [shape = 's32[1]{0}', space=sflag, size = 0x4, scoped, tag = 'scoped memory for _lambda_.1']
    #allocation10 [shape = 'u8[512]{0}', space=vmem, size = 0x400, scoped, tag = 'input window, operand 3, single buffered']
    #allocation11 [shape = 'u8[512]{0}', space=vmem, size = 0x400, scoped, tag = 'input window, operand 4, single buffered']
    #allocation12 [shape = 's32[1]{0}', space=sflag, size = 0x4, scoped, tag = 'scoped memory for _lambda_.1']
    #allocation13 [shape = 'u8[512]{0}', space=vmem, size = 0x400, scoped, tag = 'input window, operand 6, single buffered']
    #allocation14 [shape = 'u8[512]{0}', space=vmem, size = 0x400, scoped, tag = 'input window, operand 8, single buffered']
    #allocation15 [shape = 's32[1]{0}', space=sflag, size = 0x4, scoped, tag = 'scoped memory for _lambda_.1']
    #allocation16 [shape = 'u8[512]{0}', space=vmem, size = 0x400, scoped, tag = 'input window, operand 9, single buffered']
    #allocation17 [shape = 'u8[512]{0}', space=vmem, size = 0x400, scoped, tag = 'input window, operand 10, single buffered']
    #allocation18 [shape = 's32[1]{0}', space=sflag, size = 0x4, scoped, tag = 'scoped memory for _lambda_.1']
    #allocation19 [shape = 'u8[512]{0}', space=vmem, size = 0x400, scoped, tag = 'input window, operand 11, single buffered']
    #allocation20 [shape = 'u8[512]{0}', space=vmem, size = 0x400, scoped, tag = 'input window, operand 12, single buffered']
    #allocation21 [shape = 's32[1]{0}', space=sflag, size = 0x4, scoped, tag = 'scoped memory for _lambda_.1']
    #allocation22 [shape = 'u8[512]{0}', space=vmem, size = 0x400, scoped, tag = 'input window, operand 13, single buffered']
    #allocation23 [shape = 'u8[512]{0}', space=vmem, size = 0x400, scoped, tag = 'input window, operand 16, single buffered']
    #allocation24 [shape = 's32[1]{0}', space=sflag, size = 0x4, scoped, tag = 'scoped memory for _lambda_.1']
    #allocation25 [shape = 'u8[512]{0}', space=vmem, size = 0x400, scoped, tag = 'input window, operand 17, single buffered']
    #allocation26 [shape = 'u8[512]{0}', space=vmem, size = 0x400, scoped, tag = 'input window, operand 18, single buffered']
    #allocation27 [shape = 's32[1]{0}', space=sflag, size = 0x4, scoped, tag = 'scoped memory for _lambda_.1']
    #allocation28 [shape = 'u8[4096]{0}', space=vmem, size = 0x1000, scoped, tag = 'input window, operand 19, single buffered']
    #allocation29 [shape = 'u8[512]{0}', space=vmem, size = 0x400, scoped, tag = 'input window, operand 22, single buffered']
    #allocation30 [shape = 's32[1]{0}', space=sflag, size = 0x4, scoped, tag = 'scoped memory for _lambda_.1']
    #allocation31 [shape = 'u8[512]{0}', space=vmem, size = 0x400, scoped, tag = 'input window, operand 24, single buffered']
    #allocation32 [shape = 'u8[4096]{0}', space=vmem, size = 0x1000, scoped, tag = 'input window, operand 27, single buffered']
    #allocation33 [shape = 's32[1]{0}', space=sflag, size = 0x4, scoped, tag = 'scoped memory for _lambda_.1']
    #allocation34 [shape = 'u8[512]{0}', space=vmem, size = 0x400, scoped, tag = 'input window, operand 28, single buffered']
    #allocation35 [shape = 'u8[512]{0}', space=vmem, size = 0x400, scoped, tag = 'input window, operand 29, single buffered']
    #allocation36 [shape = 's32[1]{0}', space=sflag, size = 0x4, scoped, tag = 'scoped memory for _lambda_.1']
    #allocation37 [shape = 'u8[512]{0}', space=vmem, size = 0x400, scoped, tag = 'input window, operand 32, single buffered']
    #allocation38 [shape = 'u8[8192]{0}', space=vmem, size = 0x2000, scoped, tag = 'output window, operand 0']
    #allocation39 [shape = 'u8[1024]{0}', space=vmem, size = 0x400, scoped, tag = 'output window, operand 2']
    #allocation40 [shape = 's32[2]{0}', space=sflag, size = 0x8, scoped, tag = 'scoped memory for _lambda_.1']
    #allocation41 [shape = 'u8[1024]{0}', space=vmem, size = 0x400, scoped, tag = 'output window, operand 3']
    %145 = vsyncpa [#allocation6], 0
    %146 = vsyncpa [#allocation9], 0
    %147 = vsyncpa [#allocation12], 0
    %148 = vsyncpa [#allocation15], 0
    %149 = vsyncpa [#allocation18], 0
    %150 = vsyncpa [#allocation21], 0
    %151 = vsyncpa [#allocation24], 0
    %152 = vsyncpa [#allocation27], 0
    %153 = vsyncpa [#allocation30], 0
    %154 = vsyncpa [#allocation33], 0
    %155 = vsyncpa [#allocation36], 0
    %156 = vsyncpa [#allocation7], 0
    %s157 = scalar_lea.sflag [#allocation7], 1
    %158 = vsyncpa %s157, 0
    %159 = vsyncpa [#allocation40], 0
    %s160 = scalar_lea.sflag [#allocation40], 1
    %161 = vsyncpa %s160, 0
    loop: start=0, step=1, limit=4
    $region2: #{_lambda_.1} parent=1 // loop_pre_header
      _
    $region3: #{_lambda_.1} parent=1 // loop_header
      %s163 = sphi 0, %s167
      %p164 = scmp.ge.s32.totalorder %s163, 4
      %s171 = sphi 0, %s171
      %s173 = sphi 0, %s171
      %s174 = sphi 0, %s173
      %s188 = sphi 0, %s174
      %s192 = sphi 0, %s192
      %s194 = sphi 0, %s192
      %s195 = sphi 0, %s194
      %s209 = sphi 0, %s195
      %s213 = sphi 0, %s213
      %s215 = sphi 0, %s213
      %s216 = sphi 0, %s215
      %s230 = sphi 0, %s216
      %s234 = sphi 0, %s234
      %s236 = sphi 0, %s234
      %s237 = sphi 0, %s236
      %s251 = sphi 0, %s237
      %s255 = sphi 0, %s255
      %s257 = sphi 0, %s255
      %s258 = sphi 0, %s257
      %s272 = sphi 0, %s258
      %s276 = sphi 0, %s276
      %s278 = sphi 0, %s276
      %s279 = sphi 0, %s278
      %s293 = sphi 0, %s279
      %s297 = sphi 0, %s297
      %s299 = sphi 0, %s297
      %s300 = sphi 0, %s299
      %s314 = sphi 0, %s300
      %s318 = sphi 0, %s318
      %s320 = sphi 0, %s318
      %s321 = sphi 0, %s320
      %s335 = sphi 0, %s321
      %s339 = sphi 0, %s339
      %s341 = sphi 0, %s339
      %s342 = sphi 0, %s341
      %s356 = sphi 0, %s342
      %s360 = sphi 0, %s360
      %s362 = sphi 0, %s360
      %s363 = sphi 0, %s362
      %s377 = sphi 0, %s363
      %s381 = sphi 0, %s381
      %s383 = sphi 0, %s381
      %s384 = sphi 0, %s383
      %s398 = sphi 0, %s384
      %s402 = sphi 0, %s402
      %s404 = sphi 0, %s402
      %s405 = sphi 0, %s404
      %s419 = sphi 0, %s405
      %s423 = sphi 0, %s423
      %s425 = sphi 0, %s423
      %s426 = sphi 0, %s425
      %s440 = sphi 0, %s426
      %s444 = sphi 0, %s444
      %s446 = sphi 0, %s444
      %s447 = sphi 0, %s446
      %s461 = sphi 0, %s447
      %s465 = sphi 0, %s465
      %s467 = sphi 0, %s465
      %s468 = sphi 0, %s467
      %s482 = sphi 0, %s468
      %s486 = sphi 0, %s486
      %s488 = sphi 0, %s486
      %s489 = sphi 0, %s488
      %s503 = sphi 0, %s489
      %s507 = sphi 0, %s507
      %s509 = sphi 0, %s507
      %s510 = sphi 0, %s509
      %s524 = sphi 0, %s510
      %s528 = sphi 0, %s528
      %s530 = sphi 0, %s528
      %s531 = sphi 0, %s530
      %s545 = sphi 0, %s531
      %s549 = sphi 0, %s549
      %s551 = sphi 0, %s549
      %s552 = sphi 0, %s551
      %s566 = sphi 0, %s552
      %s570 = sphi 0, %s570
      %s572 = sphi 0, %s570
      %s573 = sphi 0, %s572
      %s587 = sphi 0, %s573
      %s591 = sphi 0, %s591
      %s593 = sphi 0, %s591
      %s594 = sphi 0, %s593
      %s608 = sphi 0, %s594
      %s612 = sphi 0, %s612
      %s614 = sphi 0, %s612
      %s615 = sphi 0, %s614
      %s629 = sphi 0, %s615
      %s633 = sphi 0, %s633
      %s635 = sphi 0, %s633
      %s636 = sphi 0, %s635
      %s650 = sphi 0, %s636
      %s654 = sphi 0, %s654
      %s656 = sphi 0, %s654
      %s657 = sphi 0, %s656
      %s671 = sphi 0, %s657
      %s675 = sphi 0, %s675
      %s677 = sphi 0, %s675
      %s678 = sphi 0, %s677
      %s692 = sphi 0, %s678
      %s696 = sphi 0, %s696
      %s698 = sphi 0, %s696
      %s699 = sphi 0, %s698
      %s713 = sphi 0, %s699
      %s717 = sphi 0, %s717
      %s719 = sphi 0, %s717
      %s720 = sphi 0, %s719
      %s734 = sphi 0, %s720
      %s738 = sphi 0, %s738
      %s740 = sphi 0, %s738
      %s741 = sphi 0, %s740
      %s755 = sphi 0, %s741
      %s759 = sphi 0, %s759
      %s761 = sphi 0, %s759
      %s762 = sphi 0, %s761
      %s776 = sphi 0, %s762
      %s780 = sphi 0, %s780
      %s782 = sphi 0, %s780
      %s783 = sphi 0, %s782
      %s797 = sphi 0, %s783
      %s801 = sphi 0, %s801
      %s803 = sphi 0, %s801
      %s804 = sphi 0, %s803
      %s818 = sphi 0, %s804
      %s822 = sphi 0, %s822
      %s824 = sphi 0, %s822
      %s825 = sphi 0, %s824
      %s839 = sphi 0, %s825
      %s843 = sphi 0, %s843
      %s845 = sphi 0, %s843
      %s846 = sphi 0, %s845
      %s860 = sphi 0, %s846
      %s864 = sphi 0, %s864
      %s866 = sphi 0, %s864
      %s867 = sphi 0, %s866
      %s881 = sphi 0, %s867
      %s885 = sphi 0, %s885
      %s887 = sphi 0, %s885
      %s888 = sphi 0, %s887
      %s902 = sphi 0, %s888
      %s906 = sphi 0, %s906
      %s908 = sphi 0, %s906
      %s909 = sphi 0, %s908
      %s923 = sphi 0, %s909
      %s927 = sphi 0, %s927
      %s929 = sphi 0, %s927
      %s930 = sphi 0, %s929
      %s944 = sphi 0, %s930
      %s948 = sphi 0, %s948
      %s950 = sphi 0, %s948
      %s951 = sphi 0, %s950
      %s965 = sphi 0, %s951
      %s969 = sphi 0, %s969
      %s971 = sphi 0, %s969
      %s972 = sphi 0, %s971
      %s986 = sphi 0, %s972
      %s990 = sphi 0, %s990
      %s992 = sphi 0, %s990
      %s993 = sphi 0, %s992
      %s1007 = sphi 0, %s993
      %s1011 = sphi 0, %s1011
      %s1013 = sphi 0, %s1011
      %s1014 = sphi 0, %s1013
      %s1028 = sphi 0, %s1014
      %s1032 = sphi 0, %s1032
      %s1034 = sphi 0, %s1032
      %s1035 = sphi 0, %s1034
      %s1049 = sphi 0, %s1035
      %s1053 = sphi 0, %s1053
      %s1055 = sphi 0, %s1053
      %s1056 = sphi 0, %s1055
      %s1070 = sphi 0, %s1056
      %s1074 = sphi 0, %s1074
      %s1076 = sphi 0, %s1074
      %s1077 = sphi 0, %s1076
      %s1091 = sphi 0, %s1077
      %s1095 = sphi 0, %s1095
      %s1097 = sphi 0, %s1095
      %s1098 = sphi 0, %s1097
      %s1112 = sphi 0, %s1098
      %s1116 = sphi 0, %s1116
      %s1118 = sphi 0, %s1116
      %s1119 = sphi 0, %s1118
      %s1133 = sphi 0, %s1119
      %s1137 = sphi 0, %s1137
      %s1139 = sphi 0, %s1137
      %s1140 = sphi 0, %s1139
      %s1154 = sphi 0, %s1140
      %s1158 = sphi 0, %s1158
      %s1160 = sphi 0, %s1158
      %s1161 = sphi 0, %s1160
      %s1175 = sphi 0, %s1161
      %s1179 = sphi 0, %s1179
      %s1181 = sphi 0, %s1179
      %s1182 = sphi 0, %s1181
      %s1196 = sphi 0, %s1182
      %s1200 = sphi 0, %s1200
      %s1202 = sphi 0, %s1200
      %s1203 = sphi 0, %s1202
      %s1217 = sphi 0, %s1203
      %s1221 = sphi 0, %s1221
      %s1223 = sphi 0, %s1221
      %s1224 = sphi 0, %s1223
      %s1238 = sphi 0, %s1224
      %s1242 = sphi 0, %s1242
      %s1244 = sphi 0, %s1242
      %s1245 = sphi 0, %s1244
      %s1259 = sphi 0, %s1245
      %s1263 = sphi 0, %s1263
      %s1265 = sphi 0, %s1263
      %s1266 = sphi 0, %s1265
      %s1280 = sphi 0, %s1266
      %s1284 = sphi 0, %s1284
      %s1286 = sphi 0, %s1284
      %s1287 = sphi 0, %s1286
      %s1301 = sphi 0, %s1287
      %s1305 = sphi 0, %s1305
      %s1307 = sphi 0, %s1305
      %s1308 = sphi 0, %s1307
      %s1322 = sphi 0, %s1308
      %s1326 = sphi 0, %s1326
      %s1328 = sphi 0, %s1326
      %s1329 = sphi 0, %s1328
      %s1343 = sphi 0, %s1329
      %s1347 = sphi 0, %s1347
      %s1349 = sphi 0, %s1347
      %s1350 = sphi 0, %s1349
      %s1364 = sphi 0, %s1350
      %s1368 = sphi 0, %s1368
      %s1370 = sphi 0, %s1368
      %s1371 = sphi 0, %s1370
      %s1385 = sphi 0, %s1371
      %s1389 = sphi 0, %s1389
      %s1391 = sphi 0, %s1389
      %s1392 = sphi 0, %s1391
      %s1406 = sphi 0, %s1392
      %s1412 = sphi 0, %s1414
      %s1415 = sphi 0, %s1412
      %s1416 = sphi 0, %s1415
      %s1432 = sphi 0, %s1416
      %s1438 = sphi 0, %s1440
      %s1441 = sphi 0, %s1438
      %s1442 = sphi 0, %s1441
      %s1458 = sphi 0, %s1442
      %s1464 = sphi 0, %s1466
      %s1467 = sphi 0, %s1464
      %s1468 = sphi 0, %s1467
      %s1484 = sphi 0, %s1468
      %s1490 = sphi 0, %s1492
      %s1493 = sphi 0, %s1490
      %s1494 = sphi 0, %s1493
      %s1510 = sphi 0, %s1494
      %s1516 = sphi 0, %s1518
      %s1519 = sphi 0, %s1516
      %s1520 = sphi 0, %s1519
      %s1536 = sphi 0, %s1520
      %s1542 = sphi 0, %s1544
      %s1545 = sphi 0, %s1542
      %s1546 = sphi 0, %s1545
      %s1562 = sphi 0, %s1546
      %s1568 = sphi 0, %s1570
      %s1571 = sphi 0, %s1568
      %s1572 = sphi 0, %s1571
      %s1588 = sphi 0, %s1572
      %s1594 = sphi 0, %s1596
      %s1597 = sphi 0, %s1594
      %s1598 = sphi 0, %s1597
      %s1614 = sphi 0, %s1598
      %s1620 = sphi 0, %s1622
      %s1623 = sphi 0, %s1620
      %s1624 = sphi 0, %s1623
      %s1640 = sphi 0, %s1624
      %s1646 = sphi 0, %s1648
      %s1649 = sphi 0, %s1646
      %s1650 = sphi 0, %s1649
      %s1666 = sphi 0, %s1650
    $region4: #{_lambda_.1} parent=1 // loop_header_branch
      %166 = sbr.rel (%p164) target = $region8
    $region5: #{_lambda_.1} parent=1 // loop_body
      %s168 = ssub.s32 %s163, 1
      %s169 = ssub.s32 %s163, 2
      %s170 = sadd.s32 %s163, 1
      %s172 = sadd.s32 %s171, 1
      %p175 = scmp.eq.s32.totalorder %s163, 1
      %p176 = scmp.ne.s32.totalorder %s171, %s173
      %p177 = scmp.eq.s32.totalorder %s163, 0
      %p178 = por %p176, %p177
      %p179 = scmp.ne.s32.totalorder %s171, %s173
      %p180 = scmp.eq.s32.totalorder %s168, 1
      %p181 = por %p179, %p180
      %p182 = scmp.ne.s32.totalorder %s173, %s174
      %p183 = scmp.eq.s32.totalorder %s168, 0
      %p184 = por %p182, %p183
      %p185 = scmp.ne.s32.totalorder %s173, %s174
      %p186 = scmp.eq.s32.totalorder %s169, 1
      %p187 = por %p185, %p186
      %p189 = scmp.ne.s32.totalorder %s174, %s188
      %p190 = scmp.eq.s32.totalorder %s169, 0
      %p191 = por %p189, %p190
      %s193 = sadd.s32 %s192, 1
      %p196 = scmp.eq.s32.totalorder %s163, 1
      %p197 = scmp.ne.s32.totalorder %s192, %s194
      %p198 = scmp.eq.s32.totalorder %s163, 0
      %p199 = por %p197, %p198
      %p200 = scmp.ne.s32.totalorder %s192, %s194
      %p201 = scmp.eq.s32.totalorder %s168, 1
      %p202 = por %p200, %p201
      %p203 = scmp.ne.s32.totalorder %s194, %s195
      %p204 = scmp.eq.s32.totalorder %s168, 0
      %p205 = por %p203, %p204
      %p206 = scmp.ne.s32.totalorder %s194, %s195
      %p207 = scmp.eq.s32.totalorder %s169, 1
      %p208 = por %p206, %p207
      %p210 = scmp.ne.s32.totalorder %s195, %s209
      %p211 = scmp.eq.s32.totalorder %s169, 0
      %p212 = por %p210, %p211
      %s214 = sadd.s32 %s213, 1
      %p217 = scmp.eq.s32.totalorder %s163, 1
      %p218 = scmp.ne.s32.totalorder %s213, %s215
      %p219 = scmp.eq.s32.totalorder %s163, 0
      %p220 = por %p218, %p219
      %p221 = scmp.ne.s32.totalorder %s213, %s215
      %p222 = scmp.eq.s32.totalorder %s168, 1
      %p223 = por %p221, %p222
      %p224 = scmp.ne.s32.totalorder %s215, %s216
      %p225 = scmp.eq.s32.totalorder %s168, 0
      %p226 = por %p224, %p225
      %p227 = scmp.ne.s32.totalorder %s215, %s216
      %p228 = scmp.eq.s32.totalorder %s169, 1
      %p229 = por %p227, %p228
      %p231 = scmp.ne.s32.totalorder %s216, %s230
      %p232 = scmp.eq.s32.totalorder %s169, 0
      %p233 = por %p231, %p232
      %s235 = sadd.s32 %s234, 1
      %p238 = scmp.eq.s32.totalorder %s163, 1
      %p239 = scmp.ne.s32.totalorder %s234, %s236
      %p240 = scmp.eq.s32.totalorder %s163, 0
      %p241 = por %p239, %p240
      %p242 = scmp.ne.s32.totalorder %s234, %s236
      %p243 = scmp.eq.s32.totalorder %s168, 1
      %p244 = por %p242, %p243
      %p245 = scmp.ne.s32.totalorder %s236, %s237
      %p246 = scmp.eq.s32.totalorder %s168, 0
      %p247 = por %p245, %p246
      %p248 = scmp.ne.s32.totalorder %s236, %s237
      %p249 = scmp.eq.s32.totalorder %s169, 1
      %p250 = por %p248, %p249
      %p252 = scmp.ne.s32.totalorder %s237, %s251
      %p253 = scmp.eq.s32.totalorder %s169, 0
      %p254 = por %p252, %p253
      %s256 = sadd.s32 %s255, 1
      %p259 = scmp.eq.s32.totalorder %s163, 1
      %p260 = scmp.ne.s32.totalorder %s255, %s257
      %p261 = scmp.eq.s32.totalorder %s163, 0
      %p262 = por %p260, %p261
      %p263 = scmp.ne.s32.totalorder %s255, %s257
      %p264 = scmp.eq.s32.totalorder %s168, 1
      %p265 = por %p263, %p264
      %p266 = scmp.ne.s32.totalorder %s257, %s258
      %p267 = scmp.eq.s32.totalorder %s168, 0
      %p268 = por %p266, %p267
      %p269 = scmp.ne.s32.totalorder %s257, %s258
      %p270 = scmp.eq.s32.totalorder %s169, 1
      %p271 = por %p269, %p270
      %p273 = scmp.ne.s32.totalorder %s258, %s272
      %p274 = scmp.eq.s32.totalorder %s169, 0
      %p275 = por %p273, %p274
      %s277 = sadd.s32 %s276, 1
      %p280 = scmp.eq.s32.totalorder %s163, 1
      %p281 = scmp.ne.s32.totalorder %s276, %s278
      %p282 = scmp.eq.s32.totalorder %s163, 0
      %p283 = por %p281, %p282
      %p284 = scmp.ne.s32.totalorder %s276, %s278
      %p285 = scmp.eq.s32.totalorder %s168, 1
      %p286 = por %p284, %p285
      %p287 = scmp.ne.s32.totalorder %s278, %s279
      %p288 = scmp.eq.s32.totalorder %s168, 0
      %p289 = por %p287, %p288
      %p290 = scmp.ne.s32.totalorder %s278, %s279
      %p291 = scmp.eq.s32.totalorder %s169, 1
      %p292 = por %p290, %p291
      %p294 = scmp.ne.s32.totalorder %s279, %s293
      %p295 = scmp.eq.s32.totalorder %s169, 0
      %p296 = por %p294, %p295
      %s298 = sadd.s32 %s297, 1
      %p301 = scmp.eq.s32.totalorder %s163, 1
      %p302 = scmp.ne.s32.totalorder %s297, %s299
      %p303 = scmp.eq.s32.totalorder %s163, 0
      %p304 = por %p302, %p303
      %p305 = scmp.ne.s32.totalorder %s297, %s299
      %p306 = scmp.eq.s32.totalorder %s168, 1
      %p307 = por %p305, %p306
      %p308 = scmp.ne.s32.totalorder %s299, %s300
      %p309 = scmp.eq.s32.totalorder %s168, 0
      %p310 = por %p308, %p309
      %p311 = scmp.ne.s32.totalorder %s299, %s300
      %p312 = scmp.eq.s32.totalorder %s169, 1
      %p313 = por %p311, %p312
      %p315 = scmp.ne.s32.totalorder %s300, %s314
      %p316 = scmp.eq.s32.totalorder %s169, 0
      %p317 = por %p315, %p316
      %s319 = sadd.s32 %s318, 1
      %p322 = scmp.eq.s32.totalorder %s163, 1
      %p323 = scmp.ne.s32.totalorder %s318, %s320
      %p324 = scmp.eq.s32.totalorder %s163, 0
      %p325 = por %p323, %p324
      %p326 = scmp.ne.s32.totalorder %s318, %s320
      %p327 = scmp.eq.s32.totalorder %s168, 1
      %p328 = por %p326, %p327
      %p329 = scmp.ne.s32.totalorder %s320, %s321
      %p330 = scmp.eq.s32.totalorder %s168, 0
      %p331 = por %p329, %p330
      %p332 = scmp.ne.s32.totalorder %s320, %s321
      %p333 = scmp.eq.s32.totalorder %s169, 1
      %p334 = por %p332, %p333
      %p336 = scmp.ne.s32.totalorder %s321, %s335
      %p337 = scmp.eq.s32.totalorder %s169, 0
      %p338 = por %p336, %p337
      %s340 = sadd.s32 %s339, 1
      %p343 = scmp.eq.s32.totalorder %s163, 1
      %p344 = scmp.ne.s32.totalorder %s339, %s341
      %p345 = scmp.eq.s32.totalorder %s163, 0
      %p346 = por %p344, %p345
      %p347 = scmp.ne.s32.totalorder %s339, %s341
      %p348 = scmp.eq.s32.totalorder %s168, 1
      %p349 = por %p347, %p348
      %p350 = scmp.ne.s32.totalorder %s341, %s342
      %p351 = scmp.eq.s32.totalorder %s168, 0
      %p352 = por %p350, %p351
      %p353 = scmp.ne.s32.totalorder %s341, %s342
      %p354 = scmp.eq.s32.totalorder %s169, 1
      %p355 = por %p353, %p354
      %p357 = scmp.ne.s32.totalorder %s342, %s356
      %p358 = scmp.eq.s32.totalorder %s169, 0
      %p359 = por %p357, %p358
      %s361 = sadd.s32 %s360, 1
      %p364 = scmp.eq.s32.totalorder %s163, 1
      %p365 = scmp.ne.s32.totalorder %s360, %s362
      %p366 = scmp.eq.s32.totalorder %s163, 0
      %p367 = por %p365, %p366
      %p368 = scmp.ne.s32.totalorder %s360, %s362
      %p369 = scmp.eq.s32.totalorder %s168, 1
      %p370 = por %p368, %p369
      %p371 = scmp.ne.s32.totalorder %s362, %s363
      %p372 = scmp.eq.s32.totalorder %s168, 0
      %p373 = por %p371, %p372
      %p374 = scmp.ne.s32.totalorder %s362, %s363
      %p375 = scmp.eq.s32.totalorder %s169, 1
      %p376 = por %p374, %p375
      %p378 = scmp.ne.s32.totalorder %s363, %s377
      %p379 = scmp.eq.s32.totalorder %s169, 0
      %p380 = por %p378, %p379
      %s382 = sadd.s32 %s381, 1
      %p385 = scmp.eq.s32.totalorder %s163, 1
      %p386 = scmp.ne.s32.totalorder %s381, %s383
      %p387 = scmp.eq.s32.totalorder %s163, 0
      %p388 = por %p386, %p387
      %p389 = scmp.ne.s32.totalorder %s381, %s383
      %p390 = scmp.eq.s32.totalorder %s168, 1
      %p391 = por %p389, %p390
      %p392 = scmp.ne.s32.totalorder %s383, %s384
      %p393 = scmp.eq.s32.totalorder %s168, 0
      %p394 = por %p392, %p393
      %p395 = scmp.ne.s32.totalorder %s383, %s384
      %p396 = scmp.eq.s32.totalorder %s169, 1
      %p397 = por %p395, %p396
      %p399 = scmp.ne.s32.totalorder %s384, %s398
      %p400 = scmp.eq.s32.totalorder %s169, 0
      %p401 = por %p399, %p400
      %s403 = sadd.s32 %s402, 1
      %p406 = scmp.eq.s32.totalorder %s163, 1
      %p407 = scmp.ne.s32.totalorder %s402, %s404
      %p408 = scmp.eq.s32.totalorder %s163, 0
      %p409 = por %p407, %p408
      %p410 = scmp.ne.s32.totalorder %s402, %s404
      %p411 = scmp.eq.s32.totalorder %s168, 1
      %p412 = por %p410, %p411
      %p413 = scmp.ne.s32.totalorder %s404, %s405
      %p414 = scmp.eq.s32.totalorder %s168, 0
      %p415 = por %p413, %p414
      %p416 = scmp.ne.s32.totalorder %s404, %s405
      %p417 = scmp.eq.s32.totalorder %s169, 1
      %p418 = por %p416, %p417
      %p420 = scmp.ne.s32.totalorder %s405, %s419
      %p421 = scmp.eq.s32.totalorder %s169, 0
      %p422 = por %p420, %p421
      %s424 = sadd.s32 %s423, 1
      %p427 = scmp.eq.s32.totalorder %s163, 1
      %p428 = scmp.ne.s32.totalorder %s423, %s425
      %p429 = scmp.eq.s32.totalorder %s163, 0
      %p430 = por %p428, %p429
      %p431 = scmp.ne.s32.totalorder %s423, %s425
      %p432 = scmp.eq.s32.totalorder %s168, 1
      %p433 = por %p431, %p432
      %p434 = scmp.ne.s32.totalorder %s425, %s426
      %p435 = scmp.eq.s32.totalorder %s168, 0
      %p436 = por %p434, %p435
      %p437 = scmp.ne.s32.totalorder %s425, %s426
      %p438 = scmp.eq.s32.totalorder %s169, 1
      %p439 = por %p437, %p438
      %p441 = scmp.ne.s32.totalorder %s426, %s440
      %p442 = scmp.eq.s32.totalorder %s169, 0
      %p443 = por %p441, %p442
      %s445 = sadd.s32 %s444, 1
      %p448 = scmp.eq.s32.totalorder %s163, 1
      %p449 = scmp.ne.s32.totalorder %s444, %s446
      %p450 = scmp.eq.s32.totalorder %s163, 0
      %p451 = por %p449, %p450
      %p452 = scmp.ne.s32.totalorder %s444, %s446
      %p453 = scmp.eq.s32.totalorder %s168, 1
      %p454 = por %p452, %p453
      %p455 = scmp.ne.s32.totalorder %s446, %s447
      %p456 = scmp.eq.s32.totalorder %s168, 0
      %p457 = por %p455, %p456
      %p458 = scmp.ne.s32.totalorder %s446, %s447
      %p459 = scmp.eq.s32.totalorder %s169, 1
      %p460 = por %p458, %p459
      %p462 = scmp.ne.s32.totalorder %s447, %s461
      %p463 = scmp.eq.s32.totalorder %s169, 0
      %p464 = por %p462, %p463
      %s466 = sadd.s32 %s465, 1
      %p469 = scmp.eq.s32.totalorder %s163, 1
      %p470 = scmp.ne.s32.totalorder %s465, %s467
      %p471 = scmp.eq.s32.totalorder %s163, 0
      %p472 = por %p470, %p471
      %p473 = scmp.ne.s32.totalorder %s465, %s467
      %p474 = scmp.eq.s32.totalorder %s168, 1
      %p475 = por %p473, %p474
      %p476 = scmp.ne.s32.totalorder %s467, %s468
      %p477 = scmp.eq.s32.totalorder %s168, 0
      %p478 = por %p476, %p477
      %p479 = scmp.ne.s32.totalorder %s467, %s468
      %p480 = scmp.eq.s32.totalorder %s169, 1
      %p481 = por %p479, %p480
      %p483 = scmp.ne.s32.totalorder %s468, %s482
      %p484 = scmp.eq.s32.totalorder %s169, 0
      %p485 = por %p483, %p484
      %s487 = sadd.s32 %s486, 1
      %p490 = scmp.eq.s32.totalorder %s163, 1
      %p491 = scmp.ne.s32.totalorder %s486, %s488
      %p492 = scmp.eq.s32.totalorder %s163, 0
      %p493 = por %p491, %p492
      %p494 = scmp.ne.s32.totalorder %s486, %s488
      %p495 = scmp.eq.s32.totalorder %s168, 1
      %p496 = por %p494, %p495
      %p497 = scmp.ne.s32.totalorder %s488, %s489
      %p498 = scmp.eq.s32.totalorder %s168, 0
      %p499 = por %p497, %p498
      %p500 = scmp.ne.s32.totalorder %s488, %s489
      %p501 = scmp.eq.s32.totalorder %s169, 1
      %p502 = por %p500, %p501
      %p504 = scmp.ne.s32.totalorder %s489, %s503
      %p505 = scmp.eq.s32.totalorder %s169, 0
      %p506 = por %p504, %p505
      %s508 = sadd.s32 %s507, 1
      %p511 = scmp.eq.s32.totalorder %s163, 1
      %p512 = scmp.ne.s32.totalorder %s507, %s509
      %p513 = scmp.eq.s32.totalorder %s163, 0
      %p514 = por %p512, %p513
      %p515 = scmp.ne.s32.totalorder %s507, %s509
      %p516 = scmp.eq.s32.totalorder %s168, 1
      %p517 = por %p515, %p516
      %p518 = scmp.ne.s32.totalorder %s509, %s510
      %p519 = scmp.eq.s32.totalorder %s168, 0
      %p520 = por %p518, %p519
      %p521 = scmp.ne.s32.totalorder %s509, %s510
      %p522 = scmp.eq.s32.totalorder %s169, 1
      %p523 = por %p521, %p522
      %p525 = scmp.ne.s32.totalorder %s510, %s524
      %p526 = scmp.eq.s32.totalorder %s169, 0
      %p527 = por %p525, %p526
      %s529 = sadd.s32 %s528, 1
      %p532 = scmp.eq.s32.totalorder %s163, 1
      %p533 = scmp.ne.s32.totalorder %s528, %s530
      %p534 = scmp.eq.s32.totalorder %s163, 0
      %p535 = por %p533, %p534
      %p536 = scmp.ne.s32.totalorder %s528, %s530
      %p537 = scmp.eq.s32.totalorder %s168, 1
      %p538 = por %p536, %p537
      %p539 = scmp.ne.s32.totalorder %s530, %s531
      %p540 = scmp.eq.s32.totalorder %s168, 0
      %p541 = por %p539, %p540
      %p542 = scmp.ne.s32.totalorder %s530, %s531
      %p543 = scmp.eq.s32.totalorder %s169, 1
      %p544 = por %p542, %p543
      %p546 = scmp.ne.s32.totalorder %s531, %s545
      %p547 = scmp.eq.s32.totalorder %s169, 0
      %p548 = por %p546, %p547
      %s550 = sadd.s32 %s549, 1
      %p553 = scmp.eq.s32.totalorder %s163, 1
      %p554 = scmp.ne.s32.totalorder %s549, %s551
      %p555 = scmp.eq.s32.totalorder %s163, 0
      %p556 = por %p554, %p555
      %p557 = scmp.ne.s32.totalorder %s549, %s551
      %p558 = scmp.eq.s32.totalorder %s168, 1
      %p559 = por %p557, %p558
      %p560 = scmp.ne.s32.totalorder %s551, %s552
      %p561 = scmp.eq.s32.totalorder %s168, 0
      %p562 = por %p560, %p561
      %p563 = scmp.ne.s32.totalorder %s551, %s552
      %p564 = scmp.eq.s32.totalorder %s169, 1
      %p565 = por %p563, %p564
      %p567 = scmp.ne.s32.totalorder %s552, %s566
      %p568 = scmp.eq.s32.totalorder %s169, 0
      %p569 = por %p567, %p568
      %s571 = sadd.s32 %s570, 1
      %p574 = scmp.eq.s32.totalorder %s163, 1
      %p575 = scmp.ne.s32.totalorder %s570, %s572
      %p576 = scmp.eq.s32.totalorder %s163, 0
      %p577 = por %p575, %p576
      %p578 = scmp.ne.s32.totalorder %s570, %s572
      %p579 = scmp.eq.s32.totalorder %s168, 1
      %p580 = por %p578, %p579
      %p581 = scmp.ne.s32.totalorder %s572, %s573
      %p582 = scmp.eq.s32.totalorder %s168, 0
      %p583 = por %p581, %p582
      %p584 = scmp.ne.s32.totalorder %s572, %s573
      %p585 = scmp.eq.s32.totalorder %s169, 1
      %p586 = por %p584, %p585
      %p588 = scmp.ne.s32.totalorder %s573, %s587
      %p589 = scmp.eq.s32.totalorder %s169, 0
      %p590 = por %p588, %p589
      %s592 = sadd.s32 %s591, 1
      %p595 = scmp.eq.s32.totalorder %s163, 1
      %p596 = scmp.ne.s32.totalorder %s591, %s593
      %p597 = scmp.eq.s32.totalorder %s163, 0
      %p598 = por %p596, %p597
      %p599 = scmp.ne.s32.totalorder %s591, %s593
      %p600 = scmp.eq.s32.totalorder %s168, 1
      %p601 = por %p599, %p600
      %p602 = scmp.ne.s32.totalorder %s593, %s594
      %p603 = scmp.eq.s32.totalorder %s168, 0
      %p604 = por %p602, %p603
      %p605 = scmp.ne.s32.totalorder %s593, %s594
      %p606 = scmp.eq.s32.totalorder %s169, 1
      %p607 = por %p605, %p606
      %p609 = scmp.ne.s32.totalorder %s594, %s608
      %p610 = scmp.eq.s32.totalorder %s169, 0
      %p611 = por %p609, %p610
      %s613 = sadd.s32 %s612, 1
      %p616 = scmp.eq.s32.totalorder %s163, 1
      %p617 = scmp.ne.s32.totalorder %s612, %s614
      %p618 = scmp.eq.s32.totalorder %s163, 0
      %p619 = por %p617, %p618
      %p620 = scmp.ne.s32.totalorder %s612, %s614
      %p621 = scmp.eq.s32.totalorder %s168, 1
      %p622 = por %p620, %p621
      %p623 = scmp.ne.s32.totalorder %s614, %s615
      %p624 = scmp.eq.s32.totalorder %s168, 0
      %p625 = por %p623, %p624
      %p626 = scmp.ne.s32.totalorder %s614, %s615
      %p627 = scmp.eq.s32.totalorder %s169, 1
      %p628 = por %p626, %p627
      %p630 = scmp.ne.s32.totalorder %s615, %s629
      %p631 = scmp.eq.s32.totalorder %s169, 0
      %p632 = por %p630, %p631
      %s634 = sadd.s32 %s633, 1
      %p637 = scmp.eq.s32.totalorder %s163, 1
      %p638 = scmp.ne.s32.totalorder %s633, %s635
      %p639 = scmp.eq.s32.totalorder %s163, 0
      %p640 = por %p638, %p639
      %p641 = scmp.ne.s32.totalorder %s633, %s635
      %p642 = scmp.eq.s32.totalorder %s168, 1
      %p643 = por %p641, %p642
      %p644 = scmp.ne.s32.totalorder %s635, %s636
      %p645 = scmp.eq.s32.totalorder %s168, 0
      %p646 = por %p644, %p645
      %p647 = scmp.ne.s32.totalorder %s635, %s636
      %p648 = scmp.eq.s32.totalorder %s169, 1
      %p649 = por %p647, %p648
      %p651 = scmp.ne.s32.totalorder %s636, %s650
      %p652 = scmp.eq.s32.totalorder %s169, 0
      %p653 = por %p651, %p652
      %s655 = sadd.s32 %s654, 1
      %p658 = scmp.eq.s32.totalorder %s163, 1
      %p659 = scmp.ne.s32.totalorder %s654, %s656
      %p660 = scmp.eq.s32.totalorder %s163, 0
      %p661 = por %p659, %p660
      %p662 = scmp.ne.s32.totalorder %s654, %s656
      %p663 = scmp.eq.s32.totalorder %s168, 1
      %p664 = por %p662, %p663
      %p665 = scmp.ne.s32.totalorder %s656, %s657
      %p666 = scmp.eq.s32.totalorder %s168, 0
      %p667 = por %p665, %p666
      %p668 = scmp.ne.s32.totalorder %s656, %s657
      %p669 = scmp.eq.s32.totalorder %s169, 1
      %p670 = por %p668, %p669
      %p672 = scmp.ne.s32.totalorder %s657, %s671
      %p673 = scmp.eq.s32.totalorder %s169, 0
      %p674 = por %p672, %p673
      %s676 = sadd.s32 %s675, 1
      %p679 = scmp.eq.s32.totalorder %s163, 1
      %p680 = scmp.ne.s32.totalorder %s675, %s677
      %p681 = scmp.eq.s32.totalorder %s163, 0
      %p682 = por %p680, %p681
      %p683 = scmp.ne.s32.totalorder %s675, %s677
      %p684 = scmp.eq.s32.totalorder %s168, 1
      %p685 = por %p683, %p684
      %p686 = scmp.ne.s32.totalorder %s677, %s678
      %p687 = scmp.eq.s32.totalorder %s168, 0
      %p688 = por %p686, %p687
      %p689 = scmp.ne.s32.totalorder %s677, %s678
      %p690 = scmp.eq.s32.totalorder %s169, 1
      %p691 = por %p689, %p690
      %p693 = scmp.ne.s32.totalorder %s678, %s692
      %p694 = scmp.eq.s32.totalorder %s169, 0
      %p695 = por %p693, %p694
      %s697 = sadd.s32 %s696, 1
      %p700 = scmp.eq.s32.totalorder %s163, 1
      %p701 = scmp.ne.s32.totalorder %s696, %s698
      %p702 = scmp.eq.s32.totalorder %s163, 0
      %p703 = por %p701, %p702
      %p704 = scmp.ne.s32.totalorder %s696, %s698
      %p705 = scmp.eq.s32.totalorder %s168, 1
      %p706 = por %p704, %p705
      %p707 = scmp.ne.s32.totalorder %s698, %s699
      %p708 = scmp.eq.s32.totalorder %s168, 0
      %p709 = por %p707, %p708
      %p710 = scmp.ne.s32.totalorder %s698, %s699
      %p711 = scmp.eq.s32.totalorder %s169, 1
      %p712 = por %p710, %p711
      %p714 = scmp.ne.s32.totalorder %s699, %s713
      %p715 = scmp.eq.s32.totalorder %s169, 0
      %p716 = por %p714, %p715
      %s718 = sadd.s32 %s717, 1
      %p721 = scmp.eq.s32.totalorder %s163, 1
      %p722 = scmp.ne.s32.totalorder %s717, %s719
      %p723 = scmp.eq.s32.totalorder %s163, 0
      %p724 = por %p722, %p723
      %p725 = scmp.ne.s32.totalorder %s717, %s719
      %p726 = scmp.eq.s32.totalorder %s168, 1
      %p727 = por %p725, %p726
      %p728 = scmp.ne.s32.totalorder %s719, %s720
      %p729 = scmp.eq.s32.totalorder %s168, 0
      %p730 = por %p728, %p729
      %p731 = scmp.ne.s32.totalorder %s719, %s720
      %p732 = scmp.eq.s32.totalorder %s169, 1
      %p733 = por %p731, %p732
      %p735 = scmp.ne.s32.totalorder %s720, %s734
      %p736 = scmp.eq.s32.totalorder %s169, 0
      %p737 = por %p735, %p736
      %s739 = sadd.s32 %s738, 1
      %p742 = scmp.eq.s32.totalorder %s163, 1
      %p743 = scmp.ne.s32.totalorder %s738, %s740
      %p744 = scmp.eq.s32.totalorder %s163, 0
      %p745 = por %p743, %p744
      %p746 = scmp.ne.s32.totalorder %s738, %s740
      %p747 = scmp.eq.s32.totalorder %s168, 1
      %p748 = por %p746, %p747
      %p749 = scmp.ne.s32.totalorder %s740, %s741
      %p750 = scmp.eq.s32.totalorder %s168, 0
      %p751 = por %p749, %p750
      %p752 = scmp.ne.s32.totalorder %s740, %s741
      %p753 = scmp.eq.s32.totalorder %s169, 1
      %p754 = por %p752, %p753
      %p756 = scmp.ne.s32.totalorder %s741, %s755
      %p757 = scmp.eq.s32.totalorder %s169, 0
      %p758 = por %p756, %p757
      %s760 = sadd.s32 %s759, 1
      %p763 = scmp.eq.s32.totalorder %s163, 1
      %p764 = scmp.ne.s32.totalorder %s759, %s761
      %p765 = scmp.eq.s32.totalorder %s163, 0
      %p766 = por %p764, %p765
      %p767 = scmp.ne.s32.totalorder %s759, %s761
      %p768 = scmp.eq.s32.totalorder %s168, 1
      %p769 = por %p767, %p768
      %p770 = scmp.ne.s32.totalorder %s761, %s762
      %p771 = scmp.eq.s32.totalorder %s168, 0
      %p772 = por %p770, %p771
      %p773 = scmp.ne.s32.totalorder %s761, %s762
      %p774 = scmp.eq.s32.totalorder %s169, 1
      %p775 = por %p773, %p774
      %p777 = scmp.ne.s32.totalorder %s762, %s776
      %p778 = scmp.eq.s32.totalorder %s169, 0
      %p779 = por %p777, %p778
      %s781 = sadd.s32 %s780, 1
      %p784 = scmp.eq.s32.totalorder %s163, 1
      %p785 = scmp.ne.s32.totalorder %s780, %s782
      %p786 = scmp.eq.s32.totalorder %s163, 0
      %p787 = por %p785, %p786
      %p788 = scmp.ne.s32.totalorder %s780, %s782
      %p789 = scmp.eq.s32.totalorder %s168, 1
      %p790 = por %p788, %p789
      %p791 = scmp.ne.s32.totalorder %s782, %s783
      %p792 = scmp.eq.s32.totalorder %s168, 0
      %p793 = por %p791, %p792
      %p794 = scmp.ne.s32.totalorder %s782, %s783
      %p795 = scmp.eq.s32.totalorder %s169, 1
      %p796 = por %p794, %p795
      %p798 = scmp.ne.s32.totalorder %s783, %s797
      %p799 = scmp.eq.s32.totalorder %s169, 0
      %p800 = por %p798, %p799
      %s802 = sadd.s32 %s801, 1
      %p805 = scmp.eq.s32.totalorder %s163, 1
      %p806 = scmp.ne.s32.totalorder %s801, %s803
      %p807 = scmp.eq.s32.totalorder %s163, 0
      %p808 = por %p806, %p807
      %p809 = scmp.ne.s32.totalorder %s801, %s803
      %p810 = scmp.eq.s32.totalorder %s168, 1
      %p811 = por %p809, %p810
      %p812 = scmp.ne.s32.totalorder %s803, %s804
      %p813 = scmp.eq.s32.totalorder %s168, 0
      %p814 = por %p812, %p813
      %p815 = scmp.ne.s32.totalorder %s803, %s804
      %p816 = scmp.eq.s32.totalorder %s169, 1
      %p817 = por %p815, %p816
      %p819 = scmp.ne.s32.totalorder %s804, %s818
      %p820 = scmp.eq.s32.totalorder %s169, 0
      %p821 = por %p819, %p820
      %s823 = sadd.s32 %s822, 1
      %p826 = scmp.eq.s32.totalorder %s163, 1
      %p827 = scmp.ne.s32.totalorder %s822, %s824
      %p828 = scmp.eq.s32.totalorder %s163, 0
      %p829 = por %p827, %p828
      %p830 = scmp.ne.s32.totalorder %s822, %s824
      %p831 = scmp.eq.s32.totalorder %s168, 1
      %p832 = por %p830, %p831
      %p833 = scmp.ne.s32.totalorder %s824, %s825
      %p834 = scmp.eq.s32.totalorder %s168, 0
      %p835 = por %p833, %p834
      %p836 = scmp.ne.s32.totalorder %s824, %s825
      %p837 = scmp.eq.s32.totalorder %s169, 1
      %p838 = por %p836, %p837
      %p840 = scmp.ne.s32.totalorder %s825, %s839
      %p841 = scmp.eq.s32.totalorder %s169, 0
      %p842 = por %p840, %p841
      %s844 = sadd.s32 %s843, 1
      %p847 = scmp.eq.s32.totalorder %s163, 1
      %p848 = scmp.ne.s32.totalorder %s843, %s845
      %p849 = scmp.eq.s32.totalorder %s163, 0
      %p850 = por %p848, %p849
      %p851 = scmp.ne.s32.totalorder %s843, %s845
      %p852 = scmp.eq.s32.totalorder %s168, 1
      %p853 = por %p851, %p852
      %p854 = scmp.ne.s32.totalorder %s845, %s846
      %p855 = scmp.eq.s32.totalorder %s168, 0
      %p856 = por %p854, %p855
      %p857 = scmp.ne.s32.totalorder %s845, %s846
      %p858 = scmp.eq.s32.totalorder %s169, 1
      %p859 = por %p857, %p858
      %p861 = scmp.ne.s32.totalorder %s846, %s860
      %p862 = scmp.eq.s32.totalorder %s169, 0
      %p863 = por %p861, %p862
      %s865 = sadd.s32 %s864, 1
      %p868 = scmp.eq.s32.totalorder %s163, 1
      %p869 = scmp.ne.s32.totalorder %s864, %s866
      %p870 = scmp.eq.s32.totalorder %s163, 0
      %p871 = por %p869, %p870
      %p872 = scmp.ne.s32.totalorder %s864, %s866
      %p873 = scmp.eq.s32.totalorder %s168, 1
      %p874 = por %p872, %p873
      %p875 = scmp.ne.s32.totalorder %s866, %s867
      %p876 = scmp.eq.s32.totalorder %s168, 0
      %p877 = por %p875, %p876
      %p878 = scmp.ne.s32.totalorder %s866, %s867
      %p879 = scmp.eq.s32.totalorder %s169, 1
      %p880 = por %p878, %p879
      %p882 = scmp.ne.s32.totalorder %s867, %s881
      %p883 = scmp.eq.s32.totalorder %s169, 0
      %p884 = por %p882, %p883
      %s886 = sadd.s32 %s885, 1
      %p889 = scmp.eq.s32.totalorder %s163, 1
      %p890 = scmp.ne.s32.totalorder %s885, %s887
      %p891 = scmp.eq.s32.totalorder %s163, 0
      %p892 = por %p890, %p891
      %p893 = scmp.ne.s32.totalorder %s885, %s887
      %p894 = scmp.eq.s32.totalorder %s168, 1
      %p895 = por %p893, %p894
      %p896 = scmp.ne.s32.totalorder %s887, %s888
      %p897 = scmp.eq.s32.totalorder %s168, 0
      %p898 = por %p896, %p897
      %p899 = scmp.ne.s32.totalorder %s887, %s888
      %p900 = scmp.eq.s32.totalorder %s169, 1
      %p901 = por %p899, %p900
      %p903 = scmp.ne.s32.totalorder %s888, %s902
      %p904 = scmp.eq.s32.totalorder %s169, 0
      %p905 = por %p903, %p904
      %s907 = sadd.s32 %s906, 1
      %p910 = scmp.eq.s32.totalorder %s163, 1
      %p911 = scmp.ne.s32.totalorder %s906, %s908
      %p912 = scmp.eq.s32.totalorder %s163, 0
      %p913 = por %p911, %p912
      %p914 = scmp.ne.s32.totalorder %s906, %s908
      %p915 = scmp.eq.s32.totalorder %s168, 1
      %p916 = por %p914, %p915
      %p917 = scmp.ne.s32.totalorder %s908, %s909
      %p918 = scmp.eq.s32.totalorder %s168, 0
      %p919 = por %p917, %p918
      %p920 = scmp.ne.s32.totalorder %s908, %s909
      %p921 = scmp.eq.s32.totalorder %s169, 1
      %p922 = por %p920, %p921
      %p924 = scmp.ne.s32.totalorder %s909, %s923
      %p925 = scmp.eq.s32.totalorder %s169, 0
      %p926 = por %p924, %p925
      %s928 = sadd.s32 %s927, 1
      %p931 = scmp.eq.s32.totalorder %s163, 1
      %p932 = scmp.ne.s32.totalorder %s927, %s929
      %p933 = scmp.eq.s32.totalorder %s163, 0
      %p934 = por %p932, %p933
      %p935 = scmp.ne.s32.totalorder %s927, %s929
      %p936 = scmp.eq.s32.totalorder %s168, 1
      %p937 = por %p935, %p936
      %p938 = scmp.ne.s32.totalorder %s929, %s930
      %p939 = scmp.eq.s32.totalorder %s168, 0
      %p940 = por %p938, %p939
      %p941 = scmp.ne.s32.totalorder %s929, %s930
      %p942 = scmp.eq.s32.totalorder %s169, 1
      %p943 = por %p941, %p942
      %p945 = scmp.ne.s32.totalorder %s930, %s944
      %p946 = scmp.eq.s32.totalorder %s169, 0
      %p947 = por %p945, %p946
      %s949 = sadd.s32 %s948, 1
      %p952 = scmp.eq.s32.totalorder %s163, 1
      %p953 = scmp.ne.s32.totalorder %s948, %s950
      %p954 = scmp.eq.s32.totalorder %s163, 0
      %p955 = por %p953, %p954
      %p956 = scmp.ne.s32.totalorder %s948, %s950
      %p957 = scmp.eq.s32.totalorder %s168, 1
      %p958 = por %p956, %p957
      %p959 = scmp.ne.s32.totalorder %s950, %s951
      %p960 = scmp.eq.s32.totalorder %s168, 0
      %p961 = por %p959, %p960
      %p962 = scmp.ne.s32.totalorder %s950, %s951
      %p963 = scmp.eq.s32.totalorder %s169, 1
      %p964 = por %p962, %p963
      %p966 = scmp.ne.s32.totalorder %s951, %s965
      %p967 = scmp.eq.s32.totalorder %s169, 0
      %p968 = por %p966, %p967
      %s970 = sadd.s32 %s969, 1
      %p973 = scmp.eq.s32.totalorder %s163, 1
      %p974 = scmp.ne.s32.totalorder %s969, %s971
      %p975 = scmp.eq.s32.totalorder %s163, 0
      %p976 = por %p974, %p975
      %p977 = scmp.ne.s32.totalorder %s969, %s971
      %p978 = scmp.eq.s32.totalorder %s168, 1
      %p979 = por %p977, %p978
      %p980 = scmp.ne.s32.totalorder %s971, %s972
      %p981 = scmp.eq.s32.totalorder %s168, 0
      %p982 = por %p980, %p981
      %p983 = scmp.ne.s32.totalorder %s971, %s972
      %p984 = scmp.eq.s32.totalorder %s169, 1
      %p985 = por %p983, %p984
      %p987 = scmp.ne.s32.totalorder %s972, %s986
      %p988 = scmp.eq.s32.totalorder %s169, 0
      %p989 = por %p987, %p988
      %s991 = sadd.s32 %s990, 1
      %p994 = scmp.eq.s32.totalorder %s163, 1
      %p995 = scmp.ne.s32.totalorder %s990, %s992
      %p996 = scmp.eq.s32.totalorder %s163, 0
      %p997 = por %p995, %p996
      %p998 = scmp.ne.s32.totalorder %s990, %s992
      %p999 = scmp.eq.s32.totalorder %s168, 1
      %p1000 = por %p998, %p999
      %p1001 = scmp.ne.s32.totalorder %s992, %s993
      %p1002 = scmp.eq.s32.totalorder %s168, 0
      %p1003 = por %p1001, %p1002
      %p1004 = scmp.ne.s32.totalorder %s992, %s993
      %p1005 = scmp.eq.s32.totalorder %s169, 1
      %p1006 = por %p1004, %p1005
      %p1008 = scmp.ne.s32.totalorder %s993, %s1007
      %p1009 = scmp.eq.s32.totalorder %s169, 0
      %p1010 = por %p1008, %p1009
      %s1012 = sadd.s32 %s1011, 1
      %p1015 = scmp.eq.s32.totalorder %s163, 1
      %p1016 = scmp.ne.s32.totalorder %s1011, %s1013
      %p1017 = scmp.eq.s32.totalorder %s163, 0
      %p1018 = por %p1016, %p1017
      %p1019 = scmp.ne.s32.totalorder %s1011, %s1013
      %p1020 = scmp.eq.s32.totalorder %s168, 1
      %p1021 = por %p1019, %p1020
      %p1022 = scmp.ne.s32.totalorder %s1013, %s1014
      %p1023 = scmp.eq.s32.totalorder %s168, 0
      %p1024 = por %p1022, %p1023
      %p1025 = scmp.ne.s32.totalorder %s1013, %s1014
      %p1026 = scmp.eq.s32.totalorder %s169, 1
      %p1027 = por %p1025, %p1026
      %p1029 = scmp.ne.s32.totalorder %s1014, %s1028
      %p1030 = scmp.eq.s32.totalorder %s169, 0
      %p1031 = por %p1029, %p1030
      %s1033 = sadd.s32 %s1032, 1
      %p1036 = scmp.eq.s32.totalorder %s163, 1
      %p1037 = scmp.ne.s32.totalorder %s1032, %s1034
      %p1038 = scmp.eq.s32.totalorder %s163, 0
      %p1039 = por %p1037, %p1038
      %p1040 = scmp.ne.s32.totalorder %s1032, %s1034
      %p1041 = scmp.eq.s32.totalorder %s168, 1
      %p1042 = por %p1040, %p1041
      %p1043 = scmp.ne.s32.totalorder %s1034, %s1035
      %p1044 = scmp.eq.s32.totalorder %s168, 0
      %p1045 = por %p1043, %p1044
      %p1046 = scmp.ne.s32.totalorder %s1034, %s1035
      %p1047 = scmp.eq.s32.totalorder %s169, 1
      %p1048 = por %p1046, %p1047
      %p1050 = scmp.ne.s32.totalorder %s1035, %s1049
      %p1051 = scmp.eq.s32.totalorder %s169, 0
      %p1052 = por %p1050, %p1051
      %s1054 = sadd.s32 %s1053, 1
      %p1057 = scmp.eq.s32.totalorder %s163, 1
      %p1058 = scmp.ne.s32.totalorder %s1053, %s1055
      %p1059 = scmp.eq.s32.totalorder %s163, 0
      %p1060 = por %p1058, %p1059
      %p1061 = scmp.ne.s32.totalorder %s1053, %s1055
      %p1062 = scmp.eq.s32.totalorder %s168, 1
      %p1063 = por %p1061, %p1062
      %p1064 = scmp.ne.s32.totalorder %s1055, %s1056
      %p1065 = scmp.eq.s32.totalorder %s168, 0
      %p1066 = por %p1064, %p1065
      %p1067 = scmp.ne.s32.totalorder %s1055, %s1056
      %p1068 = scmp.eq.s32.totalorder %s169, 1
      %p1069 = por %p1067, %p1068
      %p1071 = scmp.ne.s32.totalorder %s1056, %s1070
      %p1072 = scmp.eq.s32.totalorder %s169, 0
      %p1073 = por %p1071, %p1072
      %s1075 = sadd.s32 %s1074, 1
      %p1078 = scmp.eq.s32.totalorder %s163, 1
      %p1079 = scmp.ne.s32.totalorder %s1074, %s1076
      %p1080 = scmp.eq.s32.totalorder %s163, 0
      %p1081 = por %p1079, %p1080
      %p1082 = scmp.ne.s32.totalorder %s1074, %s1076
      %p1083 = scmp.eq.s32.totalorder %s168, 1
      %p1084 = por %p1082, %p1083
      %p1085 = scmp.ne.s32.totalorder %s1076, %s1077
      %p1086 = scmp.eq.s32.totalorder %s168, 0
      %p1087 = por %p1085, %p1086
      %p1088 = scmp.ne.s32.totalorder %s1076, %s1077
      %p1089 = scmp.eq.s32.totalorder %s169, 1
      %p1090 = por %p1088, %p1089
      %p1092 = scmp.ne.s32.totalorder %s1077, %s1091
      %p1093 = scmp.eq.s32.totalorder %s169, 0
      %p1094 = por %p1092, %p1093
      %s1096 = sadd.s32 %s1095, 1
      %p1099 = scmp.eq.s32.totalorder %s163, 1
      %p1100 = scmp.ne.s32.totalorder %s1095, %s1097
      %p1101 = scmp.eq.s32.totalorder %s163, 0
      %p1102 = por %p1100, %p1101
      %p1103 = scmp.ne.s32.totalorder %s1095, %s1097
      %p1104 = scmp.eq.s32.totalorder %s168, 1
      %p1105 = por %p1103, %p1104
      %p1106 = scmp.ne.s32.totalorder %s1097, %s1098
      %p1107 = scmp.eq.s32.totalorder %s168, 0
      %p1108 = por %p1106, %p1107
      %p1109 = scmp.ne.s32.totalorder %s1097, %s1098
      %p1110 = scmp.eq.s32.totalorder %s169, 1
      %p1111 = por %p1109, %p1110
      %p1113 = scmp.ne.s32.totalorder %s1098, %s1112
      %p1114 = scmp.eq.s32.totalorder %s169, 0
      %p1115 = por %p1113, %p1114
      %s1117 = sadd.s32 %s1116, 1
      %p1120 = scmp.eq.s32.totalorder %s163, 1
      %p1121 = scmp.ne.s32.totalorder %s1116, %s1118
      %p1122 = scmp.eq.s32.totalorder %s163, 0
      %p1123 = por %p1121, %p1122
      %p1124 = scmp.ne.s32.totalorder %s1116, %s1118
      %p1125 = scmp.eq.s32.totalorder %s168, 1
      %p1126 = por %p1124, %p1125
      %p1127 = scmp.ne.s32.totalorder %s1118, %s1119
      %p1128 = scmp.eq.s32.totalorder %s168, 0
      %p1129 = por %p1127, %p1128
      %p1130 = scmp.ne.s32.totalorder %s1118, %s1119
      %p1131 = scmp.eq.s32.totalorder %s169, 1
      %p1132 = por %p1130, %p1131
      %p1134 = scmp.ne.s32.totalorder %s1119, %s1133
      %p1135 = scmp.eq.s32.totalorder %s169, 0
      %p1136 = por %p1134, %p1135
      %s1138 = sadd.s32 %s1137, 1
      %p1141 = scmp.eq.s32.totalorder %s163, 1
      %p1142 = scmp.ne.s32.totalorder %s1137, %s1139
      %p1143 = scmp.eq.s32.totalorder %s163, 0
      %p1144 = por %p1142, %p1143
      %p1145 = scmp.ne.s32.totalorder %s1137, %s1139
      %p1146 = scmp.eq.s32.totalorder %s168, 1
      %p1147 = por %p1145, %p1146
      %p1148 = scmp.ne.s32.totalorder %s1139, %s1140
      %p1149 = scmp.eq.s32.totalorder %s168, 0
      %p1150 = por %p1148, %p1149
      %p1151 = scmp.ne.s32.totalorder %s1139, %s1140
      %p1152 = scmp.eq.s32.totalorder %s169, 1
      %p1153 = por %p1151, %p1152
      %p1155 = scmp.ne.s32.totalorder %s1140, %s1154
      %p1156 = scmp.eq.s32.totalorder %s169, 0
      %p1157 = por %p1155, %p1156
      %s1159 = sadd.s32 %s1158, 1
      %p1162 = scmp.eq.s32.totalorder %s163, 1
      %p1163 = scmp.ne.s32.totalorder %s1158, %s1160
      %p1164 = scmp.eq.s32.totalorder %s163, 0
      %p1165 = por %p1163, %p1164
      %p1166 = scmp.ne.s32.totalorder %s1158, %s1160
      %p1167 = scmp.eq.s32.totalorder %s168, 1
      %p1168 = por %p1166, %p1167
      %p1169 = scmp.ne.s32.totalorder %s1160, %s1161
      %p1170 = scmp.eq.s32.totalorder %s168, 0
      %p1171 = por %p1169, %p1170
      %p1172 = scmp.ne.s32.totalorder %s1160, %s1161
      %p1173 = scmp.eq.s32.totalorder %s169, 1
      %p1174 = por %p1172, %p1173
      %p1176 = scmp.ne.s32.totalorder %s1161, %s1175
      %p1177 = scmp.eq.s32.totalorder %s169, 0
      %p1178 = por %p1176, %p1177
      %s1180 = sadd.s32 %s1179, 1
      %p1183 = scmp.eq.s32.totalorder %s163, 1
      %p1184 = scmp.ne.s32.totalorder %s1179, %s1181
      %p1185 = scmp.eq.s32.totalorder %s163, 0
      %p1186 = por %p1184, %p1185
      %p1187 = scmp.ne.s32.totalorder %s1179, %s1181
      %p1188 = scmp.eq.s32.totalorder %s168, 1
      %p1189 = por %p1187, %p1188
      %p1190 = scmp.ne.s32.totalorder %s1181, %s1182
      %p1191 = scmp.eq.s32.totalorder %s168, 0
      %p1192 = por %p1190, %p1191
      %p1193 = scmp.ne.s32.totalorder %s1181, %s1182
      %p1194 = scmp.eq.s32.totalorder %s169, 1
      %p1195 = por %p1193, %p1194
      %p1197 = scmp.ne.s32.totalorder %s1182, %s1196
      %p1198 = scmp.eq.s32.totalorder %s169, 0
      %p1199 = por %p1197, %p1198
      %s1201 = sadd.s32 %s1200, 1
      %p1204 = scmp.eq.s32.totalorder %s163, 1
      %p1205 = scmp.ne.s32.totalorder %s1200, %s1202
      %p1206 = scmp.eq.s32.totalorder %s163, 0
      %p1207 = por %p1205, %p1206
      %p1208 = scmp.ne.s32.totalorder %s1200, %s1202
      %p1209 = scmp.eq.s32.totalorder %s168, 1
      %p1210 = por %p1208, %p1209
      %p1211 = scmp.ne.s32.totalorder %s1202, %s1203
      %p1212 = scmp.eq.s32.totalorder %s168, 0
      %p1213 = por %p1211, %p1212
      %p1214 = scmp.ne.s32.totalorder %s1202, %s1203
      %p1215 = scmp.eq.s32.totalorder %s169, 1
      %p1216 = por %p1214, %p1215
      %p1218 = scmp.ne.s32.totalorder %s1203, %s1217
      %p1219 = scmp.eq.s32.totalorder %s169, 0
      %p1220 = por %p1218, %p1219
      %s1222 = sadd.s32 %s1221, 1
      %p1225 = scmp.eq.s32.totalorder %s163, 1
      %p1226 = scmp.ne.s32.totalorder %s1221, %s1223
      %p1227 = scmp.eq.s32.totalorder %s163, 0
      %p1228 = por %p1226, %p1227
      %p1229 = scmp.ne.s32.totalorder %s1221, %s1223
      %p1230 = scmp.eq.s32.totalorder %s168, 1
      %p1231 = por %p1229, %p1230
      %p1232 = scmp.ne.s32.totalorder %s1223, %s1224
      %p1233 = scmp.eq.s32.totalorder %s168, 0
      %p1234 = por %p1232, %p1233
      %p1235 = scmp.ne.s32.totalorder %s1223, %s1224
      %p1236 = scmp.eq.s32.totalorder %s169, 1
      %p1237 = por %p1235, %p1236
      %p1239 = scmp.ne.s32.totalorder %s1224, %s1238
      %p1240 = scmp.eq.s32.totalorder %s169, 0
      %p1241 = por %p1239, %p1240
      %s1243 = sadd.s32 %s1242, 1
      %p1246 = scmp.eq.s32.totalorder %s163, 1
      %p1247 = scmp.ne.s32.totalorder %s1242, %s1244
      %p1248 = scmp.eq.s32.totalorder %s163, 0
      %p1249 = por %p1247, %p1248
      %p1250 = scmp.ne.s32.totalorder %s1242, %s1244
      %p1251 = scmp.eq.s32.totalorder %s168, 1
      %p1252 = por %p1250, %p1251
      %p1253 = scmp.ne.s32.totalorder %s1244, %s1245
      %p1254 = scmp.eq.s32.totalorder %s168, 0
      %p1255 = por %p1253, %p1254
      %p1256 = scmp.ne.s32.totalorder %s1244, %s1245
      %p1257 = scmp.eq.s32.totalorder %s169, 1
      %p1258 = por %p1256, %p1257
      %p1260 = scmp.ne.s32.totalorder %s1245, %s1259
      %p1261 = scmp.eq.s32.totalorder %s169, 0
      %p1262 = por %p1260, %p1261
      %s1264 = sadd.s32 %s1263, 1
      %p1267 = scmp.eq.s32.totalorder %s163, 1
      %p1268 = scmp.ne.s32.totalorder %s1263, %s1265
      %p1269 = scmp.eq.s32.totalorder %s163, 0
      %p1270 = por %p1268, %p1269
      %p1271 = scmp.ne.s32.totalorder %s1263, %s1265
      %p1272 = scmp.eq.s32.totalorder %s168, 1
      %p1273 = por %p1271, %p1272
      %p1274 = scmp.ne.s32.totalorder %s1265, %s1266
      %p1275 = scmp.eq.s32.totalorder %s168, 0
      %p1276 = por %p1274, %p1275
      %p1277 = scmp.ne.s32.totalorder %s1265, %s1266
      %p1278 = scmp.eq.s32.totalorder %s169, 1
      %p1279 = por %p1277, %p1278
      %p1281 = scmp.ne.s32.totalorder %s1266, %s1280
      %p1282 = scmp.eq.s32.totalorder %s169, 0
      %p1283 = por %p1281, %p1282
      %s1285 = sadd.s32 %s1284, 1
      %p1288 = scmp.eq.s32.totalorder %s163, 1
      %p1289 = scmp.ne.s32.totalorder %s1284, %s1286
      %p1290 = scmp.eq.s32.totalorder %s163, 0
      %p1291 = por %p1289, %p1290
      %p1292 = scmp.ne.s32.totalorder %s1284, %s1286
      %p1293 = scmp.eq.s32.totalorder %s168, 1
      %p1294 = por %p1292, %p1293
      %p1295 = scmp.ne.s32.totalorder %s1286, %s1287
      %p1296 = scmp.eq.s32.totalorder %s168, 0
      %p1297 = por %p1295, %p1296
      %p1298 = scmp.ne.s32.totalorder %s1286, %s1287
      %p1299 = scmp.eq.s32.totalorder %s169, 1
      %p1300 = por %p1298, %p1299
      %p1302 = scmp.ne.s32.totalorder %s1287, %s1301
      %p1303 = scmp.eq.s32.totalorder %s169, 0
      %p1304 = por %p1302, %p1303
      %s1306 = sadd.s32 %s1305, 1
      %p1309 = scmp.eq.s32.totalorder %s163, 1
      %p1310 = scmp.ne.s32.totalorder %s1305, %s1307
      %p1311 = scmp.eq.s32.totalorder %s163, 0
      %p1312 = por %p1310, %p1311
      %p1313 = scmp.ne.s32.totalorder %s1305, %s1307
      %p1314 = scmp.eq.s32.totalorder %s168, 1
      %p1315 = por %p1313, %p1314
      %p1316 = scmp.ne.s32.totalorder %s1307, %s1308
      %p1317 = scmp.eq.s32.totalorder %s168, 0
      %p1318 = por %p1316, %p1317
      %p1319 = scmp.ne.s32.totalorder %s1307, %s1308
      %p1320 = scmp.eq.s32.totalorder %s169, 1
      %p1321 = por %p1319, %p1320
      %p1323 = scmp.ne.s32.totalorder %s1308, %s1322
      %p1324 = scmp.eq.s32.totalorder %s169, 0
      %p1325 = por %p1323, %p1324
      %s1327 = sadd.s32 %s1326, 1
      %p1330 = scmp.eq.s32.totalorder %s163, 1
      %p1331 = scmp.ne.s32.totalorder %s1326, %s1328
      %p1332 = scmp.eq.s32.totalorder %s163, 0
      %p1333 = por %p1331, %p1332
      %p1334 = scmp.ne.s32.totalorder %s1326, %s1328
      %p1335 = scmp.eq.s32.totalorder %s168, 1
      %p1336 = por %p1334, %p1335
      %p1337 = scmp.ne.s32.totalorder %s1328, %s1329
      %p1338 = scmp.eq.s32.totalorder %s168, 0
      %p1339 = por %p1337, %p1338
      %p1340 = scmp.ne.s32.totalorder %s1328, %s1329
      %p1341 = scmp.eq.s32.totalorder %s169, 1
      %p1342 = por %p1340, %p1341
      %p1344 = scmp.ne.s32.totalorder %s1329, %s1343
      %p1345 = scmp.eq.s32.totalorder %s169, 0
      %p1346 = por %p1344, %p1345
      %s1348 = sadd.s32 %s1347, 1
      %p1351 = scmp.eq.s32.totalorder %s163, 1
      %p1352 = scmp.ne.s32.totalorder %s1347, %s1349
      %p1353 = scmp.eq.s32.totalorder %s163, 0
      %p1354 = por %p1352, %p1353
      %p1355 = scmp.ne.s32.totalorder %s1347, %s1349
      %p1356 = scmp.eq.s32.totalorder %s168, 1
      %p1357 = por %p1355, %p1356
      %p1358 = scmp.ne.s32.totalorder %s1349, %s1350
      %p1359 = scmp.eq.s32.totalorder %s168, 0
      %p1360 = por %p1358, %p1359
      %p1361 = scmp.ne.s32.totalorder %s1349, %s1350
      %p1362 = scmp.eq.s32.totalorder %s169, 1
      %p1363 = por %p1361, %p1362
      %p1365 = scmp.ne.s32.totalorder %s1350, %s1364
      %p1366 = scmp.eq.s32.totalorder %s169, 0
      %p1367 = por %p1365, %p1366
      %s1369 = sadd.s32 %s1368, 1
      %p1372 = scmp.eq.s32.totalorder %s163, 1
      %p1373 = scmp.ne.s32.totalorder %s1368, %s1370
      %p1374 = scmp.eq.s32.totalorder %s163, 0
      %p1375 = por %p1373, %p1374
      %p1376 = scmp.ne.s32.totalorder %s1368, %s1370
      %p1377 = scmp.eq.s32.totalorder %s168, 1
      %p1378 = por %p1376, %p1377
      %p1379 = scmp.ne.s32.totalorder %s1370, %s1371
      %p1380 = scmp.eq.s32.totalorder %s168, 0
      %p1381 = por %p1379, %p1380
      %p1382 = scmp.ne.s32.totalorder %s1370, %s1371
      %p1383 = scmp.eq.s32.totalorder %s169, 1
      %p1384 = por %p1382, %p1383
      %p1386 = scmp.ne.s32.totalorder %s1371, %s1385
      %p1387 = scmp.eq.s32.totalorder %s169, 0
      %p1388 = por %p1386, %p1387
      %s1390 = sadd.s32 %s1389, 1
      %p1393 = scmp.eq.s32.totalorder %s163, 1
      %p1394 = scmp.ne.s32.totalorder %s1389, %s1391
      %p1395 = scmp.eq.s32.totalorder %s163, 0
      %p1396 = por %p1394, %p1395
      %p1397 = scmp.ne.s32.totalorder %s1389, %s1391
      %p1398 = scmp.eq.s32.totalorder %s168, 1
      %p1399 = por %p1397, %p1398
      %p1400 = scmp.ne.s32.totalorder %s1391, %s1392
      %p1401 = scmp.eq.s32.totalorder %s168, 0
      %p1402 = por %p1400, %p1401
      %p1403 = scmp.ne.s32.totalorder %s1391, %s1392
      %p1404 = scmp.eq.s32.totalorder %s169, 1
      %p1405 = por %p1403, %p1404
      %p1407 = scmp.ne.s32.totalorder %s1392, %s1406
      %p1408 = scmp.eq.s32.totalorder %s169, 0
      %p1409 = por %p1407, %p1408
      %s1410 = ssub.s32 %s163, %s170
      %p1411 = scmp.eq.s32.totalorder %s1410, 0
      %s1413 = sadd.s32 %s1412, 1
      %s1414 = scalar_select %p1411, %s1412, %s1413
      %p1417 = pneg %p1411
      %p1418 = scmp.eq.s32.totalorder %s163, 1
      %p1419 = por %p1417, %p1418
      %p1420 = scmp.ne.s32.totalorder %s1412, %s1415
      %p1421 = scmp.eq.s32.totalorder %s163, 0
      %p1422 = por %p1420, %p1421
      %p1423 = scmp.ne.s32.totalorder %s1412, %s1415
      %p1424 = scmp.eq.s32.totalorder %s168, 1
      %p1425 = por %p1423, %p1424
      %p1426 = scmp.ne.s32.totalorder %s1415, %s1416
      %p1427 = scmp.eq.s32.totalorder %s168, 0
      %p1428 = por %p1426, %p1427
      %p1429 = scmp.ne.s32.totalorder %s1415, %s1416
      %p1430 = scmp.eq.s32.totalorder %s169, 1
      %p1431 = por %p1429, %p1430
      %p1433 = scmp.ne.s32.totalorder %s1416, %s1432
      %p1434 = scmp.eq.s32.totalorder %s169, 0
      %p1435 = por %p1433, %p1434
      %s1436 = ssub.s32 %s163, %s170
      %p1437 = scmp.eq.s32.totalorder %s1436, 0
      %s1439 = sadd.s32 %s1438, 1
      %s1440 = scalar_select %p1437, %s1438, %s1439
      %p1443 = pneg %p1437
      %p1444 = scmp.eq.s32.totalorder %s163, 1
      %p1445 = por %p1443, %p1444
      %p1446 = scmp.ne.s32.totalorder %s1438, %s1441
      %p1447 = scmp.eq.s32.totalorder %s163, 0
      %p1448 = por %p1446, %p1447
      %p1449 = scmp.ne.s32.totalorder %s1438, %s1441
      %p1450 = scmp.eq.s32.totalorder %s168, 1
      %p1451 = por %p1449, %p1450
      %p1452 = scmp.ne.s32.totalorder %s1441, %s1442
      %p1453 = scmp.eq.s32.totalorder %s168, 0
      %p1454 = por %p1452, %p1453
      %p1455 = scmp.ne.s32.totalorder %s1441, %s1442
      %p1456 = scmp.eq.s32.totalorder %s169, 1
      %p1457 = por %p1455, %p1456
      %p1459 = scmp.ne.s32.totalorder %s1442, %s1458
      %p1460 = scmp.eq.s32.totalorder %s169, 0
      %p1461 = por %p1459, %p1460
      %s1462 = ssub.s32 %s163, %s170
      %p1463 = scmp.eq.s32.totalorder %s1462, 0
      %s1465 = sadd.s32 %s1464, 1
      %s1466 = scalar_select %p1463, %s1464, %s1465
      %p1469 = pneg %p1463
      %p1470 = scmp.eq.s32.totalorder %s163, 1
      %p1471 = por %p1469, %p1470
      %p1472 = scmp.ne.s32.totalorder %s1464, %s1467
      %p1473 = scmp.eq.s32.totalorder %s163, 0
      %p1474 = por %p1472, %p1473
      %p1475 = scmp.ne.s32.totalorder %s1464, %s1467
      %p1476 = scmp.eq.s32.totalorder %s168, 1
      %p1477 = por %p1475, %p1476
      %p1478 = scmp.ne.s32.totalorder %s1467, %s1468
      %p1479 = scmp.eq.s32.totalorder %s168, 0
      %p1480 = por %p1478, %p1479
      %p1481 = scmp.ne.s32.totalorder %s1467, %s1468
      %p1482 = scmp.eq.s32.totalorder %s169, 1
      %p1483 = por %p1481, %p1482
      %p1485 = scmp.ne.s32.totalorder %s1468, %s1484
      %p1486 = scmp.eq.s32.totalorder %s169, 0
      %p1487 = por %p1485, %p1486
      %s1488 = ssub.s32 %s163, %s170
      %p1489 = scmp.eq.s32.totalorder %s1488, 0
      %s1491 = sadd.s32 %s1490, 1
      %s1492 = scalar_select %p1489, %s1490, %s1491
      %p1495 = pneg %p1489
      %p1496 = scmp.eq.s32.totalorder %s163, 1
      %p1497 = por %p1495, %p1496
      %p1498 = scmp.ne.s32.totalorder %s1490, %s1493
      %p1499 = scmp.eq.s32.totalorder %s163, 0
      %p1500 = por %p1498, %p1499
      %p1501 = scmp.ne.s32.totalorder %s1490, %s1493
      %p1502 = scmp.eq.s32.totalorder %s168, 1
      %p1503 = por %p1501, %p1502
      %p1504 = scmp.ne.s32.totalorder %s1493, %s1494
      %p1505 = scmp.eq.s32.totalorder %s168, 0
      %p1506 = por %p1504, %p1505
      %p1507 = scmp.ne.s32.totalorder %s1493, %s1494
      %p1508 = scmp.eq.s32.totalorder %s169, 1
      %p1509 = por %p1507, %p1508
      %p1511 = scmp.ne.s32.totalorder %s1494, %s1510
      %p1512 = scmp.eq.s32.totalorder %s169, 0
      %p1513 = por %p1511, %p1512
      %s1514 = ssub.s32 %s163, %s170
      %p1515 = scmp.eq.s32.totalorder %s1514, 0
      %s1517 = sadd.s32 %s1516, 1
      %s1518 = scalar_select %p1515, %s1516, %s1517
      %p1521 = pneg %p1515
      %p1522 = scmp.eq.s32.totalorder %s163, 1
      %p1523 = por %p1521, %p1522
      %p1524 = scmp.ne.s32.totalorder %s1516, %s1519
      %p1525 = scmp.eq.s32.totalorder %s163, 0
      %p1526 = por %p1524, %p1525
      %p1527 = scmp.ne.s32.totalorder %s1516, %s1519
      %p1528 = scmp.eq.s32.totalorder %s168, 1
      %p1529 = por %p1527, %p1528
      %p1530 = scmp.ne.s32.totalorder %s1519, %s1520
      %p1531 = scmp.eq.s32.totalorder %s168, 0
      %p1532 = por %p1530, %p1531
      %p1533 = scmp.ne.s32.totalorder %s1519, %s1520
      %p1534 = scmp.eq.s32.totalorder %s169, 1
      %p1535 = por %p1533, %p1534
      %p1537 = scmp.ne.s32.totalorder %s1520, %s1536
      %p1538 = scmp.eq.s32.totalorder %s169, 0
      %p1539 = por %p1537, %p1538
      %s1540 = ssub.s32 %s163, %s170
      %p1541 = scmp.eq.s32.totalorder %s1540, 0
      %s1543 = sadd.s32 %s1542, 1
      %s1544 = scalar_select %p1541, %s1542, %s1543
      %p1547 = pneg %p1541
      %p1548 = scmp.eq.s32.totalorder %s163, 1
      %p1549 = por %p1547, %p1548
      %p1550 = scmp.ne.s32.totalorder %s1542, %s1545
      %p1551 = scmp.eq.s32.totalorder %s163, 0
      %p1552 = por %p1550, %p1551
      %p1553 = scmp.ne.s32.totalorder %s1542, %s1545
      %p1554 = scmp.eq.s32.totalorder %s168, 1
      %p1555 = por %p1553, %p1554
      %p1556 = scmp.ne.s32.totalorder %s1545, %s1546
      %p1557 = scmp.eq.s32.totalorder %s168, 0
      %p1558 = por %p1556, %p1557
      %p1559 = scmp.ne.s32.totalorder %s1545, %s1546
      %p1560 = scmp.eq.s32.totalorder %s169, 1
      %p1561 = por %p1559, %p1560
      %p1563 = scmp.ne.s32.totalorder %s1546, %s1562
      %p1564 = scmp.eq.s32.totalorder %s169, 0
      %p1565 = por %p1563, %p1564
      %s1566 = ssub.s32 %s163, %s170
      %p1567 = scmp.eq.s32.totalorder %s1566, 0
      %s1569 = sadd.s32 %s1568, 1
      %s1570 = scalar_select %p1567, %s1568, %s1569
      %p1573 = pneg %p1567
      %p1574 = scmp.eq.s32.totalorder %s163, 1
      %p1575 = por %p1573, %p1574
      %p1576 = scmp.ne.s32.totalorder %s1568, %s1571
      %p1577 = scmp.eq.s32.totalorder %s163, 0
      %p1578 = por %p1576, %p1577
      %p1579 = scmp.ne.s32.totalorder %s1568, %s1571
      %p1580 = scmp.eq.s32.totalorder %s168, 1
      %p1581 = por %p1579, %p1580
      %p1582 = scmp.ne.s32.totalorder %s1571, %s1572
      %p1583 = scmp.eq.s32.totalorder %s168, 0
      %p1584 = por %p1582, %p1583
      %p1585 = scmp.ne.s32.totalorder %s1571, %s1572
      %p1586 = scmp.eq.s32.totalorder %s169, 1
      %p1587 = por %p1585, %p1586
      %p1589 = scmp.ne.s32.totalorder %s1572, %s1588
      %p1590 = scmp.eq.s32.totalorder %s169, 0
      %p1591 = por %p1589, %p1590
      %s1592 = ssub.s32 %s163, %s170
      %p1593 = scmp.eq.s32.totalorder %s1592, 0
      %s1595 = sadd.s32 %s1594, 1
      %s1596 = scalar_select %p1593, %s1594, %s1595
      %p1599 = pneg %p1593
      %p1600 = scmp.eq.s32.totalorder %s163, 1
      %p1601 = por %p1599, %p1600
      %p1602 = scmp.ne.s32.totalorder %s1594, %s1597
      %p1603 = scmp.eq.s32.totalorder %s163, 0
      %p1604 = por %p1602, %p1603
      %p1605 = scmp.ne.s32.totalorder %s1594, %s1597
      %p1606 = scmp.eq.s32.totalorder %s168, 1
      %p1607 = por %p1605, %p1606
      %p1608 = scmp.ne.s32.totalorder %s1597, %s1598
      %p1609 = scmp.eq.s32.totalorder %s168, 0
      %p1610 = por %p1608, %p1609
      %p1611 = scmp.ne.s32.totalorder %s1597, %s1598
      %p1612 = scmp.eq.s32.totalorder %s169, 1
      %p1613 = por %p1611, %p1612
      %p1615 = scmp.ne.s32.totalorder %s1598, %s1614
      %p1616 = scmp.eq.s32.totalorder %s169, 0
      %p1617 = por %p1615, %p1616
      %s1618 = ssub.s32 %s163, %s170
      %p1619 = scmp.eq.s32.totalorder %s1618, 0
      %s1621 = sadd.s32 %s1620, 1
      %s1622 = scalar_select %p1619, %s1620, %s1621
      %p1625 = pneg %p1619
      %p1626 = scmp.eq.s32.totalorder %s163, 1
      %p1627 = por %p1625, %p1626
      %p1628 = scmp.ne.s32.totalorder %s1620, %s1623
      %p1629 = scmp.eq.s32.totalorder %s163, 0
      %p1630 = por %p1628, %p1629
      %p1631 = scmp.ne.s32.totalorder %s1620, %s1623
      %p1632 = scmp.eq.s32.totalorder %s168, 1
      %p1633 = por %p1631, %p1632
      %p1634 = scmp.ne.s32.totalorder %s1623, %s1624
      %p1635 = scmp.eq.s32.totalorder %s168, 0
      %p1636 = por %p1634, %p1635
      %p1637 = scmp.ne.s32.totalorder %s1623, %s1624
      %p1638 = scmp.eq.s32.totalorder %s169, 1
      %p1639 = por %p1637, %p1638
      %p1641 = scmp.ne.s32.totalorder %s1624, %s1640
      %p1642 = scmp.eq.s32.totalorder %s169, 0
      %p1643 = por %p1641, %p1642
      %s1644 = ssub.s32 %s163, %s170
      %p1645 = scmp.eq.s32.totalorder %s1644, 0
      %s1647 = sadd.s32 %s1646, 1
      %s1648 = scalar_select %p1645, %s1646, %s1647
      %p1651 = pneg %p1645
      %p1652 = scmp.eq.s32.totalorder %s163, 1
      %p1653 = por %p1651, %p1652
      %p1654 = scmp.ne.s32.totalorder %s1646, %s1649
      %p1655 = scmp.eq.s32.totalorder %s163, 0
      %p1656 = por %p1654, %p1655
      %p1657 = scmp.ne.s32.totalorder %s1646, %s1649
      %p1658 = scmp.eq.s32.totalorder %s168, 1
      %p1659 = por %p1657, %p1658
      %p1660 = scmp.ne.s32.totalorder %s1649, %s1650
      %p1661 = scmp.eq.s32.totalorder %s168, 0
      %p1662 = por %p1660, %p1661
      %p1663 = scmp.ne.s32.totalorder %s1649, %s1650
      %p1664 = scmp.eq.s32.totalorder %s169, 1
      %p1665 = por %p1663, %p1664
      %p1667 = scmp.ne.s32.totalorder %s1650, %s1666
      %p1668 = scmp.eq.s32.totalorder %s169, 0
      %p1669 = por %p1667, %p1668
      %p1670 = scmp.le.s32.totalorder 1, %s163
      %p1671 = scmp.lt.s32.totalorder %s163, 3
      %p1672 = pnand %p1670, %p1671
      %p1673 = pneg %p1672
      // Predicated region
      $region9: #{_lambda_.1} parent=5 // pred_check
        _
      $region10: #{_lambda_.1} parent=5 // pred_check_branch
        %1675 = sbr.rel (%p1672) target = $region12
      $region11: #{_lambda_.1} parent=5 // pred_region
        %s1676 = ssub.s32 %s163, 1
        // Predicated region
        $region13: #{_lambda_.1} parent=11 // pred_check
          %p1677 = pneg %p184
        $region14: #{_lambda_.1} parent=11 // pred_check_branch
          %1679 = sbr.rel (%p1677) target = $region16
        $region15: #{_lambda_.1} parent=11 // pred_region
          %s1681 = ssub.s32 16, 16
          %1682 = vsyncadd [#allocation6], %s1681
          %s1684 = sshll.u32 [#allocation5], 4
          %s1685 = int_to_ptr.vmem [resolvable:$true] %s1684
          %1687 = dma.hbm_to_vmem [thread:$0]  %s1, 16, %s1685, [#allocation6]
        $region16: #{_lambda_.1} parent=11 // pred_fallthru
          _
        // Predicated region
        $region17: #{_lambda_.1} parent=11 // pred_check
          %p1688 = pneg %p205
        $region18: #{_lambda_.1} parent=11 // pred_check_branch
          %1690 = sbr.rel (%p1688) target = $region20
        $region19: #{_lambda_.1} parent=11 // pred_region
          _
        $region20: #{_lambda_.1} parent=11 // pred_fallthru
          _
        // Predicated region
        $region21: #{_lambda_.1} parent=11 // pred_check
          %p1691 = pneg %p226
        $region22: #{_lambda_.1} parent=11 // pred_check_branch
          %1693 = sbr.rel (%p1691) target = $region24
        $region23: #{_lambda_.1} parent=11 // pred_region
          %s1695 = ssub.s32 128, 128
          %1696 = vsyncadd [#allocation9], %s1695
          %s1698 = sshll.u32 [#allocation8], 4
          %s1699 = int_to_ptr.vmem [resolvable:$true] %s1698
          %1701 = dma.hbm_to_vmem [thread:$0]  %s5, 128, %s1699, [#allocation9]
        $region24: #{_lambda_.1} parent=11 // pred_fallthru
          _
        // Predicated region
        $region25: #{_lambda_.1} parent=11 // pred_check
          %p1702 = pneg %p247
        $region26: #{_lambda_.1} parent=11 // pred_check_branch
          %1704 = sbr.rel (%p1702) target = $region28
        $region27: #{_lambda_.1} parent=11 // pred_region
          %s1706 = ssub.s32 16, 16
          %1707 = vsyncadd [#allocation9], %s1706
          %s1709 = sshll.u32 [#allocation10], 4
          %s1710 = int_to_ptr.vmem [resolvable:$true] %s1709
          %1712 = dma.hbm_to_vmem [thread:$0]  %s7, 16, %s1710, [#allocation9]
        $region28: #{_lambda_.1} parent=11 // pred_fallthru
          _
        // Predicated region
        $region29: #{_lambda_.1} parent=11 // pred_check
          %p1713 = pneg %p268
        $region30: #{_lambda_.1} parent=11 // pred_check_branch
          %1715 = sbr.rel (%p1713) target = $region32
        $region31: #{_lambda_.1} parent=11 // pred_region
          %s1717 = ssub.s32 16, 16
          %1718 = vsyncadd [#allocation12], %s1717
          %s1720 = sshll.u32 [#allocation11], 4
          %s1721 = int_to_ptr.vmem [resolvable:$true] %s1720
          %1723 = dma.hbm_to_vmem [thread:$0]  %s9, 16, %s1721, [#allocation12]
        $region32: #{_lambda_.1} parent=11 // pred_fallthru
          _
        // Predicated region
        $region33: #{_lambda_.1} parent=11 // pred_check
          %p1724 = pneg %p289
        $region34: #{_lambda_.1} parent=11 // pred_check_branch
          %1726 = sbr.rel (%p1724) target = $region36
        $region35: #{_lambda_.1} parent=11 // pred_region
          _
        $region36: #{_lambda_.1} parent=11 // pred_fallthru
          _
        // Predicated region
        $region37: #{_lambda_.1} parent=11 // pred_check
          %p1727 = pneg %p310
        $region38: #{_lambda_.1} parent=11 // pred_check_branch
          %1729 = sbr.rel (%p1727) target = $region40
        $region39: #{_lambda_.1} parent=11 // pred_region
          %s1731 = ssub.s32 16, 16
          %1732 = vsyncadd [#allocation12], %s1731
          %s1734 = sshll.u32 [#allocation13], 4
          %s1735 = int_to_ptr.vmem [resolvable:$true] %s1734
          %1737 = dma.hbm_to_vmem [thread:$0]  %s13, 16, %s1735, [#allocation12]
        $region40: #{_lambda_.1} parent=11 // pred_fallthru
          _
        // Predicated region
        $region41: #{_lambda_.1} parent=11 // pred_check
          %p1738 = pneg %p331
        $region42: #{_lambda_.1} parent=11 // pred_check_branch
          %1740 = sbr.rel (%p1738) target = $region44
        $region43: #{_lambda_.1} parent=11 // pred_region
          _
        $region44: #{_lambda_.1} parent=11 // pred_fallthru
          _
        // Predicated region
        $region45: #{_lambda_.1} parent=11 // pred_check
          %p1741 = pneg %p352
        $region46: #{_lambda_.1} parent=11 // pred_check_branch
          %1743 = sbr.rel (%p1741) target = $region48
        $region47: #{_lambda_.1} parent=11 // pred_region
          %s1745 = ssub.s32 16, 16
          %1746 = vsyncadd [#allocation15], %s1745
          %s1748 = sshll.u32 [#allocation14], 4
          %s1749 = int_to_ptr.vmem [resolvable:$true] %s1748
          %1751 = dma.hbm_to_vmem [thread:$0]  %s17, 16, %s1749, [#allocation15]
        $region48: #{_lambda_.1} parent=11 // pred_fallthru
          _
        // Predicated region
        $region49: #{_lambda_.1} parent=11 // pred_check
          %p1752 = pneg %p373
        $region50: #{_lambda_.1} parent=11 // pred_check_branch
          %1754 = sbr.rel (%p1752) target = $region52
        $region51: #{_lambda_.1} parent=11 // pred_region
          %s1756 = ssub.s32 16, 16
          %1757 = vsyncadd [#allocation15], %s1756
          %s1759 = sshll.u32 [#allocation16], 4
          %s1760 = int_to_ptr.vmem [resolvable:$true] %s1759
          %1762 = dma.hbm_to_vmem [thread:$0]  %s19, 16, %s1760, [#allocation15]
        $region52: #{_lambda_.1} parent=11 // pred_fallthru
          _
        // Predicated region
        $region53: #{_lambda_.1} parent=11 // pred_check
          %p1763 = pneg %p394
        $region54: #{_lambda_.1} parent=11 // pred_check_branch
          %1765 = sbr.rel (%p1763) target = $region56
        $region55: #{_lambda_.1} parent=11 // pred_region
          %s1767 = ssub.s32 16, 16
          %1768 = vsyncadd [#allocation18], %s1767
          %s1770 = sshll.u32 [#allocation17], 4
          %s1771 = int_to_ptr.vmem [resolvable:$true] %s1770
          %1773 = dma.hbm_to_vmem [thread:$0]  %s21, 16, %s1771, [#allocation18]
        $region56: #{_lambda_.1} parent=11 // pred_fallthru
          _
        // Predicated region
        $region57: #{_lambda_.1} parent=11 // pred_check
          %p1774 = pneg %p415
        $region58: #{_lambda_.1} parent=11 // pred_check_branch
          %1776 = sbr.rel (%p1774) target = $region60
        $region59: #{_lambda_.1} parent=11 // pred_region
          %s1778 = ssub.s32 16, 16
          %1779 = vsyncadd [#allocation18], %s1778
          %s1781 = sshll.u32 [#allocation19], 4
          %s1782 = int_to_ptr.vmem [resolvable:$true] %s1781
          %1784 = dma.hbm_to_vmem [thread:$0]  %s23, 16, %s1782, [#allocation18]
        $region60: #{_lambda_.1} parent=11 // pred_fallthru
          _
        // Predicated region
        $region61: #{_lambda_.1} parent=11 // pred_check
          %p1785 = pneg %p436
        $region62: #{_lambda_.1} parent=11 // pred_check_branch
          %1787 = sbr.rel (%p1785) target = $region64
        $region63: #{_lambda_.1} parent=11 // pred_region
          %s1789 = ssub.s32 16, 16
          %1790 = vsyncadd [#allocation21], %s1789
          %s1792 = sshll.u32 [#allocation20], 4
          %s1793 = int_to_ptr.vmem [resolvable:$true] %s1792
          %1795 = dma.hbm_to_vmem [thread:$0]  %s25, 16, %s1793, [#allocation21]
        $region64: #{_lambda_.1} parent=11 // pred_fallthru
          _
        // Predicated region
        $region65: #{_lambda_.1} parent=11 // pred_check
          %p1796 = pneg %p457
        $region66: #{_lambda_.1} parent=11 // pred_check_branch
          %1798 = sbr.rel (%p1796) target = $region68
        $region67: #{_lambda_.1} parent=11 // pred_region
          %s1800 = ssub.s32 16, 16
          %1801 = vsyncadd [#allocation21], %s1800
          %s1803 = sshll.u32 [#allocation22], 4
          %s1804 = int_to_ptr.vmem [resolvable:$true] %s1803
          %1806 = dma.hbm_to_vmem [thread:$0]  %s27, 16, %s1804, [#allocation21]
        $region68: #{_lambda_.1} parent=11 // pred_fallthru
          _
        // Predicated region
        $region69: #{_lambda_.1} parent=11 // pred_check
          %p1807 = pneg %p478
        $region70: #{_lambda_.1} parent=11 // pred_check_branch
          %1809 = sbr.rel (%p1807) target = $region72
        $region71: #{_lambda_.1} parent=11 // pred_region
          _
        $region72: #{_lambda_.1} parent=11 // pred_fallthru
          _
        // Predicated region
        $region73: #{_lambda_.1} parent=11 // pred_check
          %p1810 = pneg %p499
        $region74: #{_lambda_.1} parent=11 // pred_check_branch
          %1812 = sbr.rel (%p1810) target = $region76
        $region75: #{_lambda_.1} parent=11 // pred_region
          _
        $region76: #{_lambda_.1} parent=11 // pred_fallthru
          _
        // Predicated region
        $region77: #{_lambda_.1} parent=11 // pred_check
          %p1813 = pneg %p520
        $region78: #{_lambda_.1} parent=11 // pred_check_branch
          %1815 = sbr.rel (%p1813) target = $region80
        $region79: #{_lambda_.1} parent=11 // pred_region
          %s1817 = ssub.s32 16, 16
          %1818 = vsyncadd [#allocation24], %s1817
          %s1820 = sshll.u32 [#allocation23], 4
          %s1821 = int_to_ptr.vmem [resolvable:$true] %s1820
          %1823 = dma.hbm_to_vmem [thread:$0]  %s33, 16, %s1821, [#allocation24]
        $region80: #{_lambda_.1} parent=11 // pred_fallthru
          _
        // Predicated region
        $region81: #{_lambda_.1} parent=11 // pred_check
          %p1824 = pneg %p541
        $region82: #{_lambda_.1} parent=11 // pred_check_branch
          %1826 = sbr.rel (%p1824) target = $region84
        $region83: #{_lambda_.1} parent=11 // pred_region
          %s1828 = ssub.s32 16, 16
          %1829 = vsyncadd [#allocation24], %s1828
          %s1831 = sshll.u32 [#allocation25], 4
          %s1832 = int_to_ptr.vmem [resolvable:$true] %s1831
          %1834 = dma.hbm_to_vmem [thread:$0]  %s35, 16, %s1832, [#allocation24]
        $region84: #{_lambda_.1} parent=11 // pred_fallthru
          _
        // Predicated region
        $region85: #{_lambda_.1} parent=11 // pred_check
          %p1835 = pneg %p562
        $region86: #{_lambda_.1} parent=11 // pred_check_branch
          %1837 = sbr.rel (%p1835) target = $region88
        $region87: #{_lambda_.1} parent=11 // pred_region
          %s1839 = ssub.s32 16, 16
          %1840 = vsyncadd [#allocation27], %s1839
          %s1842 = sshll.u32 [#allocation26], 4
          %s1843 = int_to_ptr.vmem [resolvable:$true] %s1842
          %1845 = dma.hbm_to_vmem [thread:$0]  %s37, 16, %s1843, [#allocation27]
        $region88: #{_lambda_.1} parent=11 // pred_fallthru
          _
        // Predicated region
        $region89: #{_lambda_.1} parent=11 // pred_check
          %p1846 = pneg %p583
        $region90: #{_lambda_.1} parent=11 // pred_check_branch
          %1848 = sbr.rel (%p1846) target = $region92
        $region91: #{_lambda_.1} parent=11 // pred_region
          %s1850 = ssub.s32 128, 128
          %1851 = vsyncadd [#allocation27], %s1850
          %s1853 = sshll.u32 [#allocation28], 4
          %s1854 = int_to_ptr.vmem [resolvable:$true] %s1853
          %1856 = dma.hbm_to_vmem [thread:$0]  %s39, 128, %s1854, [#allocation27]
        $region92: #{_lambda_.1} parent=11 // pred_fallthru
          _
        // Predicated region
        $region93: #{_lambda_.1} parent=11 // pred_check
          %p1857 = pneg %p604
        $region94: #{_lambda_.1} parent=11 // pred_check_branch
          %1859 = sbr.rel (%p1857) target = $region96
        $region95: #{_lambda_.1} parent=11 // pred_region
          _
        $region96: #{_lambda_.1} parent=11 // pred_fallthru
          _
        // Predicated region
        $region97: #{_lambda_.1} parent=11 // pred_check
          %p1860 = pneg %p625
        $region98: #{_lambda_.1} parent=11 // pred_check_branch
          %1862 = sbr.rel (%p1860) target = $region100
        $region99: #{_lambda_.1} parent=11 // pred_region
          _
        $region100: #{_lambda_.1} parent=11 // pred_fallthru
          _
        // Predicated region
        $region101: #{_lambda_.1} parent=11 // pred_check
          %p1863 = pneg %p646
        $region102: #{_lambda_.1} parent=11 // pred_check_branch
          %1865 = sbr.rel (%p1863) target = $region104
        $region103: #{_lambda_.1} parent=11 // pred_region
          %s1867 = ssub.s32 16, 16
          %1868 = vsyncadd [#allocation30], %s1867
          %s1870 = sshll.u32 [#allocation29], 4
          %s1871 = int_to_ptr.vmem [resolvable:$true] %s1870
          %1873 = dma.hbm_to_vmem [thread:$0]  %s45, 16, %s1871, [#allocation30]
        $region104: #{_lambda_.1} parent=11 // pred_fallthru
          _
        // Predicated region
        $region105: #{_lambda_.1} parent=11 // pred_check
          %p1874 = pneg %p667
        $region106: #{_lambda_.1} parent=11 // pred_check_branch
          %1876 = sbr.rel (%p1874) target = $region108
        $region107: #{_lambda_.1} parent=11 // pred_region
          _
        $region108: #{_lambda_.1} parent=11 // pred_fallthru
          _
        // Predicated region
        $region109: #{_lambda_.1} parent=11 // pred_check
          %p1877 = pneg %p688
        $region110: #{_lambda_.1} parent=11 // pred_check_branch
          %1879 = sbr.rel (%p1877) target = $region112
        $region111: #{_lambda_.1} parent=11 // pred_region
          %s1881 = ssub.s32 16, 16
          %1882 = vsyncadd [#allocation30], %s1881
          %s1884 = sshll.u32 [#allocation31], 4
          %s1885 = int_to_ptr.vmem [resolvable:$true] %s1884
          %1887 = dma.hbm_to_vmem [thread:$0]  %s49, 16, %s1885, [#allocation30]
        $region112: #{_lambda_.1} parent=11 // pred_fallthru
          _
        // Predicated region
        $region113: #{_lambda_.1} parent=11 // pred_check
          %p1888 = pneg %p709
        $region114: #{_lambda_.1} parent=11 // pred_check_branch
          %1890 = sbr.rel (%p1888) target = $region116
        $region115: #{_lambda_.1} parent=11 // pred_region
          _
        $region116: #{_lambda_.1} parent=11 // pred_fallthru
          _
        // Predicated region
        $region117: #{_lambda_.1} parent=11 // pred_check
          %p1891 = pneg %p730
        $region118: #{_lambda_.1} parent=11 // pred_check_branch
          %1893 = sbr.rel (%p1891) target = $region120
        $region119: #{_lambda_.1} parent=11 // pred_region
          _
        $region120: #{_lambda_.1} parent=11 // pred_fallthru
          _
        // Predicated region
        $region121: #{_lambda_.1} parent=11 // pred_check
          %p1894 = pneg %p751
        $region122: #{_lambda_.1} parent=11 // pred_check_branch
          %1896 = sbr.rel (%p1894) target = $region124
        $region123: #{_lambda_.1} parent=11 // pred_region
          %s1898 = ssub.s32 128, 128
          %1899 = vsyncadd [#allocation33], %s1898
          %s1901 = sshll.u32 [#allocation32], 4
          %s1902 = int_to_ptr.vmem [resolvable:$true] %s1901
          %1904 = dma.hbm_to_vmem [thread:$0]  %s55, 128, %s1902, [#allocation33]
        $region124: #{_lambda_.1} parent=11 // pred_fallthru
          _
        // Predicated region
        $region125: #{_lambda_.1} parent=11 // pred_check
          %p1905 = pneg %p772
        $region126: #{_lambda_.1} parent=11 // pred_check_branch
          %1907 = sbr.rel (%p1905) target = $region128
        $region127: #{_lambda_.1} parent=11 // pred_region
          %s1909 = ssub.s32 16, 16
          %1910 = vsyncadd [#allocation33], %s1909
          %s1912 = sshll.u32 [#allocation34], 4
          %s1913 = int_to_ptr.vmem [resolvable:$true] %s1912
          %1915 = dma.hbm_to_vmem [thread:$0]  %s57, 16, %s1913, [#allocation33]
        $region128: #{_lambda_.1} parent=11 // pred_fallthru
          _
        // Predicated region
        $region129: #{_lambda_.1} parent=11 // pred_check
          %p1916 = pneg %p793
        $region130: #{_lambda_.1} parent=11 // pred_check_branch
          %1918 = sbr.rel (%p1916) target = $region132
        $region131: #{_lambda_.1} parent=11 // pred_region
          %s1920 = ssub.s32 16, 16
          %1921 = vsyncadd [#allocation36], %s1920
          %s1923 = sshll.u32 [#allocation35], 4
          %s1924 = int_to_ptr.vmem [resolvable:$true] %s1923
          %1926 = dma.hbm_to_vmem [thread:$0]  %s59, 16, %s1924, [#allocation36]
        $region132: #{_lambda_.1} parent=11 // pred_fallthru
          _
        // Predicated region
        $region133: #{_lambda_.1} parent=11 // pred_check
          %p1927 = pneg %p814
        $region134: #{_lambda_.1} parent=11 // pred_check_branch
          %1929 = sbr.rel (%p1927) target = $region136
        $region135: #{_lambda_.1} parent=11 // pred_region
          _
        $region136: #{_lambda_.1} parent=11 // pred_fallthru
          _
        // Predicated region
        $region137: #{_lambda_.1} parent=11 // pred_check
          %p1930 = pneg %p835
        $region138: #{_lambda_.1} parent=11 // pred_check_branch
          %1932 = sbr.rel (%p1930) target = $region140
        $region139: #{_lambda_.1} parent=11 // pred_region
          _
        $region140: #{_lambda_.1} parent=11 // pred_fallthru
          _
        // Predicated region
        $region141: #{_lambda_.1} parent=11 // pred_check
          %p1933 = pneg %p856
        $region142: #{_lambda_.1} parent=11 // pred_check_branch
          %1935 = sbr.rel (%p1933) target = $region144
        $region143: #{_lambda_.1} parent=11 // pred_region
          %s1937 = ssub.s32 16, 16
          %1938 = vsyncadd [#allocation36], %s1937
          %s1940 = sshll.u32 [#allocation37], 4
          %s1941 = int_to_ptr.vmem [resolvable:$true] %s1940
          %1943 = dma.hbm_to_vmem [thread:$0]  %s65, 16, %s1941, [#allocation36]
        $region144: #{_lambda_.1} parent=11 // pred_fallthru
          _
        // Predicated region
        $region145: #{_lambda_.1} parent=11 // pred_check
          %p1944 = pneg %p877
        $region146: #{_lambda_.1} parent=11 // pred_check_branch
          %1946 = sbr.rel (%p1944) target = $region148
        $region147: #{_lambda_.1} parent=11 // pred_region
          _
        $region148: #{_lambda_.1} parent=11 // pred_fallthru
          _
        // Predicated region
        $region149: #{_lambda_.1} parent=11 // pred_check
          %p1947 = pneg %p898
        $region150: #{_lambda_.1} parent=11 // pred_check_branch
          %1949 = sbr.rel (%p1947) target = $region152
        $region151: #{_lambda_.1} parent=11 // pred_region
          _
        $region152: #{_lambda_.1} parent=11 // pred_fallthru
          _
        // Predicated region
        $region153: #{_lambda_.1} parent=11 // pred_check
          %p1950 = pneg %p919
        $region154: #{_lambda_.1} parent=11 // pred_check_branch
          %1952 = sbr.rel (%p1950) target = $region156
        $region155: #{_lambda_.1} parent=11 // pred_region
          _
        $region156: #{_lambda_.1} parent=11 // pred_fallthru
          _
        // Predicated region
        $region157: #{_lambda_.1} parent=11 // pred_check
          %p1953 = pneg %p940
        $region158: #{_lambda_.1} parent=11 // pred_check_branch
          %1955 = sbr.rel (%p1953) target = $region160
        $region159: #{_lambda_.1} parent=11 // pred_region
          _
        $region160: #{_lambda_.1} parent=11 // pred_fallthru
          _
        // Predicated region
        $region161: #{_lambda_.1} parent=11 // pred_check
          %p1956 = pneg %p961
        $region162: #{_lambda_.1} parent=11 // pred_check_branch
          %1958 = sbr.rel (%p1956) target = $region164
        $region163: #{_lambda_.1} parent=11 // pred_region
          _
        $region164: #{_lambda_.1} parent=11 // pred_fallthru
          _
        // Predicated region
        $region165: #{_lambda_.1} parent=11 // pred_check
          %p1959 = pneg %p982
        $region166: #{_lambda_.1} parent=11 // pred_check_branch
          %1961 = sbr.rel (%p1959) target = $region168
        $region167: #{_lambda_.1} parent=11 // pred_region
          _
        $region168: #{_lambda_.1} parent=11 // pred_fallthru
          _
        // Predicated region
        $region169: #{_lambda_.1} parent=11 // pred_check
          %p1962 = pneg %p1003
        $region170: #{_lambda_.1} parent=11 // pred_check_branch
          %1964 = sbr.rel (%p1962) target = $region172
        $region171: #{_lambda_.1} parent=11 // pred_region
          _
        $region172: #{_lambda_.1} parent=11 // pred_fallthru
          _
        // Predicated region
        $region173: #{_lambda_.1} parent=11 // pred_check
          %p1965 = pneg %p1024
        $region174: #{_lambda_.1} parent=11 // pred_check_branch
          %1967 = sbr.rel (%p1965) target = $region176
        $region175: #{_lambda_.1} parent=11 // pred_region
          _
        $region176: #{_lambda_.1} parent=11 // pred_fallthru
          _
        // Predicated region
        $region177: #{_lambda_.1} parent=11 // pred_check
          %p1968 = pneg %p1045
        $region178: #{_lambda_.1} parent=11 // pred_check_branch
          %1970 = sbr.rel (%p1968) target = $region180
        $region179: #{_lambda_.1} parent=11 // pred_region
          _
        $region180: #{_lambda_.1} parent=11 // pred_fallthru
          _
        // Predicated region
        $region181: #{_lambda_.1} parent=11 // pred_check
          %p1971 = pneg %p1066
        $region182: #{_lambda_.1} parent=11 // pred_check_branch
          %1973 = sbr.rel (%p1971) target = $region184
        $region183: #{_lambda_.1} parent=11 // pred_region
          _
        $region184: #{_lambda_.1} parent=11 // pred_fallthru
          _
        // Predicated region
        $region185: #{_lambda_.1} parent=11 // pred_check
          %p1974 = pneg %p1087
        $region186: #{_lambda_.1} parent=11 // pred_check_branch
          %1976 = sbr.rel (%p1974) target = $region188
        $region187: #{_lambda_.1} parent=11 // pred_region
          _
        $region188: #{_lambda_.1} parent=11 // pred_fallthru
          _
        // Predicated region
        $region189: #{_lambda_.1} parent=11 // pred_check
          %p1977 = pneg %p1108
        $region190: #{_lambda_.1} parent=11 // pred_check_branch
          %1979 = sbr.rel (%p1977) target = $region192
        $region191: #{_lambda_.1} parent=11 // pred_region
          _
        $region192: #{_lambda_.1} parent=11 // pred_fallthru
          _
        // Predicated region
        $region193: #{_lambda_.1} parent=11 // pred_check
          %p1980 = pneg %p1129
        $region194: #{_lambda_.1} parent=11 // pred_check_branch
          %1982 = sbr.rel (%p1980) target = $region196
        $region195: #{_lambda_.1} parent=11 // pred_region
          _
        $region196: #{_lambda_.1} parent=11 // pred_fallthru
          _
        // Predicated region
        $region197: #{_lambda_.1} parent=11 // pred_check
          %p1983 = pneg %p1150
        $region198: #{_lambda_.1} parent=11 // pred_check_branch
          %1985 = sbr.rel (%p1983) target = $region200
        $region199: #{_lambda_.1} parent=11 // pred_region
          _
        $region200: #{_lambda_.1} parent=11 // pred_fallthru
          _
        // Predicated region
        $region201: #{_lambda_.1} parent=11 // pred_check
          %p1986 = pneg %p1171
        $region202: #{_lambda_.1} parent=11 // pred_check_branch
          %1988 = sbr.rel (%p1986) target = $region204
        $region203: #{_lambda_.1} parent=11 // pred_region
          _
        $region204: #{_lambda_.1} parent=11 // pred_fallthru
          _
        // Predicated region
        $region205: #{_lambda_.1} parent=11 // pred_check
          %p1989 = pneg %p1192
        $region206: #{_lambda_.1} parent=11 // pred_check_branch
          %1991 = sbr.rel (%p1989) target = $region208
        $region207: #{_lambda_.1} parent=11 // pred_region
          _
        $region208: #{_lambda_.1} parent=11 // pred_fallthru
          _
        // Predicated region
        $region209: #{_lambda_.1} parent=11 // pred_check
          %p1992 = pneg %p1213
        $region210: #{_lambda_.1} parent=11 // pred_check_branch
          %1994 = sbr.rel (%p1992) target = $region212
        $region211: #{_lambda_.1} parent=11 // pred_region
          _
        $region212: #{_lambda_.1} parent=11 // pred_fallthru
          _
        // Predicated region
        $region213: #{_lambda_.1} parent=11 // pred_check
          %p1995 = pneg %p1234
        $region214: #{_lambda_.1} parent=11 // pred_check_branch
          %1997 = sbr.rel (%p1995) target = $region216
        $region215: #{_lambda_.1} parent=11 // pred_region
          _
        $region216: #{_lambda_.1} parent=11 // pred_fallthru
          _
        // Predicated region
        $region217: #{_lambda_.1} parent=11 // pred_check
          %p1998 = pneg %p1255
        $region218: #{_lambda_.1} parent=11 // pred_check_branch
          %2000 = sbr.rel (%p1998) target = $region220
        $region219: #{_lambda_.1} parent=11 // pred_region
          _
        $region220: #{_lambda_.1} parent=11 // pred_fallthru
          _
        // Predicated region
        $region221: #{_lambda_.1} parent=11 // pred_check
          %p2001 = pneg %p1276
        $region222: #{_lambda_.1} parent=11 // pred_check_branch
          %2003 = sbr.rel (%p2001) target = $region224
        $region223: #{_lambda_.1} parent=11 // pred_region
          _
        $region224: #{_lambda_.1} parent=11 // pred_fallthru
          _
        // Predicated region
        $region225: #{_lambda_.1} parent=11 // pred_check
          %p2004 = pneg %p1297
        $region226: #{_lambda_.1} parent=11 // pred_check_branch
          %2006 = sbr.rel (%p2004) target = $region228
        $region227: #{_lambda_.1} parent=11 // pred_region
          _
        $region228: #{_lambda_.1} parent=11 // pred_fallthru
          _
        // Predicated region
        $region229: #{_lambda_.1} parent=11 // pred_check
          %p2007 = pneg %p1318
        $region230: #{_lambda_.1} parent=11 // pred_check_branch
          %2009 = sbr.rel (%p2007) target = $region232
        $region231: #{_lambda_.1} parent=11 // pred_region
          _
        $region232: #{_lambda_.1} parent=11 // pred_fallthru
          _
        // Predicated region
        $region233: #{_lambda_.1} parent=11 // pred_check
          %p2010 = pneg %p1339
        $region234: #{_lambda_.1} parent=11 // pred_check_branch
          %2012 = sbr.rel (%p2010) target = $region236
        $region235: #{_lambda_.1} parent=11 // pred_region
          _
        $region236: #{_lambda_.1} parent=11 // pred_fallthru
          _
        // Predicated region
        $region237: #{_lambda_.1} parent=11 // pred_check
          %p2013 = pneg %p1360
        $region238: #{_lambda_.1} parent=11 // pred_check_branch
          %2015 = sbr.rel (%p2013) target = $region240
        $region239: #{_lambda_.1} parent=11 // pred_region
          _
        $region240: #{_lambda_.1} parent=11 // pred_fallthru
          _
        // Predicated region
        $region241: #{_lambda_.1} parent=11 // pred_check
          %p2016 = pneg %p1381
        $region242: #{_lambda_.1} parent=11 // pred_check_branch
          %2018 = sbr.rel (%p2016) target = $region244
        $region243: #{_lambda_.1} parent=11 // pred_region
          _
        $region244: #{_lambda_.1} parent=11 // pred_fallthru
          _
        // Predicated region
        $region245: #{_lambda_.1} parent=11 // pred_check
          %p2019 = pneg %p1402
        $region246: #{_lambda_.1} parent=11 // pred_check_branch
          %2021 = sbr.rel (%p2019) target = $region248
        $region247: #{_lambda_.1} parent=11 // pred_region
          _
        $region248: #{_lambda_.1} parent=11 // pred_fallthru
          _
      $region12: #{_lambda_.1} parent=5 // pred_fallthru
        _
      %p2022 = scmp.lt.s32.totalorder %s163, 2
      // Predicated region
      $region249: #{_lambda_.1} parent=5 // pred_check
        %p2023 = pneg %p2022
      $region250: #{_lambda_.1} parent=5 // pred_check_branch
        %2025 = sbr.rel (%p2023) target = $region252
      $region251: #{_lambda_.1} parent=5 // pred_region
        // Predicated region
        $region253: #{_lambda_.1} parent=251 // pred_check
          %p2026 = pneg %p1422
        $region254: #{_lambda_.1} parent=251 // pred_check_branch
          %2028 = sbr.rel (%p2026) target = $region256
        $region255: #{_lambda_.1} parent=251 // pred_region
          %p2029 = scmp.lt.s32.totalorder %s163, 1
          %s2030 = scalar_select %p2029, %s163, 1
          %s2031 = smul.addr %s2030, 2
          %s2032 = scalar_lea.vmem %s119, %s2031
        $region256: #{_lambda_.1} parent=251 // pred_fallthru
          _
        // Predicated region
        $region257: #{_lambda_.1} parent=251 // pred_check
          %p2033 = pneg %p1448
        $region258: #{_lambda_.1} parent=251 // pred_check_branch
          %2035 = sbr.rel (%p2033) target = $region260
        $region259: #{_lambda_.1} parent=251 // pred_region
          %p2036 = scmp.lt.s32.totalorder %s163, 1
          %s2037 = scalar_select %p2036, %s163, 1
          %s2038 = smul.addr %s2037, 4
          %s2039 = scalar_lea.vmem %s121, %s2038
        $region260: #{_lambda_.1} parent=251 // pred_fallthru
          _
        // Predicated region
        $region261: #{_lambda_.1} parent=251 // pred_check
          %p2040 = pneg %p1474
        $region262: #{_lambda_.1} parent=251 // pred_check_branch
          %2042 = sbr.rel (%p2040) target = $region264
        $region263: #{_lambda_.1} parent=251 // pred_region
          %p2043 = scmp.lt.s32.totalorder %s163, 1
          %s2044 = scalar_select %p2043, %s163, 1
          %s2045 = scalar_lea.vmem %s123, %s2044
        $region264: #{_lambda_.1} parent=251 // pred_fallthru
          _
        // Predicated region
        $region265: #{_lambda_.1} parent=251 // pred_check
          %p2046 = pneg %p1500
        $region266: #{_lambda_.1} parent=251 // pred_check_branch
          %2048 = sbr.rel (%p2046) target = $region268
        $region267: #{_lambda_.1} parent=251 // pred_region
          %p2049 = scmp.lt.s32.totalorder %s163, 1
          %s2050 = scalar_select %p2049, %s163, 1
          %s2051 = smul.addr %s2050, 8
          %s2052 = scalar_lea.vmem %s125, %s2051
        $region268: #{_lambda_.1} parent=251 // pred_fallthru
          _
        // Predicated region
        $region269: #{_lambda_.1} parent=251 // pred_check
          %p2053 = pneg %p1526
        $region270: #{_lambda_.1} parent=251 // pred_check_branch
          %2055 = sbr.rel (%p2053) target = $region272
        $region271: #{_lambda_.1} parent=251 // pred_region
          %p2056 = scmp.lt.s32.totalorder %s163, 1
          %s2057 = scalar_select %p2056, %s163, 1
          %s2058 = scalar_lea.vmem %s127, %s2057
        $region272: #{_lambda_.1} parent=251 // pred_fallthru
          _
        // Predicated region
        $region273: #{_lambda_.1} parent=251 // pred_check
          %p2059 = pneg %p1552
        $region274: #{_lambda_.1} parent=251 // pred_check_branch
          %2061 = sbr.rel (%p2059) target = $region276
        $region275: #{_lambda_.1} parent=251 // pred_region
          %p2062 = scmp.lt.s32.totalorder %s163, 1
          %s2063 = scalar_select %p2062, %s163, 1
          %s2064 = scalar_lea.vmem %s129, %s2063
        $region276: #{_lambda_.1} parent=251 // pred_fallthru
          _
      $region252: #{_lambda_.1} parent=5 // pred_fallthru
        _
      %p2065 = scmp.le.s32.totalorder 1, %s163
      %p2066 = scmp.lt.s32.totalorder %s163, 3
      %p2067 = pnand %p2065, %p2066
      %p2068 = pneg %p2067
      // Predicated region
      $region277: #{_lambda_.1} parent=5 // pred_check
        _
      $region278: #{_lambda_.1} parent=5 // pred_check_branch
        %2070 = sbr.rel (%p2067) target = $region280
      $region279: #{_lambda_.1} parent=5 // pred_region
        %s2071 = ssub.s32 %s163, 1
        // Predicated region
        $region281: #{_lambda_.1} parent=279 // pred_check
          %p2072 = pneg %p184
        $region282: #{_lambda_.1} parent=279 // pred_check_branch
          %2074 = sbr.rel (%p2072) target = $region284
        $region283: #{_lambda_.1} parent=279 // pred_region
          %2075 = dma.done [#allocation6], 16
        $region284: #{_lambda_.1} parent=279 // pred_fallthru
          _
        // Predicated region
        $region285: #{_lambda_.1} parent=279 // pred_check
          %p2076 = pneg %p226
        $region286: #{_lambda_.1} parent=279 // pred_check_branch
          %2078 = sbr.rel (%p2076) target = $region288
        $region287: #{_lambda_.1} parent=279 // pred_region
          %2079 = dma.done [#allocation9], 128
        $region288: #{_lambda_.1} parent=279 // pred_fallthru
          _
        // Predicated region
        $region289: #{_lambda_.1} parent=279 // pred_check
          %p2080 = pneg %p247
        $region290: #{_lambda_.1} parent=279 // pred_check_branch
          %2082 = sbr.rel (%p2080) target = $region292
        $region291: #{_lambda_.1} parent=279 // pred_region
          %2083 = dma.done [#allocation9], 16
        $region292: #{_lambda_.1} parent=279 // pred_fallthru
          _
        // Predicated region
        $region293: #{_lambda_.1} parent=279 // pred_check
          %p2084 = pneg %p268
        $region294: #{_lambda_.1} parent=279 // pred_check_branch
          %2086 = sbr.rel (%p2084) target = $region296
        $region295: #{_lambda_.1} parent=279 // pred_region
          %2087 = dma.done [#allocation12], 16
        $region296: #{_lambda_.1} parent=279 // pred_fallthru
          _
        // Predicated region
        $region297: #{_lambda_.1} parent=279 // pred_check
          %p2088 = pneg %p310
        $region298: #{_lambda_.1} parent=279 // pred_check_branch
          %2090 = sbr.rel (%p2088) target = $region300
        $region299: #{_lambda_.1} parent=279 // pred_region
          %2091 = dma.done [#allocation12], 16
        $region300: #{_lambda_.1} parent=279 // pred_fallthru
          _
        // Predicated region
        $region301: #{_lambda_.1} parent=279 // pred_check
          %p2092 = pneg %p352
        $region302: #{_lambda_.1} parent=279 // pred_check_branch
          %2094 = sbr.rel (%p2092) target = $region304
        $region303: #{_lambda_.1} parent=279 // pred_region
          %2095 = dma.done [#allocation15], 16
        $region304: #{_lambda_.1} parent=279 // pred_fallthru
          _
        // Predicated region
        $region305: #{_lambda_.1} parent=279 // pred_check
          %p2096 = pneg %p373
        $region306: #{_lambda_.1} parent=279 // pred_check_branch
          %2098 = sbr.rel (%p2096) target = $region308
        $region307: #{_lambda_.1} parent=279 // pred_region
          %2099 = dma.done [#allocation15], 16
        $region308: #{_lambda_.1} parent=279 // pred_fallthru
          _
        // Predicated region
        $region309: #{_lambda_.1} parent=279 // pred_check
          %p2100 = pneg %p394
        $region310: #{_lambda_.1} parent=279 // pred_check_branch
          %2102 = sbr.rel (%p2100) target = $region312
        $region311: #{_lambda_.1} parent=279 // pred_region
          %2103 = dma.done [#allocation18], 16
        $region312: #{_lambda_.1} parent=279 // pred_fallthru
          _
        // Predicated region
        $region313: #{_lambda_.1} parent=279 // pred_check
          %p2104 = pneg %p415
        $region314: #{_lambda_.1} parent=279 // pred_check_branch
          %2106 = sbr.rel (%p2104) target = $region316
        $region315: #{_lambda_.1} parent=279 // pred_region
          %2107 = dma.done [#allocation18], 16
        $region316: #{_lambda_.1} parent=279 // pred_fallthru
          _
        // Predicated region
        $region317: #{_lambda_.1} parent=279 // pred_check
          %p2108 = pneg %p436
        $region318: #{_lambda_.1} parent=279 // pred_check_branch
          %2110 = sbr.rel (%p2108) target = $region320
        $region319: #{_lambda_.1} parent=279 // pred_region
          %2111 = dma.done [#allocation21], 16
        $region320: #{_lambda_.1} parent=279 // pred_fallthru
          _
        // Predicated region
        $region321: #{_lambda_.1} parent=279 // pred_check
          %p2112 = pneg %p457
        $region322: #{_lambda_.1} parent=279 // pred_check_branch
          %2114 = sbr.rel (%p2112) target = $region324
        $region323: #{_lambda_.1} parent=279 // pred_region
          %2115 = dma.done [#allocation21], 16
        $region324: #{_lambda_.1} parent=279 // pred_fallthru
          _
        // Predicated region
        $region325: #{_lambda_.1} parent=279 // pred_check
          %p2116 = pneg %p520
        $region326: #{_lambda_.1} parent=279 // pred_check_branch
          %2118 = sbr.rel (%p2116) target = $region328
        $region327: #{_lambda_.1} parent=279 // pred_region
          %2119 = dma.done [#allocation24], 16
        $region328: #{_lambda_.1} parent=279 // pred_fallthru
          _
        // Predicated region
        $region329: #{_lambda_.1} parent=279 // pred_check
          %p2120 = pneg %p541
        $region330: #{_lambda_.1} parent=279 // pred_check_branch
          %2122 = sbr.rel (%p2120) target = $region332
        $region331: #{_lambda_.1} parent=279 // pred_region
          %2123 = dma.done [#allocation24], 16
        $region332: #{_lambda_.1} parent=279 // pred_fallthru
          _
        // Predicated region
        $region333: #{_lambda_.1} parent=279 // pred_check
          %p2124 = pneg %p562
        $region334: #{_lambda_.1} parent=279 // pred_check_branch
          %2126 = sbr.rel (%p2124) target = $region336
        $region335: #{_lambda_.1} parent=279 // pred_region
          %2127 = dma.done [#allocation27], 16
        $region336: #{_lambda_.1} parent=279 // pred_fallthru
          _
        // Predicated region
        $region337: #{_lambda_.1} parent=279 // pred_check
          %p2128 = pneg %p583
        $region338: #{_lambda_.1} parent=279 // pred_check_branch
          %2130 = sbr.rel (%p2128) target = $region340
        $region339: #{_lambda_.1} parent=279 // pred_region
          %2131 = dma.done [#allocation27], 128
        $region340: #{_lambda_.1} parent=279 // pred_fallthru
          _
        // Predicated region
        $region341: #{_lambda_.1} parent=279 // pred_check
          %p2132 = pneg %p646
        $region342: #{_lambda_.1} parent=279 // pred_check_branch
          %2134 = sbr.rel (%p2132) target = $region344
        $region343: #{_lambda_.1} parent=279 // pred_region
          %2135 = dma.done [#allocation30], 16
        $region344: #{_lambda_.1} parent=279 // pred_fallthru
          _
        // Predicated region
        $region345: #{_lambda_.1} parent=279 // pred_check
          %p2136 = pneg %p688
        $region346: #{_lambda_.1} parent=279 // pred_check_branch
          %2138 = sbr.rel (%p2136) target = $region348
        $region347: #{_lambda_.1} parent=279 // pred_region
          %2139 = dma.done [#allocation30], 16
        $region348: #{_lambda_.1} parent=279 // pred_fallthru
          _
        // Predicated region
        $region349: #{_lambda_.1} parent=279 // pred_check
          %p2140 = pneg %p751
        $region350: #{_lambda_.1} parent=279 // pred_check_branch
          %2142 = sbr.rel (%p2140) target = $region352
        $region351: #{_lambda_.1} parent=279 // pred_region
          %2143 = dma.done [#allocation33], 128
        $region352: #{_lambda_.1} parent=279 // pred_fallthru
          _
        // Predicated region
        $region353: #{_lambda_.1} parent=279 // pred_check
          %p2144 = pneg %p772
        $region354: #{_lambda_.1} parent=279 // pred_check_branch
          %2146 = sbr.rel (%p2144) target = $region356
        $region355: #{_lambda_.1} parent=279 // pred_region
          %2147 = dma.done [#allocation33], 16
        $region356: #{_lambda_.1} parent=279 // pred_fallthru
          _
        // Predicated region
        $region357: #{_lambda_.1} parent=279 // pred_check
          %p2148 = pneg %p793
        $region358: #{_lambda_.1} parent=279 // pred_check_branch
          %2150 = sbr.rel (%p2148) target = $region360
        $region359: #{_lambda_.1} parent=279 // pred_region
          %2151 = dma.done [#allocation36], 16
        $region360: #{_lambda_.1} parent=279 // pred_fallthru
          _
        // Predicated region
        $region361: #{_lambda_.1} parent=279 // pred_check
          %p2152 = pneg %p856
        $region362: #{_lambda_.1} parent=279 // pred_check_branch
          %2154 = sbr.rel (%p2152) target = $region364
        $region363: #{_lambda_.1} parent=279 // pred_region
          %2155 = dma.done [#allocation36], 16
        $region364: #{_lambda_.1} parent=279 // pred_fallthru
          _
        %p2156 = pneg %p184
        %p2157 = pneg %p181
        %p2158 = pneg %p205
        %p2159 = pneg %p202
        %p2160 = pneg %p226
        %p2161 = pneg %p223
        %p2162 = pneg %p247
        %p2163 = pneg %p244
        %p2164 = pneg %p268
        %p2165 = pneg %p265
        %p2166 = pneg %p289
        %p2167 = pneg %p286
        %p2168 = pneg %p310
        %p2169 = pneg %p307
        %p2170 = pneg %p331
        %p2171 = pneg %p328
        %p2172 = pneg %p352
        %p2173 = pneg %p349
        %p2174 = pneg %p373
        %p2175 = pneg %p370
        %p2176 = pneg %p394
        %p2177 = pneg %p391
        %p2178 = pneg %p415
        %p2179 = pneg %p412
        %p2180 = pneg %p436
        %p2181 = pneg %p433
        %p2182 = pneg %p457
        %p2183 = pneg %p454
        %p2184 = pneg %p478
        %p2185 = pneg %p475
        %p2186 = pneg %p499
        %p2187 = pneg %p496
        %p2188 = pneg %p520
        %p2189 = pneg %p517
        %p2190 = pneg %p541
        %p2191 = pneg %p538
        %p2192 = pneg %p562
        %p2193 = pneg %p559
        %p2194 = pneg %p583
        %p2195 = pneg %p580
        %p2196 = pneg %p604
        %p2197 = pneg %p601
        %p2198 = pneg %p625
        %p2199 = pneg %p622
        %p2200 = pneg %p646
        %p2201 = pneg %p643
        %p2202 = pneg %p667
        %p2203 = pneg %p664
        %p2204 = pneg %p688
        %p2205 = pneg %p685
        %p2206 = pneg %p709
        %p2207 = pneg %p706
        %p2208 = pneg %p730
        %p2209 = pneg %p727
        %p2210 = pneg %p751
        %p2211 = pneg %p748
        %p2212 = pneg %p772
        %p2213 = pneg %p769
        %p2214 = pneg %p793
        %p2215 = pneg %p790
        %p2216 = pneg %p814
        %p2217 = pneg %p811
        %p2218 = pneg %p835
        %p2219 = pneg %p832
        %p2220 = pneg %p856
        %p2221 = pneg %p853
        %p2222 = pneg %p877
        %p2223 = pneg %p874
        %p2224 = pneg %p898
        %p2225 = pneg %p895
        %p2226 = pneg %p919
        %p2227 = pneg %p916
        %p2228 = pneg %p940
        %p2229 = pneg %p937
        %p2230 = pneg %p961
        %p2231 = pneg %p958
        %p2232 = pneg %p982
        %p2233 = pneg %p979
        %p2234 = pneg %p1003
        %p2235 = pneg %p1000
        %p2236 = pneg %p1024
        %p2237 = pneg %p1021
        %p2238 = pneg %p1045
        %p2239 = pneg %p1042
        %p2240 = pneg %p1066
        %p2241 = pneg %p1063
        %p2242 = pneg %p1087
        %p2243 = pneg %p1084
        %p2244 = pneg %p1108
        %p2245 = pneg %p1105
        %p2246 = pneg %p1129
        %p2247 = pneg %p1126
        %p2248 = pneg %p1150
        %p2249 = pneg %p1147
        %p2250 = pneg %p1171
        %p2251 = pneg %p1168
        %p2252 = pneg %p1192
        %p2253 = pneg %p1189
        %p2254 = pneg %p1213
        %p2255 = pneg %p1210
        %p2256 = pneg %p1234
        %p2257 = pneg %p1231
        %p2258 = pneg %p1255
        %p2259 = pneg %p1252
        %p2260 = pneg %p1276
        %p2261 = pneg %p1273
        %p2262 = pneg %p1297
        %p2263 = pneg %p1294
        %p2264 = pneg %p1318
        %p2265 = pneg %p1315
        %p2266 = pneg %p1339
        %p2267 = pneg %p1336
        %p2268 = pneg %p1360
        %p2269 = pneg %p1357
        %p2270 = pneg %p1381
        %p2271 = pneg %p1378
        %p2272 = pneg %p1402
        %p2273 = pneg %p1399
        %p2274 = scmp.lt.s32.totalorder %s168, 1
        %s2275 = scalar_select %p2274, %s168, 1
        %s2276 = smul.addr %s2275, 2
        %s2277 = scalar_lea.vmem %s119, %s2276
        %p2278 = pneg %p1428
        %p2279 = pneg %p1425
        %p2280 = scmp.lt.s32.totalorder %s168, 1
        %s2281 = scalar_select %p2280, %s168, 1
        %s2282 = smul.addr %s2281, 4
        %s2283 = scalar_lea.vmem %s121, %s2282
        %p2284 = pneg %p1454
        %p2285 = pneg %p1451
        %p2286 = scmp.lt.s32.totalorder %s168, 1
        %s2287 = scalar_select %p2286, %s168, 1
        %s2288 = scalar_lea.vmem %s123, %s2287
        %p2289 = pneg %p1480
        %p2290 = pneg %p1477
        %p2291 = scmp.lt.s32.totalorder %s168, 1
        %s2292 = scalar_select %p2291, %s168, 1
        %s2293 = smul.addr %s2292, 8
        %s2294 = scalar_lea.vmem %s125, %s2293
        %p2295 = pneg %p1506
        %p2296 = pneg %p1503
        %p2297 = scmp.lt.s32.totalorder %s168, 1
        %s2298 = scalar_select %p2297, %s168, 1
        %s2299 = scalar_lea.vmem %s127, %s2298
        %p2300 = pneg %p1532
        %p2301 = pneg %p1529
        %p2302 = scmp.lt.s32.totalorder %s168, 1
        %s2303 = scalar_select %p2302, %s168, 1
        %s2304 = scalar_lea.vmem %s129, %s2303
        %p2305 = pneg %p1558
        %p2306 = pneg %p1555
        %p2307 = pneg %p1584
        %p2308 = pneg %p1581
        %s2309 = sand.u32 %s1571, 1
        %s2310 = scalar_lea.sflag [#allocation7], %s2309
        %s2311 = sand.u32 %s1571, 1
        %s2312 = smul.addr %s2311, 8
        %s2313 = scalar_lea.vmem [#allocation38], %s2312
        %p2314 = pneg %p1610
        %p2315 = pneg %p1607
        %p2316 = scmp.lt.s32.totalorder %s168, 1
        %s2317 = scalar_select %p2316, %s168, 1
        %s2318 = smul.addr %s2317, 8
        %s2319 = scalar_lea.vmem %s133, %s2318
        %p2320 = pneg %p1636
        %p2321 = pneg %p1633
        %s2322 = sand.u32 %s168, 1
        %s2323 = scalar_lea.sflag [#allocation40], %s2322
        %s2324 = sand.u32 %s1623, 1
        %s2325 = scalar_lea.vmem [#allocation39], %s2324
        %p2326 = pneg %p1662
        %p2327 = pneg %p1659
        %s2328 = sand.u32 %s168, 1
        %s2329 = scalar_lea.sflag [#allocation40], %s2328
        %s2330 = sand.u32 %s1649, 1
        %s2331 = scalar_lea.vmem [#allocation41], %s2330
        %p2332 = scmp.lt.s32.totalorder %s168, 1
        %s2333 = scalar_select %p2332, %s168, 1
        %s2334 = smul.addr %s2333, 2
        %s2335 = scalar_lea.vmem %s119, %s2334
        %p2336 = scmp.lt.s32.totalorder %s168, 1
        %s2337 = scalar_select %p2336, %s168, 1
        %s2338 = smul.addr %s2337, 4
        %s2339 = scalar_lea.vmem %s121, %s2338
        %p2340 = scmp.lt.s32.totalorder %s168, 1
        %s2341 = scalar_select %p2340, %s168, 1
        %s2342 = scalar_lea.vmem %s123, %s2341
        %p2343 = scmp.lt.s32.totalorder %s168, 1
        %s2344 = scalar_select %p2343, %s168, 1
        %s2345 = smul.addr %s2344, 8
        %s2346 = scalar_lea.vmem %s125, %s2345
        %p2347 = scmp.lt.s32.totalorder %s168, 1
        %s2348 = scalar_select %p2347, %s168, 1
        %s2349 = scalar_lea.vmem %s127, %s2348
        %p2350 = scmp.lt.s32.totalorder %s168, 1
        %s2351 = scalar_select %p2350, %s168, 1
        %s2352 = scalar_lea.vmem %s129, %s2351
        %p2353 = scmp.lt.s32.totalorder %s168, 1
        %s2354 = scalar_select %p2353, %s168, 1
        %s2355 = smul.addr %s2354, 8
        %s2356 = scalar_lea.vmem %s133, %s2355
        %v2357 = vld [vmem:[%s2335] sm:$0x3]
        %v2358 = vld [vmem:[%s2339] sm:$0x7]
        %v2359 = vld [vmem:[%s2342] sm:$0x1]
        %v2360 = vld [vmem:[%s2346] sm:$0xff]
        %v2361 = vld [vmem:[#allocation28] sm:$0xff]
        %v2362 = vld [vmem:[#allocation26] sm:$0x1]
        %v2364 = vlaneseq
        %v2365 = vshrl.u32 %v2364, 7
        %v2366 = vsub.s32 0, %v2365
        %v2367 = vrot.slane %v2362, %v2366
        %vm2369 = vcmask 64512
        %v2371 = vsel %vm2369, %v2360, 0
        %2373 = vmatprep.subr.mxu0 0.0
        %2374 = vmatpush1.msra.mxu0 %v2361
        %2375 = vmatprep.subr.mxu0 0.0
        %2376 = vmatpush1.msra.mxu0 0.0
        %2377 = vmatprep.subr.mxu0 0.0
        %2378 = vmatpush1.msra.mxu0 0.0
        %2379 = vmatprep.subr.mxu0 0.0
        %2380 = vmatpush1.msra.mxu0 0.0
        %2381 = vmatprep.subr.mxu0 0.0
        %2382 = vmatpush1.msra.mxu0 0.0
        %2383 = vmatprep.subr.mxu0 0.0
        %2384 = vmatpush1.msra.mxu0 0.0
        %2385 = vmatprep.subr.mxu0 0.0
        %2386 = vmatpush1.msra.mxu0 0.0
        %2387 = vmatprep.subr.mxu0 0.0
        %2388 = vmatpush1.msra.mxu0 0.0
        %2389 = vmatprep.subr.mxu0 0.0
        %2390 = vmatpush1.msra.mxu0 0.0
        %2391 = vmatprep.subr.mxu0 0.0
        %2392 = vmatpush1.msra.mxu0 0.0
        %2393 = vmatprep.subr.mxu0 0.0
        %2394 = vmatpush1.msra.mxu0 0.0
        %2395 = vmatprep.subr.mxu0 0.0
        %2396 = vmatpush1.msra.mxu0 0.0
        %2397 = vmatprep.subr.mxu0 0.0
        %2398 = vmatpush1.msra.mxu0 0.0
        %2399 = vmatprep.subr.mxu0 0.0
        %2400 = vmatpush1.msra.mxu0 0.0
        %2401 = vmatprep.subr.mxu0 0.0
        %2402 = vmatpush1.msra.mxu0 0.0
        %2403 = vmatprep.subr.mxu0 0.0
        %2404 = vmatpush1.msra.mxu0 0.0
        %2405 = vmatprep.subr.mxu0 0.0
        %2406 = vmatpush1.msra.mxu0 0.0
        %2407 = vmatprep.subr.mxu0 0.0
        %2408 = vmatpush1.msra.mxu0 0.0
        %2409 = vmatprep.subr.mxu0 0.0
        %2410 = vmatpush1.msra.mxu0 0.0
        %2411 = vmatprep.subr.mxu0 0.0
        %2412 = vmatpush1.msra.mxu0 0.0
        %2413 = vmatprep.subr.mxu0 0.0
        %2414 = vmatpush1.msra.mxu0 0.0
        %2415 = vmatprep.subr.mxu0 0.0
        %2416 = vmatpush1.msra.mxu0 0.0
        %2417 = vmatprep.subr.mxu0 0.0
        %2418 = vmatpush1.msra.mxu0 0.0
        %2419 = vmatprep.subr.mxu0 0.0
        %2420 = vmatpush1.msra.mxu0 0.0
        %2421 = vmatprep.subr.mxu0 0.0
        %2422 = vmatpush1.msra.mxu0 0.0
        %2423 = vmatprep.subr.mxu0 0.0
        %2424 = vmatpush1.msra.mxu0 0.0
        %2425 = vmatprep.subr.mxu0 0.0
        %2426 = vmatpush1.msra.mxu0 0.0
        %2427 = vmatprep.subr.mxu0 0.0
        %2428 = vmatpush1.msra.mxu0 0.0
        %2429 = vmatprep.subr.mxu0 0.0
        %2430 = vmatpush1.msra.mxu0 0.0
        %2431 = vmatprep.subr.mxu0 0.0
        %2432 = vmatpush1.msra.mxu0 0.0
        %2433 = vmatprep.subr.mxu0 0.0
        %2434 = vmatpush1.msra.mxu0 0.0
        %2435 = vmatprep.subr.mxu0 0.0
        %2436 = vmatpush1.msra.mxu0 0.0
        %2437 = vmatprep.mubr.f32.mxu0 0.0
        %2438 = vmatmul.mubr.f32.gmra.mrb[0].mxu0 %v2371
        %v2439 = vpop.f32.mrb[0].mxu0
        %v2440 = vadd.f32 %v2367, %v2439
        %v2441 = vpop.f32.mrb[0].mxu0
        %2442 = vdwg.mxu0
        %v2443 = vld [vmem:[#allocation10] sm:$0x1]
        %vm2444 = vcmask 253952
        %2445 = vst.msk [vmem:[#allocation2] sm:$0x1] %vm2444, %v2443
        %vm2446 = vcmask 254976
        %2447 = vst.msk [vmem:[#allocation2 + $0x1] sm:$0x3] %vm2446, %v2357
        %vm2448 = vcmask 256000
        %2449 = vst.msk [vmem:[#allocation2 + $0x3] sm:$0x7] %vm2448, %v2358
        %vm2450 = vcmask 261120
        %2451 = vst.msk [vmem:[#allocation2 + $0x6] sm:$0xff] %vm2450, %v2440
        %v2452 = vld [vmem:[#allocation2] sm:$0xff]
        %v2453 = vld [vmem:[#allocation2 + $0x8] sm:$0x3f]
        %v2454 = vld [vmem:[%s53] sm:$0xff]
        %v2455 = vld [vmem:[%s53 + $0x8] sm:$0x3f]
        %v2456 = vld [vmem:[%s2349] sm:$0x1]
        %v2457 = vadd.f32 %v2452, %v2454
        %v2458 = vadd.f32 %v2453, %v2455
        %v2459 = vld [vmem:[%s31] sm:$0xff]
        %v2460 = vld [vmem:[%s31 + $0x8] sm:$0xff]
        %v2461 = vld [vmem:[%s31 + $0x10] sm:$0xff]
        %v2462 = vld [vmem:[%s31 + $0x18] sm:$0xff]
        %v2463 = vld [vmem:[#allocation22] sm:$0x1]
        %v2465 = vlaneseq
        %v2466 = vshrl.u32 %v2465, 7
        %v2467 = vsub.s32 0, %v2466
        %v2468 = vrot.slane %v2463, %v2467
        %v2471 = vsel %vm2450, %v2457, 0
        %v2474 = vsel %vm2450, %v2458, 0
        %2476 = vmatprep.subr.mxu0 0.0
        %2477 = vmatpush1.msra.mxu0 %v2459
        %2478 = vmatprep.subr.mxu0 0.0
        %2479 = vmatpush1.msra.mxu0 %v2460
        %2480 = vmatprep.subr.mxu0 0.0
        %2481 = vmatpush1.msra.mxu0 %v2461
        %2482 = vmatprep.subr.mxu0 0.0
        %2483 = vmatpush1.msra.mxu0 %v2462
        %2484 = vmatprep.subr.mxu0 0.0
        %2485 = vmatpush1.msra.mxu0 0.0
        %2486 = vmatprep.subr.mxu0 0.0
        %2487 = vmatpush1.msra.mxu0 0.0
        %2488 = vmatprep.subr.mxu0 0.0
        %2489 = vmatpush1.msra.mxu0 0.0
        %2490 = vmatprep.subr.mxu0 0.0
        %2491 = vmatpush1.msra.mxu0 0.0
        %2492 = vmatprep.subr.mxu0 0.0
        %2493 = vmatpush1.msra.mxu0 0.0
        %2494 = vmatprep.subr.mxu0 0.0
        %2495 = vmatpush1.msra.mxu0 0.0
        %2496 = vmatprep.subr.mxu0 0.0
        %2497 = vmatpush1.msra.mxu0 0.0
        %2498 = vmatprep.subr.mxu0 0.0
        %2499 = vmatpush1.msra.mxu0 0.0
        %2500 = vmatprep.subr.mxu0 0.0
        %2501 = vmatpush1.msra.mxu0 0.0
        %2502 = vmatprep.subr.mxu0 0.0
        %2503 = vmatpush1.msra.mxu0 0.0
        %2504 = vmatprep.subr.mxu0 0.0
        %2505 = vmatpush1.msra.mxu0 0.0
        %2506 = vmatprep.subr.mxu0 0.0
        %2507 = vmatpush1.msra.mxu0 0.0
        %2508 = vmatprep.subr.mxu0 0.0
        %2509 = vmatpush1.msra.mxu0 0.0
        %2510 = vmatprep.subr.mxu0 0.0
        %2511 = vmatpush1.msra.mxu0 0.0
        %2512 = vmatprep.subr.mxu0 0.0
        %2513 = vmatpush1.msra.mxu0 0.0
        %2514 = vmatprep.subr.mxu0 0.0
        %2515 = vmatpush1.msra.mxu0 0.0
        %2516 = vmatprep.subr.mxu0 0.0
        %2517 = vmatpush1.msra.mxu0 0.0
        %2518 = vmatprep.subr.mxu0 0.0
        %2519 = vmatpush1.msra.mxu0 0.0
        %2520 = vmatprep.subr.mxu0 0.0
        %2521 = vmatpush1.msra.mxu0 0.0
        %2522 = vmatprep.subr.mxu0 0.0
        %2523 = vmatpush1.msra.mxu0 0.0
        %2524 = vmatprep.subr.mxu0 0.0
        %2525 = vmatpush1.msra.mxu0 0.0
        %2526 = vmatprep.subr.mxu0 0.0
        %2527 = vmatpush1.msra.mxu0 0.0
        %2528 = vmatprep.subr.mxu0 0.0
        %2529 = vmatpush1.msra.mxu0 0.0
        %2530 = vmatprep.subr.mxu0 0.0
        %2531 = vmatpush1.msra.mxu0 0.0
        %2532 = vmatprep.subr.mxu0 0.0
        %2533 = vmatpush1.msra.mxu0 0.0
        %2534 = vmatprep.subr.mxu0 0.0
        %2535 = vmatpush1.msra.mxu0 0.0
        %2536 = vmatprep.subr.mxu0 0.0
        %2537 = vmatpush1.msra.mxu0 0.0
        %2538 = vmatprep.subr.mxu0 0.0
        %2539 = vmatpush1.msra.mxu0 0.0
        %2540 = vmatprep.mubr.f32.mxu0 0.0
        %2541 = vmatmul.mubr.f32.gmra.mrb[0].mxu0 %v2471
        %v2542 = vpop.f32.mrb[0].mxu0
        %v2543 = vadd.f32 %v2468, %v2542
        %v2544 = vpop.f32.mrb[0].mxu0
        %2545 = vmatprep.mubr.f32.mxu0 0.0
        %2546 = vmatmul.mubr.f32.gmra.mrb[0].mxu0 %v2474
        %v2547 = vpop.f32.mrb[0].mxu0
        %v2548 = vadd.f32 %v2468, %v2547
        %v2549 = vpop.f32.mrb[0].mxu0
        %2550 = vdwg.mxu0
        %2555 = vrot.lane.b32.xlu0 %v2459, 64
        %v2556 = vpop.permute.xlu0 %2555
        %2557 = vrot.lane.b32.xlu0 %v2460, 64
        %v2558 = vpop.permute.xlu0 %2557
        %2559 = vrot.lane.b32.xlu0 %v2461, 64
        %v2560 = vpop.permute.xlu0 %2559
        %2561 = vrot.lane.b32.xlu0 %v2462, 64
        %v2562 = vpop.permute.xlu0 %2561
        %2567 = vrot.lane.b32.xlu0 %v2468, 64
        %v2568 = vpop.permute.xlu0 %2567
        %v2571 = vsel %vm2450, %v2452, 0
        %v2574 = vsel %vm2450, %v2453, 0
        %2576 = vmatprep.subr.mxu0 0.0
        %2577 = vmatpush1.msra.mxu0 %v2556
        %2578 = vmatprep.subr.mxu0 0.0
        %2579 = vmatpush1.msra.mxu0 %v2558
        %2580 = vmatprep.subr.mxu0 0.0
        %2581 = vmatpush1.msra.mxu0 %v2560
        %2582 = vmatprep.subr.mxu0 0.0
        %2583 = vmatpush1.msra.mxu0 %v2562
        %2584 = vmatprep.subr.mxu0 0.0
        %2585 = vmatpush1.msra.mxu0 0.0
        %2586 = vmatprep.subr.mxu0 0.0
        %2587 = vmatpush1.msra.mxu0 0.0
        %2588 = vmatprep.subr.mxu0 0.0
        %2589 = vmatpush1.msra.mxu0 0.0
        %2590 = vmatprep.subr.mxu0 0.0
        %2591 = vmatpush1.msra.mxu0 0.0
        %2592 = vmatprep.subr.mxu0 0.0
        %2593 = vmatpush1.msra.mxu0 0.0
        %2594 = vmatprep.subr.mxu0 0.0
        %2595 = vmatpush1.msra.mxu0 0.0
        %2596 = vmatprep.subr.mxu0 0.0
        %2597 = vmatpush1.msra.mxu0 0.0
        %2598 = vmatprep.subr.mxu0 0.0
        %2599 = vmatpush1.msra.mxu0 0.0
        %2600 = vmatprep.subr.mxu0 0.0
        %2601 = vmatpush1.msra.mxu0 0.0
        %2602 = vmatprep.subr.mxu0 0.0
        %2603 = vmatpush1.msra.mxu0 0.0
        %2604 = vmatprep.subr.mxu0 0.0
        %2605 = vmatpush1.msra.mxu0 0.0
        %2606 = vmatprep.subr.mxu0 0.0
        %2607 = vmatpush1.msra.mxu0 0.0
        %2608 = vmatprep.subr.mxu0 0.0
        %2609 = vmatpush1.msra.mxu0 0.0
        %2610 = vmatprep.subr.mxu0 0.0
        %2611 = vmatpush1.msra.mxu0 0.0
        %2612 = vmatprep.subr.mxu0 0.0
        %2613 = vmatpush1.msra.mxu0 0.0
        %2614 = vmatprep.subr.mxu0 0.0
        %2615 = vmatpush1.msra.mxu0 0.0
        %2616 = vmatprep.subr.mxu0 0.0
        %2617 = vmatpush1.msra.mxu0 0.0
        %2618 = vmatprep.subr.mxu0 0.0
        %2619 = vmatpush1.msra.mxu0 0.0
        %2620 = vmatprep.subr.mxu0 0.0
        %2621 = vmatpush1.msra.mxu0 0.0
        %2622 = vmatprep.subr.mxu0 0.0
        %2623 = vmatpush1.msra.mxu0 0.0
        %2624 = vmatprep.subr.mxu0 0.0
        %2625 = vmatpush1.msra.mxu0 0.0
        %2626 = vmatprep.subr.mxu0 0.0
        %2627 = vmatpush1.msra.mxu0 0.0
        %2628 = vmatprep.subr.mxu0 0.0
        %2629 = vmatpush1.msra.mxu0 0.0
        %2630 = vmatprep.subr.mxu0 0.0
        %2631 = vmatpush1.msra.mxu0 0.0
        %2632 = vmatprep.subr.mxu0 0.0
        %2633 = vmatpush1.msra.mxu0 0.0
        %2634 = vmatprep.subr.mxu0 0.0
        %2635 = vmatpush1.msra.mxu0 0.0
        %2636 = vmatprep.subr.mxu0 0.0
        %2637 = vmatpush1.msra.mxu0 0.0
        %2638 = vmatprep.subr.mxu0 0.0
        %2639 = vmatpush1.msra.mxu0 0.0
        %2640 = vmatprep.mubr.f32.mxu0 0.0
        %2641 = vmatmul.mubr.f32.gmra.mrb[0].mxu0 %v2571
        %v2642 = vpop.f32.mrb[0].mxu0
        %v2643 = vadd.f32 %v2568, %v2642
        %v2644 = vpop.f32.mrb[0].mxu0
        %2645 = vmatprep.mubr.f32.mxu0 0.0
        %2646 = vmatmul.mubr.f32.gmra.mrb[0].mxu0 %v2574
        %v2647 = vpop.f32.mrb[0].mxu0
        %v2648 = vadd.f32 %v2568, %v2647
        %v2649 = vpop.f32.mrb[0].mxu0
        %2650 = vdwg.mxu0
        %v2651 = vmul.f32 %v2543, 0.35355338
        %v2652 = vmul.f32 %v2548, 0.35355338
        %v2653 = vld [vmem:[%s117] sm:$0x1]
        %v2654 = vlaneseq
        %v2655 = vshrl.u32 %v2654, 7
        %v2656 = vsub.s32 0, %v2655
        %v2657 = vrot.slane %v2653, %v2656
        %v2658 = vmul.f32 %v2651, %v2657
        %v2659 = vmul.f32 %v2652, %v2657
        %v2661 = vlaneseq
        %v2662 = vshrl.u32 %v2661, 7
        %v2663 = vsub.s32 0, %v2662
        %v2664 = vrot.slane %v2456, %v2663
        %2668 = vrot.lane.b32.xlu0 %v2543, 96
        %v2669 = vpop.permute.xlu0 %2668
        %2670 = vrot.lane.b32.xlu0 %v2548, 96
        %v2671 = vpop.permute.xlu0 %2670
        %v2673 = vsel %vm2450, %v2658, 0
        %v2676 = vsel %vm2450, %v2659, 0
        %v2678 = vsel %vm2450, %v2669, 0
        %v2680 = vsel %vm2450, %v2671, 0
        %2682 = vmatprep.subr.mxu0 0.0
        %2683 = vmatpush1.xpose.msra.mxu0 %v2678
        %2684 = vmatprep.subr.mxu0 0.0
        %2685 = vmatpush1.xpose.msra.mxu0 %v2680
        %2686 = vmatprep.subr.mxu0 0.0
        %2687 = vmatpush1.xpose.msra.mxu0 0.0
        %2688 = vmatprep.subr.mxu0 0.0
        %2689 = vmatpush1.xpose.msra.mxu0 0.0
        %2690 = vmatprep.subr.mxu0 0.0
        %2691 = vmatpush1.xpose.msra.mxu0 0.0
        %2692 = vmatprep.subr.mxu0 0.0
        %2693 = vmatpush1.xpose.msra.mxu0 0.0
        %2694 = vmatprep.subr.mxu0 0.0
        %2695 = vmatpush1.xpose.msra.mxu0 0.0
        %2696 = vmatprep.subr.mxu0 0.0
        %2697 = vmatpush1.xpose.msra.mxu0 0.0
        %2698 = vmatprep.subr.mxu0 0.0
        %2699 = vmatpush1.xpose.msra.mxu0 0.0
        %2700 = vmatprep.subr.mxu0 0.0
        %2701 = vmatpush1.xpose.msra.mxu0 0.0
        %2702 = vmatprep.subr.mxu0 0.0
        %2703 = vmatpush1.xpose.msra.mxu0 0.0
        %2704 = vmatprep.subr.mxu0 0.0
        %2705 = vmatpush1.xpose.msra.mxu0 0.0
        %2706 = vmatprep.subr.mxu0 0.0
        %2707 = vmatpush1.xpose.msra.mxu0 0.0
        %2708 = vmatprep.subr.mxu0 0.0
        %2709 = vmatpush1.xpose.msra.mxu0 0.0
        %2710 = vmatprep.subr.mxu0 0.0
        %2711 = vmatpush1.xpose.msra.mxu0 0.0
        %2712 = vmatprep.subr.mxu0 0.0
        %2713 = vmatpush1.xpose.msra.mxu0 0.0
        %2714 = vmatprep.subr.mxu0 0.0
        %2715 = vmatpush1.xpose.msra.mxu0 0.0
        %2716 = vmatprep.subr.mxu0 0.0
        %2717 = vmatpush1.xpose.msra.mxu0 0.0
        %2718 = vmatprep.subr.mxu0 0.0
        %2719 = vmatpush1.xpose.msra.mxu0 0.0
        %2720 = vmatprep.subr.mxu0 0.0
        %2721 = vmatpush1.xpose.msra.mxu0 0.0
        %2722 = vmatprep.subr.mxu0 0.0
        %2723 = vmatpush1.xpose.msra.mxu0 0.0
        %2724 = vmatprep.subr.mxu0 0.0
        %2725 = vmatpush1.xpose.msra.mxu0 0.0
        %2726 = vmatprep.subr.mxu0 0.0
        %2727 = vmatpush1.xpose.msra.mxu0 0.0
        %2728 = vmatprep.subr.mxu0 0.0
        %2729 = vmatpush1.xpose.msra.mxu0 0.0
        %2730 = vmatprep.subr.mxu0 0.0
        %2731 = vmatpush1.xpose.msra.mxu0 0.0
        %2732 = vmatprep.subr.mxu0 0.0
        %2733 = vmatpush1.xpose.msra.mxu0 0.0
        %2734 = vmatprep.subr.mxu0 0.0
        %2735 = vmatpush1.xpose.msra.mxu0 0.0
        %2736 = vmatprep.subr.mxu0 0.0
        %2737 = vmatpush1.xpose.msra.mxu0 0.0
        %2738 = vmatprep.subr.mxu0 0.0
        %2739 = vmatpush1.xpose.msra.mxu0 0.0
        %2740 = vmatprep.subr.mxu0 0.0
        %2741 = vmatpush1.xpose.msra.mxu0 0.0
        %2742 = vmatprep.subr.mxu0 0.0
        %2743 = vmatpush1.xpose.msra.mxu0 0.0
        %2744 = vmatprep.subr.mxu0 0.0
        %2745 = vmatpush1.xpose.msra.mxu0 0.0
        %2746 = vmatprep.mubr.f32.mxu0 0.0
        %2747 = vmatmul.mubr.f32.gmra.mrb[0].mxu0 %v2673
        %v2748 = vpop.f32.mrb[0].mxu0
        %v2749 = vadd.f32 %v2664, %v2748
        %v2750 = vpop.f32.mrb[0].mxu0
        %2751 = vmatprep.mubr.f32.mxu0 0.0
        %2752 = vmatmul.mubr.f32.gmra.mrb[0].mxu0 %v2676
        %v2753 = vpop.f32.mrb[0].mxu0
        %v2754 = vadd.f32 %v2664, %v2753
        %v2755 = vpop.f32.mrb[0].mxu0
        %2756 = vdwg.mxu0
        %vm2757 = vcmask 113664
        %v2758 = vsel %vm2757, %v2749, -inf
        %2759 = vmax.xlane.f32.xlu0 %v2758
        %v2760 = vpop.xlane.xlu0 %2759
        %vm2761 = vcmask 111616
        %v2762 = vsel %vm2761, %v2754, -inf
        %2763 = vmax.xlane.f32.xlu0 %v2762
        %v2764 = vpop.xlane.xlu0 %2763
        %v2765 = vsub.f32 %v2749, %v2760
        %v2766 = vsub.f32 %v2754, %v2764
        %v2767 = vmul.f32 %v2765, 1.442695
        %v2768 = vpow.pop %v2767
        %v2769 = vmul.f32 %v2766, 1.442695
        %v2770 = vpow.pop %v2769
        %v2771 = vsel %vm2757, %v2768, 0.0
        %2772 = vadd.xlane.f32.xlu0 %v2771
        %v2773 = vpop.xlane.xlu0 %2772
        %v2774 = vsel %vm2761, %v2770, 0.0
        %2775 = vadd.xlane.f32.xlu0 %v2774
        %v2776 = vpop.xlane.xlu0 %2775
        %v2777 = vrcp.pop %v2773
        %v2778 = vmul.f32 %v2768, %v2777
        %v2779 = vrcp.pop %v2776
        %v2780 = vmul.f32 %v2770, %v2779
        %v2781 = vmul.f32 %v2643, %v2657
        %v2782 = vmul.f32 %v2648, %v2657
        %v2783 = vld [vmem:[%s117 + $0x1] sm:$0x1]
        %v2784 = vlaneseq
        %v2785 = vshrl.u32 %v2784, 7
        %v2786 = vsub.s32 0, %v2785
        %v2787 = vrot.slane %v2783, %v2786
        %v2788 = vmul.f32 %v2651, %v2787
        %v2789 = vmul.f32 %v2652, %v2787
        %v2791 = vsel %vm2450, %v2788, 0
        %v2794 = vsel %vm2450, %v2789, 0
        %2796 = vmatprep.subr.mxu0 0.0
        %2797 = vmatpush1.xpose.msra.mxu0 %v2678
        %2798 = vmatprep.subr.mxu0 0.0
        %2799 = vmatpush1.xpose.msra.mxu0 %v2680
        %2800 = vmatprep.subr.mxu0 0.0
        %2801 = vmatpush1.xpose.msra.mxu0 0.0
        %2802 = vmatprep.subr.mxu0 0.0
        %2803 = vmatpush1.xpose.msra.mxu0 0.0
        %2804 = vmatprep.subr.mxu0 0.0
        %2805 = vmatpush1.xpose.msra.mxu0 0.0
        %2806 = vmatprep.subr.mxu0 0.0
        %2807 = vmatpush1.xpose.msra.mxu0 0.0
        %2808 = vmatprep.subr.mxu0 0.0
        %2809 = vmatpush1.xpose.msra.mxu0 0.0
        %2810 = vmatprep.subr.mxu0 0.0
        %2811 = vmatpush1.xpose.msra.mxu0 0.0
        %2812 = vmatprep.subr.mxu0 0.0
        %2813 = vmatpush1.xpose.msra.mxu0 0.0
        %2814 = vmatprep.subr.mxu0 0.0
        %2815 = vmatpush1.xpose.msra.mxu0 0.0
        %2816 = vmatprep.subr.mxu0 0.0
        %2817 = vmatpush1.xpose.msra.mxu0 0.0
        %2818 = vmatprep.subr.mxu0 0.0
        %2819 = vmatpush1.xpose.msra.mxu0 0.0
        %2820 = vmatprep.subr.mxu0 0.0
        %2821 = vmatpush1.xpose.msra.mxu0 0.0
        %2822 = vmatprep.subr.mxu0 0.0
        %2823 = vmatpush1.xpose.msra.mxu0 0.0
        %2824 = vmatprep.subr.mxu0 0.0
        %2825 = vmatpush1.xpose.msra.mxu0 0.0
        %2826 = vmatprep.subr.mxu0 0.0
        %2827 = vmatpush1.xpose.msra.mxu0 0.0
        %2828 = vmatprep.subr.mxu0 0.0
        %2829 = vmatpush1.xpose.msra.mxu0 0.0
        %2830 = vmatprep.subr.mxu0 0.0
        %2831 = vmatpush1.xpose.msra.mxu0 0.0
        %2832 = vmatprep.subr.mxu0 0.0
        %2833 = vmatpush1.xpose.msra.mxu0 0.0
        %2834 = vmatprep.subr.mxu0 0.0
        %2835 = vmatpush1.xpose.msra.mxu0 0.0
        %2836 = vmatprep.subr.mxu0 0.0
        %2837 = vmatpush1.xpose.msra.mxu0 0.0
        %2838 = vmatprep.subr.mxu0 0.0
        %2839 = vmatpush1.xpose.msra.mxu0 0.0
        %2840 = vmatprep.subr.mxu0 0.0
        %2841 = vmatpush1.xpose.msra.mxu0 0.0
        %2842 = vmatprep.subr.mxu0 0.0
        %2843 = vmatpush1.xpose.msra.mxu0 0.0
        %2844 = vmatprep.subr.mxu0 0.0
        %2845 = vmatpush1.xpose.msra.mxu0 0.0
        %2846 = vmatprep.subr.mxu0 0.0
        %2847 = vmatpush1.xpose.msra.mxu0 0.0
        %2848 = vmatprep.subr.mxu0 0.0
        %2849 = vmatpush1.xpose.msra.mxu0 0.0
        %2850 = vmatprep.subr.mxu0 0.0
        %2851 = vmatpush1.xpose.msra.mxu0 0.0
        %2852 = vmatprep.subr.mxu0 0.0
        %2853 = vmatpush1.xpose.msra.mxu0 0.0
        %2854 = vmatprep.subr.mxu0 0.0
        %2855 = vmatpush1.xpose.msra.mxu0 0.0
        %2856 = vmatprep.subr.mxu0 0.0
        %2857 = vmatpush1.xpose.msra.mxu0 0.0
        %2858 = vmatprep.subr.mxu0 0.0
        %2859 = vmatpush1.xpose.msra.mxu0 0.0
        %2860 = vmatprep.mubr.f32.mxu0 0.0
        %2861 = vmatmul.mubr.f32.gmra.mrb[0].mxu0 %v2791
        %v2862 = vpop.f32.mrb[0].mxu0
        %v2863 = vadd.f32 %v2664, %v2862
        %v2864 = vpop.f32.mrb[0].mxu0
        %2865 = vmatprep.mubr.f32.mxu0 0.0
        %2866 = vmatmul.mubr.f32.gmra.mrb[0].mxu0 %v2794
        %v2867 = vpop.f32.mrb[0].mxu0
        %v2868 = vadd.f32 %v2664, %v2867
        %v2869 = vpop.f32.mrb[0].mxu0
        %2870 = vdwg.mxu0
        %v2871 = vsel %vm2757, %v2863, -inf
        %2872 = vmax.xlane.f32.xlu0 %v2871
        %v2873 = vpop.xlane.xlu0 %2872
        %v2874 = vsel %vm2761, %v2868, -inf
        %2875 = vmax.xlane.f32.xlu0 %v2874
        %v2876 = vpop.xlane.xlu0 %2875
        %v2877 = vsub.f32 %v2863, %v2873
        %v2878 = vsub.f32 %v2868, %v2876
        %v2879 = vmul.f32 %v2877, 1.442695
        %v2880 = vpow.pop %v2879
        %v2881 = vmul.f32 %v2878, 1.442695
        %v2882 = vpow.pop %v2881
        %v2883 = vsel %vm2757, %v2880, 0.0
        %2884 = vadd.xlane.f32.xlu0 %v2883
        %v2885 = vpop.xlane.xlu0 %2884
        %v2886 = vsel %vm2761, %v2882, 0.0
        %2887 = vadd.xlane.f32.xlu0 %v2886
        %v2888 = vpop.xlane.xlu0 %2887
        %v2889 = vrcp.pop %v2885
        %v2890 = vmul.f32 %v2880, %v2889
        %v2891 = vrcp.pop %v2888
        %v2892 = vmul.f32 %v2882, %v2891
        %v2893 = vmul.f32 %v2643, %v2787
        %v2894 = vmul.f32 %v2648, %v2787
        %v2896 = vsel %vm2757, %v2890, 0
        %v2899 = vsel %vm2757, %v2892, 0
        %vm2901 = vcmask 1045504
        %v2903 = vsel %vm2901, %v2894, 0
        %2905 = vmatprep.subr.mxu0 0.0
        %2906 = vmatpush1.msra.mxu0 %v2893
        %2907 = vmatprep.subr.mxu0 0.0
        %2908 = vmatpush1.msra.mxu0 %v2903
        %2909 = vmatprep.subr.mxu0 0.0
        %2910 = vmatpush1.msra.mxu0 0.0
        %2911 = vmatprep.subr.mxu0 0.0
        %2912 = vmatpush1.msra.mxu0 0.0
        %2913 = vmatprep.subr.mxu0 0.0
        %2914 = vmatpush1.msra.mxu0 0.0
        %2915 = vmatprep.subr.mxu0 0.0
        %2916 = vmatpush1.msra.mxu0 0.0
        %2917 = vmatprep.subr.mxu0 0.0
        %2918 = vmatpush1.msra.mxu0 0.0
        %2919 = vmatprep.subr.mxu0 0.0
        %2920 = vmatpush1.msra.mxu0 0.0
        %2921 = vmatprep.subr.mxu0 0.0
        %2922 = vmatpush1.msra.mxu0 0.0
        %2923 = vmatprep.subr.mxu0 0.0
        %2924 = vmatpush1.msra.mxu0 0.0
        %2925 = vmatprep.subr.mxu0 0.0
        %2926 = vmatpush1.msra.mxu0 0.0
        %2927 = vmatprep.subr.mxu0 0.0
        %2928 = vmatpush1.msra.mxu0 0.0
        %2929 = vmatprep.subr.mxu0 0.0
        %2930 = vmatpush1.msra.mxu0 0.0
        %2931 = vmatprep.subr.mxu0 0.0
        %2932 = vmatpush1.msra.mxu0 0.0
        %2933 = vmatprep.subr.mxu0 0.0
        %2934 = vmatpush1.msra.mxu0 0.0
        %2935 = vmatprep.subr.mxu0 0.0
        %2936 = vmatpush1.msra.mxu0 0.0
        %2937 = vmatprep.subr.mxu0 0.0
        %2938 = vmatpush1.msra.mxu0 0.0
        %2939 = vmatprep.subr.mxu0 0.0
        %2940 = vmatpush1.msra.mxu0 0.0
        %2941 = vmatprep.subr.mxu0 0.0
        %2942 = vmatpush1.msra.mxu0 0.0
        %2943 = vmatprep.subr.mxu0 0.0
        %2944 = vmatpush1.msra.mxu0 0.0
        %2945 = vmatprep.subr.mxu0 0.0
        %2946 = vmatpush1.msra.mxu0 0.0
        %2947 = vmatprep.subr.mxu0 0.0
        %2948 = vmatpush1.msra.mxu0 0.0
        %2949 = vmatprep.subr.mxu0 0.0
        %2950 = vmatpush1.msra.mxu0 0.0
        %2951 = vmatprep.subr.mxu0 0.0
        %2952 = vmatpush1.msra.mxu0 0.0
        %2953 = vmatprep.subr.mxu0 0.0
        %2954 = vmatpush1.msra.mxu0 0.0
        %2955 = vmatprep.subr.mxu0 0.0
        %2956 = vmatpush1.msra.mxu0 0.0
        %2957 = vmatprep.subr.mxu0 0.0
        %2958 = vmatpush1.msra.mxu0 0.0
        %2959 = vmatprep.subr.mxu0 0.0
        %2960 = vmatpush1.msra.mxu0 0.0
        %2961 = vmatprep.subr.mxu0 0.0
        %2962 = vmatpush1.msra.mxu0 0.0
        %2963 = vmatprep.subr.mxu0 0.0
        %2964 = vmatpush1.msra.mxu0 0.0
        %2965 = vmatprep.subr.mxu0 0.0
        %2966 = vmatpush1.msra.mxu0 0.0
        %2967 = vmatprep.subr.mxu0 0.0
        %2968 = vmatpush1.msra.mxu0 0.0
        %2969 = vmatprep.mubr.f32.mxu0 0.0
        %2970 = vmatmul.mubr.f32.gmra.mrb[0].mxu0 %v2896
        %v2971 = vpop.f32.mrb[0].mxu0
        %v2972 = vadd.f32 0.0, %v2971
        %v2973 = vpop.f32.mrb[0].mxu0
        %2974 = vmatprep.mubr.f32.mxu0 0.0
        %2975 = vmatmul.mubr.f32.gmra.mrb[0].mxu0 %v2899
        %v2976 = vpop.f32.mrb[0].mxu0
        %v2977 = vadd.f32 0.0, %v2976
        %v2978 = vpop.f32.mrb[0].mxu0
        %2979 = vdwg.mxu0
        %v2981 = vsel %vm2757, %v2778, 0
        %v2984 = vsel %vm2757, %v2780, 0
        %v2987 = vsel %vm2901, %v2782, 0
        %2989 = vmatprep.subr.mxu0 0.0
        %2990 = vmatpush1.msra.mxu0 %v2781
        %2991 = vmatprep.subr.mxu0 0.0
        %2992 = vmatpush1.msra.mxu0 %v2987
        %2993 = vmatprep.subr.mxu0 0.0
        %2994 = vmatpush1.msra.mxu0 0.0
        %2995 = vmatprep.subr.mxu0 0.0
        %2996 = vmatpush1.msra.mxu0 0.0
        %2997 = vmatprep.subr.mxu0 0.0
        %2998 = vmatpush1.msra.mxu0 0.0
        %2999 = vmatprep.subr.mxu0 0.0
        %3000 = vmatpush1.msra.mxu0 0.0
        %3001 = vmatprep.subr.mxu0 0.0
        %3002 = vmatpush1.msra.mxu0 0.0
        %3003 = vmatprep.subr.mxu0 0.0
        %3004 = vmatpush1.msra.mxu0 0.0
        %3005 = vmatprep.subr.mxu0 0.0
        %3006 = vmatpush1.msra.mxu0 0.0
        %3007 = vmatprep.subr.mxu0 0.0
        %3008 = vmatpush1.msra.mxu0 0.0
        %3009 = vmatprep.subr.mxu0 0.0
        %3010 = vmatpush1.msra.mxu0 0.0
        %3011 = vmatprep.subr.mxu0 0.0
        %3012 = vmatpush1.msra.mxu0 0.0
        %3013 = vmatprep.subr.mxu0 0.0
        %3014 = vmatpush1.msra.mxu0 0.0
        %3015 = vmatprep.subr.mxu0 0.0
        %3016 = vmatpush1.msra.mxu0 0.0
        %3017 = vmatprep.subr.mxu0 0.0
        %3018 = vmatpush1.msra.mxu0 0.0
        %3019 = vmatprep.subr.mxu0 0.0
        %3020 = vmatpush1.msra.mxu0 0.0
        %3021 = vmatprep.subr.mxu0 0.0
        %3022 = vmatpush1.msra.mxu0 0.0
        %3023 = vmatprep.subr.mxu0 0.0
        %3024 = vmatpush1.msra.mxu0 0.0
        %3025 = vmatprep.subr.mxu0 0.0
        %3026 = vmatpush1.msra.mxu0 0.0
        %3027 = vmatprep.subr.mxu0 0.0
        %3028 = vmatpush1.msra.mxu0 0.0
        %3029 = vmatprep.subr.mxu0 0.0
        %3030 = vmatpush1.msra.mxu0 0.0
        %3031 = vmatprep.subr.mxu0 0.0
        %3032 = vmatpush1.msra.mxu0 0.0
        %3033 = vmatprep.subr.mxu0 0.0
        %3034 = vmatpush1.msra.mxu0 0.0
        %3035 = vmatprep.subr.mxu0 0.0
        %3036 = vmatpush1.msra.mxu0 0.0
        %3037 = vmatprep.subr.mxu0 0.0
        %3038 = vmatpush1.msra.mxu0 0.0
        %3039 = vmatprep.subr.mxu0 0.0
        %3040 = vmatpush1.msra.mxu0 0.0
        %3041 = vmatprep.subr.mxu0 0.0
        %3042 = vmatpush1.msra.mxu0 0.0
        %3043 = vmatprep.subr.mxu0 0.0
        %3044 = vmatpush1.msra.mxu0 0.0
        %3045 = vmatprep.subr.mxu0 0.0
        %3046 = vmatpush1.msra.mxu0 0.0
        %3047 = vmatprep.subr.mxu0 0.0
        %3048 = vmatpush1.msra.mxu0 0.0
        %3049 = vmatprep.subr.mxu0 0.0
        %3050 = vmatpush1.msra.mxu0 0.0
        %3051 = vmatprep.subr.mxu0 0.0
        %3052 = vmatpush1.msra.mxu0 0.0
        %3053 = vmatprep.mubr.f32.mxu0 0.0
        %3054 = vmatmul.mubr.f32.gmra.mrb[0].mxu0 %v2981
        %v3055 = vpop.f32.mrb[0].mxu0
        %v3056 = vadd.f32 %v2972, %v3055
        %v3057 = vpop.f32.mrb[0].mxu0
        %3058 = vmatprep.mubr.f32.mxu0 0.0
        %3059 = vmatmul.mubr.f32.gmra.mrb[0].mxu0 %v2984
        %v3060 = vpop.f32.mrb[0].mxu0
        %v3061 = vadd.f32 %v2977, %v3060
        %v3062 = vpop.f32.mrb[0].mxu0
        %3063 = vdwg.mxu0
        %v3064 = vld [vmem:[%s117 + $0x2] sm:$0x1]
        %v3065 = vlaneseq
        %v3066 = vshrl.u32 %v3065, 7
        %v3067 = vsub.s32 0, %v3066
        %v3068 = vrot.slane %v3064, %v3067
        %v3069 = vmul.f32 %v2651, %v3068
        %v3070 = vmul.f32 %v2652, %v3068
        %v3072 = vsel %vm2450, %v3069, 0
        %v3075 = vsel %vm2450, %v3070, 0
        %3077 = vmatprep.subr.mxu0 0.0
        %3078 = vmatpush1.xpose.msra.mxu0 %v2678
        %3079 = vmatprep.subr.mxu0 0.0
        %3080 = vmatpush1.xpose.msra.mxu0 %v2680
        %3081 = vmatprep.subr.mxu0 0.0
        %3082 = vmatpush1.xpose.msra.mxu0 0.0
        %3083 = vmatprep.subr.mxu0 0.0
        %3084 = vmatpush1.xpose.msra.mxu0 0.0
        %3085 = vmatprep.subr.mxu0 0.0
        %3086 = vmatpush1.xpose.msra.mxu0 0.0
        %3087 = vmatprep.subr.mxu0 0.0
        %3088 = vmatpush1.xpose.msra.mxu0 0.0
        %3089 = vmatprep.subr.mxu0 0.0
        %3090 = vmatpush1.xpose.msra.mxu0 0.0
        %3091 = vmatprep.subr.mxu0 0.0
        %3092 = vmatpush1.xpose.msra.mxu0 0.0
        %3093 = vmatprep.subr.mxu0 0.0
        %3094 = vmatpush1.xpose.msra.mxu0 0.0
        %3095 = vmatprep.subr.mxu0 0.0
        %3096 = vmatpush1.xpose.msra.mxu0 0.0
        %3097 = vmatprep.subr.mxu0 0.0
        %3098 = vmatpush1.xpose.msra.mxu0 0.0
        %3099 = vmatprep.subr.mxu0 0.0
        %3100 = vmatpush1.xpose.msra.mxu0 0.0
        %3101 = vmatprep.subr.mxu0 0.0
        %3102 = vmatpush1.xpose.msra.mxu0 0.0
        %3103 = vmatprep.subr.mxu0 0.0
        %3104 = vmatpush1.xpose.msra.mxu0 0.0
        %3105 = vmatprep.subr.mxu0 0.0
        %3106 = vmatpush1.xpose.msra.mxu0 0.0
        %3107 = vmatprep.subr.mxu0 0.0
        %3108 = vmatpush1.xpose.msra.mxu0 0.0
        %3109 = vmatprep.subr.mxu0 0.0
        %3110 = vmatpush1.xpose.msra.mxu0 0.0
        %3111 = vmatprep.subr.mxu0 0.0
        %3112 = vmatpush1.xpose.msra.mxu0 0.0
        %3113 = vmatprep.subr.mxu0 0.0
        %3114 = vmatpush1.xpose.msra.mxu0 0.0
        %3115 = vmatprep.subr.mxu0 0.0
        %3116 = vmatpush1.xpose.msra.mxu0 0.0
        %3117 = vmatprep.subr.mxu0 0.0
        %3118 = vmatpush1.xpose.msra.mxu0 0.0
        %3119 = vmatprep.subr.mxu0 0.0
        %3120 = vmatpush1.xpose.msra.mxu0 0.0
        %3121 = vmatprep.subr.mxu0 0.0
        %3122 = vmatpush1.xpose.msra.mxu0 0.0
        %3123 = vmatprep.subr.mxu0 0.0
        %3124 = vmatpush1.xpose.msra.mxu0 0.0
        %3125 = vmatprep.subr.mxu0 0.0
        %3126 = vmatpush1.xpose.msra.mxu0 0.0
        %3127 = vmatprep.subr.mxu0 0.0
        %3128 = vmatpush1.xpose.msra.mxu0 0.0
        %3129 = vmatprep.subr.mxu0 0.0
        %3130 = vmatpush1.xpose.msra.mxu0 0.0
        %3131 = vmatprep.subr.mxu0 0.0
        %3132 = vmatpush1.xpose.msra.mxu0 0.0
        %3133 = vmatprep.subr.mxu0 0.0
        %3134 = vmatpush1.xpose.msra.mxu0 0.0
        %3135 = vmatprep.subr.mxu0 0.0
        %3136 = vmatpush1.xpose.msra.mxu0 0.0
        %3137 = vmatprep.subr.mxu0 0.0
        %3138 = vmatpush1.xpose.msra.mxu0 0.0
        %3139 = vmatprep.subr.mxu0 0.0
        %3140 = vmatpush1.xpose.msra.mxu0 0.0
        %3141 = vmatprep.mubr.f32.mxu0 0.0
        %3142 = vmatmul.mubr.f32.gmra.mrb[0].mxu0 %v3072
        %v3143 = vpop.f32.mrb[0].mxu0
        %v3144 = vadd.f32 %v2664, %v3143
        %v3145 = vpop.f32.mrb[0].mxu0
        %3146 = vmatprep.mubr.f32.mxu0 0.0
        %3147 = vmatmul.mubr.f32.gmra.mrb[0].mxu0 %v3075
        %v3148 = vpop.f32.mrb[0].mxu0
        %v3149 = vadd.f32 %v2664, %v3148
        %v3150 = vpop.f32.mrb[0].mxu0
        %3151 = vdwg.mxu0
        %v3152 = vsel %vm2757, %v3144, -inf
        %3153 = vmax.xlane.f32.xlu0 %v3152
        %v3154 = vpop.xlane.xlu0 %3153
        %v3155 = vsel %vm2761, %v3149, -inf
        %3156 = vmax.xlane.f32.xlu0 %v3155
        %v3157 = vpop.xlane.xlu0 %3156
        %v3158 = vsub.f32 %v3144, %v3154
        %v3159 = vsub.f32 %v3149, %v3157
        %v3160 = vmul.f32 %v3158, 1.442695
        %v3161 = vpow.pop %v3160
        %v3162 = vmul.f32 %v3159, 1.442695
        %v3163 = vpow.pop %v3162
        %v3164 = vsel %vm2757, %v3161, 0.0
        %3165 = vadd.xlane.f32.xlu0 %v3164
        %v3166 = vpop.xlane.xlu0 %3165
        %v3167 = vsel %vm2761, %v3163, 0.0
        %3168 = vadd.xlane.f32.xlu0 %v3167
        %v3169 = vpop.xlane.xlu0 %3168
        %v3170 = vrcp.pop %v3166
        %v3171 = vmul.f32 %v3161, %v3170
        %v3172 = vrcp.pop %v3169
        %v3173 = vmul.f32 %v3163, %v3172
        %v3174 = vmul.f32 %v2643, %v3068
        %v3175 = vmul.f32 %v2648, %v3068
        %v3177 = vsel %vm2757, %v3171, 0
        %v3180 = vsel %vm2757, %v3173, 0
        %v3183 = vsel %vm2901, %v3175, 0
        %3185 = vmatprep.subr.mxu0 0.0
        %3186 = vmatpush1.msra.mxu0 %v3174
        %3187 = vmatprep.subr.mxu0 0.0
        %3188 = vmatpush1.msra.mxu0 %v3183
        %3189 = vmatprep.subr.mxu0 0.0
        %3190 = vmatpush1.msra.mxu0 0.0
        %3191 = vmatprep.subr.mxu0 0.0
        %3192 = vmatpush1.msra.mxu0 0.0
        %3193 = vmatprep.subr.mxu0 0.0
        %3194 = vmatpush1.msra.mxu0 0.0
        %3195 = vmatprep.subr.mxu0 0.0
        %3196 = vmatpush1.msra.mxu0 0.0
        %3197 = vmatprep.subr.mxu0 0.0
        %3198 = vmatpush1.msra.mxu0 0.0
        %3199 = vmatprep.subr.mxu0 0.0
        %3200 = vmatpush1.msra.mxu0 0.0
        %3201 = vmatprep.subr.mxu0 0.0
        %3202 = vmatpush1.msra.mxu0 0.0
        %3203 = vmatprep.subr.mxu0 0.0
        %3204 = vmatpush1.msra.mxu0 0.0
        %3205 = vmatprep.subr.mxu0 0.0
        %3206 = vmatpush1.msra.mxu0 0.0
        %3207 = vmatprep.subr.mxu0 0.0
        %3208 = vmatpush1.msra.mxu0 0.0
        %3209 = vmatprep.subr.mxu0 0.0
        %3210 = vmatpush1.msra.mxu0 0.0
        %3211 = vmatprep.subr.mxu0 0.0
        %3212 = vmatpush1.msra.mxu0 0.0
        %3213 = vmatprep.subr.mxu0 0.0
        %3214 = vmatpush1.msra.mxu0 0.0
        %3215 = vmatprep.subr.mxu0 0.0
        %3216 = vmatpush1.msra.mxu0 0.0
        %3217 = vmatprep.subr.mxu0 0.0
        %3218 = vmatpush1.msra.mxu0 0.0
        %3219 = vmatprep.subr.mxu0 0.0
        %3220 = vmatpush1.msra.mxu0 0.0
        %3221 = vmatprep.subr.mxu0 0.0
        %3222 = vmatpush1.msra.mxu0 0.0
        %3223 = vmatprep.subr.mxu0 0.0
        %3224 = vmatpush1.msra.mxu0 0.0
        %3225 = vmatprep.subr.mxu0 0.0
        %3226 = vmatpush1.msra.mxu0 0.0
        %3227 = vmatprep.subr.mxu0 0.0
        %3228 = vmatpush1.msra.mxu0 0.0
        %3229 = vmatprep.subr.mxu0 0.0
        %3230 = vmatpush1.msra.mxu0 0.0
        %3231 = vmatprep.subr.mxu0 0.0
        %3232 = vmatpush1.msra.mxu0 0.0
        %3233 = vmatprep.subr.mxu0 0.0
        %3234 = vmatpush1.msra.mxu0 0.0
        %3235 = vmatprep.subr.mxu0 0.0
        %3236 = vmatpush1.msra.mxu0 0.0
        %3237 = vmatprep.subr.mxu0 0.0
        %3238 = vmatpush1.msra.mxu0 0.0
        %3239 = vmatprep.subr.mxu0 0.0
        %3240 = vmatpush1.msra.mxu0 0.0
        %3241 = vmatprep.subr.mxu0 0.0
        %3242 = vmatpush1.msra.mxu0 0.0
        %3243 = vmatprep.subr.mxu0 0.0
        %3244 = vmatpush1.msra.mxu0 0.0
        %3245 = vmatprep.subr.mxu0 0.0
        %3246 = vmatpush1.msra.mxu0 0.0
        %3247 = vmatprep.subr.mxu0 0.0
        %3248 = vmatpush1.msra.mxu0 0.0
        %3249 = vmatprep.mubr.f32.mxu0 0.0
        %3250 = vmatmul.mubr.f32.gmra.mrb[0].mxu0 %v3177
        %v3251 = vpop.f32.mrb[0].mxu0
        %v3252 = vadd.f32 0.0, %v3251
        %v3253 = vpop.f32.mrb[0].mxu0
        %3254 = vmatprep.mubr.f32.mxu0 0.0
        %3255 = vmatmul.mubr.f32.gmra.mrb[0].mxu0 %v3180
        %v3256 = vpop.f32.mrb[0].mxu0
        %v3257 = vadd.f32 0.0, %v3256
        %v3258 = vpop.f32.mrb[0].mxu0
        %3259 = vdwg.mxu0
        %v3260 = vadd.f32 %v3056, %v3252
        %v3261 = vadd.f32 %v3061, %v3257
        %v3262 = vld [vmem:[%s117 + $0x3] sm:$0x1]
        %v3263 = vlaneseq
        %v3264 = vshrl.u32 %v3263, 7
        %v3265 = vsub.s32 0, %v3264
        %v3266 = vrot.slane %v3262, %v3265
        %v3267 = vmul.f32 %v2651, %v3266
        %v3268 = vmul.f32 %v2652, %v3266
        %v3270 = vsel %vm2450, %v3267, 0
        %v3273 = vsel %vm2450, %v3268, 0
        %3275 = vmatprep.subr.mxu0 0.0
        %3276 = vmatpush1.xpose.msra.mxu0 %v2678
        %3277 = vmatprep.subr.mxu0 0.0
        %3278 = vmatpush1.xpose.msra.mxu0 %v2680
        %3279 = vmatprep.subr.mxu0 0.0
        %3280 = vmatpush1.xpose.msra.mxu0 0.0
        %3281 = vmatprep.subr.mxu0 0.0
        %3282 = vmatpush1.xpose.msra.mxu0 0.0
        %3283 = vmatprep.subr.mxu0 0.0
        %3284 = vmatpush1.xpose.msra.mxu0 0.0
        %3285 = vmatprep.subr.mxu0 0.0
        %3286 = vmatpush1.xpose.msra.mxu0 0.0
        %3287 = vmatprep.subr.mxu0 0.0
        %3288 = vmatpush1.xpose.msra.mxu0 0.0
        %3289 = vmatprep.subr.mxu0 0.0
        %3290 = vmatpush1.xpose.msra.mxu0 0.0
        %3291 = vmatprep.subr.mxu0 0.0
        %3292 = vmatpush1.xpose.msra.mxu0 0.0
        %3293 = vmatprep.subr.mxu0 0.0
        %3294 = vmatpush1.xpose.msra.mxu0 0.0
        %3295 = vmatprep.subr.mxu0 0.0
        %3296 = vmatpush1.xpose.msra.mxu0 0.0
        %3297 = vmatprep.subr.mxu0 0.0
        %3298 = vmatpush1.xpose.msra.mxu0 0.0
        %3299 = vmatprep.subr.mxu0 0.0
        %3300 = vmatpush1.xpose.msra.mxu0 0.0
        %3301 = vmatprep.subr.mxu0 0.0
        %3302 = vmatpush1.xpose.msra.mxu0 0.0
        %3303 = vmatprep.subr.mxu0 0.0
        %3304 = vmatpush1.xpose.msra.mxu0 0.0
        %3305 = vmatprep.subr.mxu0 0.0
        %3306 = vmatpush1.xpose.msra.mxu0 0.0
        %3307 = vmatprep.subr.mxu0 0.0
        %3308 = vmatpush1.xpose.msra.mxu0 0.0
        %3309 = vmatprep.subr.mxu0 0.0
        %3310 = vmatpush1.xpose.msra.mxu0 0.0
        %3311 = vmatprep.subr.mxu0 0.0
        %3312 = vmatpush1.xpose.msra.mxu0 0.0
        %3313 = vmatprep.subr.mxu0 0.0
        %3314 = vmatpush1.xpose.msra.mxu0 0.0
        %3315 = vmatprep.subr.mxu0 0.0
        %3316 = vmatpush1.xpose.msra.mxu0 0.0
        %3317 = vmatprep.subr.mxu0 0.0
        %3318 = vmatpush1.xpose.msra.mxu0 0.0
        %3319 = vmatprep.subr.mxu0 0.0
        %3320 = vmatpush1.xpose.msra.mxu0 0.0
        %3321 = vmatprep.subr.mxu0 0.0
        %3322 = vmatpush1.xpose.msra.mxu0 0.0
        %3323 = vmatprep.subr.mxu0 0.0
        %3324 = vmatpush1.xpose.msra.mxu0 0.0
        %3325 = vmatprep.subr.mxu0 0.0
        %3326 = vmatpush1.xpose.msra.mxu0 0.0
        %3327 = vmatprep.subr.mxu0 0.0
        %3328 = vmatpush1.xpose.msra.mxu0 0.0
        %3329 = vmatprep.subr.mxu0 0.0
        %3330 = vmatpush1.xpose.msra.mxu0 0.0
        %3331 = vmatprep.subr.mxu0 0.0
        %3332 = vmatpush1.xpose.msra.mxu0 0.0
        %3333 = vmatprep.subr.mxu0 0.0
        %3334 = vmatpush1.xpose.msra.mxu0 0.0
        %3335 = vmatprep.subr.mxu0 0.0
        %3336 = vmatpush1.xpose.msra.mxu0 0.0
        %3337 = vmatprep.subr.mxu0 0.0
        %3338 = vmatpush1.xpose.msra.mxu0 0.0
        %3339 = vmatprep.mubr.f32.mxu0 0.0
        %3340 = vmatmul.mubr.f32.gmra.mrb[0].mxu0 %v3270
        %v3341 = vpop.f32.mrb[0].mxu0
        %v3342 = vadd.f32 %v2664, %v3341
        %v3343 = vpop.f32.mrb[0].mxu0
        %3344 = vmatprep.mubr.f32.mxu0 0.0
        %3345 = vmatmul.mubr.f32.gmra.mrb[0].mxu0 %v3273
        %v3346 = vpop.f32.mrb[0].mxu0
        %v3347 = vadd.f32 %v2664, %v3346
        %v3348 = vpop.f32.mrb[0].mxu0
        %3349 = vdwg.mxu0
        %v3350 = vsel %vm2757, %v3342, -inf
        %3351 = vmax.xlane.f32.xlu0 %v3350
        %v3352 = vpop.xlane.xlu0 %3351
        %v3353 = vsel %vm2761, %v3347, -inf
        %3354 = vmax.xlane.f32.xlu0 %v3353
        %v3355 = vpop.xlane.xlu0 %3354
        %v3356 = vsub.f32 %v3342, %v3352
        %v3357 = vsub.f32 %v3347, %v3355
        %v3358 = vmul.f32 %v3356, 1.442695
        %v3359 = vpow.pop %v3358
        %v3360 = vmul.f32 %v3357, 1.442695
        %v3361 = vpow.pop %v3360
        %v3362 = vsel %vm2757, %v3359, 0.0
        %3363 = vadd.xlane.f32.xlu0 %v3362
        %v3364 = vpop.xlane.xlu0 %3363
        %v3365 = vsel %vm2761, %v3361, 0.0
        %3366 = vadd.xlane.f32.xlu0 %v3365
        %v3367 = vpop.xlane.xlu0 %3366
        %v3368 = vrcp.pop %v3364
        %v3369 = vmul.f32 %v3359, %v3368
        %v3370 = vrcp.pop %v3367
        %v3371 = vmul.f32 %v3361, %v3370
        %v3372 = vmul.f32 %v2643, %v3266
        %v3373 = vmul.f32 %v2648, %v3266
        %v3375 = vsel %vm2757, %v3369, 0
        %v3378 = vsel %vm2757, %v3371, 0
        %v3381 = vsel %vm2901, %v3373, 0
        %3383 = vmatprep.subr.mxu0 0.0
        %3384 = vmatpush1.msra.mxu0 %v3372
        %3385 = vmatprep.subr.mxu0 0.0
        %3386 = vmatpush1.msra.mxu0 %v3381
        %3387 = vmatprep.subr.mxu0 0.0
        %3388 = vmatpush1.msra.mxu0 0.0
        %3389 = vmatprep.subr.mxu0 0.0
        %3390 = vmatpush1.msra.mxu0 0.0
        %3391 = vmatprep.subr.mxu0 0.0
        %3392 = vmatpush1.msra.mxu0 0.0
        %3393 = vmatprep.subr.mxu0 0.0
        %3394 = vmatpush1.msra.mxu0 0.0
        %3395 = vmatprep.subr.mxu0 0.0
        %3396 = vmatpush1.msra.mxu0 0.0
        %3397 = vmatprep.subr.mxu0 0.0
        %3398 = vmatpush1.msra.mxu0 0.0
        %3399 = vmatprep.subr.mxu0 0.0
        %3400 = vmatpush1.msra.mxu0 0.0
        %3401 = vmatprep.subr.mxu0 0.0
        %3402 = vmatpush1.msra.mxu0 0.0
        %3403 = vmatprep.subr.mxu0 0.0
        %3404 = vmatpush1.msra.mxu0 0.0
        %3405 = vmatprep.subr.mxu0 0.0
        %3406 = vmatpush1.msra.mxu0 0.0
        %3407 = vmatprep.subr.mxu0 0.0
        %3408 = vmatpush1.msra.mxu0 0.0
        %3409 = vmatprep.subr.mxu0 0.0
        %3410 = vmatpush1.msra.mxu0 0.0
        %3411 = vmatprep.subr.mxu0 0.0
        %3412 = vmatpush1.msra.mxu0 0.0
        %3413 = vmatprep.subr.mxu0 0.0
        %3414 = vmatpush1.msra.mxu0 0.0
        %3415 = vmatprep.subr.mxu0 0.0
        %3416 = vmatpush1.msra.mxu0 0.0
        %3417 = vmatprep.subr.mxu0 0.0
        %3418 = vmatpush1.msra.mxu0 0.0
        %3419 = vmatprep.subr.mxu0 0.0
        %3420 = vmatpush1.msra.mxu0 0.0
        %3421 = vmatprep.subr.mxu0 0.0
        %3422 = vmatpush1.msra.mxu0 0.0
        %3423 = vmatprep.subr.mxu0 0.0
        %3424 = vmatpush1.msra.mxu0 0.0
        %3425 = vmatprep.subr.mxu0 0.0
        %3426 = vmatpush1.msra.mxu0 0.0
        %3427 = vmatprep.subr.mxu0 0.0
        %3428 = vmatpush1.msra.mxu0 0.0
        %3429 = vmatprep.subr.mxu0 0.0
        %3430 = vmatpush1.msra.mxu0 0.0
        %3431 = vmatprep.subr.mxu0 0.0
        %3432 = vmatpush1.msra.mxu0 0.0
        %3433 = vmatprep.subr.mxu0 0.0
        %3434 = vmatpush1.msra.mxu0 0.0
        %3435 = vmatprep.subr.mxu0 0.0
        %3436 = vmatpush1.msra.mxu0 0.0
        %3437 = vmatprep.subr.mxu0 0.0
        %3438 = vmatpush1.msra.mxu0 0.0
        %3439 = vmatprep.subr.mxu0 0.0
        %3440 = vmatpush1.msra.mxu0 0.0
        %3441 = vmatprep.subr.mxu0 0.0
        %3442 = vmatpush1.msra.mxu0 0.0
        %3443 = vmatprep.subr.mxu0 0.0
        %3444 = vmatpush1.msra.mxu0 0.0
        %3445 = vmatprep.subr.mxu0 0.0
        %3446 = vmatpush1.msra.mxu0 0.0
        %3447 = vmatprep.mubr.f32.mxu0 0.0
        %3448 = vmatmul.mubr.f32.gmra.mrb[0].mxu0 %v3375
        %v3449 = vpop.f32.mrb[0].mxu0
        %v3450 = vadd.f32 0.0, %v3449
        %v3451 = vpop.f32.mrb[0].mxu0
        %3452 = vmatprep.mubr.f32.mxu0 0.0
        %3453 = vmatmul.mubr.f32.gmra.mrb[0].mxu0 %v3378
        %v3454 = vpop.f32.mrb[0].mxu0
        %v3455 = vadd.f32 0.0, %v3454
        %v3456 = vpop.f32.mrb[0].mxu0
        %3457 = vdwg.mxu0
        %v3458 = vadd.f32 %v3260, %v3450
        %v3459 = vadd.f32 %v3261, %v3455
        %v3460 = vld [vmem:[%s29] sm:$0xff]
        %v3461 = vld [vmem:[%s29 + $0x8] sm:$0xff]
        %v3462 = vld [vmem:[%s29 + $0x10] sm:$0xff]
        %v3463 = vld [vmem:[%s29 + $0x18] sm:$0xff]
        %v3464 = vld [vmem:[#allocation20] sm:$0x1]
        %v3466 = vlaneseq
        %v3467 = vshrl.u32 %v3466, 7
        %v3468 = vsub.s32 0, %v3467
        %v3469 = vrot.slane %v3464, %v3468
        %v3472 = vsel %vm2450, %v3458, 0
        %v3475 = vsel %vm2450, %v3459, 0
        %3477 = vmatprep.subr.mxu0 0.0
        %3478 = vmatpush1.msra.mxu0 %v3460
        %3479 = vmatprep.subr.mxu0 0.0
        %3480 = vmatpush1.msra.mxu0 %v3461
        %3481 = vmatprep.subr.mxu0 0.0
        %3482 = vmatpush1.msra.mxu0 %v3462
        %3483 = vmatprep.subr.mxu0 0.0
        %3484 = vmatpush1.msra.mxu0 %v3463
        %3485 = vmatprep.subr.mxu0 0.0
        %3486 = vmatpush1.msra.mxu0 0.0
        %3487 = vmatprep.subr.mxu0 0.0
        %3488 = vmatpush1.msra.mxu0 0.0
        %3489 = vmatprep.subr.mxu0 0.0
        %3490 = vmatpush1.msra.mxu0 0.0
        %3491 = vmatprep.subr.mxu0 0.0
        %3492 = vmatpush1.msra.mxu0 0.0
        %3493 = vmatprep.subr.mxu0 0.0
        %3494 = vmatpush1.msra.mxu0 0.0
        %3495 = vmatprep.subr.mxu0 0.0
        %3496 = vmatpush1.msra.mxu0 0.0
        %3497 = vmatprep.subr.mxu0 0.0
        %3498 = vmatpush1.msra.mxu0 0.0
        %3499 = vmatprep.subr.mxu0 0.0
        %3500 = vmatpush1.msra.mxu0 0.0
        %3501 = vmatprep.subr.mxu0 0.0
        %3502 = vmatpush1.msra.mxu0 0.0
        %3503 = vmatprep.subr.mxu0 0.0
        %3504 = vmatpush1.msra.mxu0 0.0
        %3505 = vmatprep.subr.mxu0 0.0
        %3506 = vmatpush1.msra.mxu0 0.0
        %3507 = vmatprep.subr.mxu0 0.0
        %3508 = vmatpush1.msra.mxu0 0.0
        %3509 = vmatprep.subr.mxu0 0.0
        %3510 = vmatpush1.msra.mxu0 0.0
        %3511 = vmatprep.subr.mxu0 0.0
        %3512 = vmatpush1.msra.mxu0 0.0
        %3513 = vmatprep.subr.mxu0 0.0
        %3514 = vmatpush1.msra.mxu0 0.0
        %3515 = vmatprep.subr.mxu0 0.0
        %3516 = vmatpush1.msra.mxu0 0.0
        %3517 = vmatprep.subr.mxu0 0.0
        %3518 = vmatpush1.msra.mxu0 0.0
        %3519 = vmatprep.subr.mxu0 0.0
        %3520 = vmatpush1.msra.mxu0 0.0
        %3521 = vmatprep.subr.mxu0 0.0
        %3522 = vmatpush1.msra.mxu0 0.0
        %3523 = vmatprep.subr.mxu0 0.0
        %3524 = vmatpush1.msra.mxu0 0.0
        %3525 = vmatprep.subr.mxu0 0.0
        %3526 = vmatpush1.msra.mxu0 0.0
        %3527 = vmatprep.subr.mxu0 0.0
        %3528 = vmatpush1.msra.mxu0 0.0
        %3529 = vmatprep.subr.mxu0 0.0
        %3530 = vmatpush1.msra.mxu0 0.0
        %3531 = vmatprep.subr.mxu0 0.0
        %3532 = vmatpush1.msra.mxu0 0.0
        %3533 = vmatprep.subr.mxu0 0.0
        %3534 = vmatpush1.msra.mxu0 0.0
        %3535 = vmatprep.subr.mxu0 0.0
        %3536 = vmatpush1.msra.mxu0 0.0
        %3537 = vmatprep.subr.mxu0 0.0
        %3538 = vmatpush1.msra.mxu0 0.0
        %3539 = vmatprep.subr.mxu0 0.0
        %3540 = vmatpush1.msra.mxu0 0.0
        %3541 = vmatprep.mubr.f32.mxu0 0.0
        %3542 = vmatmul.mubr.f32.gmra.mrb[0].mxu0 %v3472
        %v3543 = vpop.f32.mrb[0].mxu0
        %v3544 = vadd.f32 %v3469, %v3543
        %v3545 = vpop.f32.mrb[0].mxu0
        %3546 = vmatprep.mubr.f32.mxu0 0.0
        %3547 = vmatmul.mubr.f32.gmra.mrb[0].mxu0 %v3475
        %v3548 = vpop.f32.mrb[0].mxu0
        %v3549 = vadd.f32 %v3469, %v3548
        %v3550 = vpop.f32.mrb[0].mxu0
        %3551 = vdwg.mxu0
        %v3552 = vadd.f32 %v2452, %v3544
        %v3553 = vadd.f32 %v2453, %v3549
        %v3554 = vsel %vm2450, %v3552, 0.0
        %3555 = vadd.xlane.f32.xlu0 %v3554
        %v3556 = vpop.xlane.xlu0 %3555
        %vm3557 = vcmask 259072
        %v3558 = vsel %vm3557, %v3553, 0.0
        %3559 = vadd.xlane.f32.xlu0 %v3558
        %v3560 = vpop.xlane.xlu0 %3559
        %v3561 = vrcp.pop 32.0
        %v3562 = vmul.f32 %v3556, %v3561
        %v3563 = vmul.f32 %v3560, %v3561
        %v3564 = vsub.f32 %v3552, %v3562
        %v3565 = vsub.f32 %v3553, %v3563
        %v3566 = vmul.f32 %v3564, %v3564
        %v3567 = vmul.f32 %v3565, %v3565
        %v3568 = vsel %vm2450, %v3566, 0.0
        %3569 = vadd.xlane.f32.xlu0 %v3568
        %v3570 = vpop.xlane.xlu0 %3569
        %v3571 = vsel %vm3557, %v3567, 0.0
        %3572 = vadd.xlane.f32.xlu0 %v3571
        %v3573 = vpop.xlane.xlu0 %3572
        %v3574 = vmul.f32 %v3570, %v3561
        %v3575 = vmul.f32 %v3573, %v3561
        %v3576 = vadd.f32 %v3574, 1e-05
        %v3577 = vadd.f32 %v3575, 1e-05
        %v3578 = vrsqrt.pop %v3576
        %v3579 = vrsqrt.pop %v3577
        %v3580 = vmul.f32 %v3564, %v3578
        %v3581 = vmul.f32 %v3565, %v3579
        %v3582 = vld [vmem:[#allocation16] sm:$0x1]
        %v3584 = vlaneseq
        %v3585 = vshrl.u32 %v3584, 7
        %v3586 = vsub.s32 0, %v3585
        %v3587 = vrot.slane %v3582, %v3586
        %v3589 = vmul.f32 %v3580, %v3587
        %v3590 = vmul.f32 %v3581, %v3587
        %v3591 = vld [vmem:[#allocation14] sm:$0x1]
        %v3593 = vlaneseq
        %v3594 = vshrl.u32 %v3593, 7
        %v3595 = vsub.s32 0, %v3594
        %v3596 = vrot.slane %v3591, %v3595
        %v3598 = vadd.f32 %v3589, %v3596
        %v3599 = vadd.f32 %v3590, %v3596
        %v3600 = vld [vmem:[%s11] sm:$0xff]
        %v3601 = vld [vmem:[%s11 + $0x8] sm:$0xff]
        %v3602 = vld [vmem:[%s11 + $0x10] sm:$0xff]
        %v3603 = vld [vmem:[%s11 + $0x18] sm:$0xff]
        %v3604 = vld [vmem:[#allocation11] sm:$0x1]
        %v3606 = vlaneseq
        %v3607 = vshrl.u32 %v3606, 7
        %v3608 = vsub.s32 0, %v3607
        %v3609 = vrot.slane %v3604, %v3608
        %v3612 = vsel %vm2450, %v3598, 0
        %v3615 = vsel %vm2450, %v3599, 0
        %3617 = vmatprep.subr.mxu0 0.0
        %3618 = vmatpush1.msra.mxu0 %v3600
        %3619 = vmatprep.subr.mxu0 0.0
        %3620 = vmatpush1.msra.mxu0 %v3601
        %3621 = vmatprep.subr.mxu0 0.0
        %3622 = vmatpush1.msra.mxu0 %v3602
        %3623 = vmatprep.subr.mxu0 0.0
        %3624 = vmatpush1.msra.mxu0 %v3603
        %3625 = vmatprep.subr.mxu0 0.0
        %3626 = vmatpush1.msra.mxu0 0.0
        %3627 = vmatprep.subr.mxu0 0.0
        %3628 = vmatpush1.msra.mxu0 0.0
        %3629 = vmatprep.subr.mxu0 0.0
        %3630 = vmatpush1.msra.mxu0 0.0
        %3631 = vmatprep.subr.mxu0 0.0
        %3632 = vmatpush1.msra.mxu0 0.0
        %3633 = vmatprep.subr.mxu0 0.0
        %3634 = vmatpush1.msra.mxu0 0.0
        %3635 = vmatprep.subr.mxu0 0.0
        %3636 = vmatpush1.msra.mxu0 0.0
        %3637 = vmatprep.subr.mxu0 0.0
        %3638 = vmatpush1.msra.mxu0 0.0
        %3639 = vmatprep.subr.mxu0 0.0
        %3640 = vmatpush1.msra.mxu0 0.0
        %3641 = vmatprep.subr.mxu0 0.0
        %3642 = vmatpush1.msra.mxu0 0.0
        %3643 = vmatprep.subr.mxu0 0.0
        %3644 = vmatpush1.msra.mxu0 0.0
        %3645 = vmatprep.subr.mxu0 0.0
        %3646 = vmatpush1.msra.mxu0 0.0
        %3647 = vmatprep.subr.mxu0 0.0
        %3648 = vmatpush1.msra.mxu0 0.0
        %3649 = vmatprep.subr.mxu0 0.0
        %3650 = vmatpush1.msra.mxu0 0.0
        %3651 = vmatprep.subr.mxu0 0.0
        %3652 = vmatpush1.msra.mxu0 0.0
        %3653 = vmatprep.subr.mxu0 0.0
        %3654 = vmatpush1.msra.mxu0 0.0
        %3655 = vmatprep.subr.mxu0 0.0
        %3656 = vmatpush1.msra.mxu0 0.0
        %3657 = vmatprep.subr.mxu0 0.0
        %3658 = vmatpush1.msra.mxu0 0.0
        %3659 = vmatprep.subr.mxu0 0.0
        %3660 = vmatpush1.msra.mxu0 0.0
        %3661 = vmatprep.subr.mxu0 0.0
        %3662 = vmatpush1.msra.mxu0 0.0
        %3663 = vmatprep.subr.mxu0 0.0
        %3664 = vmatpush1.msra.mxu0 0.0
        %3665 = vmatprep.subr.mxu0 0.0
        %3666 = vmatpush1.msra.mxu0 0.0
        %3667 = vmatprep.subr.mxu0 0.0
        %3668 = vmatpush1.msra.mxu0 0.0
        %3669 = vmatprep.subr.mxu0 0.0
        %3670 = vmatpush1.msra.mxu0 0.0
        %3671 = vmatprep.subr.mxu0 0.0
        %3672 = vmatpush1.msra.mxu0 0.0
        %3673 = vmatprep.subr.mxu0 0.0
        %3674 = vmatpush1.msra.mxu0 0.0
        %3675 = vmatprep.subr.mxu0 0.0
        %3676 = vmatpush1.msra.mxu0 0.0
        %3677 = vmatprep.subr.mxu0 0.0
        %3678 = vmatpush1.msra.mxu0 0.0
        %3679 = vmatprep.subr.mxu0 0.0
        %3680 = vmatpush1.msra.mxu0 0.0
        %3681 = vmatprep.mubr.f32.mxu0 0.0
        %3682 = vmatmul.mubr.f32.gmra.mrb[0].mxu0 %v3612
        %v3683 = vpop.f32.mrb[0].mxu0
        %v3684 = vadd.f32 %v3609, %v3683
        %v3685 = vpop.f32.mrb[0].mxu0
        %3686 = vmatprep.mubr.f32.mxu0 0.0
        %3687 = vmatmul.mubr.f32.gmra.mrb[0].mxu0 %v3615
        %v3688 = vpop.f32.mrb[0].mxu0
        %v3689 = vadd.f32 %v3609, %v3688
        %v3690 = vpop.f32.mrb[0].mxu0
        %3691 = vdwg.mxu0
        %v3692 = vmax.f32 %v3684, 0.0
        %v3693 = vmax.f32 %v3689, 0.0
        %v3694 = vld [vmem:[%s15] sm:$0xff]
        %v3695 = vld [vmem:[%s15 + $0x8] sm:$0xff]
        %v3696 = vld [vmem:[%s15 + $0x10] sm:$0xff]
        %v3697 = vld [vmem:[%s15 + $0x18] sm:$0xff]
        %v3698 = vld [vmem:[%s15 + $0x20] sm:$0xff]
        %v3699 = vld [vmem:[%s15 + $0x28] sm:$0xff]
        %v3700 = vld [vmem:[%s15 + $0x30] sm:$0xff]
        %v3701 = vld [vmem:[%s15 + $0x38] sm:$0xff]
        %v3702 = vld [vmem:[#allocation13] sm:$0x1]
        %v3704 = vlaneseq
        %v3705 = vshrl.u32 %v3704, 7
        %v3706 = vsub.s32 0, %v3705
        %v3707 = vrot.slane %v3702, %v3706
        %vm3709 = vcmask 523264
        %v3711 = vsel %vm3709, %v3692, 0
        %v3714 = vsel %vm3709, %v3693, 0
        %3716 = vmatprep.subr.mxu0 0.0
        %3717 = vmatpush1.msra.mxu0 %v3694
        %3718 = vmatprep.subr.mxu0 0.0
        %3719 = vmatpush1.msra.mxu0 %v3695
        %3720 = vmatprep.subr.mxu0 0.0
        %3721 = vmatpush1.msra.mxu0 %v3696
        %3722 = vmatprep.subr.mxu0 0.0
        %3723 = vmatpush1.msra.mxu0 %v3697
        %3724 = vmatprep.subr.mxu0 0.0
        %3725 = vmatpush1.msra.mxu0 %v3698
        %3726 = vmatprep.subr.mxu0 0.0
        %3727 = vmatpush1.msra.mxu0 %v3699
        %3728 = vmatprep.subr.mxu0 0.0
        %3729 = vmatpush1.msra.mxu0 %v3700
        %3730 = vmatprep.subr.mxu0 0.0
        %3731 = vmatpush1.msra.mxu0 %v3701
        %3732 = vmatprep.subr.mxu0 0.0
        %3733 = vmatpush1.msra.mxu0 0.0
        %3734 = vmatprep.subr.mxu0 0.0
        %3735 = vmatpush1.msra.mxu0 0.0
        %3736 = vmatprep.subr.mxu0 0.0
        %3737 = vmatpush1.msra.mxu0 0.0
        %3738 = vmatprep.subr.mxu0 0.0
        %3739 = vmatpush1.msra.mxu0 0.0
        %3740 = vmatprep.subr.mxu0 0.0
        %3741 = vmatpush1.msra.mxu0 0.0
        %3742 = vmatprep.subr.mxu0 0.0
        %3743 = vmatpush1.msra.mxu0 0.0
        %3744 = vmatprep.subr.mxu0 0.0
        %3745 = vmatpush1.msra.mxu0 0.0
        %3746 = vmatprep.subr.mxu0 0.0
        %3747 = vmatpush1.msra.mxu0 0.0
        %3748 = vmatprep.subr.mxu0 0.0
        %3749 = vmatpush1.msra.mxu0 0.0
        %3750 = vmatprep.subr.mxu0 0.0
        %3751 = vmatpush1.msra.mxu0 0.0
        %3752 = vmatprep.subr.mxu0 0.0
        %3753 = vmatpush1.msra.mxu0 0.0
        %3754 = vmatprep.subr.mxu0 0.0
        %3755 = vmatpush1.msra.mxu0 0.0
        %3756 = vmatprep.subr.mxu0 0.0
        %3757 = vmatpush1.msra.mxu0 0.0
        %3758 = vmatprep.subr.mxu0 0.0
        %3759 = vmatpush1.msra.mxu0 0.0
        %3760 = vmatprep.subr.mxu0 0.0
        %3761 = vmatpush1.msra.mxu0 0.0
        %3762 = vmatprep.subr.mxu0 0.0
        %3763 = vmatpush1.msra.mxu0 0.0
        %3764 = vmatprep.subr.mxu0 0.0
        %3765 = vmatpush1.msra.mxu0 0.0
        %3766 = vmatprep.subr.mxu0 0.0
        %3767 = vmatpush1.msra.mxu0 0.0
        %3768 = vmatprep.subr.mxu0 0.0
        %3769 = vmatpush1.msra.mxu0 0.0
        %3770 = vmatprep.subr.mxu0 0.0
        %3771 = vmatpush1.msra.mxu0 0.0
        %3772 = vmatprep.subr.mxu0 0.0
        %3773 = vmatpush1.msra.mxu0 0.0
        %3774 = vmatprep.subr.mxu0 0.0
        %3775 = vmatpush1.msra.mxu0 0.0
        %3776 = vmatprep.subr.mxu0 0.0
        %3777 = vmatpush1.msra.mxu0 0.0
        %3778 = vmatprep.subr.mxu0 0.0
        %3779 = vmatpush1.msra.mxu0 0.0
        %3780 = vmatprep.mubr.f32.mxu0 0.0
        %3781 = vmatmul.mubr.f32.gmra.mrb[0].mxu0 %v3711
        %v3782 = vpop.f32.mrb[0].mxu0
        %v3783 = vadd.f32 %v3707, %v3782
        %v3784 = vpop.f32.mrb[0].mxu0
        %3785 = vmatprep.mubr.f32.mxu0 0.0
        %3786 = vmatmul.mubr.f32.gmra.mrb[0].mxu0 %v3714
        %v3787 = vpop.f32.mrb[0].mxu0
        %v3788 = vpop.f32.mrb[0].mxu0
        %3789 = vdwg.mxu0
        %v3790 = vadd.f32 %v3598, %v3783
        %v3791 = vsel %vm2450, %v3790, 0.0
        %3792 = vadd.xlane.f32.xlu0 %v3791
        %v3793 = vpop.xlane.xlu0 %3792
        %v3794 = vmul.f32 %v3793, %v3561
        %v3795 = vsub.f32 %v3790, %v3794
        %v3796 = vmul.f32 %v3795, %v3795
        %v3797 = vsel %vm2450, %v3796, 0.0
        %3798 = vadd.xlane.f32.xlu0 %v3797
        %v3799 = vpop.xlane.xlu0 %3798
        %v3800 = vmul.f32 %v3799, %v3561
        %v3801 = vadd.f32 %v3800, 1e-05
        %v3802 = vrsqrt.pop %v3801
        %v3803 = vmul.f32 %v3795, %v3802
        %v3804 = vld [vmem:[#allocation19] sm:$0x1]
        %v3806 = vlaneseq
        %v3807 = vshrl.u32 %v3806, 7
        %v3808 = vsub.s32 0, %v3807
        %v3809 = vrot.slane %v3804, %v3808
        %v3811 = vmul.f32 %v3803, %v3809
        %v3812 = vld [vmem:[#allocation17] sm:$0x1]
        %v3814 = vlaneseq
        %v3815 = vshrl.u32 %v3814, 7
        %v3816 = vsub.s32 0, %v3815
        %v3817 = vrot.slane %v3812, %v3816
        %v3819 = vadd.f32 %v3811, %v3817
        %v3820 = vld [vmem:[%s51] sm:$0xff]
        %v3821 = vld [vmem:[%s51 + $0x8] sm:$0xff]
        %v3822 = vld [vmem:[%s51 + $0x10] sm:$0xff]
        %v3823 = vld [vmem:[%s51 + $0x18] sm:$0xff]
        %v3824 = vld [vmem:[#allocation31] sm:$0x1]
        %v3826 = vsel %vm2450, %v3819, 0
        %3828 = vmatprep.subr.mxu0 0.0
        %3829 = vmatpush1.msra.mxu0 %v3820
        %3830 = vmatprep.subr.mxu0 0.0
        %3831 = vmatpush1.msra.mxu0 %v3821
        %3832 = vmatprep.subr.mxu0 0.0
        %3833 = vmatpush1.msra.mxu0 %v3822
        %3834 = vmatprep.subr.mxu0 0.0
        %3835 = vmatpush1.msra.mxu0 %v3823
        %3836 = vmatprep.subr.mxu0 0.0
        %3837 = vmatpush1.msra.mxu0 0.0
        %3838 = vmatprep.subr.mxu0 0.0
        %3839 = vmatpush1.msra.mxu0 0.0
        %3840 = vmatprep.subr.mxu0 0.0
        %3841 = vmatpush1.msra.mxu0 0.0
        %3842 = vmatprep.subr.mxu0 0.0
        %3843 = vmatpush1.msra.mxu0 0.0
        %3844 = vmatprep.subr.mxu0 0.0
        %3845 = vmatpush1.msra.mxu0 0.0
        %3846 = vmatprep.subr.mxu0 0.0
        %3847 = vmatpush1.msra.mxu0 0.0
        %3848 = vmatprep.subr.mxu0 0.0
        %3849 = vmatpush1.msra.mxu0 0.0
        %3850 = vmatprep.subr.mxu0 0.0
        %3851 = vmatpush1.msra.mxu0 0.0
        %3852 = vmatprep.subr.mxu0 0.0
        %3853 = vmatpush1.msra.mxu0 0.0
        %3854 = vmatprep.subr.mxu0 0.0
        %3855 = vmatpush1.msra.mxu0 0.0
        %3856 = vmatprep.subr.mxu0 0.0
        %3857 = vmatpush1.msra.mxu0 0.0
        %3858 = vmatprep.subr.mxu0 0.0
        %3859 = vmatpush1.msra.mxu0 0.0
        %3860 = vmatprep.subr.mxu0 0.0
        %3861 = vmatpush1.msra.mxu0 0.0
        %3862 = vmatprep.subr.mxu0 0.0
        %3863 = vmatpush1.msra.mxu0 0.0
        %3864 = vmatprep.subr.mxu0 0.0
        %3865 = vmatpush1.msra.mxu0 0.0
        %3866 = vmatprep.subr.mxu0 0.0
        %3867 = vmatpush1.msra.mxu0 0.0
        %3868 = vmatprep.subr.mxu0 0.0
        %3869 = vmatpush1.msra.mxu0 0.0
        %3870 = vmatprep.subr.mxu0 0.0
        %3871 = vmatpush1.msra.mxu0 0.0
        %3872 = vmatprep.subr.mxu0 0.0
        %3873 = vmatpush1.msra.mxu0 0.0
        %3874 = vmatprep.subr.mxu0 0.0
        %3875 = vmatpush1.msra.mxu0 0.0
        %3876 = vmatprep.subr.mxu0 0.0
        %3877 = vmatpush1.msra.mxu0 0.0
        %3878 = vmatprep.subr.mxu0 0.0
        %3879 = vmatpush1.msra.mxu0 0.0
        %3880 = vmatprep.subr.mxu0 0.0
        %3881 = vmatpush1.msra.mxu0 0.0
        %3882 = vmatprep.subr.mxu0 0.0
        %3883 = vmatpush1.msra.mxu0 0.0
        %3884 = vmatprep.subr.mxu0 0.0
        %3885 = vmatpush1.msra.mxu0 0.0
        %3886 = vmatprep.subr.mxu0 0.0
        %3887 = vmatpush1.msra.mxu0 0.0
        %3888 = vmatprep.subr.mxu0 0.0
        %3889 = vmatpush1.msra.mxu0 0.0
        %3890 = vmatprep.subr.mxu0 0.0
        %3891 = vmatpush1.msra.mxu0 0.0
        %3892 = vmatprep.mubr.f32.mxu0 0.0
        %3893 = vmatmul.mubr.f32.gmra.mrb[0].mxu0 %v3826
        %v3894 = vpop.f32.mrb[0].mxu0
        %v3895 = vadd.f32 %v3824, %v3894
        %v3896 = vpop.f32.mrb[0].mxu0
        %3897 = vdwg.mxu0
        %3898 = vst.msk [vmem:[%s2325] sm:$0x1] %vm2444, %v3895
        %3900 = vrot.lane.b32.xlu0 %v3895, 96
        %v3901 = vpop.permute.xlu0 %3900
        %3903 = vst.msk [vmem:[%s2331] sm:$0x1] %vm2444, %v3901
        %v3904 = vmul.f32 %v3895, 0.5
        %v3905 = vmul.f32 %v3904, 1.442695
        %v3906 = vpow.pop %v3905
        %v3907 = vld [vmem:[%s2352] sm:$0x1]
        %v3909 = vlaneseq
        %v3910 = vshrl.u32 %v3909, 7
        %v3911 = vsub.s32 0, %v3910
        %v3912 = vrot.slane %v3907, %v3911
        %3913 = vrot.lane.b32.xlu0 %v3912, 32
        %v3914 = vpop.permute.xlu0 %3913
        %v3916 = vmul.f32 %v3906, %v3914
        %3918 = vrot.lane.b32.xlu0 %v3916, 96
        %v3919 = vpop.permute.xlu0 %3918
        %v3921 = vadd.f32 %v3895, %v3919
        %v3922 = vld [vmem:[%s47] sm:$0xff]
        %v3923 = vld [vmem:[%s47 + $0x8] sm:$0xff]
        %v3924 = vld [vmem:[%s47 + $0x10] sm:$0xff]
        %v3925 = vld [vmem:[%s47 + $0x18] sm:$0xff]
        %v3926 = vld [vmem:[#allocation29] sm:$0x1]
        %v3928 = vsel %vm2450, %v3921, 0
        %3930 = vmatprep.subr.mxu0 0.0
        %3931 = vmatpush1.msra.mxu0 %v3922
        %3932 = vmatprep.subr.mxu0 0.0
        %3933 = vmatpush1.msra.mxu0 %v3923
        %3934 = vmatprep.subr.mxu0 0.0
        %3935 = vmatpush1.msra.mxu0 %v3924
        %3936 = vmatprep.subr.mxu0 0.0
        %3937 = vmatpush1.msra.mxu0 %v3925
        %3938 = vmatprep.subr.mxu0 0.0
        %3939 = vmatpush1.msra.mxu0 0.0
        %3940 = vmatprep.subr.mxu0 0.0
        %3941 = vmatpush1.msra.mxu0 0.0
        %3942 = vmatprep.subr.mxu0 0.0
        %3943 = vmatpush1.msra.mxu0 0.0
        %3944 = vmatprep.subr.mxu0 0.0
        %3945 = vmatpush1.msra.mxu0 0.0
        %3946 = vmatprep.subr.mxu0 0.0
        %3947 = vmatpush1.msra.mxu0 0.0
        %3948 = vmatprep.subr.mxu0 0.0
        %3949 = vmatpush1.msra.mxu0 0.0
        %3950 = vmatprep.subr.mxu0 0.0
        %3951 = vmatpush1.msra.mxu0 0.0
        %3952 = vmatprep.subr.mxu0 0.0
        %3953 = vmatpush1.msra.mxu0 0.0
        %3954 = vmatprep.subr.mxu0 0.0
        %3955 = vmatpush1.msra.mxu0 0.0
        %3956 = vmatprep.subr.mxu0 0.0
        %3957 = vmatpush1.msra.mxu0 0.0
        %3958 = vmatprep.subr.mxu0 0.0
        %3959 = vmatpush1.msra.mxu0 0.0
        %3960 = vmatprep.subr.mxu0 0.0
        %3961 = vmatpush1.msra.mxu0 0.0
        %3962 = vmatprep.subr.mxu0 0.0
        %3963 = vmatpush1.msra.mxu0 0.0
        %3964 = vmatprep.subr.mxu0 0.0
        %3965 = vmatpush1.msra.mxu0 0.0
        %3966 = vmatprep.subr.mxu0 0.0
        %3967 = vmatpush1.msra.mxu0 0.0
        %3968 = vmatprep.subr.mxu0 0.0
        %3969 = vmatpush1.msra.mxu0 0.0
        %3970 = vmatprep.subr.mxu0 0.0
        %3971 = vmatpush1.msra.mxu0 0.0
        %3972 = vmatprep.subr.mxu0 0.0
        %3973 = vmatpush1.msra.mxu0 0.0
        %3974 = vmatprep.subr.mxu0 0.0
        %3975 = vmatpush1.msra.mxu0 0.0
        %3976 = vmatprep.subr.mxu0 0.0
        %3977 = vmatpush1.msra.mxu0 0.0
        %3978 = vmatprep.subr.mxu0 0.0
        %3979 = vmatpush1.msra.mxu0 0.0
        %3980 = vmatprep.subr.mxu0 0.0
        %3981 = vmatpush1.msra.mxu0 0.0
        %3982 = vmatprep.subr.mxu0 0.0
        %3983 = vmatpush1.msra.mxu0 0.0
        %3984 = vmatprep.subr.mxu0 0.0
        %3985 = vmatpush1.msra.mxu0 0.0
        %3986 = vmatprep.subr.mxu0 0.0
        %3987 = vmatpush1.msra.mxu0 0.0
        %3988 = vmatprep.subr.mxu0 0.0
        %3989 = vmatpush1.msra.mxu0 0.0
        %3990 = vmatprep.subr.mxu0 0.0
        %3991 = vmatpush1.msra.mxu0 0.0
        %3992 = vmatprep.subr.mxu0 0.0
        %3993 = vmatpush1.msra.mxu0 0.0
        %3994 = vmatprep.mubr.f32.mxu0 0.0
        %3995 = vmatmul.mubr.f32.gmra.mrb[0].mxu0 %v3928
        %v3996 = vpop.f32.mrb[0].mxu0
        %v3997 = vadd.f32 %v3926, %v3996
        %v3998 = vpop.f32.mrb[0].mxu0
        %3999 = vdwg.mxu0
        %4000 = vst.msk [vmem:[#allocation3] sm:$0x1] %vm2444, %v2359
        %4001 = vst.msk [vmem:[#allocation3 + $0x1] sm:$0x1] %vm2444, %v3997
        %4002 = vst.msk [vmem:[#allocation3 + $0x2] sm:$0x3] %vm2446, %v2357
        %4003 = vst.msk [vmem:[#allocation3 + $0x4] sm:$0x7] %vm2448, %v2358
        %v4004 = vld [vmem:[#allocation3] sm:$0x7f]
        %v4005 = vld [vmem:[#allocation8] sm:$0x7f]
        %v4006 = vld [vmem:[#allocation32] sm:$0xff]
        %v4007 = vadd.f32 %v4004, %v4005
        %v4008 = vld [vmem:[%s115] sm:$0xff]
        %v4009 = vld [vmem:[%s115 + $0x8] sm:$0xff]
        %v4010 = vld [vmem:[%s115 + $0x10] sm:$0xff]
        %v4011 = vld [vmem:[%s115 + $0x18] sm:$0xff]
        %v4012 = vld [vmem:[%s111] sm:$0x1]
        %v4014 = vlaneseq
        %v4015 = vshrl.u32 %v4014, 7
        %v4016 = vsub.s32 0, %v4015
        %v4017 = vrot.slane %v4012, %v4016
        %v4020 = vsel %vm2450, %v4007, 0
        %4022 = vmatprep.subr.mxu0 0.0
        %4023 = vmatpush1.msra.mxu0 %v4008
        %4024 = vmatprep.subr.mxu0 0.0
        %4025 = vmatpush1.msra.mxu0 %v4009
        %4026 = vmatprep.subr.mxu0 0.0
        %4027 = vmatpush1.msra.mxu0 %v4010
        %4028 = vmatprep.subr.mxu0 0.0
        %4029 = vmatpush1.msra.mxu0 %v4011
        %4030 = vmatprep.subr.mxu0 0.0
        %4031 = vmatpush1.msra.mxu0 0.0
        %4032 = vmatprep.subr.mxu0 0.0
        %4033 = vmatpush1.msra.mxu0 0.0
        %4034 = vmatprep.subr.mxu0 0.0
        %4035 = vmatpush1.msra.mxu0 0.0
        %4036 = vmatprep.subr.mxu0 0.0
        %4037 = vmatpush1.msra.mxu0 0.0
        %4038 = vmatprep.subr.mxu0 0.0
        %4039 = vmatpush1.msra.mxu0 0.0
        %4040 = vmatprep.subr.mxu0 0.0
        %4041 = vmatpush1.msra.mxu0 0.0
        %4042 = vmatprep.subr.mxu0 0.0
        %4043 = vmatpush1.msra.mxu0 0.0
        %4044 = vmatprep.subr.mxu0 0.0
        %4045 = vmatpush1.msra.mxu0 0.0
        %4046 = vmatprep.subr.mxu0 0.0
        %4047 = vmatpush1.msra.mxu0 0.0
        %4048 = vmatprep.subr.mxu0 0.0
        %4049 = vmatpush1.msra.mxu0 0.0
        %4050 = vmatprep.subr.mxu0 0.0
        %4051 = vmatpush1.msra.mxu0 0.0
        %4052 = vmatprep.subr.mxu0 0.0
        %4053 = vmatpush1.msra.mxu0 0.0
        %4054 = vmatprep.subr.mxu0 0.0
        %4055 = vmatpush1.msra.mxu0 0.0
        %4056 = vmatprep.subr.mxu0 0.0
        %4057 = vmatpush1.msra.mxu0 0.0
        %4058 = vmatprep.subr.mxu0 0.0
        %4059 = vmatpush1.msra.mxu0 0.0
        %4060 = vmatprep.subr.mxu0 0.0
        %4061 = vmatpush1.msra.mxu0 0.0
        %4062 = vmatprep.subr.mxu0 0.0
        %4063 = vmatpush1.msra.mxu0 0.0
        %4064 = vmatprep.subr.mxu0 0.0
        %4065 = vmatpush1.msra.mxu0 0.0
        %4066 = vmatprep.subr.mxu0 0.0
        %4067 = vmatpush1.msra.mxu0 0.0
        %4068 = vmatprep.subr.mxu0 0.0
        %4069 = vmatpush1.msra.mxu0 0.0
        %4070 = vmatprep.subr.mxu0 0.0
        %4071 = vmatpush1.msra.mxu0 0.0
        %4072 = vmatprep.subr.mxu0 0.0
        %4073 = vmatpush1.msra.mxu0 0.0
        %4074 = vmatprep.subr.mxu0 0.0
        %4075 = vmatpush1.msra.mxu0 0.0
        %4076 = vmatprep.subr.mxu0 0.0
        %4077 = vmatpush1.msra.mxu0 0.0
        %4078 = vmatprep.subr.mxu0 0.0
        %4079 = vmatpush1.msra.mxu0 0.0
        %4080 = vmatprep.subr.mxu0 0.0
        %4081 = vmatpush1.msra.mxu0 0.0
        %4082 = vmatprep.subr.mxu0 0.0
        %4083 = vmatpush1.msra.mxu0 0.0
        %4084 = vmatprep.subr.mxu0 0.0
        %4085 = vmatpush1.msra.mxu0 0.0
        %4086 = vmatprep.mubr.f32.mxu0 0.0
        %4087 = vmatmul.mubr.f32.gmra.mrb[0].mxu0 %v4020
        %v4088 = vpop.f32.mrb[0].mxu0
        %v4089 = vadd.f32 %v4017, %v4088
        %v4090 = vpop.f32.mrb[0].mxu0
        %4091 = vdwg.mxu0
        %4096 = vrot.lane.b32.xlu0 %v4008, 64
        %v4097 = vpop.permute.xlu0 %4096
        %4098 = vrot.lane.b32.xlu0 %v4009, 64
        %v4099 = vpop.permute.xlu0 %4098
        %4100 = vrot.lane.b32.xlu0 %v4010, 64
        %v4101 = vpop.permute.xlu0 %4100
        %4102 = vrot.lane.b32.xlu0 %v4011, 64
        %v4103 = vpop.permute.xlu0 %4102
        %4108 = vrot.lane.b32.xlu0 %v4017, 64
        %v4109 = vpop.permute.xlu0 %4108
        %v4112 = vsel %vm2450, %v4004, 0
        %4114 = vmatprep.subr.mxu0 0.0
        %4115 = vmatpush1.msra.mxu0 %v4097
        %4116 = vmatprep.subr.mxu0 0.0
        %4117 = vmatpush1.msra.mxu0 %v4099
        %4118 = vmatprep.subr.mxu0 0.0
        %4119 = vmatpush1.msra.mxu0 %v4101
        %4120 = vmatprep.subr.mxu0 0.0
        %4121 = vmatpush1.msra.mxu0 %v4103
        %4122 = vmatprep.subr.mxu0 0.0
        %4123 = vmatpush1.msra.mxu0 0.0
        %4124 = vmatprep.subr.mxu0 0.0
        %4125 = vmatpush1.msra.mxu0 0.0
        %4126 = vmatprep.subr.mxu0 0.0
        %4127 = vmatpush1.msra.mxu0 0.0
        %4128 = vmatprep.subr.mxu0 0.0
        %4129 = vmatpush1.msra.mxu0 0.0
        %4130 = vmatprep.subr.mxu0 0.0
        %4131 = vmatpush1.msra.mxu0 0.0
        %4132 = vmatprep.subr.mxu0 0.0
        %4133 = vmatpush1.msra.mxu0 0.0
        %4134 = vmatprep.subr.mxu0 0.0
        %4135 = vmatpush1.msra.mxu0 0.0
        %4136 = vmatprep.subr.mxu0 0.0
        %4137 = vmatpush1.msra.mxu0 0.0
        %4138 = vmatprep.subr.mxu0 0.0
        %4139 = vmatpush1.msra.mxu0 0.0
        %4140 = vmatprep.subr.mxu0 0.0
        %4141 = vmatpush1.msra.mxu0 0.0
        %4142 = vmatprep.subr.mxu0 0.0
        %4143 = vmatpush1.msra.mxu0 0.0
        %4144 = vmatprep.subr.mxu0 0.0
        %4145 = vmatpush1.msra.mxu0 0.0
        %4146 = vmatprep.subr.mxu0 0.0
        %4147 = vmatpush1.msra.mxu0 0.0
        %4148 = vmatprep.subr.mxu0 0.0
        %4149 = vmatpush1.msra.mxu0 0.0
        %4150 = vmatprep.subr.mxu0 0.0
        %4151 = vmatpush1.msra.mxu0 0.0
        %4152 = vmatprep.subr.mxu0 0.0
        %4153 = vmatpush1.msra.mxu0 0.0
        %4154 = vmatprep.subr.mxu0 0.0
        %4155 = vmatpush1.msra.mxu0 0.0
        %4156 = vmatprep.subr.mxu0 0.0
        %4157 = vmatpush1.msra.mxu0 0.0
        %4158 = vmatprep.subr.mxu0 0.0
        %4159 = vmatpush1.msra.mxu0 0.0
        %4160 = vmatprep.subr.mxu0 0.0
        %4161 = vmatpush1.msra.mxu0 0.0
        %4162 = vmatprep.subr.mxu0 0.0
        %4163 = vmatpush1.msra.mxu0 0.0
        %4164 = vmatprep.subr.mxu0 0.0
        %4165 = vmatpush1.msra.mxu0 0.0
        %4166 = vmatprep.subr.mxu0 0.0
        %4167 = vmatpush1.msra.mxu0 0.0
        %4168 = vmatprep.subr.mxu0 0.0
        %4169 = vmatpush1.msra.mxu0 0.0
        %4170 = vmatprep.subr.mxu0 0.0
        %4171 = vmatpush1.msra.mxu0 0.0
        %4172 = vmatprep.subr.mxu0 0.0
        %4173 = vmatpush1.msra.mxu0 0.0
        %4174 = vmatprep.subr.mxu0 0.0
        %4175 = vmatpush1.msra.mxu0 0.0
        %4176 = vmatprep.subr.mxu0 0.0
        %4177 = vmatpush1.msra.mxu0 0.0
        %4178 = vmatprep.mubr.f32.mxu0 0.0
        %4179 = vmatmul.mubr.f32.gmra.mrb[0].mxu0 %v4112
        %v4180 = vpop.f32.mrb[0].mxu0
        %v4181 = vadd.f32 %v4109, %v4180
        %v4182 = vpop.f32.mrb[0].mxu0
        %4183 = vdwg.mxu0
        %v4184 = vmul.f32 %v4089, 0.35355338
        %v4185 = vld [vmem:[%s117] sm:$0x1]
        %v4186 = vlaneseq
        %v4187 = vshrl.u32 %v4186, 7
        %v4188 = vsub.s32 0, %v4187
        %v4189 = vrot.slane %v4185, %v4188
        %v4190 = vmul.f32 %v4184, %v4189
        %4192 = vrot.lane.b32.xlu0 %v4089, 96
        %v4193 = vpop.permute.xlu0 %4192
        %v4195 = vsel %vm2450, %v4190, 0
        %v4197 = vsel %vm2450, %v4193, 0
        %4199 = vmatprep.subr.mxu0 0.0
        %4200 = vmatpush1.xpose.msra.mxu0 %v4197
        %4201 = vmatprep.subr.mxu0 0.0
        %4202 = vmatpush1.xpose.msra.mxu0 0.0
        %4203 = vmatprep.subr.mxu0 0.0
        %4204 = vmatpush1.xpose.msra.mxu0 0.0
        %4205 = vmatprep.subr.mxu0 0.0
        %4206 = vmatpush1.xpose.msra.mxu0 0.0
        %4207 = vmatprep.subr.mxu0 0.0
        %4208 = vmatpush1.xpose.msra.mxu0 0.0
        %4209 = vmatprep.subr.mxu0 0.0
        %4210 = vmatpush1.xpose.msra.mxu0 0.0
        %4211 = vmatprep.subr.mxu0 0.0
        %4212 = vmatpush1.xpose.msra.mxu0 0.0
        %4213 = vmatprep.subr.mxu0 0.0
        %4214 = vmatpush1.xpose.msra.mxu0 0.0
        %4215 = vmatprep.subr.mxu0 0.0
        %4216 = vmatpush1.xpose.msra.mxu0 0.0
        %4217 = vmatprep.subr.mxu0 0.0
        %4218 = vmatpush1.xpose.msra.mxu0 0.0
        %4219 = vmatprep.subr.mxu0 0.0
        %4220 = vmatpush1.xpose.msra.mxu0 0.0
        %4221 = vmatprep.subr.mxu0 0.0
        %4222 = vmatpush1.xpose.msra.mxu0 0.0
        %4223 = vmatprep.subr.mxu0 0.0
        %4224 = vmatpush1.xpose.msra.mxu0 0.0
        %4225 = vmatprep.subr.mxu0 0.0
        %4226 = vmatpush1.xpose.msra.mxu0 0.0
        %4227 = vmatprep.subr.mxu0 0.0
        %4228 = vmatpush1.xpose.msra.mxu0 0.0
        %4229 = vmatprep.subr.mxu0 0.0
        %4230 = vmatpush1.xpose.msra.mxu0 0.0
        %4231 = vmatprep.subr.mxu0 0.0
        %4232 = vmatpush1.xpose.msra.mxu0 0.0
        %4233 = vmatprep.subr.mxu0 0.0
        %4234 = vmatpush1.xpose.msra.mxu0 0.0
        %4235 = vmatprep.subr.mxu0 0.0
        %4236 = vmatpush1.xpose.msra.mxu0 0.0
        %4237 = vmatprep.subr.mxu0 0.0
        %4238 = vmatpush1.xpose.msra.mxu0 0.0
        %4239 = vmatprep.subr.mxu0 0.0
        %4240 = vmatpush1.xpose.msra.mxu0 0.0
        %4241 = vmatprep.subr.mxu0 0.0
        %4242 = vmatpush1.xpose.msra.mxu0 0.0
        %4243 = vmatprep.subr.mxu0 0.0
        %4244 = vmatpush1.xpose.msra.mxu0 0.0
        %4245 = vmatprep.subr.mxu0 0.0
        %4246 = vmatpush1.xpose.msra.mxu0 0.0
        %4247 = vmatprep.subr.mxu0 0.0
        %4248 = vmatpush1.xpose.msra.mxu0 0.0
        %4249 = vmatprep.subr.mxu0 0.0
        %4250 = vmatpush1.xpose.msra.mxu0 0.0
        %4251 = vmatprep.subr.mxu0 0.0
        %4252 = vmatpush1.xpose.msra.mxu0 0.0
        %4253 = vmatprep.subr.mxu0 0.0
        %4254 = vmatpush1.xpose.msra.mxu0 0.0
        %4255 = vmatprep.subr.mxu0 0.0
        %4256 = vmatpush1.xpose.msra.mxu0 0.0
        %4257 = vmatprep.subr.mxu0 0.0
        %4258 = vmatpush1.xpose.msra.mxu0 0.0
        %4259 = vmatprep.subr.mxu0 0.0
        %4260 = vmatpush1.xpose.msra.mxu0 0.0
        %4261 = vmatprep.subr.mxu0 0.0
        %4262 = vmatpush1.xpose.msra.mxu0 0.0
        %4263 = vmatprep.mubr.f32.mxu0 0.0
        %4264 = vmatmul.mubr.f32.gmra.mrb[0].mxu0 %v4195
        %v4265 = vpop.f32.mrb[0].mxu0
        %v4266 = vadd.f32 0.0, %v4265
        %v4267 = vpop.f32.mrb[0].mxu0
        %4268 = vdwg.mxu0
        %vm4269 = vcmask 55296
        %v4270 = vsel %vm4269, %v4266, -inf
        %4271 = vmax.xlane.f32.xlu0 %v4270
        %v4272 = vpop.xlane.xlu0 %4271
        %v4273 = vsub.f32 %v4266, %v4272
        %v4274 = vmul.f32 %v4273, 1.442695
        %v4275 = vpow.pop %v4274
        %v4276 = vsel %vm4269, %v4275, 0.0
        %4277 = vadd.xlane.f32.xlu0 %v4276
        %v4278 = vpop.xlane.xlu0 %4277
        %v4279 = vrcp.pop %v4278
        %v4280 = vmul.f32 %v4275, %v4279
        %v4281 = vmul.f32 %v4181, %v4189
        %v4282 = vld [vmem:[%s117 + $0x1] sm:$0x1]
        %v4283 = vlaneseq
        %v4284 = vshrl.u32 %v4283, 7
        %v4285 = vsub.s32 0, %v4284
        %v4286 = vrot.slane %v4282, %v4285
        %v4287 = vmul.f32 %v4184, %v4286
        %v4289 = vsel %vm2450, %v4287, 0
        %4291 = vmatprep.subr.mxu0 0.0
        %4292 = vmatpush1.xpose.msra.mxu0 %v4197
        %4293 = vmatprep.subr.mxu0 0.0
        %4294 = vmatpush1.xpose.msra.mxu0 0.0
        %4295 = vmatprep.subr.mxu0 0.0
        %4296 = vmatpush1.xpose.msra.mxu0 0.0
        %4297 = vmatprep.subr.mxu0 0.0
        %4298 = vmatpush1.xpose.msra.mxu0 0.0
        %4299 = vmatprep.subr.mxu0 0.0
        %4300 = vmatpush1.xpose.msra.mxu0 0.0
        %4301 = vmatprep.subr.mxu0 0.0
        %4302 = vmatpush1.xpose.msra.mxu0 0.0
        %4303 = vmatprep.subr.mxu0 0.0
        %4304 = vmatpush1.xpose.msra.mxu0 0.0
        %4305 = vmatprep.subr.mxu0 0.0
        %4306 = vmatpush1.xpose.msra.mxu0 0.0
        %4307 = vmatprep.subr.mxu0 0.0
        %4308 = vmatpush1.xpose.msra.mxu0 0.0
        %4309 = vmatprep.subr.mxu0 0.0
        %4310 = vmatpush1.xpose.msra.mxu0 0.0
        %4311 = vmatprep.subr.mxu0 0.0
        %4312 = vmatpush1.xpose.msra.mxu0 0.0
        %4313 = vmatprep.subr.mxu0 0.0
        %4314 = vmatpush1.xpose.msra.mxu0 0.0
        %4315 = vmatprep.subr.mxu0 0.0
        %4316 = vmatpush1.xpose.msra.mxu0 0.0
        %4317 = vmatprep.subr.mxu0 0.0
        %4318 = vmatpush1.xpose.msra.mxu0 0.0
        %4319 = vmatprep.subr.mxu0 0.0
        %4320 = vmatpush1.xpose.msra.mxu0 0.0
        %4321 = vmatprep.subr.mxu0 0.0
        %4322 = vmatpush1.xpose.msra.mxu0 0.0
        %4323 = vmatprep.subr.mxu0 0.0
        %4324 = vmatpush1.xpose.msra.mxu0 0.0
        %4325 = vmatprep.subr.mxu0 0.0
        %4326 = vmatpush1.xpose.msra.mxu0 0.0
        %4327 = vmatprep.subr.mxu0 0.0
        %4328 = vmatpush1.xpose.msra.mxu0 0.0
        %4329 = vmatprep.subr.mxu0 0.0
        %4330 = vmatpush1.xpose.msra.mxu0 0.0
        %4331 = vmatprep.subr.mxu0 0.0
        %4332 = vmatpush1.xpose.msra.mxu0 0.0
        %4333 = vmatprep.subr.mxu0 0.0
        %4334 = vmatpush1.xpose.msra.mxu0 0.0
        %4335 = vmatprep.subr.mxu0 0.0
        %4336 = vmatpush1.xpose.msra.mxu0 0.0
        %4337 = vmatprep.subr.mxu0 0.0
        %4338 = vmatpush1.xpose.msra.mxu0 0.0
        %4339 = vmatprep.subr.mxu0 0.0
        %4340 = vmatpush1.xpose.msra.mxu0 0.0
        %4341 = vmatprep.subr.mxu0 0.0
        %4342 = vmatpush1.xpose.msra.mxu0 0.0
        %4343 = vmatprep.subr.mxu0 0.0
        %4344 = vmatpush1.xpose.msra.mxu0 0.0
        %4345 = vmatprep.subr.mxu0 0.0
        %4346 = vmatpush1.xpose.msra.mxu0 0.0
        %4347 = vmatprep.subr.mxu0 0.0
        %4348 = vmatpush1.xpose.msra.mxu0 0.0
        %4349 = vmatprep.subr.mxu0 0.0
        %4350 = vmatpush1.xpose.msra.mxu0 0.0
        %4351 = vmatprep.subr.mxu0 0.0
        %4352 = vmatpush1.xpose.msra.mxu0 0.0
        %4353 = vmatprep.subr.mxu0 0.0
        %4354 = vmatpush1.xpose.msra.mxu0 0.0
        %4355 = vmatprep.mubr.f32.mxu0 0.0
        %4356 = vmatmul.mubr.f32.gmra.mrb[0].mxu0 %v4289
        %v4357 = vpop.f32.mrb[0].mxu0
        %v4358 = vadd.f32 0.0, %v4357
        %v4359 = vpop.f32.mrb[0].mxu0
        %4360 = vdwg.mxu0
        %v4361 = vsel %vm4269, %v4358, -inf
        %4362 = vmax.xlane.f32.xlu0 %v4361
        %v4363 = vpop.xlane.xlu0 %4362
        %v4364 = vsub.f32 %v4358, %v4363
        %v4365 = vmul.f32 %v4364, 1.442695
        %v4366 = vpow.pop %v4365
        %v4367 = vsel %vm4269, %v4366, 0.0
        %4368 = vadd.xlane.f32.xlu0 %v4367
        %v4369 = vpop.xlane.xlu0 %4368
        %v4370 = vrcp.pop %v4369
        %v4371 = vmul.f32 %v4366, %v4370
        %v4372 = vmul.f32 %v4181, %v4286
        %vm4373 = vcmask 56320
        %v4375 = vsel %vm4373, %v4371, 0
        %vm4377 = vcmask 1046528
        %v4379 = vsel %vm4377, %v4372, 0
        %4381 = vmatprep.subr.mxu0 0.0
        %4382 = vmatpush1.msra.mxu0 %v4379
        %4383 = vmatprep.subr.mxu0 0.0
        %4384 = vmatpush1.msra.mxu0 0.0
        %4385 = vmatprep.subr.mxu0 0.0
        %4386 = vmatpush1.msra.mxu0 0.0
        %4387 = vmatprep.subr.mxu0 0.0
        %4388 = vmatpush1.msra.mxu0 0.0
        %4389 = vmatprep.subr.mxu0 0.0
        %4390 = vmatpush1.msra.mxu0 0.0
        %4391 = vmatprep.subr.mxu0 0.0
        %4392 = vmatpush1.msra.mxu0 0.0
        %4393 = vmatprep.subr.mxu0 0.0
        %4394 = vmatpush1.msra.mxu0 0.0
        %4395 = vmatprep.subr.mxu0 0.0
        %4396 = vmatpush1.msra.mxu0 0.0
        %4397 = vmatprep.subr.mxu0 0.0
        %4398 = vmatpush1.msra.mxu0 0.0
        %4399 = vmatprep.subr.mxu0 0.0
        %4400 = vmatpush1.msra.mxu0 0.0
        %4401 = vmatprep.subr.mxu0 0.0
        %4402 = vmatpush1.msra.mxu0 0.0
        %4403 = vmatprep.subr.mxu0 0.0
        %4404 = vmatpush1.msra.mxu0 0.0
        %4405 = vmatprep.subr.mxu0 0.0
        %4406 = vmatpush1.msra.mxu0 0.0
        %4407 = vmatprep.subr.mxu0 0.0
        %4408 = vmatpush1.msra.mxu0 0.0
        %4409 = vmatprep.subr.mxu0 0.0
        %4410 = vmatpush1.msra.mxu0 0.0
        %4411 = vmatprep.subr.mxu0 0.0
        %4412 = vmatpush1.msra.mxu0 0.0
        %4413 = vmatprep.subr.mxu0 0.0
        %4414 = vmatpush1.msra.mxu0 0.0
        %4415 = vmatprep.subr.mxu0 0.0
        %4416 = vmatpush1.msra.mxu0 0.0
        %4417 = vmatprep.subr.mxu0 0.0
        %4418 = vmatpush1.msra.mxu0 0.0
        %4419 = vmatprep.subr.mxu0 0.0
        %4420 = vmatpush1.msra.mxu0 0.0
        %4421 = vmatprep.subr.mxu0 0.0
        %4422 = vmatpush1.msra.mxu0 0.0
        %4423 = vmatprep.subr.mxu0 0.0
        %4424 = vmatpush1.msra.mxu0 0.0
        %4425 = vmatprep.subr.mxu0 0.0
        %4426 = vmatpush1.msra.mxu0 0.0
        %4427 = vmatprep.subr.mxu0 0.0
        %4428 = vmatpush1.msra.mxu0 0.0
        %4429 = vmatprep.subr.mxu0 0.0
        %4430 = vmatpush1.msra.mxu0 0.0
        %4431 = vmatprep.subr.mxu0 0.0
        %4432 = vmatpush1.msra.mxu0 0.0
        %4433 = vmatprep.subr.mxu0 0.0
        %4434 = vmatpush1.msra.mxu0 0.0
        %4435 = vmatprep.subr.mxu0 0.0
        %4436 = vmatpush1.msra.mxu0 0.0
        %4437 = vmatprep.subr.mxu0 0.0
        %4438 = vmatpush1.msra.mxu0 0.0
        %4439 = vmatprep.subr.mxu0 0.0
        %4440 = vmatpush1.msra.mxu0 0.0
        %4441 = vmatprep.subr.mxu0 0.0
        %4442 = vmatpush1.msra.mxu0 0.0
        %4443 = vmatprep.subr.mxu0 0.0
        %4444 = vmatpush1.msra.mxu0 0.0
        %4445 = vmatprep.mubr.f32.mxu0 0.0
        %4446 = vmatmul.mubr.f32.gmra.mrb[0].mxu0 %v4375
        %v4447 = vpop.f32.mrb[0].mxu0
        %v4448 = vadd.f32 0.0, %v4447
        %v4449 = vpop.f32.mrb[0].mxu0
        %4450 = vdwg.mxu0
        %v4452 = vsel %vm4373, %v4280, 0
        %v4455 = vsel %vm4377, %v4281, 0
        %4457 = vmatprep.subr.mxu0 0.0
        %4458 = vmatpush1.msra.mxu0 %v4455
        %4459 = vmatprep.subr.mxu0 0.0
        %4460 = vmatpush1.msra.mxu0 0.0
        %4461 = vmatprep.subr.mxu0 0.0
        %4462 = vmatpush1.msra.mxu0 0.0
        %4463 = vmatprep.subr.mxu0 0.0
        %4464 = vmatpush1.msra.mxu0 0.0
        %4465 = vmatprep.subr.mxu0 0.0
        %4466 = vmatpush1.msra.mxu0 0.0
        %4467 = vmatprep.subr.mxu0 0.0
        %4468 = vmatpush1.msra.mxu0 0.0
        %4469 = vmatprep.subr.mxu0 0.0
        %4470 = vmatpush1.msra.mxu0 0.0
        %4471 = vmatprep.subr.mxu0 0.0
        %4472 = vmatpush1.msra.mxu0 0.0
        %4473 = vmatprep.subr.mxu0 0.0
        %4474 = vmatpush1.msra.mxu0 0.0
        %4475 = vmatprep.subr.mxu0 0.0
        %4476 = vmatpush1.msra.mxu0 0.0
        %4477 = vmatprep.subr.mxu0 0.0
        %4478 = vmatpush1.msra.mxu0 0.0
        %4479 = vmatprep.subr.mxu0 0.0
        %4480 = vmatpush1.msra.mxu0 0.0
        %4481 = vmatprep.subr.mxu0 0.0
        %4482 = vmatpush1.msra.mxu0 0.0
        %4483 = vmatprep.subr.mxu0 0.0
        %4484 = vmatpush1.msra.mxu0 0.0
        %4485 = vmatprep.subr.mxu0 0.0
        %4486 = vmatpush1.msra.mxu0 0.0
        %4487 = vmatprep.subr.mxu0 0.0
        %4488 = vmatpush1.msra.mxu0 0.0
        %4489 = vmatprep.subr.mxu0 0.0
        %4490 = vmatpush1.msra.mxu0 0.0
        %4491 = vmatprep.subr.mxu0 0.0
        %4492 = vmatpush1.msra.mxu0 0.0
        %4493 = vmatprep.subr.mxu0 0.0
        %4494 = vmatpush1.msra.mxu0 0.0
        %4495 = vmatprep.subr.mxu0 0.0
        %4496 = vmatpush1.msra.mxu0 0.0
        %4497 = vmatprep.subr.mxu0 0.0
        %4498 = vmatpush1.msra.mxu0 0.0
        %4499 = vmatprep.subr.mxu0 0.0
        %4500 = vmatpush1.msra.mxu0 0.0
        %4501 = vmatprep.subr.mxu0 0.0
        %4502 = vmatpush1.msra.mxu0 0.0
        %4503 = vmatprep.subr.mxu0 0.0
        %4504 = vmatpush1.msra.mxu0 0.0
        %4505 = vmatprep.subr.mxu0 0.0
        %4506 = vmatpush1.msra.mxu0 0.0
        %4507 = vmatprep.subr.mxu0 0.0
        %4508 = vmatpush1.msra.mxu0 0.0
        %4509 = vmatprep.subr.mxu0 0.0
        %4510 = vmatpush1.msra.mxu0 0.0
        %4511 = vmatprep.subr.mxu0 0.0
        %4512 = vmatpush1.msra.mxu0 0.0
        %4513 = vmatprep.subr.mxu0 0.0
        %4514 = vmatpush1.msra.mxu0 0.0
        %4515 = vmatprep.subr.mxu0 0.0
        %4516 = vmatpush1.msra.mxu0 0.0
        %4517 = vmatprep.subr.mxu0 0.0
        %4518 = vmatpush1.msra.mxu0 0.0
        %4519 = vmatprep.subr.mxu0 0.0
        %4520 = vmatpush1.msra.mxu0 0.0
        %4521 = vmatprep.mubr.f32.mxu0 0.0
        %4522 = vmatmul.mubr.f32.gmra.mrb[0].mxu0 %v4452
        %v4523 = vpop.f32.mrb[0].mxu0
        %v4524 = vadd.f32 %v4448, %v4523
        %v4525 = vpop.f32.mrb[0].mxu0
        %4526 = vdwg.mxu0
        %v4527 = vld [vmem:[%s117 + $0x2] sm:$0x1]
        %v4528 = vlaneseq
        %v4529 = vshrl.u32 %v4528, 7
        %v4530 = vsub.s32 0, %v4529
        %v4531 = vrot.slane %v4527, %v4530
        %v4532 = vmul.f32 %v4184, %v4531
        %v4534 = vsel %vm2450, %v4532, 0
        %4536 = vmatprep.subr.mxu0 0.0
        %4537 = vmatpush1.xpose.msra.mxu0 %v4197
        %4538 = vmatprep.subr.mxu0 0.0
        %4539 = vmatpush1.xpose.msra.mxu0 0.0
        %4540 = vmatprep.subr.mxu0 0.0
        %4541 = vmatpush1.xpose.msra.mxu0 0.0
        %4542 = vmatprep.subr.mxu0 0.0
        %4543 = vmatpush1.xpose.msra.mxu0 0.0
        %4544 = vmatprep.subr.mxu0 0.0
        %4545 = vmatpush1.xpose.msra.mxu0 0.0
        %4546 = vmatprep.subr.mxu0 0.0
        %4547 = vmatpush1.xpose.msra.mxu0 0.0
        %4548 = vmatprep.subr.mxu0 0.0
        %4549 = vmatpush1.xpose.msra.mxu0 0.0
        %4550 = vmatprep.subr.mxu0 0.0
        %4551 = vmatpush1.xpose.msra.mxu0 0.0
        %4552 = vmatprep.subr.mxu0 0.0
        %4553 = vmatpush1.xpose.msra.mxu0 0.0
        %4554 = vmatprep.subr.mxu0 0.0
        %4555 = vmatpush1.xpose.msra.mxu0 0.0
        %4556 = vmatprep.subr.mxu0 0.0
        %4557 = vmatpush1.xpose.msra.mxu0 0.0
        %4558 = vmatprep.subr.mxu0 0.0
        %4559 = vmatpush1.xpose.msra.mxu0 0.0
        %4560 = vmatprep.subr.mxu0 0.0
        %4561 = vmatpush1.xpose.msra.mxu0 0.0
        %4562 = vmatprep.subr.mxu0 0.0
        %4563 = vmatpush1.xpose.msra.mxu0 0.0
        %4564 = vmatprep.subr.mxu0 0.0
        %4565 = vmatpush1.xpose.msra.mxu0 0.0
        %4566 = vmatprep.subr.mxu0 0.0
        %4567 = vmatpush1.xpose.msra.mxu0 0.0
        %4568 = vmatprep.subr.mxu0 0.0
        %4569 = vmatpush1.xpose.msra.mxu0 0.0
        %4570 = vmatprep.subr.mxu0 0.0
        %4571 = vmatpush1.xpose.msra.mxu0 0.0
        %4572 = vmatprep.subr.mxu0 0.0
        %4573 = vmatpush1.xpose.msra.mxu0 0.0
        %4574 = vmatprep.subr.mxu0 0.0
        %4575 = vmatpush1.xpose.msra.mxu0 0.0
        %4576 = vmatprep.subr.mxu0 0.0
        %4577 = vmatpush1.xpose.msra.mxu0 0.0
        %4578 = vmatprep.subr.mxu0 0.0
        %4579 = vmatpush1.xpose.msra.mxu0 0.0
        %4580 = vmatprep.subr.mxu0 0.0
        %4581 = vmatpush1.xpose.msra.mxu0 0.0
        %4582 = vmatprep.subr.mxu0 0.0
        %4583 = vmatpush1.xpose.msra.mxu0 0.0
        %4584 = vmatprep.subr.mxu0 0.0
        %4585 = vmatpush1.xpose.msra.mxu0 0.0
        %4586 = vmatprep.subr.mxu0 0.0
        %4587 = vmatpush1.xpose.msra.mxu0 0.0
        %4588 = vmatprep.subr.mxu0 0.0
        %4589 = vmatpush1.xpose.msra.mxu0 0.0
        %4590 = vmatprep.subr.mxu0 0.0
        %4591 = vmatpush1.xpose.msra.mxu0 0.0
        %4592 = vmatprep.subr.mxu0 0.0
        %4593 = vmatpush1.xpose.msra.mxu0 0.0
        %4594 = vmatprep.subr.mxu0 0.0
        %4595 = vmatpush1.xpose.msra.mxu0 0.0
        %4596 = vmatprep.subr.mxu0 0.0
        %4597 = vmatpush1.xpose.msra.mxu0 0.0
        %4598 = vmatprep.subr.mxu0 0.0
        %4599 = vmatpush1.xpose.msra.mxu0 0.0
        %4600 = vmatprep.mubr.f32.mxu0 0.0
        %4601 = vmatmul.mubr.f32.gmra.mrb[0].mxu0 %v4534
        %v4602 = vpop.f32.mrb[0].mxu0
        %v4603 = vadd.f32 0.0, %v4602
        %v4604 = vpop.f32.mrb[0].mxu0
        %4605 = vdwg.mxu0
        %v4606 = vsel %vm4269, %v4603, -inf
        %4607 = vmax.xlane.f32.xlu0 %v4606
        %v4608 = vpop.xlane.xlu0 %4607
        %v4609 = vsub.f32 %v4603, %v4608
        %v4610 = vmul.f32 %v4609, 1.442695
        %v4611 = vpow.pop %v4610
        %v4612 = vsel %vm4269, %v4611, 0.0
        %4613 = vadd.xlane.f32.xlu0 %v4612
        %v4614 = vpop.xlane.xlu0 %4613
        %v4615 = vrcp.pop %v4614
        %v4616 = vmul.f32 %v4611, %v4615
        %v4617 = vmul.f32 %v4181, %v4531
        %v4619 = vsel %vm4373, %v4616, 0
        %v4622 = vsel %vm4377, %v4617, 0
        %4624 = vmatprep.subr.mxu0 0.0
        %4625 = vmatpush1.msra.mxu0 %v4622
        %4626 = vmatprep.subr.mxu0 0.0
        %4627 = vmatpush1.msra.mxu0 0.0
        %4628 = vmatprep.subr.mxu0 0.0
        %4629 = vmatpush1.msra.mxu0 0.0
        %4630 = vmatprep.subr.mxu0 0.0
        %4631 = vmatpush1.msra.mxu0 0.0
        %4632 = vmatprep.subr.mxu0 0.0
        %4633 = vmatpush1.msra.mxu0 0.0
        %4634 = vmatprep.subr.mxu0 0.0
        %4635 = vmatpush1.msra.mxu0 0.0
        %4636 = vmatprep.subr.mxu0 0.0
        %4637 = vmatpush1.msra.mxu0 0.0
        %4638 = vmatprep.subr.mxu0 0.0
        %4639 = vmatpush1.msra.mxu0 0.0
        %4640 = vmatprep.subr.mxu0 0.0
        %4641 = vmatpush1.msra.mxu0 0.0
        %4642 = vmatprep.subr.mxu0 0.0
        %4643 = vmatpush1.msra.mxu0 0.0
        %4644 = vmatprep.subr.mxu0 0.0
        %4645 = vmatpush1.msra.mxu0 0.0
        %4646 = vmatprep.subr.mxu0 0.0
        %4647 = vmatpush1.msra.mxu0 0.0
        %4648 = vmatprep.subr.mxu0 0.0
        %4649 = vmatpush1.msra.mxu0 0.0
        %4650 = vmatprep.subr.mxu0 0.0
        %4651 = vmatpush1.msra.mxu0 0.0
        %4652 = vmatprep.subr.mxu0 0.0
        %4653 = vmatpush1.msra.mxu0 0.0
        %4654 = vmatprep.subr.mxu0 0.0
        %4655 = vmatpush1.msra.mxu0 0.0
        %4656 = vmatprep.subr.mxu0 0.0
        %4657 = vmatpush1.msra.mxu0 0.0
        %4658 = vmatprep.subr.mxu0 0.0
        %4659 = vmatpush1.msra.mxu0 0.0
        %4660 = vmatprep.subr.mxu0 0.0
        %4661 = vmatpush1.msra.mxu0 0.0
        %4662 = vmatprep.subr.mxu0 0.0
        %4663 = vmatpush1.msra.mxu0 0.0
        %4664 = vmatprep.subr.mxu0 0.0
        %4665 = vmatpush1.msra.mxu0 0.0
        %4666 = vmatprep.subr.mxu0 0.0
        %4667 = vmatpush1.msra.mxu0 0.0
        %4668 = vmatprep.subr.mxu0 0.0
        %4669 = vmatpush1.msra.mxu0 0.0
        %4670 = vmatprep.subr.mxu0 0.0
        %4671 = vmatpush1.msra.mxu0 0.0
        %4672 = vmatprep.subr.mxu0 0.0
        %4673 = vmatpush1.msra.mxu0 0.0
        %4674 = vmatprep.subr.mxu0 0.0
        %4675 = vmatpush1.msra.mxu0 0.0
        %4676 = vmatprep.subr.mxu0 0.0
        %4677 = vmatpush1.msra.mxu0 0.0
        %4678 = vmatprep.subr.mxu0 0.0
        %4679 = vmatpush1.msra.mxu0 0.0
        %4680 = vmatprep.subr.mxu0 0.0
        %4681 = vmatpush1.msra.mxu0 0.0
        %4682 = vmatprep.subr.mxu0 0.0
        %4683 = vmatpush1.msra.mxu0 0.0
        %4684 = vmatprep.subr.mxu0 0.0
        %4685 = vmatpush1.msra.mxu0 0.0
        %4686 = vmatprep.subr.mxu0 0.0
        %4687 = vmatpush1.msra.mxu0 0.0
        %4688 = vmatprep.mubr.f32.mxu0 0.0
        %4689 = vmatmul.mubr.f32.gmra.mrb[0].mxu0 %v4619
        %v4690 = vpop.f32.mrb[0].mxu0
        %v4691 = vadd.f32 0.0, %v4690
        %v4692 = vpop.f32.mrb[0].mxu0
        %4693 = vdwg.mxu0
        %v4694 = vadd.f32 %v4524, %v4691
        %v4695 = vld [vmem:[%s117 + $0x3] sm:$0x1]
        %v4696 = vlaneseq
        %v4697 = vshrl.u32 %v4696, 7
        %v4698 = vsub.s32 0, %v4697
        %v4699 = vrot.slane %v4695, %v4698
        %v4700 = vmul.f32 %v4184, %v4699
        %v4702 = vsel %vm2450, %v4700, 0
        %4704 = vmatprep.subr.mxu0 0.0
        %4705 = vmatpush1.xpose.msra.mxu0 %v4197
        %4706 = vmatprep.subr.mxu0 0.0
        %4707 = vmatpush1.xpose.msra.mxu0 0.0
        %4708 = vmatprep.subr.mxu0 0.0
        %4709 = vmatpush1.xpose.msra.mxu0 0.0
        %4710 = vmatprep.subr.mxu0 0.0
        %4711 = vmatpush1.xpose.msra.mxu0 0.0
        %4712 = vmatprep.subr.mxu0 0.0
        %4713 = vmatpush1.xpose.msra.mxu0 0.0
        %4714 = vmatprep.subr.mxu0 0.0
        %4715 = vmatpush1.xpose.msra.mxu0 0.0
        %4716 = vmatprep.subr.mxu0 0.0
        %4717 = vmatpush1.xpose.msra.mxu0 0.0
        %4718 = vmatprep.subr.mxu0 0.0
        %4719 = vmatpush1.xpose.msra.mxu0 0.0
        %4720 = vmatprep.subr.mxu0 0.0
        %4721 = vmatpush1.xpose.msra.mxu0 0.0
        %4722 = vmatprep.subr.mxu0 0.0
        %4723 = vmatpush1.xpose.msra.mxu0 0.0
        %4724 = vmatprep.subr.mxu0 0.0
        %4725 = vmatpush1.xpose.msra.mxu0 0.0
        %4726 = vmatprep.subr.mxu0 0.0
        %4727 = vmatpush1.xpose.msra.mxu0 0.0
        %4728 = vmatprep.subr.mxu0 0.0
        %4729 = vmatpush1.xpose.msra.mxu0 0.0
        %4730 = vmatprep.subr.mxu0 0.0
        %4731 = vmatpush1.xpose.msra.mxu0 0.0
        %4732 = vmatprep.subr.mxu0 0.0
        %4733 = vmatpush1.xpose.msra.mxu0 0.0
        %4734 = vmatprep.subr.mxu0 0.0
        %4735 = vmatpush1.xpose.msra.mxu0 0.0
        %4736 = vmatprep.subr.mxu0 0.0
        %4737 = vmatpush1.xpose.msra.mxu0 0.0
        %4738 = vmatprep.subr.mxu0 0.0
        %4739 = vmatpush1.xpose.msra.mxu0 0.0
        %4740 = vmatprep.subr.mxu0 0.0
        %4741 = vmatpush1.xpose.msra.mxu0 0.0
        %4742 = vmatprep.subr.mxu0 0.0
        %4743 = vmatpush1.xpose.msra.mxu0 0.0
        %4744 = vmatprep.subr.mxu0 0.0
        %4745 = vmatpush1.xpose.msra.mxu0 0.0
        %4746 = vmatprep.subr.mxu0 0.0
        %4747 = vmatpush1.xpose.msra.mxu0 0.0
        %4748 = vmatprep.subr.mxu0 0.0
        %4749 = vmatpush1.xpose.msra.mxu0 0.0
        %4750 = vmatprep.subr.mxu0 0.0
        %4751 = vmatpush1.xpose.msra.mxu0 0.0
        %4752 = vmatprep.subr.mxu0 0.0
        %4753 = vmatpush1.xpose.msra.mxu0 0.0
        %4754 = vmatprep.subr.mxu0 0.0
        %4755 = vmatpush1.xpose.msra.mxu0 0.0
        %4756 = vmatprep.subr.mxu0 0.0
        %4757 = vmatpush1.xpose.msra.mxu0 0.0
        %4758 = vmatprep.subr.mxu0 0.0
        %4759 = vmatpush1.xpose.msra.mxu0 0.0
        %4760 = vmatprep.subr.mxu0 0.0
        %4761 = vmatpush1.xpose.msra.mxu0 0.0
        %4762 = vmatprep.subr.mxu0 0.0
        %4763 = vmatpush1.xpose.msra.mxu0 0.0
        %4764 = vmatprep.subr.mxu0 0.0
        %4765 = vmatpush1.xpose.msra.mxu0 0.0
        %4766 = vmatprep.subr.mxu0 0.0
        %4767 = vmatpush1.xpose.msra.mxu0 0.0
        %4768 = vmatprep.mubr.f32.mxu0 0.0
        %4769 = vmatmul.mubr.f32.gmra.mrb[0].mxu0 %v4702
        %v4770 = vpop.f32.mrb[0].mxu0
        %v4771 = vadd.f32 0.0, %v4770
        %v4772 = vpop.f32.mrb[0].mxu0
        %4773 = vdwg.mxu0
        %v4774 = vsel %vm4269, %v4771, -inf
        %4775 = vmax.xlane.f32.xlu0 %v4774
        %v4776 = vpop.xlane.xlu0 %4775
        %v4777 = vsub.f32 %v4771, %v4776
        %v4778 = vmul.f32 %v4777, 1.442695
        %v4779 = vpow.pop %v4778
        %v4780 = vsel %vm4269, %v4779, 0.0
        %4781 = vadd.xlane.f32.xlu0 %v4780
        %v4782 = vpop.xlane.xlu0 %4781
        %v4783 = vrcp.pop %v4782
        %v4784 = vmul.f32 %v4779, %v4783
        %v4785 = vmul.f32 %v4181, %v4699
        %v4787 = vsel %vm4373, %v4784, 0
        %v4790 = vsel %vm4377, %v4785, 0
        %4792 = vmatprep.subr.mxu0 0.0
        %4793 = vmatpush1.msra.mxu0 %v4790
        %4794 = vmatprep.subr.mxu0 0.0
        %4795 = vmatpush1.msra.mxu0 0.0
        %4796 = vmatprep.subr.mxu0 0.0
        %4797 = vmatpush1.msra.mxu0 0.0
        %4798 = vmatprep.subr.mxu0 0.0
        %4799 = vmatpush1.msra.mxu0 0.0
        %4800 = vmatprep.subr.mxu0 0.0
        %4801 = vmatpush1.msra.mxu0 0.0
        %4802 = vmatprep.subr.mxu0 0.0
        %4803 = vmatpush1.msra.mxu0 0.0
        %4804 = vmatprep.subr.mxu0 0.0
        %4805 = vmatpush1.msra.mxu0 0.0
        %4806 = vmatprep.subr.mxu0 0.0
        %4807 = vmatpush1.msra.mxu0 0.0
        %4808 = vmatprep.subr.mxu0 0.0
        %4809 = vmatpush1.msra.mxu0 0.0
        %4810 = vmatprep.subr.mxu0 0.0
        %4811 = vmatpush1.msra.mxu0 0.0
        %4812 = vmatprep.subr.mxu0 0.0
        %4813 = vmatpush1.msra.mxu0 0.0
        %4814 = vmatprep.subr.mxu0 0.0
        %4815 = vmatpush1.msra.mxu0 0.0
        %4816 = vmatprep.subr.mxu0 0.0
        %4817 = vmatpush1.msra.mxu0 0.0
        %4818 = vmatprep.subr.mxu0 0.0
        %4819 = vmatpush1.msra.mxu0 0.0
        %4820 = vmatprep.subr.mxu0 0.0
        %4821 = vmatpush1.msra.mxu0 0.0
        %4822 = vmatprep.subr.mxu0 0.0
        %4823 = vmatpush1.msra.mxu0 0.0
        %4824 = vmatprep.subr.mxu0 0.0
        %4825 = vmatpush1.msra.mxu0 0.0
        %4826 = vmatprep.subr.mxu0 0.0
        %4827 = vmatpush1.msra.mxu0 0.0
        %4828 = vmatprep.subr.mxu0 0.0
        %4829 = vmatpush1.msra.mxu0 0.0
        %4830 = vmatprep.subr.mxu0 0.0
        %4831 = vmatpush1.msra.mxu0 0.0
        %4832 = vmatprep.subr.mxu0 0.0
        %4833 = vmatpush1.msra.mxu0 0.0
        %4834 = vmatprep.subr.mxu0 0.0
        %4835 = vmatpush1.msra.mxu0 0.0
        %4836 = vmatprep.subr.mxu0 0.0
        %4837 = vmatpush1.msra.mxu0 0.0
        %4838 = vmatprep.subr.mxu0 0.0
        %4839 = vmatpush1.msra.mxu0 0.0
        %4840 = vmatprep.subr.mxu0 0.0
        %4841 = vmatpush1.msra.mxu0 0.0
        %4842 = vmatprep.subr.mxu0 0.0
        %4843 = vmatpush1.msra.mxu0 0.0
        %4844 = vmatprep.subr.mxu0 0.0
        %4845 = vmatpush1.msra.mxu0 0.0
        %4846 = vmatprep.subr.mxu0 0.0
        %4847 = vmatpush1.msra.mxu0 0.0
        %4848 = vmatprep.subr.mxu0 0.0
        %4849 = vmatpush1.msra.mxu0 0.0
        %4850 = vmatprep.subr.mxu0 0.0
        %4851 = vmatpush1.msra.mxu0 0.0
        %4852 = vmatprep.subr.mxu0 0.0
        %4853 = vmatpush1.msra.mxu0 0.0
        %4854 = vmatprep.subr.mxu0 0.0
        %4855 = vmatpush1.msra.mxu0 0.0
        %4856 = vmatprep.mubr.f32.mxu0 0.0
        %4857 = vmatmul.mubr.f32.gmra.mrb[0].mxu0 %v4787
        %v4858 = vpop.f32.mrb[0].mxu0
        %v4859 = vadd.f32 0.0, %v4858
        %v4860 = vpop.f32.mrb[0].mxu0
        %4861 = vdwg.mxu0
        %v4862 = vadd.f32 %v4694, %v4859
        %v4863 = vld [vmem:[%s113] sm:$0xff]
        %v4864 = vld [vmem:[%s113 + $0x8] sm:$0xff]
        %v4865 = vld [vmem:[%s113 + $0x10] sm:$0xff]
        %v4866 = vld [vmem:[%s113 + $0x18] sm:$0xff]
        %v4867 = vld [vmem:[%s109] sm:$0x1]
        %v4869 = vlaneseq
        %v4870 = vshrl.u32 %v4869, 7
        %v4871 = vsub.s32 0, %v4870
        %v4872 = vrot.slane %v4867, %v4871
        %v4875 = vsel %vm2450, %v4862, 0
        %4877 = vmatprep.subr.mxu0 0.0
        %4878 = vmatpush1.msra.mxu0 %v4863
        %4879 = vmatprep.subr.mxu0 0.0
        %4880 = vmatpush1.msra.mxu0 %v4864
        %4881 = vmatprep.subr.mxu0 0.0
        %4882 = vmatpush1.msra.mxu0 %v4865
        %4883 = vmatprep.subr.mxu0 0.0
        %4884 = vmatpush1.msra.mxu0 %v4866
        %4885 = vmatprep.subr.mxu0 0.0
        %4886 = vmatpush1.msra.mxu0 0.0
        %4887 = vmatprep.subr.mxu0 0.0
        %4888 = vmatpush1.msra.mxu0 0.0
        %4889 = vmatprep.subr.mxu0 0.0
        %4890 = vmatpush1.msra.mxu0 0.0
        %4891 = vmatprep.subr.mxu0 0.0
        %4892 = vmatpush1.msra.mxu0 0.0
        %4893 = vmatprep.subr.mxu0 0.0
        %4894 = vmatpush1.msra.mxu0 0.0
        %4895 = vmatprep.subr.mxu0 0.0
        %4896 = vmatpush1.msra.mxu0 0.0
        %4897 = vmatprep.subr.mxu0 0.0
        %4898 = vmatpush1.msra.mxu0 0.0
        %4899 = vmatprep.subr.mxu0 0.0
        %4900 = vmatpush1.msra.mxu0 0.0
        %4901 = vmatprep.subr.mxu0 0.0
        %4902 = vmatpush1.msra.mxu0 0.0
        %4903 = vmatprep.subr.mxu0 0.0
        %4904 = vmatpush1.msra.mxu0 0.0
        %4905 = vmatprep.subr.mxu0 0.0
        %4906 = vmatpush1.msra.mxu0 0.0
        %4907 = vmatprep.subr.mxu0 0.0
        %4908 = vmatpush1.msra.mxu0 0.0
        %4909 = vmatprep.subr.mxu0 0.0
        %4910 = vmatpush1.msra.mxu0 0.0
        %4911 = vmatprep.subr.mxu0 0.0
        %4912 = vmatpush1.msra.mxu0 0.0
        %4913 = vmatprep.subr.mxu0 0.0
        %4914 = vmatpush1.msra.mxu0 0.0
        %4915 = vmatprep.subr.mxu0 0.0
        %4916 = vmatpush1.msra.mxu0 0.0
        %4917 = vmatprep.subr.mxu0 0.0
        %4918 = vmatpush1.msra.mxu0 0.0
        %4919 = vmatprep.subr.mxu0 0.0
        %4920 = vmatpush1.msra.mxu0 0.0
        %4921 = vmatprep.subr.mxu0 0.0
        %4922 = vmatpush1.msra.mxu0 0.0
        %4923 = vmatprep.subr.mxu0 0.0
        %4924 = vmatpush1.msra.mxu0 0.0
        %4925 = vmatprep.subr.mxu0 0.0
        %4926 = vmatpush1.msra.mxu0 0.0
        %4927 = vmatprep.subr.mxu0 0.0
        %4928 = vmatpush1.msra.mxu0 0.0
        %4929 = vmatprep.subr.mxu0 0.0
        %4930 = vmatpush1.msra.mxu0 0.0
        %4931 = vmatprep.subr.mxu0 0.0
        %4932 = vmatpush1.msra.mxu0 0.0
        %4933 = vmatprep.subr.mxu0 0.0
        %4934 = vmatpush1.msra.mxu0 0.0
        %4935 = vmatprep.subr.mxu0 0.0
        %4936 = vmatpush1.msra.mxu0 0.0
        %4937 = vmatprep.subr.mxu0 0.0
        %4938 = vmatpush1.msra.mxu0 0.0
        %4939 = vmatprep.subr.mxu0 0.0
        %4940 = vmatpush1.msra.mxu0 0.0
        %4941 = vmatprep.mubr.f32.mxu0 0.0
        %4942 = vmatmul.mubr.f32.gmra.mrb[0].mxu0 %v4875
        %v4943 = vpop.f32.mrb[0].mxu0
        %v4944 = vadd.f32 %v4872, %v4943
        %v4945 = vpop.f32.mrb[0].mxu0
        %4946 = vdwg.mxu0
        %v4947 = vadd.f32 %v4004, %v4944
        %vm4948 = vcmask 260096
        %v4949 = vsel %vm4948, %v4947, 0.0
        %4950 = vadd.xlane.f32.xlu0 %v4949
        %v4951 = vpop.xlane.xlu0 %4950
        %v4952 = vmul.f32 %v4951, %v3561
        %v4953 = vsub.f32 %v4947, %v4952
        %v4954 = vmul.f32 %v4953, %v4953
        %v4955 = vsel %vm4948, %v4954, 0.0
        %4956 = vadd.xlane.f32.xlu0 %v4955
        %v4957 = vpop.xlane.xlu0 %4956
        %v4958 = vmul.f32 %v4957, %v3561
        %v4959 = vadd.f32 %v4958, 1e-05
        %v4960 = vrsqrt.pop %v4959
        %v4961 = vmul.f32 %v4953, %v4960
        %v4962 = vld [vmem:[%s103] sm:$0x1]
        %v4964 = vlaneseq
        %v4965 = vshrl.u32 %v4964, 7
        %v4966 = vsub.s32 0, %v4965
        %v4967 = vrot.slane %v4962, %v4966
        %v4969 = vmul.f32 %v4961, %v4967
        %v4970 = vld [vmem:[%s101] sm:$0x1]
        %v4972 = vlaneseq
        %v4973 = vshrl.u32 %v4972, 7
        %v4974 = vsub.s32 0, %v4973
        %v4975 = vrot.slane %v4970, %v4974
        %v4977 = vadd.f32 %v4969, %v4975
        %v4978 = vld [vmem:[%s95] sm:$0xff]
        %v4979 = vld [vmem:[%s95 + $0x8] sm:$0xff]
        %v4980 = vld [vmem:[%s95 + $0x10] sm:$0xff]
        %v4981 = vld [vmem:[%s95 + $0x18] sm:$0xff]
        %v4982 = vld [vmem:[%s93] sm:$0x1]
        %v4984 = vlaneseq
        %v4985 = vshrl.u32 %v4984, 7
        %v4986 = vsub.s32 0, %v4985
        %v4987 = vrot.slane %v4982, %v4986
        %v4990 = vsel %vm2450, %v4977, 0
        %4992 = vmatprep.subr.mxu0 0.0
        %4993 = vmatpush1.msra.mxu0 %v4978
        %4994 = vmatprep.subr.mxu0 0.0
        %4995 = vmatpush1.msra.mxu0 %v4979
        %4996 = vmatprep.subr.mxu0 0.0
        %4997 = vmatpush1.msra.mxu0 %v4980
        %4998 = vmatprep.subr.mxu0 0.0
        %4999 = vmatpush1.msra.mxu0 %v4981
        %5000 = vmatprep.subr.mxu0 0.0
        %5001 = vmatpush1.msra.mxu0 0.0
        %5002 = vmatprep.subr.mxu0 0.0
        %5003 = vmatpush1.msra.mxu0 0.0
        %5004 = vmatprep.subr.mxu0 0.0
        %5005 = vmatpush1.msra.mxu0 0.0
        %5006 = vmatprep.subr.mxu0 0.0
        %5007 = vmatpush1.msra.mxu0 0.0
        %5008 = vmatprep.subr.mxu0 0.0
        %5009 = vmatpush1.msra.mxu0 0.0
        %5010 = vmatprep.subr.mxu0 0.0
        %5011 = vmatpush1.msra.mxu0 0.0
        %5012 = vmatprep.subr.mxu0 0.0
        %5013 = vmatpush1.msra.mxu0 0.0
        %5014 = vmatprep.subr.mxu0 0.0
        %5015 = vmatpush1.msra.mxu0 0.0
        %5016 = vmatprep.subr.mxu0 0.0
        %5017 = vmatpush1.msra.mxu0 0.0
        %5018 = vmatprep.subr.mxu0 0.0
        %5019 = vmatpush1.msra.mxu0 0.0
        %5020 = vmatprep.subr.mxu0 0.0
        %5021 = vmatpush1.msra.mxu0 0.0
        %5022 = vmatprep.subr.mxu0 0.0
        %5023 = vmatpush1.msra.mxu0 0.0
        %5024 = vmatprep.subr.mxu0 0.0
        %5025 = vmatpush1.msra.mxu0 0.0
        %5026 = vmatprep.subr.mxu0 0.0
        %5027 = vmatpush1.msra.mxu0 0.0
        %5028 = vmatprep.subr.mxu0 0.0
        %5029 = vmatpush1.msra.mxu0 0.0
        %5030 = vmatprep.subr.mxu0 0.0
        %5031 = vmatpush1.msra.mxu0 0.0
        %5032 = vmatprep.subr.mxu0 0.0
        %5033 = vmatpush1.msra.mxu0 0.0
        %5034 = vmatprep.subr.mxu0 0.0
        %5035 = vmatpush1.msra.mxu0 0.0
        %5036 = vmatprep.subr.mxu0 0.0
        %5037 = vmatpush1.msra.mxu0 0.0
        %5038 = vmatprep.subr.mxu0 0.0
        %5039 = vmatpush1.msra.mxu0 0.0
        %5040 = vmatprep.subr.mxu0 0.0
        %5041 = vmatpush1.msra.mxu0 0.0
        %5042 = vmatprep.subr.mxu0 0.0
        %5043 = vmatpush1.msra.mxu0 0.0
        %5044 = vmatprep.subr.mxu0 0.0
        %5045 = vmatpush1.msra.mxu0 0.0
        %5046 = vmatprep.subr.mxu0 0.0
        %5047 = vmatpush1.msra.mxu0 0.0
        %5048 = vmatprep.subr.mxu0 0.0
        %5049 = vmatpush1.msra.mxu0 0.0
        %5050 = vmatprep.subr.mxu0 0.0
        %5051 = vmatpush1.msra.mxu0 0.0
        %5052 = vmatprep.subr.mxu0 0.0
        %5053 = vmatpush1.msra.mxu0 0.0
        %5054 = vmatprep.subr.mxu0 0.0
        %5055 = vmatpush1.msra.mxu0 0.0
        %5056 = vmatprep.mubr.f32.mxu0 0.0
        %5057 = vmatmul.mubr.f32.gmra.mrb[0].mxu0 %v4990
        %v5058 = vpop.f32.mrb[0].mxu0
        %v5059 = vadd.f32 %v4987, %v5058
        %v5060 = vpop.f32.mrb[0].mxu0
        %5061 = vdwg.mxu0
        %v5062 = vmax.f32 %v5059, 0.0
        %v5063 = vld [vmem:[%s99] sm:$0xff]
        %v5064 = vld [vmem:[%s99 + $0x8] sm:$0xff]
        %v5065 = vld [vmem:[%s99 + $0x10] sm:$0xff]
        %v5066 = vld [vmem:[%s99 + $0x18] sm:$0xff]
        %v5067 = vld [vmem:[%s99 + $0x20] sm:$0xff]
        %v5068 = vld [vmem:[%s99 + $0x28] sm:$0xff]
        %v5069 = vld [vmem:[%s99 + $0x30] sm:$0xff]
        %v5070 = vld [vmem:[%s99 + $0x38] sm:$0xff]
        %v5071 = vld [vmem:[%s97] sm:$0x1]
        %v5073 = vlaneseq
        %v5074 = vshrl.u32 %v5073, 7
        %v5075 = vsub.s32 0, %v5074
        %v5076 = vrot.slane %v5071, %v5075
        %v5079 = vsel %vm3709, %v5062, 0
        %5081 = vmatprep.subr.mxu0 0.0
        %5082 = vmatpush1.msra.mxu0 %v5063
        %5083 = vmatprep.subr.mxu0 0.0
        %5084 = vmatpush1.msra.mxu0 %v5064
        %5085 = vmatprep.subr.mxu0 0.0
        %5086 = vmatpush1.msra.mxu0 %v5065
        %5087 = vmatprep.subr.mxu0 0.0
        %5088 = vmatpush1.msra.mxu0 %v5066
        %5089 = vmatprep.subr.mxu0 0.0
        %5090 = vmatpush1.msra.mxu0 %v5067
        %5091 = vmatprep.subr.mxu0 0.0
        %5092 = vmatpush1.msra.mxu0 %v5068
        %5093 = vmatprep.subr.mxu0 0.0
        %5094 = vmatpush1.msra.mxu0 %v5069
        %5095 = vmatprep.subr.mxu0 0.0
        %5096 = vmatpush1.msra.mxu0 %v5070
        %5097 = vmatprep.subr.mxu0 0.0
        %5098 = vmatpush1.msra.mxu0 0.0
        %5099 = vmatprep.subr.mxu0 0.0
        %5100 = vmatpush1.msra.mxu0 0.0
        %5101 = vmatprep.subr.mxu0 0.0
        %5102 = vmatpush1.msra.mxu0 0.0
        %5103 = vmatprep.subr.mxu0 0.0
        %5104 = vmatpush1.msra.mxu0 0.0
        %5105 = vmatprep.subr.mxu0 0.0
        %5106 = vmatpush1.msra.mxu0 0.0
        %5107 = vmatprep.subr.mxu0 0.0
        %5108 = vmatpush1.msra.mxu0 0.0
        %5109 = vmatprep.subr.mxu0 0.0
        %5110 = vmatpush1.msra.mxu0 0.0
        %5111 = vmatprep.subr.mxu0 0.0
        %5112 = vmatpush1.msra.mxu0 0.0
        %5113 = vmatprep.subr.mxu0 0.0
        %5114 = vmatpush1.msra.mxu0 0.0
        %5115 = vmatprep.subr.mxu0 0.0
        %5116 = vmatpush1.msra.mxu0 0.0
        %5117 = vmatprep.subr.mxu0 0.0
        %5118 = vmatpush1.msra.mxu0 0.0
        %5119 = vmatprep.subr.mxu0 0.0
        %5120 = vmatpush1.msra.mxu0 0.0
        %5121 = vmatprep.subr.mxu0 0.0
        %5122 = vmatpush1.msra.mxu0 0.0
        %5123 = vmatprep.subr.mxu0 0.0
        %5124 = vmatpush1.msra.mxu0 0.0
        %5125 = vmatprep.subr.mxu0 0.0
        %5126 = vmatpush1.msra.mxu0 0.0
        %5127 = vmatprep.subr.mxu0 0.0
        %5128 = vmatpush1.msra.mxu0 0.0
        %5129 = vmatprep.subr.mxu0 0.0
        %5130 = vmatpush1.msra.mxu0 0.0
        %5131 = vmatprep.subr.mxu0 0.0
        %5132 = vmatpush1.msra.mxu0 0.0
        %5133 = vmatprep.subr.mxu0 0.0
        %5134 = vmatpush1.msra.mxu0 0.0
        %5135 = vmatprep.subr.mxu0 0.0
        %5136 = vmatpush1.msra.mxu0 0.0
        %5137 = vmatprep.subr.mxu0 0.0
        %5138 = vmatpush1.msra.mxu0 0.0
        %5139 = vmatprep.subr.mxu0 0.0
        %5140 = vmatpush1.msra.mxu0 0.0
        %5141 = vmatprep.subr.mxu0 0.0
        %5142 = vmatpush1.msra.mxu0 0.0
        %5143 = vmatprep.subr.mxu0 0.0
        %5144 = vmatpush1.msra.mxu0 0.0
        %5145 = vmatprep.mubr.f32.mxu0 0.0
        %5146 = vmatmul.mubr.f32.gmra.mrb[0].mxu0 %v5079
        %v5147 = vpop.f32.mrb[0].mxu0
        %v5148 = vadd.f32 %v5076, %v5147
        %v5149 = vpop.f32.mrb[0].mxu0
        %5150 = vdwg.mxu0
        %v5151 = vadd.f32 %v4977, %v5148
        %v5152 = vsel %vm4948, %v5151, 0.0
        %5153 = vadd.xlane.f32.xlu0 %v5152
        %v5154 = vpop.xlane.xlu0 %5153
        %v5155 = vmul.f32 %v5154, %v3561
        %v5156 = vsub.f32 %v5151, %v5155
        %v5157 = vmul.f32 %v5156, %v5156
        %v5158 = vsel %vm4948, %v5157, 0.0
        %5159 = vadd.xlane.f32.xlu0 %v5158
        %v5160 = vpop.xlane.xlu0 %5159
        %v5161 = vmul.f32 %v5160, %v3561
        %v5162 = vadd.f32 %v5161, 1e-05
        %v5163 = vrsqrt.pop %v5162
        %v5164 = vmul.f32 %v5156, %v5163
        %v5165 = vld [vmem:[%s107] sm:$0x1]
        %v5167 = vlaneseq
        %v5168 = vshrl.u32 %v5167, 7
        %v5169 = vsub.s32 0, %v5168
        %v5170 = vrot.slane %v5165, %v5169
        %v5172 = vmul.f32 %v5164, %v5170
        %v5173 = vld [vmem:[%s105] sm:$0x1]
        %v5175 = vlaneseq
        %v5176 = vshrl.u32 %v5175, 7
        %v5177 = vsub.s32 0, %v5176
        %v5178 = vrot.slane %v5173, %v5177
        %v5180 = vadd.f32 %v5172, %v5178
        %v5181 = vadd.f32 %v4006, 0.0
        %v5182 = vld [vmem:[%s91] sm:$0xff]
        %v5183 = vld [vmem:[%s91 + $0x8] sm:$0xff]
        %v5184 = vld [vmem:[%s91 + $0x10] sm:$0xff]
        %v5185 = vld [vmem:[%s91 + $0x18] sm:$0xff]
        %v5186 = vld [vmem:[%s87] sm:$0x1]
        %v5188 = vlaneseq
        %v5189 = vshrl.u32 %v5188, 7
        %v5190 = vsub.s32 0, %v5189
        %v5191 = vrot.slane %v5186, %v5190
        %v5194 = vsel %vm2450, %v5181, 0
        %5196 = vmatprep.subr.mxu0 0.0
        %5197 = vmatpush1.msra.mxu0 %v5182
        %5198 = vmatprep.subr.mxu0 0.0
        %5199 = vmatpush1.msra.mxu0 %v5183
        %5200 = vmatprep.subr.mxu0 0.0
        %5201 = vmatpush1.msra.mxu0 %v5184
        %5202 = vmatprep.subr.mxu0 0.0
        %5203 = vmatpush1.msra.mxu0 %v5185
        %5204 = vmatprep.subr.mxu0 0.0
        %5205 = vmatpush1.msra.mxu0 0.0
        %5206 = vmatprep.subr.mxu0 0.0
        %5207 = vmatpush1.msra.mxu0 0.0
        %5208 = vmatprep.subr.mxu0 0.0
        %5209 = vmatpush1.msra.mxu0 0.0
        %5210 = vmatprep.subr.mxu0 0.0
        %5211 = vmatpush1.msra.mxu0 0.0
        %5212 = vmatprep.subr.mxu0 0.0
        %5213 = vmatpush1.msra.mxu0 0.0
        %5214 = vmatprep.subr.mxu0 0.0
        %5215 = vmatpush1.msra.mxu0 0.0
        %5216 = vmatprep.subr.mxu0 0.0
        %5217 = vmatpush1.msra.mxu0 0.0
        %5218 = vmatprep.subr.mxu0 0.0
        %5219 = vmatpush1.msra.mxu0 0.0
        %5220 = vmatprep.subr.mxu0 0.0
        %5221 = vmatpush1.msra.mxu0 0.0
        %5222 = vmatprep.subr.mxu0 0.0
        %5223 = vmatpush1.msra.mxu0 0.0
        %5224 = vmatprep.subr.mxu0 0.0
        %5225 = vmatpush1.msra.mxu0 0.0
        %5226 = vmatprep.subr.mxu0 0.0
        %5227 = vmatpush1.msra.mxu0 0.0
        %5228 = vmatprep.subr.mxu0 0.0
        %5229 = vmatpush1.msra.mxu0 0.0
        %5230 = vmatprep.subr.mxu0 0.0
        %5231 = vmatpush1.msra.mxu0 0.0
        %5232 = vmatprep.subr.mxu0 0.0
        %5233 = vmatpush1.msra.mxu0 0.0
        %5234 = vmatprep.subr.mxu0 0.0
        %5235 = vmatpush1.msra.mxu0 0.0
        %5236 = vmatprep.subr.mxu0 0.0
        %5237 = vmatpush1.msra.mxu0 0.0
        %5238 = vmatprep.subr.mxu0 0.0
        %5239 = vmatpush1.msra.mxu0 0.0
        %5240 = vmatprep.subr.mxu0 0.0
        %5241 = vmatpush1.msra.mxu0 0.0
        %5242 = vmatprep.subr.mxu0 0.0
        %5243 = vmatpush1.msra.mxu0 0.0
        %5244 = vmatprep.subr.mxu0 0.0
        %5245 = vmatpush1.msra.mxu0 0.0
        %5246 = vmatprep.subr.mxu0 0.0
        %5247 = vmatpush1.msra.mxu0 0.0
        %5248 = vmatprep.subr.mxu0 0.0
        %5249 = vmatpush1.msra.mxu0 0.0
        %5250 = vmatprep.subr.mxu0 0.0
        %5251 = vmatpush1.msra.mxu0 0.0
        %5252 = vmatprep.subr.mxu0 0.0
        %5253 = vmatpush1.msra.mxu0 0.0
        %5254 = vmatprep.subr.mxu0 0.0
        %5255 = vmatpush1.msra.mxu0 0.0
        %5256 = vmatprep.subr.mxu0 0.0
        %5257 = vmatpush1.msra.mxu0 0.0
        %5258 = vmatprep.subr.mxu0 0.0
        %5259 = vmatpush1.msra.mxu0 0.0
        %5260 = vmatprep.mubr.f32.mxu0 0.0
        %5261 = vmatmul.mubr.f32.gmra.mrb[0].mxu0 %v5194
        %v5262 = vpop.f32.mrb[0].mxu0
        %v5263 = vadd.f32 %v5191, %v5262
        %v5264 = vpop.f32.mrb[0].mxu0
        %5265 = vdwg.mxu0
        %5270 = vrot.lane.b32.xlu0 %v5182, 64
        %v5271 = vpop.permute.xlu0 %5270
        %5272 = vrot.lane.b32.xlu0 %v5183, 64
        %v5273 = vpop.permute.xlu0 %5272
        %5274 = vrot.lane.b32.xlu0 %v5184, 64
        %v5275 = vpop.permute.xlu0 %5274
        %5276 = vrot.lane.b32.xlu0 %v5185, 64
        %v5277 = vpop.permute.xlu0 %5276
        %5282 = vrot.lane.b32.xlu0 %v5191, 64
        %v5283 = vpop.permute.xlu0 %5282
        %v5286 = vsel %vm2450, 0.0, 0
        %5288 = vmatprep.subr.mxu0 0.0
        %5289 = vmatpush1.msra.mxu0 %v5271
        %5290 = vmatprep.subr.mxu0 0.0
        %5291 = vmatpush1.msra.mxu0 %v5273
        %5292 = vmatprep.subr.mxu0 0.0
        %5293 = vmatpush1.msra.mxu0 %v5275
        %5294 = vmatprep.subr.mxu0 0.0
        %5295 = vmatpush1.msra.mxu0 %v5277
        %5296 = vmatprep.subr.mxu0 0.0
        %5297 = vmatpush1.msra.mxu0 0.0
        %5298 = vmatprep.subr.mxu0 0.0
        %5299 = vmatpush1.msra.mxu0 0.0
        %5300 = vmatprep.subr.mxu0 0.0
        %5301 = vmatpush1.msra.mxu0 0.0
        %5302 = vmatprep.subr.mxu0 0.0
        %5303 = vmatpush1.msra.mxu0 0.0
        %5304 = vmatprep.subr.mxu0 0.0
        %5305 = vmatpush1.msra.mxu0 0.0
        %5306 = vmatprep.subr.mxu0 0.0
        %5307 = vmatpush1.msra.mxu0 0.0
        %5308 = vmatprep.subr.mxu0 0.0
        %5309 = vmatpush1.msra.mxu0 0.0
        %5310 = vmatprep.subr.mxu0 0.0
        %5311 = vmatpush1.msra.mxu0 0.0
        %5312 = vmatprep.subr.mxu0 0.0
        %5313 = vmatpush1.msra.mxu0 0.0
        %5314 = vmatprep.subr.mxu0 0.0
        %5315 = vmatpush1.msra.mxu0 0.0
        %5316 = vmatprep.subr.mxu0 0.0
        %5317 = vmatpush1.msra.mxu0 0.0
        %5318 = vmatprep.subr.mxu0 0.0
        %5319 = vmatpush1.msra.mxu0 0.0
        %5320 = vmatprep.subr.mxu0 0.0
        %5321 = vmatpush1.msra.mxu0 0.0
        %5322 = vmatprep.subr.mxu0 0.0
        %5323 = vmatpush1.msra.mxu0 0.0
        %5324 = vmatprep.subr.mxu0 0.0
        %5325 = vmatpush1.msra.mxu0 0.0
        %5326 = vmatprep.subr.mxu0 0.0
        %5327 = vmatpush1.msra.mxu0 0.0
        %5328 = vmatprep.subr.mxu0 0.0
        %5329 = vmatpush1.msra.mxu0 0.0
        %5330 = vmatprep.subr.mxu0 0.0
        %5331 = vmatpush1.msra.mxu0 0.0
        %5332 = vmatprep.subr.mxu0 0.0
        %5333 = vmatpush1.msra.mxu0 0.0
        %5334 = vmatprep.subr.mxu0 0.0
        %5335 = vmatpush1.msra.mxu0 0.0
        %5336 = vmatprep.subr.mxu0 0.0
        %5337 = vmatpush1.msra.mxu0 0.0
        %5338 = vmatprep.subr.mxu0 0.0
        %5339 = vmatpush1.msra.mxu0 0.0
        %5340 = vmatprep.subr.mxu0 0.0
        %5341 = vmatpush1.msra.mxu0 0.0
        %5342 = vmatprep.subr.mxu0 0.0
        %5343 = vmatpush1.msra.mxu0 0.0
        %5344 = vmatprep.subr.mxu0 0.0
        %5345 = vmatpush1.msra.mxu0 0.0
        %5346 = vmatprep.subr.mxu0 0.0
        %5347 = vmatpush1.msra.mxu0 0.0
        %5348 = vmatprep.subr.mxu0 0.0
        %5349 = vmatpush1.msra.mxu0 0.0
        %5350 = vmatprep.subr.mxu0 0.0
        %5351 = vmatpush1.msra.mxu0 0.0
        %5352 = vmatprep.mubr.f32.mxu0 0.0
        %5353 = vmatmul.mubr.f32.gmra.mrb[0].mxu0 %v5286
        %v5354 = vpop.f32.mrb[0].mxu0
        %v5355 = vadd.f32 %v5283, %v5354
        %v5356 = vpop.f32.mrb[0].mxu0
        %5357 = vdwg.mxu0
        %v5358 = vmul.f32 %v5263, 0.35355338
        %v5359 = vmul.f32 %v5358, %v4189
        %5361 = vrot.lane.b32.xlu0 %v5263, 96
        %v5362 = vpop.permute.xlu0 %5361
        %v5364 = vsel %vm2450, %v5359, 0
        %v5366 = vsel %vm2450, %v5362, 0
        %5368 = vmatprep.subr.mxu0 0.0
        %5369 = vmatpush1.xpose.msra.mxu0 %v5366
        %5370 = vmatprep.subr.mxu0 0.0
        %5371 = vmatpush1.xpose.msra.mxu0 0.0
        %5372 = vmatprep.subr.mxu0 0.0
        %5373 = vmatpush1.xpose.msra.mxu0 0.0
        %5374 = vmatprep.subr.mxu0 0.0
        %5375 = vmatpush1.xpose.msra.mxu0 0.0
        %5376 = vmatprep.subr.mxu0 0.0
        %5377 = vmatpush1.xpose.msra.mxu0 0.0
        %5378 = vmatprep.subr.mxu0 0.0
        %5379 = vmatpush1.xpose.msra.mxu0 0.0
        %5380 = vmatprep.subr.mxu0 0.0
        %5381 = vmatpush1.xpose.msra.mxu0 0.0
        %5382 = vmatprep.subr.mxu0 0.0
        %5383 = vmatpush1.xpose.msra.mxu0 0.0
        %5384 = vmatprep.subr.mxu0 0.0
        %5385 = vmatpush1.xpose.msra.mxu0 0.0
        %5386 = vmatprep.subr.mxu0 0.0
        %5387 = vmatpush1.xpose.msra.mxu0 0.0
        %5388 = vmatprep.subr.mxu0 0.0
        %5389 = vmatpush1.xpose.msra.mxu0 0.0
        %5390 = vmatprep.subr.mxu0 0.0
        %5391 = vmatpush1.xpose.msra.mxu0 0.0
        %5392 = vmatprep.subr.mxu0 0.0
        %5393 = vmatpush1.xpose.msra.mxu0 0.0
        %5394 = vmatprep.subr.mxu0 0.0
        %5395 = vmatpush1.xpose.msra.mxu0 0.0
        %5396 = vmatprep.subr.mxu0 0.0
        %5397 = vmatpush1.xpose.msra.mxu0 0.0
        %5398 = vmatprep.subr.mxu0 0.0
        %5399 = vmatpush1.xpose.msra.mxu0 0.0
        %5400 = vmatprep.subr.mxu0 0.0
        %5401 = vmatpush1.xpose.msra.mxu0 0.0
        %5402 = vmatprep.subr.mxu0 0.0
        %5403 = vmatpush1.xpose.msra.mxu0 0.0
        %5404 = vmatprep.subr.mxu0 0.0
        %5405 = vmatpush1.xpose.msra.mxu0 0.0
        %5406 = vmatprep.subr.mxu0 0.0
        %5407 = vmatpush1.xpose.msra.mxu0 0.0
        %5408 = vmatprep.subr.mxu0 0.0
        %5409 = vmatpush1.xpose.msra.mxu0 0.0
        %5410 = vmatprep.subr.mxu0 0.0
        %5411 = vmatpush1.xpose.msra.mxu0 0.0
        %5412 = vmatprep.subr.mxu0 0.0
        %5413 = vmatpush1.xpose.msra.mxu0 0.0
        %5414 = vmatprep.subr.mxu0 0.0
        %5415 = vmatpush1.xpose.msra.mxu0 0.0
        %5416 = vmatprep.subr.mxu0 0.0
        %5417 = vmatpush1.xpose.msra.mxu0 0.0
        %5418 = vmatprep.subr.mxu0 0.0
        %5419 = vmatpush1.xpose.msra.mxu0 0.0
        %5420 = vmatprep.subr.mxu0 0.0
        %5421 = vmatpush1.xpose.msra.mxu0 0.0
        %5422 = vmatprep.subr.mxu0 0.0
        %5423 = vmatpush1.xpose.msra.mxu0 0.0
        %5424 = vmatprep.subr.mxu0 0.0
        %5425 = vmatpush1.xpose.msra.mxu0 0.0
        %5426 = vmatprep.subr.mxu0 0.0
        %5427 = vmatpush1.xpose.msra.mxu0 0.0
        %5428 = vmatprep.subr.mxu0 0.0
        %5429 = vmatpush1.xpose.msra.mxu0 0.0
        %5430 = vmatprep.subr.mxu0 0.0
        %5431 = vmatpush1.xpose.msra.mxu0 0.0
        %5432 = vmatprep.mubr.f32.mxu0 0.0
        %5433 = vmatmul.mubr.f32.gmra.mrb[0].mxu0 %v5364
        %v5434 = vpop.f32.mrb[0].mxu0
        %v5435 = vadd.f32 0.0, %v5434
        %v5436 = vpop.f32.mrb[0].mxu0
        %5437 = vdwg.mxu0
        %v5438 = vsel %vm2369, %v5435, -inf
        %5439 = vmax.xlane.f32.xlu0 %v5438
        %v5440 = vpop.xlane.xlu0 %5439
        %v5441 = vsub.f32 %v5435, %v5440
        %v5442 = vmul.f32 %v5441, 1.442695
        %v5443 = vpow.pop %v5442
        %v5444 = vsel %vm2369, %v5443, 0.0
        %5445 = vadd.xlane.f32.xlu0 %v5444
        %v5446 = vpop.xlane.xlu0 %5445
        %v5447 = vrcp.pop %v5446
        %v5448 = vmul.f32 %v5443, %v5447
        %v5449 = vmul.f32 %v5355, %v4189
        %v5450 = vmul.f32 %v5358, %v4286
        %v5452 = vsel %vm2450, %v5450, 0
        %5454 = vmatprep.subr.mxu0 0.0
        %5455 = vmatpush1.xpose.msra.mxu0 %v5366
        %5456 = vmatprep.subr.mxu0 0.0
        %5457 = vmatpush1.xpose.msra.mxu0 0.0
        %5458 = vmatprep.subr.mxu0 0.0
        %5459 = vmatpush1.xpose.msra.mxu0 0.0
        %5460 = vmatprep.subr.mxu0 0.0
        %5461 = vmatpush1.xpose.msra.mxu0 0.0
        %5462 = vmatprep.subr.mxu0 0.0
        %5463 = vmatpush1.xpose.msra.mxu0 0.0
        %5464 = vmatprep.subr.mxu0 0.0
        %5465 = vmatpush1.xpose.msra.mxu0 0.0
        %5466 = vmatprep.subr.mxu0 0.0
        %5467 = vmatpush1.xpose.msra.mxu0 0.0
        %5468 = vmatprep.subr.mxu0 0.0
        %5469 = vmatpush1.xpose.msra.mxu0 0.0
        %5470 = vmatprep.subr.mxu0 0.0
        %5471 = vmatpush1.xpose.msra.mxu0 0.0
        %5472 = vmatprep.subr.mxu0 0.0
        %5473 = vmatpush1.xpose.msra.mxu0 0.0
        %5474 = vmatprep.subr.mxu0 0.0
        %5475 = vmatpush1.xpose.msra.mxu0 0.0
        %5476 = vmatprep.subr.mxu0 0.0
        %5477 = vmatpush1.xpose.msra.mxu0 0.0
        %5478 = vmatprep.subr.mxu0 0.0
        %5479 = vmatpush1.xpose.msra.mxu0 0.0
        %5480 = vmatprep.subr.mxu0 0.0
        %5481 = vmatpush1.xpose.msra.mxu0 0.0
        %5482 = vmatprep.subr.mxu0 0.0
        %5483 = vmatpush1.xpose.msra.mxu0 0.0
        %5484 = vmatprep.subr.mxu0 0.0
        %5485 = vmatpush1.xpose.msra.mxu0 0.0
        %5486 = vmatprep.subr.mxu0 0.0
        %5487 = vmatpush1.xpose.msra.mxu0 0.0
        %5488 = vmatprep.subr.mxu0 0.0
        %5489 = vmatpush1.xpose.msra.mxu0 0.0
        %5490 = vmatprep.subr.mxu0 0.0
        %5491 = vmatpush1.xpose.msra.mxu0 0.0
        %5492 = vmatprep.subr.mxu0 0.0
        %5493 = vmatpush1.xpose.msra.mxu0 0.0
        %5494 = vmatprep.subr.mxu0 0.0
        %5495 = vmatpush1.xpose.msra.mxu0 0.0
        %5496 = vmatprep.subr.mxu0 0.0
        %5497 = vmatpush1.xpose.msra.mxu0 0.0
        %5498 = vmatprep.subr.mxu0 0.0
        %5499 = vmatpush1.xpose.msra.mxu0 0.0
        %5500 = vmatprep.subr.mxu0 0.0
        %5501 = vmatpush1.xpose.msra.mxu0 0.0
        %5502 = vmatprep.subr.mxu0 0.0
        %5503 = vmatpush1.xpose.msra.mxu0 0.0
        %5504 = vmatprep.subr.mxu0 0.0
        %5505 = vmatpush1.xpose.msra.mxu0 0.0
        %5506 = vmatprep.subr.mxu0 0.0
        %5507 = vmatpush1.xpose.msra.mxu0 0.0
        %5508 = vmatprep.subr.mxu0 0.0
        %5509 = vmatpush1.xpose.msra.mxu0 0.0
        %5510 = vmatprep.subr.mxu0 0.0
        %5511 = vmatpush1.xpose.msra.mxu0 0.0
        %5512 = vmatprep.subr.mxu0 0.0
        %5513 = vmatpush1.xpose.msra.mxu0 0.0
        %5514 = vmatprep.subr.mxu0 0.0
        %5515 = vmatpush1.xpose.msra.mxu0 0.0
        %5516 = vmatprep.subr.mxu0 0.0
        %5517 = vmatpush1.xpose.msra.mxu0 0.0
        %5518 = vmatprep.mubr.f32.mxu0 0.0
        %5519 = vmatmul.mubr.f32.gmra.mrb[0].mxu0 %v5452
        %v5520 = vpop.f32.mrb[0].mxu0
        %v5521 = vadd.f32 0.0, %v5520
        %v5522 = vpop.f32.mrb[0].mxu0
        %5523 = vdwg.mxu0
        %v5524 = vsel %vm2369, %v5521, -inf
        %5525 = vmax.xlane.f32.xlu0 %v5524
        %v5526 = vpop.xlane.xlu0 %5525
        %v5527 = vsub.f32 %v5521, %v5526
        %v5528 = vmul.f32 %v5527, 1.442695
        %v5529 = vpow.pop %v5528
        %v5530 = vsel %vm2369, %v5529, 0.0
        %5531 = vadd.xlane.f32.xlu0 %v5530
        %v5532 = vpop.xlane.xlu0 %5531
        %v5533 = vrcp.pop %v5532
        %v5534 = vmul.f32 %v5529, %v5533
        %v5535 = vmul.f32 %v5355, %v4286
        %v5537 = vsel %vm2369, %v5534, 0
        %5539 = vmatprep.subr.mxu0 0.0
        %5540 = vmatpush1.msra.mxu0 %v5535
        %5541 = vmatprep.subr.mxu0 0.0
        %5542 = vmatpush1.msra.mxu0 0.0
        %5543 = vmatprep.subr.mxu0 0.0
        %5544 = vmatpush1.msra.mxu0 0.0
        %5545 = vmatprep.subr.mxu0 0.0
        %5546 = vmatpush1.msra.mxu0 0.0
        %5547 = vmatprep.subr.mxu0 0.0
        %5548 = vmatpush1.msra.mxu0 0.0
        %5549 = vmatprep.subr.mxu0 0.0
        %5550 = vmatpush1.msra.mxu0 0.0
        %5551 = vmatprep.subr.mxu0 0.0
        %5552 = vmatpush1.msra.mxu0 0.0
        %5553 = vmatprep.subr.mxu0 0.0
        %5554 = vmatpush1.msra.mxu0 0.0
        %5555 = vmatprep.subr.mxu0 0.0
        %5556 = vmatpush1.msra.mxu0 0.0
        %5557 = vmatprep.subr.mxu0 0.0
        %5558 = vmatpush1.msra.mxu0 0.0
        %5559 = vmatprep.subr.mxu0 0.0
        %5560 = vmatpush1.msra.mxu0 0.0
        %5561 = vmatprep.subr.mxu0 0.0
        %5562 = vmatpush1.msra.mxu0 0.0
        %5563 = vmatprep.subr.mxu0 0.0
        %5564 = vmatpush1.msra.mxu0 0.0
        %5565 = vmatprep.subr.mxu0 0.0
        %5566 = vmatpush1.msra.mxu0 0.0
        %5567 = vmatprep.subr.mxu0 0.0
        %5568 = vmatpush1.msra.mxu0 0.0
        %5569 = vmatprep.subr.mxu0 0.0
        %5570 = vmatpush1.msra.mxu0 0.0
        %5571 = vmatprep.subr.mxu0 0.0
        %5572 = vmatpush1.msra.mxu0 0.0
        %5573 = vmatprep.subr.mxu0 0.0
        %5574 = vmatpush1.msra.mxu0 0.0
        %5575 = vmatprep.subr.mxu0 0.0
        %5576 = vmatpush1.msra.mxu0 0.0
        %5577 = vmatprep.subr.mxu0 0.0
        %5578 = vmatpush1.msra.mxu0 0.0
        %5579 = vmatprep.subr.mxu0 0.0
        %5580 = vmatpush1.msra.mxu0 0.0
        %5581 = vmatprep.subr.mxu0 0.0
        %5582 = vmatpush1.msra.mxu0 0.0
        %5583 = vmatprep.subr.mxu0 0.0
        %5584 = vmatpush1.msra.mxu0 0.0
        %5585 = vmatprep.subr.mxu0 0.0
        %5586 = vmatpush1.msra.mxu0 0.0
        %5587 = vmatprep.subr.mxu0 0.0
        %5588 = vmatpush1.msra.mxu0 0.0
        %5589 = vmatprep.subr.mxu0 0.0
        %5590 = vmatpush1.msra.mxu0 0.0
        %5591 = vmatprep.subr.mxu0 0.0
        %5592 = vmatpush1.msra.mxu0 0.0
        %5593 = vmatprep.subr.mxu0 0.0
        %5594 = vmatpush1.msra.mxu0 0.0
        %5595 = vmatprep.subr.mxu0 0.0
        %5596 = vmatpush1.msra.mxu0 0.0
        %5597 = vmatprep.subr.mxu0 0.0
        %5598 = vmatpush1.msra.mxu0 0.0
        %5599 = vmatprep.subr.mxu0 0.0
        %5600 = vmatpush1.msra.mxu0 0.0
        %5601 = vmatprep.subr.mxu0 0.0
        %5602 = vmatpush1.msra.mxu0 0.0
        %5603 = vmatprep.mubr.f32.mxu0 0.0
        %5604 = vmatmul.mubr.f32.gmra.mrb[0].mxu0 %v5537
        %v5605 = vpop.f32.mrb[0].mxu0
        %v5606 = vadd.f32 0.0, %v5605
        %v5607 = vpop.f32.mrb[0].mxu0
        %5608 = vdwg.mxu0
        %v5610 = vsel %vm2369, %v5448, 0
        %5612 = vmatprep.subr.mxu0 0.0
        %5613 = vmatpush1.msra.mxu0 %v5449
        %5614 = vmatprep.subr.mxu0 0.0
        %5615 = vmatpush1.msra.mxu0 0.0
        %5616 = vmatprep.subr.mxu0 0.0
        %5617 = vmatpush1.msra.mxu0 0.0
        %5618 = vmatprep.subr.mxu0 0.0
        %5619 = vmatpush1.msra.mxu0 0.0
        %5620 = vmatprep.subr.mxu0 0.0
        %5621 = vmatpush1.msra.mxu0 0.0
        %5622 = vmatprep.subr.mxu0 0.0
        %5623 = vmatpush1.msra.mxu0 0.0
        %5624 = vmatprep.subr.mxu0 0.0
        %5625 = vmatpush1.msra.mxu0 0.0
        %5626 = vmatprep.subr.mxu0 0.0
        %5627 = vmatpush1.msra.mxu0 0.0
        %5628 = vmatprep.subr.mxu0 0.0
        %5629 = vmatpush1.msra.mxu0 0.0
        %5630 = vmatprep.subr.mxu0 0.0
        %5631 = vmatpush1.msra.mxu0 0.0
        %5632 = vmatprep.subr.mxu0 0.0
        %5633 = vmatpush1.msra.mxu0 0.0
        %5634 = vmatprep.subr.mxu0 0.0
        %5635 = vmatpush1.msra.mxu0 0.0
        %5636 = vmatprep.subr.mxu0 0.0
        %5637 = vmatpush1.msra.mxu0 0.0
        %5638 = vmatprep.subr.mxu0 0.0
        %5639 = vmatpush1.msra.mxu0 0.0
        %5640 = vmatprep.subr.mxu0 0.0
        %5641 = vmatpush1.msra.mxu0 0.0
        %5642 = vmatprep.subr.mxu0 0.0
        %5643 = vmatpush1.msra.mxu0 0.0
        %5644 = vmatprep.subr.mxu0 0.0
        %5645 = vmatpush1.msra.mxu0 0.0
        %5646 = vmatprep.subr.mxu0 0.0
        %5647 = vmatpush1.msra.mxu0 0.0
        %5648 = vmatprep.subr.mxu0 0.0
        %5649 = vmatpush1.msra.mxu0 0.0
        %5650 = vmatprep.subr.mxu0 0.0
        %5651 = vmatpush1.msra.mxu0 0.0
        %5652 = vmatprep.subr.mxu0 0.0
        %5653 = vmatpush1.msra.mxu0 0.0
        %5654 = vmatprep.subr.mxu0 0.0
        %5655 = vmatpush1.msra.mxu0 0.0
        %5656 = vmatprep.subr.mxu0 0.0
        %5657 = vmatpush1.msra.mxu0 0.0
        %5658 = vmatprep.subr.mxu0 0.0
        %5659 = vmatpush1.msra.mxu0 0.0
        %5660 = vmatprep.subr.mxu0 0.0
        %5661 = vmatpush1.msra.mxu0 0.0
        %5662 = vmatprep.subr.mxu0 0.0
        %5663 = vmatpush1.msra.mxu0 0.0
        %5664 = vmatprep.subr.mxu0 0.0
        %5665 = vmatpush1.msra.mxu0 0.0
        %5666 = vmatprep.subr.mxu0 0.0
        %5667 = vmatpush1.msra.mxu0 0.0
        %5668 = vmatprep.subr.mxu0 0.0
        %5669 = vmatpush1.msra.mxu0 0.0
        %5670 = vmatprep.subr.mxu0 0.0
        %5671 = vmatpush1.msra.mxu0 0.0
        %5672 = vmatprep.subr.mxu0 0.0
        %5673 = vmatpush1.msra.mxu0 0.0
        %5674 = vmatprep.subr.mxu0 0.0
        %5675 = vmatpush1.msra.mxu0 0.0
        %5676 = vmatprep.mubr.f32.mxu0 0.0
        %5677 = vmatmul.mubr.f32.gmra.mrb[0].mxu0 %v5610
        %v5678 = vpop.f32.mrb[0].mxu0
        %v5679 = vadd.f32 %v5606, %v5678
        %v5680 = vpop.f32.mrb[0].mxu0
        %5681 = vdwg.mxu0
        %v5682 = vmul.f32 %v5358, %v4531
        %v5684 = vsel %vm2450, %v5682, 0
        %5686 = vmatprep.subr.mxu0 0.0
        %5687 = vmatpush1.xpose.msra.mxu0 %v5366
        %5688 = vmatprep.subr.mxu0 0.0
        %5689 = vmatpush1.xpose.msra.mxu0 0.0
        %5690 = vmatprep.subr.mxu0 0.0
        %5691 = vmatpush1.xpose.msra.mxu0 0.0
        %5692 = vmatprep.subr.mxu0 0.0
        %5693 = vmatpush1.xpose.msra.mxu0 0.0
        %5694 = vmatprep.subr.mxu0 0.0
        %5695 = vmatpush1.xpose.msra.mxu0 0.0
        %5696 = vmatprep.subr.mxu0 0.0
        %5697 = vmatpush1.xpose.msra.mxu0 0.0
        %5698 = vmatprep.subr.mxu0 0.0
        %5699 = vmatpush1.xpose.msra.mxu0 0.0
        %5700 = vmatprep.subr.mxu0 0.0
        %5701 = vmatpush1.xpose.msra.mxu0 0.0
        %5702 = vmatprep.subr.mxu0 0.0
        %5703 = vmatpush1.xpose.msra.mxu0 0.0
        %5704 = vmatprep.subr.mxu0 0.0
        %5705 = vmatpush1.xpose.msra.mxu0 0.0
        %5706 = vmatprep.subr.mxu0 0.0
        %5707 = vmatpush1.xpose.msra.mxu0 0.0
        %5708 = vmatprep.subr.mxu0 0.0
        %5709 = vmatpush1.xpose.msra.mxu0 0.0
        %5710 = vmatprep.subr.mxu0 0.0
        %5711 = vmatpush1.xpose.msra.mxu0 0.0
        %5712 = vmatprep.subr.mxu0 0.0
        %5713 = vmatpush1.xpose.msra.mxu0 0.0
        %5714 = vmatprep.subr.mxu0 0.0
        %5715 = vmatpush1.xpose.msra.mxu0 0.0
        %5716 = vmatprep.subr.mxu0 0.0
        %5717 = vmatpush1.xpose.msra.mxu0 0.0
        %5718 = vmatprep.subr.mxu0 0.0
        %5719 = vmatpush1.xpose.msra.mxu0 0.0
        %5720 = vmatprep.subr.mxu0 0.0
        %5721 = vmatpush1.xpose.msra.mxu0 0.0
        %5722 = vmatprep.subr.mxu0 0.0
        %5723 = vmatpush1.xpose.msra.mxu0 0.0
        %5724 = vmatprep.subr.mxu0 0.0
        %5725 = vmatpush1.xpose.msra.mxu0 0.0
        %5726 = vmatprep.subr.mxu0 0.0
        %5727 = vmatpush1.xpose.msra.mxu0 0.0
        %5728 = vmatprep.subr.mxu0 0.0
        %5729 = vmatpush1.xpose.msra.mxu0 0.0
        %5730 = vmatprep.subr.mxu0 0.0
        %5731 = vmatpush1.xpose.msra.mxu0 0.0
        %5732 = vmatprep.subr.mxu0 0.0
        %5733 = vmatpush1.xpose.msra.mxu0 0.0
        %5734 = vmatprep.subr.mxu0 0.0
        %5735 = vmatpush1.xpose.msra.mxu0 0.0
        %5736 = vmatprep.subr.mxu0 0.0
        %5737 = vmatpush1.xpose.msra.mxu0 0.0
        %5738 = vmatprep.subr.mxu0 0.0
        %5739 = vmatpush1.xpose.msra.mxu0 0.0
        %5740 = vmatprep.subr.mxu0 0.0
        %5741 = vmatpush1.xpose.msra.mxu0 0.0
        %5742 = vmatprep.subr.mxu0 0.0
        %5743 = vmatpush1.xpose.msra.mxu0 0.0
        %5744 = vmatprep.subr.mxu0 0.0
        %5745 = vmatpush1.xpose.msra.mxu0 0.0
        %5746 = vmatprep.subr.mxu0 0.0
        %5747 = vmatpush1.xpose.msra.mxu0 0.0
        %5748 = vmatprep.subr.mxu0 0.0
        %5749 = vmatpush1.xpose.msra.mxu0 0.0
        %5750 = vmatprep.mubr.f32.mxu0 0.0
        %5751 = vmatmul.mubr.f32.gmra.mrb[0].mxu0 %v5684
        %v5752 = vpop.f32.mrb[0].mxu0
        %v5753 = vadd.f32 0.0, %v5752
        %v5754 = vpop.f32.mrb[0].mxu0
        %5755 = vdwg.mxu0
        %v5756 = vsel %vm2369, %v5753, -inf
        %5757 = vmax.xlane.f32.xlu0 %v5756
        %v5758 = vpop.xlane.xlu0 %5757
        %v5759 = vsub.f32 %v5753, %v5758
        %v5760 = vmul.f32 %v5759, 1.442695
        %v5761 = vpow.pop %v5760
        %v5762 = vsel %vm2369, %v5761, 0.0
        %5763 = vadd.xlane.f32.xlu0 %v5762
        %v5764 = vpop.xlane.xlu0 %5763
        %v5765 = vrcp.pop %v5764
        %v5766 = vmul.f32 %v5761, %v5765
        %v5767 = vmul.f32 %v5355, %v4531
        %v5769 = vsel %vm2369, %v5766, 0
        %5771 = vmatprep.subr.mxu0 0.0
        %5772 = vmatpush1.msra.mxu0 %v5767
        %5773 = vmatprep.subr.mxu0 0.0
        %5774 = vmatpush1.msra.mxu0 0.0
        %5775 = vmatprep.subr.mxu0 0.0
        %5776 = vmatpush1.msra.mxu0 0.0
        %5777 = vmatprep.subr.mxu0 0.0
        %5778 = vmatpush1.msra.mxu0 0.0
        %5779 = vmatprep.subr.mxu0 0.0
        %5780 = vmatpush1.msra.mxu0 0.0
        %5781 = vmatprep.subr.mxu0 0.0
        %5782 = vmatpush1.msra.mxu0 0.0
        %5783 = vmatprep.subr.mxu0 0.0
        %5784 = vmatpush1.msra.mxu0 0.0
        %5785 = vmatprep.subr.mxu0 0.0
        %5786 = vmatpush1.msra.mxu0 0.0
        %5787 = vmatprep.subr.mxu0 0.0
        %5788 = vmatpush1.msra.mxu0 0.0
        %5789 = vmatprep.subr.mxu0 0.0
        %5790 = vmatpush1.msra.mxu0 0.0
        %5791 = vmatprep.subr.mxu0 0.0
        %5792 = vmatpush1.msra.mxu0 0.0
        %5793 = vmatprep.subr.mxu0 0.0
        %5794 = vmatpush1.msra.mxu0 0.0
        %5795 = vmatprep.subr.mxu0 0.0
        %5796 = vmatpush1.msra.mxu0 0.0
        %5797 = vmatprep.subr.mxu0 0.0
        %5798 = vmatpush1.msra.mxu0 0.0
        %5799 = vmatprep.subr.mxu0 0.0
        %5800 = vmatpush1.msra.mxu0 0.0
        %5801 = vmatprep.subr.mxu0 0.0
        %5802 = vmatpush1.msra.mxu0 0.0
        %5803 = vmatprep.subr.mxu0 0.0
        %5804 = vmatpush1.msra.mxu0 0.0
        %5805 = vmatprep.subr.mxu0 0.0
        %5806 = vmatpush1.msra.mxu0 0.0
        %5807 = vmatprep.subr.mxu0 0.0
        %5808 = vmatpush1.msra.mxu0 0.0
        %5809 = vmatprep.subr.mxu0 0.0
        %5810 = vmatpush1.msra.mxu0 0.0
        %5811 = vmatprep.subr.mxu0 0.0
        %5812 = vmatpush1.msra.mxu0 0.0
        %5813 = vmatprep.subr.mxu0 0.0
        %5814 = vmatpush1.msra.mxu0 0.0
        %5815 = vmatprep.subr.mxu0 0.0
        %5816 = vmatpush1.msra.mxu0 0.0
        %5817 = vmatprep.subr.mxu0 0.0
        %5818 = vmatpush1.msra.mxu0 0.0
        %5819 = vmatprep.subr.mxu0 0.0
        %5820 = vmatpush1.msra.mxu0 0.0
        %5821 = vmatprep.subr.mxu0 0.0
        %5822 = vmatpush1.msra.mxu0 0.0
        %5823 = vmatprep.subr.mxu0 0.0
        %5824 = vmatpush1.msra.mxu0 0.0
        %5825 = vmatprep.subr.mxu0 0.0
        %5826 = vmatpush1.msra.mxu0 0.0
        %5827 = vmatprep.subr.mxu0 0.0
        %5828 = vmatpush1.msra.mxu0 0.0
        %5829 = vmatprep.subr.mxu0 0.0
        %5830 = vmatpush1.msra.mxu0 0.0
        %5831 = vmatprep.subr.mxu0 0.0
        %5832 = vmatpush1.msra.mxu0 0.0
        %5833 = vmatprep.subr.mxu0 0.0
        %5834 = vmatpush1.msra.mxu0 0.0
        %5835 = vmatprep.mubr.f32.mxu0 0.0
        %5836 = vmatmul.mubr.f32.gmra.mrb[0].mxu0 %v5769
        %v5837 = vpop.f32.mrb[0].mxu0
        %v5838 = vadd.f32 0.0, %v5837
        %v5839 = vpop.f32.mrb[0].mxu0
        %5840 = vdwg.mxu0
        %v5841 = vadd.f32 %v5679, %v5838
        %v5842 = vmul.f32 %v5358, %v4699
        %v5844 = vsel %vm2450, %v5842, 0
        %5846 = vmatprep.subr.mxu0 0.0
        %5847 = vmatpush1.xpose.msra.mxu0 %v5366
        %5848 = vmatprep.subr.mxu0 0.0
        %5849 = vmatpush1.xpose.msra.mxu0 0.0
        %5850 = vmatprep.subr.mxu0 0.0
        %5851 = vmatpush1.xpose.msra.mxu0 0.0
        %5852 = vmatprep.subr.mxu0 0.0
        %5853 = vmatpush1.xpose.msra.mxu0 0.0
        %5854 = vmatprep.subr.mxu0 0.0
        %5855 = vmatpush1.xpose.msra.mxu0 0.0
        %5856 = vmatprep.subr.mxu0 0.0
        %5857 = vmatpush1.xpose.msra.mxu0 0.0
        %5858 = vmatprep.subr.mxu0 0.0
        %5859 = vmatpush1.xpose.msra.mxu0 0.0
        %5860 = vmatprep.subr.mxu0 0.0
        %5861 = vmatpush1.xpose.msra.mxu0 0.0
        %5862 = vmatprep.subr.mxu0 0.0
        %5863 = vmatpush1.xpose.msra.mxu0 0.0
        %5864 = vmatprep.subr.mxu0 0.0
        %5865 = vmatpush1.xpose.msra.mxu0 0.0
        %5866 = vmatprep.subr.mxu0 0.0
        %5867 = vmatpush1.xpose.msra.mxu0 0.0
        %5868 = vmatprep.subr.mxu0 0.0
        %5869 = vmatpush1.xpose.msra.mxu0 0.0
        %5870 = vmatprep.subr.mxu0 0.0
        %5871 = vmatpush1.xpose.msra.mxu0 0.0
        %5872 = vmatprep.subr.mxu0 0.0
        %5873 = vmatpush1.xpose.msra.mxu0 0.0
        %5874 = vmatprep.subr.mxu0 0.0
        %5875 = vmatpush1.xpose.msra.mxu0 0.0
        %5876 = vmatprep.subr.mxu0 0.0
        %5877 = vmatpush1.xpose.msra.mxu0 0.0
        %5878 = vmatprep.subr.mxu0 0.0
        %5879 = vmatpush1.xpose.msra.mxu0 0.0
        %5880 = vmatprep.subr.mxu0 0.0
        %5881 = vmatpush1.xpose.msra.mxu0 0.0
        %5882 = vmatprep.subr.mxu0 0.0
        %5883 = vmatpush1.xpose.msra.mxu0 0.0
        %5884 = vmatprep.subr.mxu0 0.0
        %5885 = vmatpush1.xpose.msra.mxu0 0.0
        %5886 = vmatprep.subr.mxu0 0.0
        %5887 = vmatpush1.xpose.msra.mxu0 0.0
        %5888 = vmatprep.subr.mxu0 0.0
        %5889 = vmatpush1.xpose.msra.mxu0 0.0
        %5890 = vmatprep.subr.mxu0 0.0
        %5891 = vmatpush1.xpose.msra.mxu0 0.0
        %5892 = vmatprep.subr.mxu0 0.0
        %5893 = vmatpush1.xpose.msra.mxu0 0.0
        %5894 = vmatprep.subr.mxu0 0.0
        %5895 = vmatpush1.xpose.msra.mxu0 0.0
        %5896 = vmatprep.subr.mxu0 0.0
        %5897 = vmatpush1.xpose.msra.mxu0 0.0
        %5898 = vmatprep.subr.mxu0 0.0
        %5899 = vmatpush1.xpose.msra.mxu0 0.0
        %5900 = vmatprep.subr.mxu0 0.0
        %5901 = vmatpush1.xpose.msra.mxu0 0.0
        %5902 = vmatprep.subr.mxu0 0.0
        %5903 = vmatpush1.xpose.msra.mxu0 0.0
        %5904 = vmatprep.subr.mxu0 0.0
        %5905 = vmatpush1.xpose.msra.mxu0 0.0
        %5906 = vmatprep.subr.mxu0 0.0
        %5907 = vmatpush1.xpose.msra.mxu0 0.0
        %5908 = vmatprep.subr.mxu0 0.0
        %5909 = vmatpush1.xpose.msra.mxu0 0.0
        %5910 = vmatprep.mubr.f32.mxu0 0.0
        %5911 = vmatmul.mubr.f32.gmra.mrb[0].mxu0 %v5844
        %v5912 = vpop.f32.mrb[0].mxu0
        %v5913 = vadd.f32 0.0, %v5912
        %v5914 = vpop.f32.mrb[0].mxu0
        %5915 = vdwg.mxu0
        %v5916 = vsel %vm2369, %v5913, -inf
        %5917 = vmax.xlane.f32.xlu0 %v5916
        %v5918 = vpop.xlane.xlu0 %5917
        %v5919 = vsub.f32 %v5913, %v5918
        %v5920 = vmul.f32 %v5919, 1.442695
        %v5921 = vpow.pop %v5920
        %v5922 = vsel %vm2369, %v5921, 0.0
        %5923 = vadd.xlane.f32.xlu0 %v5922
        %v5924 = vpop.xlane.xlu0 %5923
        %v5925 = vrcp.pop %v5924
        %v5926 = vmul.f32 %v5921, %v5925
        %v5927 = vmul.f32 %v5355, %v4699
        %v5929 = vsel %vm2369, %v5926, 0
        %5931 = vmatprep.subr.mxu0 0.0
        %5932 = vmatpush1.msra.mxu0 %v5927
        %5933 = vmatprep.subr.mxu0 0.0
        %5934 = vmatpush1.msra.mxu0 0.0
        %5935 = vmatprep.subr.mxu0 0.0
        %5936 = vmatpush1.msra.mxu0 0.0
        %5937 = vmatprep.subr.mxu0 0.0
        %5938 = vmatpush1.msra.mxu0 0.0
        %5939 = vmatprep.subr.mxu0 0.0
        %5940 = vmatpush1.msra.mxu0 0.0
        %5941 = vmatprep.subr.mxu0 0.0
        %5942 = vmatpush1.msra.mxu0 0.0
        %5943 = vmatprep.subr.mxu0 0.0
        %5944 = vmatpush1.msra.mxu0 0.0
        %5945 = vmatprep.subr.mxu0 0.0
        %5946 = vmatpush1.msra.mxu0 0.0
        %5947 = vmatprep.subr.mxu0 0.0
        %5948 = vmatpush1.msra.mxu0 0.0
        %5949 = vmatprep.subr.mxu0 0.0
        %5950 = vmatpush1.msra.mxu0 0.0
        %5951 = vmatprep.subr.mxu0 0.0
        %5952 = vmatpush1.msra.mxu0 0.0
        %5953 = vmatprep.subr.mxu0 0.0
        %5954 = vmatpush1.msra.mxu0 0.0
        %5955 = vmatprep.subr.mxu0 0.0
        %5956 = vmatpush1.msra.mxu0 0.0
        %5957 = vmatprep.subr.mxu0 0.0
        %5958 = vmatpush1.msra.mxu0 0.0
        %5959 = vmatprep.subr.mxu0 0.0
        %5960 = vmatpush1.msra.mxu0 0.0
        %5961 = vmatprep.subr.mxu0 0.0
        %5962 = vmatpush1.msra.mxu0 0.0
        %5963 = vmatprep.subr.mxu0 0.0
        %5964 = vmatpush1.msra.mxu0 0.0
        %5965 = vmatprep.subr.mxu0 0.0
        %5966 = vmatpush1.msra.mxu0 0.0
        %5967 = vmatprep.subr.mxu0 0.0
        %5968 = vmatpush1.msra.mxu0 0.0
        %5969 = vmatprep.subr.mxu0 0.0
        %5970 = vmatpush1.msra.mxu0 0.0
        %5971 = vmatprep.subr.mxu0 0.0
        %5972 = vmatpush1.msra.mxu0 0.0
        %5973 = vmatprep.subr.mxu0 0.0
        %5974 = vmatpush1.msra.mxu0 0.0
        %5975 = vmatprep.subr.mxu0 0.0
        %5976 = vmatpush1.msra.mxu0 0.0
        %5977 = vmatprep.subr.mxu0 0.0
        %5978 = vmatpush1.msra.mxu0 0.0
        %5979 = vmatprep.subr.mxu0 0.0
        %5980 = vmatpush1.msra.mxu0 0.0
        %5981 = vmatprep.subr.mxu0 0.0
        %5982 = vmatpush1.msra.mxu0 0.0
        %5983 = vmatprep.subr.mxu0 0.0
        %5984 = vmatpush1.msra.mxu0 0.0
        %5985 = vmatprep.subr.mxu0 0.0
        %5986 = vmatpush1.msra.mxu0 0.0
        %5987 = vmatprep.subr.mxu0 0.0
        %5988 = vmatpush1.msra.mxu0 0.0
        %5989 = vmatprep.subr.mxu0 0.0
        %5990 = vmatpush1.msra.mxu0 0.0
        %5991 = vmatprep.subr.mxu0 0.0
        %5992 = vmatpush1.msra.mxu0 0.0
        %5993 = vmatprep.subr.mxu0 0.0
        %5994 = vmatpush1.msra.mxu0 0.0
        %5995 = vmatprep.mubr.f32.mxu0 0.0
        %5996 = vmatmul.mubr.f32.gmra.mrb[0].mxu0 %v5929
        %v5997 = vpop.f32.mrb[0].mxu0
        %v5998 = vadd.f32 0.0, %v5997
        %v5999 = vpop.f32.mrb[0].mxu0
        %6000 = vdwg.mxu0
        %v6001 = vadd.f32 %v5841, %v5998
        %v6002 = vld [vmem:[%s89] sm:$0xff]
        %v6003 = vld [vmem:[%s89 + $0x8] sm:$0xff]
        %v6004 = vld [vmem:[%s89 + $0x10] sm:$0xff]
        %v6005 = vld [vmem:[%s89 + $0x18] sm:$0xff]
        %v6006 = vld [vmem:[%s85] sm:$0x1]
        %v6008 = vlaneseq
        %v6009 = vshrl.u32 %v6008, 7
        %v6010 = vsub.s32 0, %v6009
        %v6011 = vrot.slane %v6006, %v6010
        %v6014 = vsel %vm2450, %v6001, 0
        %6016 = vmatprep.subr.mxu0 0.0
        %6017 = vmatpush1.msra.mxu0 %v6002
        %6018 = vmatprep.subr.mxu0 0.0
        %6019 = vmatpush1.msra.mxu0 %v6003
        %6020 = vmatprep.subr.mxu0 0.0
        %6021 = vmatpush1.msra.mxu0 %v6004
        %6022 = vmatprep.subr.mxu0 0.0
        %6023 = vmatpush1.msra.mxu0 %v6005
        %6024 = vmatprep.subr.mxu0 0.0
        %6025 = vmatpush1.msra.mxu0 0.0
        %6026 = vmatprep.subr.mxu0 0.0
        %6027 = vmatpush1.msra.mxu0 0.0
        %6028 = vmatprep.subr.mxu0 0.0
        %6029 = vmatpush1.msra.mxu0 0.0
        %6030 = vmatprep.subr.mxu0 0.0
        %6031 = vmatpush1.msra.mxu0 0.0
        %6032 = vmatprep.subr.mxu0 0.0
        %6033 = vmatpush1.msra.mxu0 0.0
        %6034 = vmatprep.subr.mxu0 0.0
        %6035 = vmatpush1.msra.mxu0 0.0
        %6036 = vmatprep.subr.mxu0 0.0
        %6037 = vmatpush1.msra.mxu0 0.0
        %6038 = vmatprep.subr.mxu0 0.0
        %6039 = vmatpush1.msra.mxu0 0.0
        %6040 = vmatprep.subr.mxu0 0.0
        %6041 = vmatpush1.msra.mxu0 0.0
        %6042 = vmatprep.subr.mxu0 0.0
        %6043 = vmatpush1.msra.mxu0 0.0
        %6044 = vmatprep.subr.mxu0 0.0
        %6045 = vmatpush1.msra.mxu0 0.0
        %6046 = vmatprep.subr.mxu0 0.0
        %6047 = vmatpush1.msra.mxu0 0.0
        %6048 = vmatprep.subr.mxu0 0.0
        %6049 = vmatpush1.msra.mxu0 0.0
        %6050 = vmatprep.subr.mxu0 0.0
        %6051 = vmatpush1.msra.mxu0 0.0
        %6052 = vmatprep.subr.mxu0 0.0
        %6053 = vmatpush1.msra.mxu0 0.0
        %6054 = vmatprep.subr.mxu0 0.0
        %6055 = vmatpush1.msra.mxu0 0.0
        %6056 = vmatprep.subr.mxu0 0.0
        %6057 = vmatpush1.msra.mxu0 0.0
        %6058 = vmatprep.subr.mxu0 0.0
        %6059 = vmatpush1.msra.mxu0 0.0
        %6060 = vmatprep.subr.mxu0 0.0
        %6061 = vmatpush1.msra.mxu0 0.0
        %6062 = vmatprep.subr.mxu0 0.0
        %6063 = vmatpush1.msra.mxu0 0.0
        %6064 = vmatprep.subr.mxu0 0.0
        %6065 = vmatpush1.msra.mxu0 0.0
        %6066 = vmatprep.subr.mxu0 0.0
        %6067 = vmatpush1.msra.mxu0 0.0
        %6068 = vmatprep.subr.mxu0 0.0
        %6069 = vmatpush1.msra.mxu0 0.0
        %6070 = vmatprep.subr.mxu0 0.0
        %6071 = vmatpush1.msra.mxu0 0.0
        %6072 = vmatprep.subr.mxu0 0.0
        %6073 = vmatpush1.msra.mxu0 0.0
        %6074 = vmatprep.subr.mxu0 0.0
        %6075 = vmatpush1.msra.mxu0 0.0
        %6076 = vmatprep.subr.mxu0 0.0
        %6077 = vmatpush1.msra.mxu0 0.0
        %6078 = vmatprep.subr.mxu0 0.0
        %6079 = vmatpush1.msra.mxu0 0.0
        %6080 = vmatprep.mubr.f32.mxu0 0.0
        %6081 = vmatmul.mubr.f32.gmra.mrb[0].mxu0 %v6014
        %v6082 = vpop.f32.mrb[0].mxu0
        %v6083 = vadd.f32 %v6011, %v6082
        %v6084 = vpop.f32.mrb[0].mxu0
        %6085 = vdwg.mxu0
        %v6086 = vadd.f32 %v6083, 0.0
        %v6087 = vsel %vm2450, %v6086, 0.0
        %6088 = vadd.xlane.f32.xlu0 %v6087
        %v6089 = vpop.xlane.xlu0 %6088
        %v6090 = vmul.f32 %v6089, %v3561
        %v6091 = vsub.f32 %v6086, %v6090
        %v6092 = vmul.f32 %v6091, %v6091
        %v6093 = vsel %vm2450, %v6092, 0.0
        %6094 = vadd.xlane.f32.xlu0 %v6093
        %v6095 = vpop.xlane.xlu0 %6094
        %v6096 = vmul.f32 %v6095, %v3561
        %v6097 = vadd.f32 %v6096, 1e-05
        %v6098 = vrsqrt.pop %v6097
        %v6099 = vmul.f32 %v6091, %v6098
        %v6100 = vld [vmem:[%s75] sm:$0x1]
        %v6102 = vlaneseq
        %v6103 = vshrl.u32 %v6102, 7
        %v6104 = vsub.s32 0, %v6103
        %v6105 = vrot.slane %v6100, %v6104
        %v6107 = vmul.f32 %v6099, %v6105
        %v6108 = vld [vmem:[%s73] sm:$0x1]
        %v6110 = vlaneseq
        %v6111 = vshrl.u32 %v6110, 7
        %v6112 = vsub.s32 0, %v6111
        %v6113 = vrot.slane %v6108, %v6112
        %v6115 = vadd.f32 %v6107, %v6113
        %v6116 = vadd.f32 %v6115, %v4006
        %v6117 = vadd.f32 %v5180, %v4005
        %v6118 = vld [vmem:[%s63] sm:$0xff]
        %v6119 = vld [vmem:[%s63 + $0x8] sm:$0xff]
        %v6120 = vld [vmem:[%s63 + $0x10] sm:$0xff]
        %v6121 = vld [vmem:[%s63 + $0x18] sm:$0xff]
        %v6122 = vld [vmem:[#allocation35] sm:$0x1]
        %v6124 = vlaneseq
        %v6125 = vshrl.u32 %v6124, 7
        %v6126 = vsub.s32 0, %v6125
        %v6127 = vrot.slane %v6122, %v6126
        %v6130 = vsel %vm2450, %v6116, 0
        %6132 = vmatprep.subr.mxu0 0.0
        %6133 = vmatpush1.msra.mxu0 %v6118
        %6134 = vmatprep.subr.mxu0 0.0
        %6135 = vmatpush1.msra.mxu0 %v6119
        %6136 = vmatprep.subr.mxu0 0.0
        %6137 = vmatpush1.msra.mxu0 %v6120
        %6138 = vmatprep.subr.mxu0 0.0
        %6139 = vmatpush1.msra.mxu0 %v6121
        %6140 = vmatprep.subr.mxu0 0.0
        %6141 = vmatpush1.msra.mxu0 0.0
        %6142 = vmatprep.subr.mxu0 0.0
        %6143 = vmatpush1.msra.mxu0 0.0
        %6144 = vmatprep.subr.mxu0 0.0
        %6145 = vmatpush1.msra.mxu0 0.0
        %6146 = vmatprep.subr.mxu0 0.0
        %6147 = vmatpush1.msra.mxu0 0.0
        %6148 = vmatprep.subr.mxu0 0.0
        %6149 = vmatpush1.msra.mxu0 0.0
        %6150 = vmatprep.subr.mxu0 0.0
        %6151 = vmatpush1.msra.mxu0 0.0
        %6152 = vmatprep.subr.mxu0 0.0
        %6153 = vmatpush1.msra.mxu0 0.0
        %6154 = vmatprep.subr.mxu0 0.0
        %6155 = vmatpush1.msra.mxu0 0.0
        %6156 = vmatprep.subr.mxu0 0.0
        %6157 = vmatpush1.msra.mxu0 0.0
        %6158 = vmatprep.subr.mxu0 0.0
        %6159 = vmatpush1.msra.mxu0 0.0
        %6160 = vmatprep.subr.mxu0 0.0
        %6161 = vmatpush1.msra.mxu0 0.0
        %6162 = vmatprep.subr.mxu0 0.0
        %6163 = vmatpush1.msra.mxu0 0.0
        %6164 = vmatprep.subr.mxu0 0.0
        %6165 = vmatpush1.msra.mxu0 0.0
        %6166 = vmatprep.subr.mxu0 0.0
        %6167 = vmatpush1.msra.mxu0 0.0
        %6168 = vmatprep.subr.mxu0 0.0
        %6169 = vmatpush1.msra.mxu0 0.0
        %6170 = vmatprep.subr.mxu0 0.0
        %6171 = vmatpush1.msra.mxu0 0.0
        %6172 = vmatprep.subr.mxu0 0.0
        %6173 = vmatpush1.msra.mxu0 0.0
        %6174 = vmatprep.subr.mxu0 0.0
        %6175 = vmatpush1.msra.mxu0 0.0
        %6176 = vmatprep.subr.mxu0 0.0
        %6177 = vmatpush1.msra.mxu0 0.0
        %6178 = vmatprep.subr.mxu0 0.0
        %6179 = vmatpush1.msra.mxu0 0.0
        %6180 = vmatprep.subr.mxu0 0.0
        %6181 = vmatpush1.msra.mxu0 0.0
        %6182 = vmatprep.subr.mxu0 0.0
        %6183 = vmatpush1.msra.mxu0 0.0
        %6184 = vmatprep.subr.mxu0 0.0
        %6185 = vmatpush1.msra.mxu0 0.0
        %6186 = vmatprep.subr.mxu0 0.0
        %6187 = vmatpush1.msra.mxu0 0.0
        %6188 = vmatprep.subr.mxu0 0.0
        %6189 = vmatpush1.msra.mxu0 0.0
        %6190 = vmatprep.subr.mxu0 0.0
        %6191 = vmatpush1.msra.mxu0 0.0
        %6192 = vmatprep.subr.mxu0 0.0
        %6193 = vmatpush1.msra.mxu0 0.0
        %6194 = vmatprep.subr.mxu0 0.0
        %6195 = vmatpush1.msra.mxu0 0.0
        %6196 = vmatprep.mubr.f32.mxu0 0.0
        %6197 = vmatmul.mubr.f32.gmra.mrb[0].mxu0 %v6130
        %v6198 = vpop.f32.mrb[0].mxu0
        %v6199 = vadd.f32 %v6127, %v6198
        %v6200 = vpop.f32.mrb[0].mxu0
        %6201 = vdwg.mxu0
        %6206 = vrot.lane.b32.xlu0 %v6118, 96
        %v6207 = vpop.permute.xlu0 %6206
        %6208 = vrot.lane.b32.xlu0 %v6119, 96
        %v6209 = vpop.permute.xlu0 %6208
        %6210 = vrot.lane.b32.xlu0 %v6120, 96
        %v6211 = vpop.permute.xlu0 %6210
        %6212 = vrot.lane.b32.xlu0 %v6121, 96
        %v6213 = vpop.permute.xlu0 %6212
        %6218 = vrot.lane.b32.xlu0 %v6127, 96
        %v6219 = vpop.permute.xlu0 %6218
        %v6222 = vsel %vm2450, %v6117, 0
        %6224 = vmatprep.subr.mxu0 0.0
        %6225 = vmatpush1.msra.mxu0 %v6207
        %6226 = vmatprep.subr.mxu0 0.0
        %6227 = vmatpush1.msra.mxu0 %v6209
        %6228 = vmatprep.subr.mxu0 0.0
        %6229 = vmatpush1.msra.mxu0 %v6211
        %6230 = vmatprep.subr.mxu0 0.0
        %6231 = vmatpush1.msra.mxu0 %v6213
        %6232 = vmatprep.subr.mxu0 0.0
        %6233 = vmatpush1.msra.mxu0 0.0
        %6234 = vmatprep.subr.mxu0 0.0
        %6235 = vmatpush1.msra.mxu0 0.0
        %6236 = vmatprep.subr.mxu0 0.0
        %6237 = vmatpush1.msra.mxu0 0.0
        %6238 = vmatprep.subr.mxu0 0.0
        %6239 = vmatpush1.msra.mxu0 0.0
        %6240 = vmatprep.subr.mxu0 0.0
        %6241 = vmatpush1.msra.mxu0 0.0
        %6242 = vmatprep.subr.mxu0 0.0
        %6243 = vmatpush1.msra.mxu0 0.0
        %6244 = vmatprep.subr.mxu0 0.0
        %6245 = vmatpush1.msra.mxu0 0.0
        %6246 = vmatprep.subr.mxu0 0.0
        %6247 = vmatpush1.msra.mxu0 0.0
        %6248 = vmatprep.subr.mxu0 0.0
        %6249 = vmatpush1.msra.mxu0 0.0
        %6250 = vmatprep.subr.mxu0 0.0
        %6251 = vmatpush1.msra.mxu0 0.0
        %6252 = vmatprep.subr.mxu0 0.0
        %6253 = vmatpush1.msra.mxu0 0.0
        %6254 = vmatprep.subr.mxu0 0.0
        %6255 = vmatpush1.msra.mxu0 0.0
        %6256 = vmatprep.subr.mxu0 0.0
        %6257 = vmatpush1.msra.mxu0 0.0
        %6258 = vmatprep.subr.mxu0 0.0
        %6259 = vmatpush1.msra.mxu0 0.0
        %6260 = vmatprep.subr.mxu0 0.0
        %6261 = vmatpush1.msra.mxu0 0.0
        %6262 = vmatprep.subr.mxu0 0.0
        %6263 = vmatpush1.msra.mxu0 0.0
        %6264 = vmatprep.subr.mxu0 0.0
        %6265 = vmatpush1.msra.mxu0 0.0
        %6266 = vmatprep.subr.mxu0 0.0
        %6267 = vmatpush1.msra.mxu0 0.0
        %6268 = vmatprep.subr.mxu0 0.0
        %6269 = vmatpush1.msra.mxu0 0.0
        %6270 = vmatprep.subr.mxu0 0.0
        %6271 = vmatpush1.msra.mxu0 0.0
        %6272 = vmatprep.subr.mxu0 0.0
        %6273 = vmatpush1.msra.mxu0 0.0
        %6274 = vmatprep.subr.mxu0 0.0
        %6275 = vmatpush1.msra.mxu0 0.0
        %6276 = vmatprep.subr.mxu0 0.0
        %6277 = vmatpush1.msra.mxu0 0.0
        %6278 = vmatprep.subr.mxu0 0.0
        %6279 = vmatpush1.msra.mxu0 0.0
        %6280 = vmatprep.subr.mxu0 0.0
        %6281 = vmatpush1.msra.mxu0 0.0
        %6282 = vmatprep.subr.mxu0 0.0
        %6283 = vmatpush1.msra.mxu0 0.0
        %6284 = vmatprep.subr.mxu0 0.0
        %6285 = vmatpush1.msra.mxu0 0.0
        %6286 = vmatprep.subr.mxu0 0.0
        %6287 = vmatpush1.msra.mxu0 0.0
        %6288 = vmatprep.mubr.f32.mxu0 0.0
        %6289 = vmatmul.mubr.f32.gmra.mrb[0].mxu0 %v6222
        %v6290 = vpop.f32.mrb[0].mxu0
        %v6291 = vadd.f32 %v6219, %v6290
        %v6292 = vpop.f32.mrb[0].mxu0
        %6293 = vdwg.mxu0
        %6294 = vrot.lane.b32.xlu0 %v6118, 64
        %v6295 = vpop.permute.xlu0 %6294
        %6296 = vrot.lane.b32.xlu0 %v6119, 64
        %v6297 = vpop.permute.xlu0 %6296
        %6298 = vrot.lane.b32.xlu0 %v6120, 64
        %v6299 = vpop.permute.xlu0 %6298
        %6300 = vrot.lane.b32.xlu0 %v6121, 64
        %v6301 = vpop.permute.xlu0 %6300
        %6306 = vrot.lane.b32.xlu0 %v6127, 64
        %v6307 = vpop.permute.xlu0 %6306
        %v6310 = vsel %vm2450, %v5180, 0
        %6312 = vmatprep.subr.mxu0 0.0
        %6313 = vmatpush1.msra.mxu0 %v6295
        %6314 = vmatprep.subr.mxu0 0.0
        %6315 = vmatpush1.msra.mxu0 %v6297
        %6316 = vmatprep.subr.mxu0 0.0
        %6317 = vmatpush1.msra.mxu0 %v6299
        %6318 = vmatprep.subr.mxu0 0.0
        %6319 = vmatpush1.msra.mxu0 %v6301
        %6320 = vmatprep.subr.mxu0 0.0
        %6321 = vmatpush1.msra.mxu0 0.0
        %6322 = vmatprep.subr.mxu0 0.0
        %6323 = vmatpush1.msra.mxu0 0.0
        %6324 = vmatprep.subr.mxu0 0.0
        %6325 = vmatpush1.msra.mxu0 0.0
        %6326 = vmatprep.subr.mxu0 0.0
        %6327 = vmatpush1.msra.mxu0 0.0
        %6328 = vmatprep.subr.mxu0 0.0
        %6329 = vmatpush1.msra.mxu0 0.0
        %6330 = vmatprep.subr.mxu0 0.0
        %6331 = vmatpush1.msra.mxu0 0.0
        %6332 = vmatprep.subr.mxu0 0.0
        %6333 = vmatpush1.msra.mxu0 0.0
        %6334 = vmatprep.subr.mxu0 0.0
        %6335 = vmatpush1.msra.mxu0 0.0
        %6336 = vmatprep.subr.mxu0 0.0
        %6337 = vmatpush1.msra.mxu0 0.0
        %6338 = vmatprep.subr.mxu0 0.0
        %6339 = vmatpush1.msra.mxu0 0.0
        %6340 = vmatprep.subr.mxu0 0.0
        %6341 = vmatpush1.msra.mxu0 0.0
        %6342 = vmatprep.subr.mxu0 0.0
        %6343 = vmatpush1.msra.mxu0 0.0
        %6344 = vmatprep.subr.mxu0 0.0
        %6345 = vmatpush1.msra.mxu0 0.0
        %6346 = vmatprep.subr.mxu0 0.0
        %6347 = vmatpush1.msra.mxu0 0.0
        %6348 = vmatprep.subr.mxu0 0.0
        %6349 = vmatpush1.msra.mxu0 0.0
        %6350 = vmatprep.subr.mxu0 0.0
        %6351 = vmatpush1.msra.mxu0 0.0
        %6352 = vmatprep.subr.mxu0 0.0
        %6353 = vmatpush1.msra.mxu0 0.0
        %6354 = vmatprep.subr.mxu0 0.0
        %6355 = vmatpush1.msra.mxu0 0.0
        %6356 = vmatprep.subr.mxu0 0.0
        %6357 = vmatpush1.msra.mxu0 0.0
        %6358 = vmatprep.subr.mxu0 0.0
        %6359 = vmatpush1.msra.mxu0 0.0
        %6360 = vmatprep.subr.mxu0 0.0
        %6361 = vmatpush1.msra.mxu0 0.0
        %6362 = vmatprep.subr.mxu0 0.0
        %6363 = vmatpush1.msra.mxu0 0.0
        %6364 = vmatprep.subr.mxu0 0.0
        %6365 = vmatpush1.msra.mxu0 0.0
        %6366 = vmatprep.subr.mxu0 0.0
        %6367 = vmatpush1.msra.mxu0 0.0
        %6368 = vmatprep.subr.mxu0 0.0
        %6369 = vmatpush1.msra.mxu0 0.0
        %6370 = vmatprep.subr.mxu0 0.0
        %6371 = vmatpush1.msra.mxu0 0.0
        %6372 = vmatprep.subr.mxu0 0.0
        %6373 = vmatpush1.msra.mxu0 0.0
        %6374 = vmatprep.subr.mxu0 0.0
        %6375 = vmatpush1.msra.mxu0 0.0
        %6376 = vmatprep.mubr.f32.mxu0 0.0
        %6377 = vmatmul.mubr.f32.gmra.mrb[0].mxu0 %v6310
        %v6378 = vpop.f32.mrb[0].mxu0
        %v6379 = vadd.f32 %v6307, %v6378
        %v6380 = vpop.f32.mrb[0].mxu0
        %6381 = vdwg.mxu0
        %v6382 = vmul.f32 %v6199, 0.35355338
        %v6383 = vmul.f32 %v6382, %v4189
        %v6385 = vsel %vm2450, %v6383, 0
        %v6388 = vsel %vm2450, %v6291, 0
        %6390 = vmatprep.subr.mxu0 0.0
        %6391 = vmatpush1.xpose.msra.mxu0 %v6388
        %6392 = vmatprep.subr.mxu0 0.0
        %6393 = vmatpush1.xpose.msra.mxu0 0.0
        %6394 = vmatprep.subr.mxu0 0.0
        %6395 = vmatpush1.xpose.msra.mxu0 0.0
        %6396 = vmatprep.subr.mxu0 0.0
        %6397 = vmatpush1.xpose.msra.mxu0 0.0
        %6398 = vmatprep.subr.mxu0 0.0
        %6399 = vmatpush1.xpose.msra.mxu0 0.0
        %6400 = vmatprep.subr.mxu0 0.0
        %6401 = vmatpush1.xpose.msra.mxu0 0.0
        %6402 = vmatprep.subr.mxu0 0.0
        %6403 = vmatpush1.xpose.msra.mxu0 0.0
        %6404 = vmatprep.subr.mxu0 0.0
        %6405 = vmatpush1.xpose.msra.mxu0 0.0
        %6406 = vmatprep.subr.mxu0 0.0
        %6407 = vmatpush1.xpose.msra.mxu0 0.0
        %6408 = vmatprep.subr.mxu0 0.0
        %6409 = vmatpush1.xpose.msra.mxu0 0.0
        %6410 = vmatprep.subr.mxu0 0.0
        %6411 = vmatpush1.xpose.msra.mxu0 0.0
        %6412 = vmatprep.subr.mxu0 0.0
        %6413 = vmatpush1.xpose.msra.mxu0 0.0
        %6414 = vmatprep.subr.mxu0 0.0
        %6415 = vmatpush1.xpose.msra.mxu0 0.0
        %6416 = vmatprep.subr.mxu0 0.0
        %6417 = vmatpush1.xpose.msra.mxu0 0.0
        %6418 = vmatprep.subr.mxu0 0.0
        %6419 = vmatpush1.xpose.msra.mxu0 0.0
        %6420 = vmatprep.subr.mxu0 0.0
        %6421 = vmatpush1.xpose.msra.mxu0 0.0
        %6422 = vmatprep.subr.mxu0 0.0
        %6423 = vmatpush1.xpose.msra.mxu0 0.0
        %6424 = vmatprep.subr.mxu0 0.0
        %6425 = vmatpush1.xpose.msra.mxu0 0.0
        %6426 = vmatprep.subr.mxu0 0.0
        %6427 = vmatpush1.xpose.msra.mxu0 0.0
        %6428 = vmatprep.subr.mxu0 0.0
        %6429 = vmatpush1.xpose.msra.mxu0 0.0
        %6430 = vmatprep.subr.mxu0 0.0
        %6431 = vmatpush1.xpose.msra.mxu0 0.0
        %6432 = vmatprep.subr.mxu0 0.0
        %6433 = vmatpush1.xpose.msra.mxu0 0.0
        %6434 = vmatprep.subr.mxu0 0.0
        %6435 = vmatpush1.xpose.msra.mxu0 0.0
        %6436 = vmatprep.subr.mxu0 0.0
        %6437 = vmatpush1.xpose.msra.mxu0 0.0
        %6438 = vmatprep.subr.mxu0 0.0
        %6439 = vmatpush1.xpose.msra.mxu0 0.0
        %6440 = vmatprep.subr.mxu0 0.0
        %6441 = vmatpush1.xpose.msra.mxu0 0.0
        %6442 = vmatprep.subr.mxu0 0.0
        %6443 = vmatpush1.xpose.msra.mxu0 0.0
        %6444 = vmatprep.subr.mxu0 0.0
        %6445 = vmatpush1.xpose.msra.mxu0 0.0
        %6446 = vmatprep.subr.mxu0 0.0
        %6447 = vmatpush1.xpose.msra.mxu0 0.0
        %6448 = vmatprep.subr.mxu0 0.0
        %6449 = vmatpush1.xpose.msra.mxu0 0.0
        %6450 = vmatprep.subr.mxu0 0.0
        %6451 = vmatpush1.xpose.msra.mxu0 0.0
        %6452 = vmatprep.subr.mxu0 0.0
        %6453 = vmatpush1.xpose.msra.mxu0 0.0
        %6454 = vmatprep.mubr.f32.mxu0 0.0
        %6455 = vmatmul.mubr.f32.gmra.mrb[0].mxu0 %v6385
        %v6456 = vpop.f32.mrb[0].mxu0
        %v6457 = vadd.f32 0.0, %v6456
        %v6458 = vpop.f32.mrb[0].mxu0
        %6459 = vdwg.mxu0
        %v6460 = vsel %vm4373, %v6457, -inf
        %6461 = vmax.xlane.f32.xlu0 %v6460
        %v6462 = vpop.xlane.xlu0 %6461
        %v6463 = vsub.f32 %v6457, %v6462
        %v6464 = vmul.f32 %v6463, 1.442695
        %v6465 = vpow.pop %v6464
        %v6466 = vsel %vm4373, %v6465, 0.0
        %6467 = vadd.xlane.f32.xlu0 %v6466
        %v6468 = vpop.xlane.xlu0 %6467
        %v6469 = vrcp.pop %v6468
        %v6470 = vmul.f32 %v6465, %v6469
        %v6471 = vmul.f32 %v6379, %v4189
        %v6472 = vmul.f32 %v6382, %v4286
        %v6474 = vsel %vm2450, %v6472, 0
        %6476 = vmatprep.subr.mxu0 0.0
        %6477 = vmatpush1.xpose.msra.mxu0 %v6388
        %6478 = vmatprep.subr.mxu0 0.0
        %6479 = vmatpush1.xpose.msra.mxu0 0.0
        %6480 = vmatprep.subr.mxu0 0.0
        %6481 = vmatpush1.xpose.msra.mxu0 0.0
        %6482 = vmatprep.subr.mxu0 0.0
        %6483 = vmatpush1.xpose.msra.mxu0 0.0
        %6484 = vmatprep.subr.mxu0 0.0
        %6485 = vmatpush1.xpose.msra.mxu0 0.0
        %6486 = vmatprep.subr.mxu0 0.0
        %6487 = vmatpush1.xpose.msra.mxu0 0.0
        %6488 = vmatprep.subr.mxu0 0.0
        %6489 = vmatpush1.xpose.msra.mxu0 0.0
        %6490 = vmatprep.subr.mxu0 0.0
        %6491 = vmatpush1.xpose.msra.mxu0 0.0
        %6492 = vmatprep.subr.mxu0 0.0
        %6493 = vmatpush1.xpose.msra.mxu0 0.0
        %6494 = vmatprep.subr.mxu0 0.0
        %6495 = vmatpush1.xpose.msra.mxu0 0.0
        %6496 = vmatprep.subr.mxu0 0.0
        %6497 = vmatpush1.xpose.msra.mxu0 0.0
        %6498 = vmatprep.subr.mxu0 0.0
        %6499 = vmatpush1.xpose.msra.mxu0 0.0
        %6500 = vmatprep.subr.mxu0 0.0
        %6501 = vmatpush1.xpose.msra.mxu0 0.0
        %6502 = vmatprep.subr.mxu0 0.0
        %6503 = vmatpush1.xpose.msra.mxu0 0.0
        %6504 = vmatprep.subr.mxu0 0.0
        %6505 = vmatpush1.xpose.msra.mxu0 0.0
        %6506 = vmatprep.subr.mxu0 0.0
        %6507 = vmatpush1.xpose.msra.mxu0 0.0
        %6508 = vmatprep.subr.mxu0 0.0
        %6509 = vmatpush1.xpose.msra.mxu0 0.0
        %6510 = vmatprep.subr.mxu0 0.0
        %6511 = vmatpush1.xpose.msra.mxu0 0.0
        %6512 = vmatprep.subr.mxu0 0.0
        %6513 = vmatpush1.xpose.msra.mxu0 0.0
        %6514 = vmatprep.subr.mxu0 0.0
        %6515 = vmatpush1.xpose.msra.mxu0 0.0
        %6516 = vmatprep.subr.mxu0 0.0
        %6517 = vmatpush1.xpose.msra.mxu0 0.0
        %6518 = vmatprep.subr.mxu0 0.0
        %6519 = vmatpush1.xpose.msra.mxu0 0.0
        %6520 = vmatprep.subr.mxu0 0.0
        %6521 = vmatpush1.xpose.msra.mxu0 0.0
        %6522 = vmatprep.subr.mxu0 0.0
        %6523 = vmatpush1.xpose.msra.mxu0 0.0
        %6524 = vmatprep.subr.mxu0 0.0
        %6525 = vmatpush1.xpose.msra.mxu0 0.0
        %6526 = vmatprep.subr.mxu0 0.0
        %6527 = vmatpush1.xpose.msra.mxu0 0.0
        %6528 = vmatprep.subr.mxu0 0.0
        %6529 = vmatpush1.xpose.msra.mxu0 0.0
        %6530 = vmatprep.subr.mxu0 0.0
        %6531 = vmatpush1.xpose.msra.mxu0 0.0
        %6532 = vmatprep.subr.mxu0 0.0
        %6533 = vmatpush1.xpose.msra.mxu0 0.0
        %6534 = vmatprep.subr.mxu0 0.0
        %6535 = vmatpush1.xpose.msra.mxu0 0.0
        %6536 = vmatprep.subr.mxu0 0.0
        %6537 = vmatpush1.xpose.msra.mxu0 0.0
        %6538 = vmatprep.subr.mxu0 0.0
        %6539 = vmatpush1.xpose.msra.mxu0 0.0
        %6540 = vmatprep.mubr.f32.mxu0 0.0
        %6541 = vmatmul.mubr.f32.gmra.mrb[0].mxu0 %v6474
        %v6542 = vpop.f32.mrb[0].mxu0
        %v6543 = vadd.f32 0.0, %v6542
        %v6544 = vpop.f32.mrb[0].mxu0
        %6545 = vdwg.mxu0
        %v6546 = vsel %vm4373, %v6543, -inf
        %6547 = vmax.xlane.f32.xlu0 %v6546
        %v6548 = vpop.xlane.xlu0 %6547
        %v6549 = vsub.f32 %v6543, %v6548
        %v6550 = vmul.f32 %v6549, 1.442695
        %v6551 = vpow.pop %v6550
        %v6552 = vsel %vm4373, %v6551, 0.0
        %6553 = vadd.xlane.f32.xlu0 %v6552
        %v6554 = vpop.xlane.xlu0 %6553
        %v6555 = vrcp.pop %v6554
        %v6556 = vmul.f32 %v6551, %v6555
        %v6557 = vmul.f32 %v6379, %v4286
        %v6559 = vsel %vm4373, %v6556, 0
        %v6562 = vsel %vm4377, %v6557, 0
        %6564 = vmatprep.subr.mxu0 0.0
        %6565 = vmatpush1.msra.mxu0 %v6562
        %6566 = vmatprep.subr.mxu0 0.0
        %6567 = vmatpush1.msra.mxu0 0.0
        %6568 = vmatprep.subr.mxu0 0.0
        %6569 = vmatpush1.msra.mxu0 0.0
        %6570 = vmatprep.subr.mxu0 0.0
        %6571 = vmatpush1.msra.mxu0 0.0
        %6572 = vmatprep.subr.mxu0 0.0
        %6573 = vmatpush1.msra.mxu0 0.0
        %6574 = vmatprep.subr.mxu0 0.0
        %6575 = vmatpush1.msra.mxu0 0.0
        %6576 = vmatprep.subr.mxu0 0.0
        %6577 = vmatpush1.msra.mxu0 0.0
        %6578 = vmatprep.subr.mxu0 0.0
        %6579 = vmatpush1.msra.mxu0 0.0
        %6580 = vmatprep.subr.mxu0 0.0
        %6581 = vmatpush1.msra.mxu0 0.0
        %6582 = vmatprep.subr.mxu0 0.0
        %6583 = vmatpush1.msra.mxu0 0.0
        %6584 = vmatprep.subr.mxu0 0.0
        %6585 = vmatpush1.msra.mxu0 0.0
        %6586 = vmatprep.subr.mxu0 0.0
        %6587 = vmatpush1.msra.mxu0 0.0
        %6588 = vmatprep.subr.mxu0 0.0
        %6589 = vmatpush1.msra.mxu0 0.0
        %6590 = vmatprep.subr.mxu0 0.0
        %6591 = vmatpush1.msra.mxu0 0.0
        %6592 = vmatprep.subr.mxu0 0.0
        %6593 = vmatpush1.msra.mxu0 0.0
        %6594 = vmatprep.subr.mxu0 0.0
        %6595 = vmatpush1.msra.mxu0 0.0
        %6596 = vmatprep.subr.mxu0 0.0
        %6597 = vmatpush1.msra.mxu0 0.0
        %6598 = vmatprep.subr.mxu0 0.0
        %6599 = vmatpush1.msra.mxu0 0.0
        %6600 = vmatprep.subr.mxu0 0.0
        %6601 = vmatpush1.msra.mxu0 0.0
        %6602 = vmatprep.subr.mxu0 0.0
        %6603 = vmatpush1.msra.mxu0 0.0
        %6604 = vmatprep.subr.mxu0 0.0
        %6605 = vmatpush1.msra.mxu0 0.0
        %6606 = vmatprep.subr.mxu0 0.0
        %6607 = vmatpush1.msra.mxu0 0.0
        %6608 = vmatprep.subr.mxu0 0.0
        %6609 = vmatpush1.msra.mxu0 0.0
        %6610 = vmatprep.subr.mxu0 0.0
        %6611 = vmatpush1.msra.mxu0 0.0
        %6612 = vmatprep.subr.mxu0 0.0
        %6613 = vmatpush1.msra.mxu0 0.0
        %6614 = vmatprep.subr.mxu0 0.0
        %6615 = vmatpush1.msra.mxu0 0.0
        %6616 = vmatprep.subr.mxu0 0.0
        %6617 = vmatpush1.msra.mxu0 0.0
        %6618 = vmatprep.subr.mxu0 0.0
        %6619 = vmatpush1.msra.mxu0 0.0
        %6620 = vmatprep.subr.mxu0 0.0
        %6621 = vmatpush1.msra.mxu0 0.0
        %6622 = vmatprep.subr.mxu0 0.0
        %6623 = vmatpush1.msra.mxu0 0.0
        %6624 = vmatprep.subr.mxu0 0.0
        %6625 = vmatpush1.msra.mxu0 0.0
        %6626 = vmatprep.subr.mxu0 0.0
        %6627 = vmatpush1.msra.mxu0 0.0
        %6628 = vmatprep.mubr.f32.mxu0 0.0
        %6629 = vmatmul.mubr.f32.gmra.mrb[0].mxu0 %v6559
        %v6630 = vpop.f32.mrb[0].mxu0
        %v6631 = vadd.f32 0.0, %v6630
        %v6632 = vpop.f32.mrb[0].mxu0
        %6633 = vdwg.mxu0
        %v6635 = vsel %vm4373, %v6470, 0
        %v6638 = vsel %vm4377, %v6471, 0
        %6640 = vmatprep.subr.mxu0 0.0
        %6641 = vmatpush1.msra.mxu0 %v6638
        %6642 = vmatprep.subr.mxu0 0.0
        %6643 = vmatpush1.msra.mxu0 0.0
        %6644 = vmatprep.subr.mxu0 0.0
        %6645 = vmatpush1.msra.mxu0 0.0
        %6646 = vmatprep.subr.mxu0 0.0
        %6647 = vmatpush1.msra.mxu0 0.0
        %6648 = vmatprep.subr.mxu0 0.0
        %6649 = vmatpush1.msra.mxu0 0.0
        %6650 = vmatprep.subr.mxu0 0.0
        %6651 = vmatpush1.msra.mxu0 0.0
        %6652 = vmatprep.subr.mxu0 0.0
        %6653 = vmatpush1.msra.mxu0 0.0
        %6654 = vmatprep.subr.mxu0 0.0
        %6655 = vmatpush1.msra.mxu0 0.0
        %6656 = vmatprep.subr.mxu0 0.0
        %6657 = vmatpush1.msra.mxu0 0.0
        %6658 = vmatprep.subr.mxu0 0.0
        %6659 = vmatpush1.msra.mxu0 0.0
        %6660 = vmatprep.subr.mxu0 0.0
        %6661 = vmatpush1.msra.mxu0 0.0
        %6662 = vmatprep.subr.mxu0 0.0
        %6663 = vmatpush1.msra.mxu0 0.0
        %6664 = vmatprep.subr.mxu0 0.0
        %6665 = vmatpush1.msra.mxu0 0.0
        %6666 = vmatprep.subr.mxu0 0.0
        %6667 = vmatpush1.msra.mxu0 0.0
        %6668 = vmatprep.subr.mxu0 0.0
        %6669 = vmatpush1.msra.mxu0 0.0
        %6670 = vmatprep.subr.mxu0 0.0
        %6671 = vmatpush1.msra.mxu0 0.0
        %6672 = vmatprep.subr.mxu0 0.0
        %6673 = vmatpush1.msra.mxu0 0.0
        %6674 = vmatprep.subr.mxu0 0.0
        %6675 = vmatpush1.msra.mxu0 0.0
        %6676 = vmatprep.subr.mxu0 0.0
        %6677 = vmatpush1.msra.mxu0 0.0
        %6678 = vmatprep.subr.mxu0 0.0
        %6679 = vmatpush1.msra.mxu0 0.0
        %6680 = vmatprep.subr.mxu0 0.0
        %6681 = vmatpush1.msra.mxu0 0.0
        %6682 = vmatprep.subr.mxu0 0.0
        %6683 = vmatpush1.msra.mxu0 0.0
        %6684 = vmatprep.subr.mxu0 0.0
        %6685 = vmatpush1.msra.mxu0 0.0
        %6686 = vmatprep.subr.mxu0 0.0
        %6687 = vmatpush1.msra.mxu0 0.0
        %6688 = vmatprep.subr.mxu0 0.0
        %6689 = vmatpush1.msra.mxu0 0.0
        %6690 = vmatprep.subr.mxu0 0.0
        %6691 = vmatpush1.msra.mxu0 0.0
        %6692 = vmatprep.subr.mxu0 0.0
        %6693 = vmatpush1.msra.mxu0 0.0
        %6694 = vmatprep.subr.mxu0 0.0
        %6695 = vmatpush1.msra.mxu0 0.0
        %6696 = vmatprep.subr.mxu0 0.0
        %6697 = vmatpush1.msra.mxu0 0.0
        %6698 = vmatprep.subr.mxu0 0.0
        %6699 = vmatpush1.msra.mxu0 0.0
        %6700 = vmatprep.subr.mxu0 0.0
        %6701 = vmatpush1.msra.mxu0 0.0
        %6702 = vmatprep.subr.mxu0 0.0
        %6703 = vmatpush1.msra.mxu0 0.0
        %6704 = vmatprep.mubr.f32.mxu0 0.0
        %6705 = vmatmul.mubr.f32.gmra.mrb[0].mxu0 %v6635
        %v6706 = vpop.f32.mrb[0].mxu0
        %v6707 = vadd.f32 %v6631, %v6706
        %v6708 = vpop.f32.mrb[0].mxu0
        %6709 = vdwg.mxu0
        %v6710 = vmul.f32 %v6382, %v4531
        %v6712 = vsel %vm2450, %v6710, 0
        %6714 = vmatprep.subr.mxu0 0.0
        %6715 = vmatpush1.xpose.msra.mxu0 %v6388
        %6716 = vmatprep.subr.mxu0 0.0
        %6717 = vmatpush1.xpose.msra.mxu0 0.0
        %6718 = vmatprep.subr.mxu0 0.0
        %6719 = vmatpush1.xpose.msra.mxu0 0.0
        %6720 = vmatprep.subr.mxu0 0.0
        %6721 = vmatpush1.xpose.msra.mxu0 0.0
        %6722 = vmatprep.subr.mxu0 0.0
        %6723 = vmatpush1.xpose.msra.mxu0 0.0
        %6724 = vmatprep.subr.mxu0 0.0
        %6725 = vmatpush1.xpose.msra.mxu0 0.0
        %6726 = vmatprep.subr.mxu0 0.0
        %6727 = vmatpush1.xpose.msra.mxu0 0.0
        %6728 = vmatprep.subr.mxu0 0.0
        %6729 = vmatpush1.xpose.msra.mxu0 0.0
        %6730 = vmatprep.subr.mxu0 0.0
        %6731 = vmatpush1.xpose.msra.mxu0 0.0
        %6732 = vmatprep.subr.mxu0 0.0
        %6733 = vmatpush1.xpose.msra.mxu0 0.0
        %6734 = vmatprep.subr.mxu0 0.0
        %6735 = vmatpush1.xpose.msra.mxu0 0.0
        %6736 = vmatprep.subr.mxu0 0.0
        %6737 = vmatpush1.xpose.msra.mxu0 0.0
        %6738 = vmatprep.subr.mxu0 0.0
        %6739 = vmatpush1.xpose.msra.mxu0 0.0
        %6740 = vmatprep.subr.mxu0 0.0
        %6741 = vmatpush1.xpose.msra.mxu0 0.0
        %6742 = vmatprep.subr.mxu0 0.0
        %6743 = vmatpush1.xpose.msra.mxu0 0.0
        %6744 = vmatprep.subr.mxu0 0.0
        %6745 = vmatpush1.xpose.msra.mxu0 0.0
        %6746 = vmatprep.subr.mxu0 0.0
        %6747 = vmatpush1.xpose.msra.mxu0 0.0
        %6748 = vmatprep.subr.mxu0 0.0
        %6749 = vmatpush1.xpose.msra.mxu0 0.0
        %6750 = vmatprep.subr.mxu0 0.0
        %6751 = vmatpush1.xpose.msra.mxu0 0.0
        %6752 = vmatprep.subr.mxu0 0.0
        %6753 = vmatpush1.xpose.msra.mxu0 0.0
        %6754 = vmatprep.subr.mxu0 0.0
        %6755 = vmatpush1.xpose.msra.mxu0 0.0
        %6756 = vmatprep.subr.mxu0 0.0
        %6757 = vmatpush1.xpose.msra.mxu0 0.0
        %6758 = vmatprep.subr.mxu0 0.0
        %6759 = vmatpush1.xpose.msra.mxu0 0.0
        %6760 = vmatprep.subr.mxu0 0.0
        %6761 = vmatpush1.xpose.msra.mxu0 0.0
        %6762 = vmatprep.subr.mxu0 0.0
        %6763 = vmatpush1.xpose.msra.mxu0 0.0
        %6764 = vmatprep.subr.mxu0 0.0
        %6765 = vmatpush1.xpose.msra.mxu0 0.0
        %6766 = vmatprep.subr.mxu0 0.0
        %6767 = vmatpush1.xpose.msra.mxu0 0.0
        %6768 = vmatprep.subr.mxu0 0.0
        %6769 = vmatpush1.xpose.msra.mxu0 0.0
        %6770 = vmatprep.subr.mxu0 0.0
        %6771 = vmatpush1.xpose.msra.mxu0 0.0
        %6772 = vmatprep.subr.mxu0 0.0
        %6773 = vmatpush1.xpose.msra.mxu0 0.0
        %6774 = vmatprep.subr.mxu0 0.0
        %6775 = vmatpush1.xpose.msra.mxu0 0.0
        %6776 = vmatprep.subr.mxu0 0.0
        %6777 = vmatpush1.xpose.msra.mxu0 0.0
        %6778 = vmatprep.mubr.f32.mxu0 0.0
        %6779 = vmatmul.mubr.f32.gmra.mrb[0].mxu0 %v6712
        %v6780 = vpop.f32.mrb[0].mxu0
        %v6781 = vadd.f32 0.0, %v6780
        %v6782 = vpop.f32.mrb[0].mxu0
        %6783 = vdwg.mxu0
        %v6784 = vsel %vm4373, %v6781, -inf
        %6785 = vmax.xlane.f32.xlu0 %v6784
        %v6786 = vpop.xlane.xlu0 %6785
        %v6787 = vsub.f32 %v6781, %v6786
        %v6788 = vmul.f32 %v6787, 1.442695
        %v6789 = vpow.pop %v6788
        %v6790 = vsel %vm4373, %v6789, 0.0
        %6791 = vadd.xlane.f32.xlu0 %v6790
        %v6792 = vpop.xlane.xlu0 %6791
        %v6793 = vrcp.pop %v6792
        %v6794 = vmul.f32 %v6789, %v6793
        %v6795 = vmul.f32 %v6379, %v4531
        %v6797 = vsel %vm4373, %v6794, 0
        %v6800 = vsel %vm4377, %v6795, 0
        %6802 = vmatprep.subr.mxu0 0.0
        %6803 = vmatpush1.msra.mxu0 %v6800
        %6804 = vmatprep.subr.mxu0 0.0
        %6805 = vmatpush1.msra.mxu0 0.0
        %6806 = vmatprep.subr.mxu0 0.0
        %6807 = vmatpush1.msra.mxu0 0.0
        %6808 = vmatprep.subr.mxu0 0.0
        %6809 = vmatpush1.msra.mxu0 0.0
        %6810 = vmatprep.subr.mxu0 0.0
        %6811 = vmatpush1.msra.mxu0 0.0
        %6812 = vmatprep.subr.mxu0 0.0
        %6813 = vmatpush1.msra.mxu0 0.0
        %6814 = vmatprep.subr.mxu0 0.0
        %6815 = vmatpush1.msra.mxu0 0.0
        %6816 = vmatprep.subr.mxu0 0.0
        %6817 = vmatpush1.msra.mxu0 0.0
        %6818 = vmatprep.subr.mxu0 0.0
        %6819 = vmatpush1.msra.mxu0 0.0
        %6820 = vmatprep.subr.mxu0 0.0
        %6821 = vmatpush1.msra.mxu0 0.0
        %6822 = vmatprep.subr.mxu0 0.0
        %6823 = vmatpush1.msra.mxu0 0.0
        %6824 = vmatprep.subr.mxu0 0.0
        %6825 = vmatpush1.msra.mxu0 0.0
        %6826 = vmatprep.subr.mxu0 0.0
        %6827 = vmatpush1.msra.mxu0 0.0
        %6828 = vmatprep.subr.mxu0 0.0
        %6829 = vmatpush1.msra.mxu0 0.0
        %6830 = vmatprep.subr.mxu0 0.0
        %6831 = vmatpush1.msra.mxu0 0.0
        %6832 = vmatprep.subr.mxu0 0.0
        %6833 = vmatpush1.msra.mxu0 0.0
        %6834 = vmatprep.subr.mxu0 0.0
        %6835 = vmatpush1.msra.mxu0 0.0
        %6836 = vmatprep.subr.mxu0 0.0
        %6837 = vmatpush1.msra.mxu0 0.0
        %6838 = vmatprep.subr.mxu0 0.0
        %6839 = vmatpush1.msra.mxu0 0.0
        %6840 = vmatprep.subr.mxu0 0.0
        %6841 = vmatpush1.msra.mxu0 0.0
        %6842 = vmatprep.subr.mxu0 0.0
        %6843 = vmatpush1.msra.mxu0 0.0
        %6844 = vmatprep.subr.mxu0 0.0
        %6845 = vmatpush1.msra.mxu0 0.0
        %6846 = vmatprep.subr.mxu0 0.0
        %6847 = vmatpush1.msra.mxu0 0.0
        %6848 = vmatprep.subr.mxu0 0.0
        %6849 = vmatpush1.msra.mxu0 0.0
        %6850 = vmatprep.subr.mxu0 0.0
        %6851 = vmatpush1.msra.mxu0 0.0
        %6852 = vmatprep.subr.mxu0 0.0
        %6853 = vmatpush1.msra.mxu0 0.0
        %6854 = vmatprep.subr.mxu0 0.0
        %6855 = vmatpush1.msra.mxu0 0.0
        %6856 = vmatprep.subr.mxu0 0.0
        %6857 = vmatpush1.msra.mxu0 0.0
        %6858 = vmatprep.subr.mxu0 0.0
        %6859 = vmatpush1.msra.mxu0 0.0
        %6860 = vmatprep.subr.mxu0 0.0
        %6861 = vmatpush1.msra.mxu0 0.0
        %6862 = vmatprep.subr.mxu0 0.0
        %6863 = vmatpush1.msra.mxu0 0.0
        %6864 = vmatprep.subr.mxu0 0.0
        %6865 = vmatpush1.msra.mxu0 0.0
        %6866 = vmatprep.mubr.f32.mxu0 0.0
        %6867 = vmatmul.mubr.f32.gmra.mrb[0].mxu0 %v6797
        %v6868 = vpop.f32.mrb[0].mxu0
        %v6869 = vadd.f32 0.0, %v6868
        %v6870 = vpop.f32.mrb[0].mxu0
        %6871 = vdwg.mxu0
        %v6872 = vadd.f32 %v6707, %v6869
        %v6873 = vmul.f32 %v6382, %v4699
        %v6875 = vsel %vm2450, %v6873, 0
        %6877 = vmatprep.subr.mxu0 0.0
        %6878 = vmatpush1.xpose.msra.mxu0 %v6388
        %6879 = vmatprep.subr.mxu0 0.0
        %6880 = vmatpush1.xpose.msra.mxu0 0.0
        %6881 = vmatprep.subr.mxu0 0.0
        %6882 = vmatpush1.xpose.msra.mxu0 0.0
        %6883 = vmatprep.subr.mxu0 0.0
        %6884 = vmatpush1.xpose.msra.mxu0 0.0
        %6885 = vmatprep.subr.mxu0 0.0
        %6886 = vmatpush1.xpose.msra.mxu0 0.0
        %6887 = vmatprep.subr.mxu0 0.0
        %6888 = vmatpush1.xpose.msra.mxu0 0.0
        %6889 = vmatprep.subr.mxu0 0.0
        %6890 = vmatpush1.xpose.msra.mxu0 0.0
        %6891 = vmatprep.subr.mxu0 0.0
        %6892 = vmatpush1.xpose.msra.mxu0 0.0
        %6893 = vmatprep.subr.mxu0 0.0
        %6894 = vmatpush1.xpose.msra.mxu0 0.0
        %6895 = vmatprep.subr.mxu0 0.0
        %6896 = vmatpush1.xpose.msra.mxu0 0.0
        %6897 = vmatprep.subr.mxu0 0.0
        %6898 = vmatpush1.xpose.msra.mxu0 0.0
        %6899 = vmatprep.subr.mxu0 0.0
        %6900 = vmatpush1.xpose.msra.mxu0 0.0
        %6901 = vmatprep.subr.mxu0 0.0
        %6902 = vmatpush1.xpose.msra.mxu0 0.0
        %6903 = vmatprep.subr.mxu0 0.0
        %6904 = vmatpush1.xpose.msra.mxu0 0.0
        %6905 = vmatprep.subr.mxu0 0.0
        %6906 = vmatpush1.xpose.msra.mxu0 0.0
        %6907 = vmatprep.subr.mxu0 0.0
        %6908 = vmatpush1.xpose.msra.mxu0 0.0
        %6909 = vmatprep.subr.mxu0 0.0
        %6910 = vmatpush1.xpose.msra.mxu0 0.0
        %6911 = vmatprep.subr.mxu0 0.0
        %6912 = vmatpush1.xpose.msra.mxu0 0.0
        %6913 = vmatprep.subr.mxu0 0.0
        %6914 = vmatpush1.xpose.msra.mxu0 0.0
        %6915 = vmatprep.subr.mxu0 0.0
        %6916 = vmatpush1.xpose.msra.mxu0 0.0
        %6917 = vmatprep.subr.mxu0 0.0
        %6918 = vmatpush1.xpose.msra.mxu0 0.0
        %6919 = vmatprep.subr.mxu0 0.0
        %6920 = vmatpush1.xpose.msra.mxu0 0.0
        %6921 = vmatprep.subr.mxu0 0.0
        %6922 = vmatpush1.xpose.msra.mxu0 0.0
        %6923 = vmatprep.subr.mxu0 0.0
        %6924 = vmatpush1.xpose.msra.mxu0 0.0
        %6925 = vmatprep.subr.mxu0 0.0
        %6926 = vmatpush1.xpose.msra.mxu0 0.0
        %6927 = vmatprep.subr.mxu0 0.0
        %6928 = vmatpush1.xpose.msra.mxu0 0.0
        %6929 = vmatprep.subr.mxu0 0.0
        %6930 = vmatpush1.xpose.msra.mxu0 0.0
        %6931 = vmatprep.subr.mxu0 0.0
        %6932 = vmatpush1.xpose.msra.mxu0 0.0
        %6933 = vmatprep.subr.mxu0 0.0
        %6934 = vmatpush1.xpose.msra.mxu0 0.0
        %6935 = vmatprep.subr.mxu0 0.0
        %6936 = vmatpush1.xpose.msra.mxu0 0.0
        %6937 = vmatprep.subr.mxu0 0.0
        %6938 = vmatpush1.xpose.msra.mxu0 0.0
        %6939 = vmatprep.subr.mxu0 0.0
        %6940 = vmatpush1.xpose.msra.mxu0 0.0
        %6941 = vmatprep.mubr.f32.mxu0 0.0
        %6942 = vmatmul.mubr.f32.gmra.mrb[0].mxu0 %v6875
        %v6943 = vpop.f32.mrb[0].mxu0
        %v6944 = vadd.f32 0.0, %v6943
        %v6945 = vpop.f32.mrb[0].mxu0
        %6946 = vdwg.mxu0
        %v6947 = vsel %vm4373, %v6944, -inf
        %6948 = vmax.xlane.f32.xlu0 %v6947
        %v6949 = vpop.xlane.xlu0 %6948
        %v6950 = vsub.f32 %v6944, %v6949
        %v6951 = vmul.f32 %v6950, 1.442695
        %v6952 = vpow.pop %v6951
        %v6953 = vsel %vm4373, %v6952, 0.0
        %6954 = vadd.xlane.f32.xlu0 %v6953
        %v6955 = vpop.xlane.xlu0 %6954
        %v6956 = vrcp.pop %v6955
        %v6957 = vmul.f32 %v6952, %v6956
        %v6958 = vmul.f32 %v6379, %v4699
        %v6960 = vsel %vm4373, %v6957, 0
        %v6963 = vsel %vm4377, %v6958, 0
        %6965 = vmatprep.subr.mxu0 0.0
        %6966 = vmatpush1.msra.mxu0 %v6963
        %6967 = vmatprep.subr.mxu0 0.0
        %6968 = vmatpush1.msra.mxu0 0.0
        %6969 = vmatprep.subr.mxu0 0.0
        %6970 = vmatpush1.msra.mxu0 0.0
        %6971 = vmatprep.subr.mxu0 0.0
        %6972 = vmatpush1.msra.mxu0 0.0
        %6973 = vmatprep.subr.mxu0 0.0
        %6974 = vmatpush1.msra.mxu0 0.0
        %6975 = vmatprep.subr.mxu0 0.0
        %6976 = vmatpush1.msra.mxu0 0.0
        %6977 = vmatprep.subr.mxu0 0.0
        %6978 = vmatpush1.msra.mxu0 0.0
        %6979 = vmatprep.subr.mxu0 0.0
        %6980 = vmatpush1.msra.mxu0 0.0
        %6981 = vmatprep.subr.mxu0 0.0
        %6982 = vmatpush1.msra.mxu0 0.0
        %6983 = vmatprep.subr.mxu0 0.0
        %6984 = vmatpush1.msra.mxu0 0.0
        %6985 = vmatprep.subr.mxu0 0.0
        %6986 = vmatpush1.msra.mxu0 0.0
        %6987 = vmatprep.subr.mxu0 0.0
        %6988 = vmatpush1.msra.mxu0 0.0
        %6989 = vmatprep.subr.mxu0 0.0
        %6990 = vmatpush1.msra.mxu0 0.0
        %6991 = vmatprep.subr.mxu0 0.0
        %6992 = vmatpush1.msra.mxu0 0.0
        %6993 = vmatprep.subr.mxu0 0.0
        %6994 = vmatpush1.msra.mxu0 0.0
        %6995 = vmatprep.subr.mxu0 0.0
        %6996 = vmatpush1.msra.mxu0 0.0
        %6997 = vmatprep.subr.mxu0 0.0
        %6998 = vmatpush1.msra.mxu0 0.0
        %6999 = vmatprep.subr.mxu0 0.0
        %7000 = vmatpush1.msra.mxu0 0.0
        %7001 = vmatprep.subr.mxu0 0.0
        %7002 = vmatpush1.msra.mxu0 0.0
        %7003 = vmatprep.subr.mxu0 0.0
        %7004 = vmatpush1.msra.mxu0 0.0
        %7005 = vmatprep.subr.mxu0 0.0
        %7006 = vmatpush1.msra.mxu0 0.0
        %7007 = vmatprep.subr.mxu0 0.0
        %7008 = vmatpush1.msra.mxu0 0.0
        %7009 = vmatprep.subr.mxu0 0.0
        %7010 = vmatpush1.msra.mxu0 0.0
        %7011 = vmatprep.subr.mxu0 0.0
        %7012 = vmatpush1.msra.mxu0 0.0
        %7013 = vmatprep.subr.mxu0 0.0
        %7014 = vmatpush1.msra.mxu0 0.0
        %7015 = vmatprep.subr.mxu0 0.0
        %7016 = vmatpush1.msra.mxu0 0.0
        %7017 = vmatprep.subr.mxu0 0.0
        %7018 = vmatpush1.msra.mxu0 0.0
        %7019 = vmatprep.subr.mxu0 0.0
        %7020 = vmatpush1.msra.mxu0 0.0
        %7021 = vmatprep.subr.mxu0 0.0
        %7022 = vmatpush1.msra.mxu0 0.0
        %7023 = vmatprep.subr.mxu0 0.0
        %7024 = vmatpush1.msra.mxu0 0.0
        %7025 = vmatprep.subr.mxu0 0.0
        %7026 = vmatpush1.msra.mxu0 0.0
        %7027 = vmatprep.subr.mxu0 0.0
        %7028 = vmatpush1.msra.mxu0 0.0
        %7029 = vmatprep.mubr.f32.mxu0 0.0
        %7030 = vmatmul.mubr.f32.gmra.mrb[0].mxu0 %v6960
        %v7031 = vpop.f32.mrb[0].mxu0
        %v7032 = vadd.f32 0.0, %v7031
        %v7033 = vpop.f32.mrb[0].mxu0
        %7034 = vdwg.mxu0
        %v7035 = vadd.f32 %v6872, %v7032
        %v7036 = vld [vmem:[%s61] sm:$0xff]
        %v7037 = vld [vmem:[%s61 + $0x8] sm:$0xff]
        %v7038 = vld [vmem:[%s61 + $0x10] sm:$0xff]
        %v7039 = vld [vmem:[%s61 + $0x18] sm:$0xff]
        %v7040 = vld [vmem:[#allocation34] sm:$0x1]
        %v7042 = vlaneseq
        %v7043 = vshrl.u32 %v7042, 7
        %v7044 = vsub.s32 0, %v7043
        %v7045 = vrot.slane %v7040, %v7044
        %v7048 = vsel %vm2450, %v7035, 0
        %7050 = vmatprep.subr.mxu0 0.0
        %7051 = vmatpush1.msra.mxu0 %v7036
        %7052 = vmatprep.subr.mxu0 0.0
        %7053 = vmatpush1.msra.mxu0 %v7037
        %7054 = vmatprep.subr.mxu0 0.0
        %7055 = vmatpush1.msra.mxu0 %v7038
        %7056 = vmatprep.subr.mxu0 0.0
        %7057 = vmatpush1.msra.mxu0 %v7039
        %7058 = vmatprep.subr.mxu0 0.0
        %7059 = vmatpush1.msra.mxu0 0.0
        %7060 = vmatprep.subr.mxu0 0.0
        %7061 = vmatpush1.msra.mxu0 0.0
        %7062 = vmatprep.subr.mxu0 0.0
        %7063 = vmatpush1.msra.mxu0 0.0
        %7064 = vmatprep.subr.mxu0 0.0
        %7065 = vmatpush1.msra.mxu0 0.0
        %7066 = vmatprep.subr.mxu0 0.0
        %7067 = vmatpush1.msra.mxu0 0.0
        %7068 = vmatprep.subr.mxu0 0.0
        %7069 = vmatpush1.msra.mxu0 0.0
        %7070 = vmatprep.subr.mxu0 0.0
        %7071 = vmatpush1.msra.mxu0 0.0
        %7072 = vmatprep.subr.mxu0 0.0
        %7073 = vmatpush1.msra.mxu0 0.0
        %7074 = vmatprep.subr.mxu0 0.0
        %7075 = vmatpush1.msra.mxu0 0.0
        %7076 = vmatprep.subr.mxu0 0.0
        %7077 = vmatpush1.msra.mxu0 0.0
        %7078 = vmatprep.subr.mxu0 0.0
        %7079 = vmatpush1.msra.mxu0 0.0
        %7080 = vmatprep.subr.mxu0 0.0
        %7081 = vmatpush1.msra.mxu0 0.0
        %7082 = vmatprep.subr.mxu0 0.0
        %7083 = vmatpush1.msra.mxu0 0.0
        %7084 = vmatprep.subr.mxu0 0.0
        %7085 = vmatpush1.msra.mxu0 0.0
        %7086 = vmatprep.subr.mxu0 0.0
        %7087 = vmatpush1.msra.mxu0 0.0
        %7088 = vmatprep.subr.mxu0 0.0
        %7089 = vmatpush1.msra.mxu0 0.0
        %7090 = vmatprep.subr.mxu0 0.0
        %7091 = vmatpush1.msra.mxu0 0.0
        %7092 = vmatprep.subr.mxu0 0.0
        %7093 = vmatpush1.msra.mxu0 0.0
        %7094 = vmatprep.subr.mxu0 0.0
        %7095 = vmatpush1.msra.mxu0 0.0
        %7096 = vmatprep.subr.mxu0 0.0
        %7097 = vmatpush1.msra.mxu0 0.0
        %7098 = vmatprep.subr.mxu0 0.0
        %7099 = vmatpush1.msra.mxu0 0.0
        %7100 = vmatprep.subr.mxu0 0.0
        %7101 = vmatpush1.msra.mxu0 0.0
        %7102 = vmatprep.subr.mxu0 0.0
        %7103 = vmatpush1.msra.mxu0 0.0
        %7104 = vmatprep.subr.mxu0 0.0
        %7105 = vmatpush1.msra.mxu0 0.0
        %7106 = vmatprep.subr.mxu0 0.0
        %7107 = vmatpush1.msra.mxu0 0.0
        %7108 = vmatprep.subr.mxu0 0.0
        %7109 = vmatpush1.msra.mxu0 0.0
        %7110 = vmatprep.subr.mxu0 0.0
        %7111 = vmatpush1.msra.mxu0 0.0
        %7112 = vmatprep.subr.mxu0 0.0
        %7113 = vmatpush1.msra.mxu0 0.0
        %7114 = vmatprep.mubr.f32.mxu0 0.0
        %7115 = vmatmul.mubr.f32.gmra.mrb[0].mxu0 %v7048
        %v7116 = vpop.f32.mrb[0].mxu0
        %v7117 = vadd.f32 %v7045, %v7116
        %v7118 = vpop.f32.mrb[0].mxu0
        %7119 = vdwg.mxu0
        %v7120 = vadd.f32 %v6115, %v7117
        %v7121 = vsel %vm2450, %v7120, 0.0
        %7122 = vadd.xlane.f32.xlu0 %v7121
        %v7123 = vpop.xlane.xlu0 %7122
        %v7124 = vmul.f32 %v7123, %v3561
        %v7125 = vsub.f32 %v7120, %v7124
        %v7126 = vmul.f32 %v7125, %v7125
        %v7127 = vsel %vm2450, %v7126, 0.0
        %7128 = vadd.xlane.f32.xlu0 %v7127
        %v7129 = vpop.xlane.xlu0 %7128
        %v7130 = vmul.f32 %v7129, %v3561
        %v7131 = vadd.f32 %v7130, 1e-05
        %v7132 = vrsqrt.pop %v7131
        %v7133 = vmul.f32 %v7125, %v7132
        %v7134 = vld [vmem:[%s79] sm:$0x1]
        %v7136 = vlaneseq
        %v7137 = vshrl.u32 %v7136, 7
        %v7138 = vsub.s32 0, %v7137
        %v7139 = vrot.slane %v7134, %v7138
        %v7141 = vmul.f32 %v7133, %v7139
        %v7142 = vld [vmem:[%s77] sm:$0x1]
        %v7144 = vlaneseq
        %v7145 = vshrl.u32 %v7144, 7
        %v7146 = vsub.s32 0, %v7145
        %v7147 = vrot.slane %v7142, %v7146
        %v7149 = vadd.f32 %v7141, %v7147
        %v7150 = vld [vmem:[%s67] sm:$0xff]
        %v7151 = vld [vmem:[%s67 + $0x8] sm:$0xff]
        %v7152 = vld [vmem:[%s67 + $0x10] sm:$0xff]
        %v7153 = vld [vmem:[%s67 + $0x18] sm:$0xff]
        %v7154 = vld [vmem:[#allocation37] sm:$0x1]
        %v7156 = vlaneseq
        %v7157 = vshrl.u32 %v7156, 7
        %v7158 = vsub.s32 0, %v7157
        %v7159 = vrot.slane %v7154, %v7158
        %v7162 = vsel %vm2450, %v7149, 0
        %7164 = vmatprep.subr.mxu0 0.0
        %7165 = vmatpush1.msra.mxu0 %v7150
        %7166 = vmatprep.subr.mxu0 0.0
        %7167 = vmatpush1.msra.mxu0 %v7151
        %7168 = vmatprep.subr.mxu0 0.0
        %7169 = vmatpush1.msra.mxu0 %v7152
        %7170 = vmatprep.subr.mxu0 0.0
        %7171 = vmatpush1.msra.mxu0 %v7153
        %7172 = vmatprep.subr.mxu0 0.0
        %7173 = vmatpush1.msra.mxu0 0.0
        %7174 = vmatprep.subr.mxu0 0.0
        %7175 = vmatpush1.msra.mxu0 0.0
        %7176 = vmatprep.subr.mxu0 0.0
        %7177 = vmatpush1.msra.mxu0 0.0
        %7178 = vmatprep.subr.mxu0 0.0
        %7179 = vmatpush1.msra.mxu0 0.0
        %7180 = vmatprep.subr.mxu0 0.0
        %7181 = vmatpush1.msra.mxu0 0.0
        %7182 = vmatprep.subr.mxu0 0.0
        %7183 = vmatpush1.msra.mxu0 0.0
        %7184 = vmatprep.subr.mxu0 0.0
        %7185 = vmatpush1.msra.mxu0 0.0
        %7186 = vmatprep.subr.mxu0 0.0
        %7187 = vmatpush1.msra.mxu0 0.0
        %7188 = vmatprep.subr.mxu0 0.0
        %7189 = vmatpush1.msra.mxu0 0.0
        %7190 = vmatprep.subr.mxu0 0.0
        %7191 = vmatpush1.msra.mxu0 0.0
        %7192 = vmatprep.subr.mxu0 0.0
        %7193 = vmatpush1.msra.mxu0 0.0
        %7194 = vmatprep.subr.mxu0 0.0
        %7195 = vmatpush1.msra.mxu0 0.0
        %7196 = vmatprep.subr.mxu0 0.0
        %7197 = vmatpush1.msra.mxu0 0.0
        %7198 = vmatprep.subr.mxu0 0.0
        %7199 = vmatpush1.msra.mxu0 0.0
        %7200 = vmatprep.subr.mxu0 0.0
        %7201 = vmatpush1.msra.mxu0 0.0
        %7202 = vmatprep.subr.mxu0 0.0
        %7203 = vmatpush1.msra.mxu0 0.0
        %7204 = vmatprep.subr.mxu0 0.0
        %7205 = vmatpush1.msra.mxu0 0.0
        %7206 = vmatprep.subr.mxu0 0.0
        %7207 = vmatpush1.msra.mxu0 0.0
        %7208 = vmatprep.subr.mxu0 0.0
        %7209 = vmatpush1.msra.mxu0 0.0
        %7210 = vmatprep.subr.mxu0 0.0
        %7211 = vmatpush1.msra.mxu0 0.0
        %7212 = vmatprep.subr.mxu0 0.0
        %7213 = vmatpush1.msra.mxu0 0.0
        %7214 = vmatprep.subr.mxu0 0.0
        %7215 = vmatpush1.msra.mxu0 0.0
        %7216 = vmatprep.subr.mxu0 0.0
        %7217 = vmatpush1.msra.mxu0 0.0
        %7218 = vmatprep.subr.mxu0 0.0
        %7219 = vmatpush1.msra.mxu0 0.0
        %7220 = vmatprep.subr.mxu0 0.0
        %7221 = vmatpush1.msra.mxu0 0.0
        %7222 = vmatprep.subr.mxu0 0.0
        %7223 = vmatpush1.msra.mxu0 0.0
        %7224 = vmatprep.subr.mxu0 0.0
        %7225 = vmatpush1.msra.mxu0 0.0
        %7226 = vmatprep.subr.mxu0 0.0
        %7227 = vmatpush1.msra.mxu0 0.0
        %7228 = vmatprep.mubr.f32.mxu0 0.0
        %7229 = vmatmul.mubr.f32.gmra.mrb[0].mxu0 %v7162
        %v7230 = vpop.f32.mrb[0].mxu0
        %v7231 = vadd.f32 %v7159, %v7230
        %v7232 = vpop.f32.mrb[0].mxu0
        %7233 = vdwg.mxu0
        %v7234 = vmax.f32 %v7231, 0.0
        %v7235 = vld [vmem:[%s71] sm:$0xff]
        %v7236 = vld [vmem:[%s71 + $0x8] sm:$0xff]
        %v7237 = vld [vmem:[%s71 + $0x10] sm:$0xff]
        %v7238 = vld [vmem:[%s71 + $0x18] sm:$0xff]
        %v7239 = vld [vmem:[%s71 + $0x20] sm:$0xff]
        %v7240 = vld [vmem:[%s71 + $0x28] sm:$0xff]
        %v7241 = vld [vmem:[%s71 + $0x30] sm:$0xff]
        %v7242 = vld [vmem:[%s71 + $0x38] sm:$0xff]
        %v7243 = vld [vmem:[%s69] sm:$0x1]
        %v7245 = vlaneseq
        %v7246 = vshrl.u32 %v7245, 7
        %v7247 = vsub.s32 0, %v7246
        %v7248 = vrot.slane %v7243, %v7247
        %v7251 = vsel %vm3709, %v7234, 0
        %7253 = vmatprep.subr.mxu0 0.0
        %7254 = vmatpush1.msra.mxu0 %v7235
        %7255 = vmatprep.subr.mxu0 0.0
        %7256 = vmatpush1.msra.mxu0 %v7236
        %7257 = vmatprep.subr.mxu0 0.0
        %7258 = vmatpush1.msra.mxu0 %v7237
        %7259 = vmatprep.subr.mxu0 0.0
        %7260 = vmatpush1.msra.mxu0 %v7238
        %7261 = vmatprep.subr.mxu0 0.0
        %7262 = vmatpush1.msra.mxu0 %v7239
        %7263 = vmatprep.subr.mxu0 0.0
        %7264 = vmatpush1.msra.mxu0 %v7240
        %7265 = vmatprep.subr.mxu0 0.0
        %7266 = vmatpush1.msra.mxu0 %v7241
        %7267 = vmatprep.subr.mxu0 0.0
        %7268 = vmatpush1.msra.mxu0 %v7242
        %7269 = vmatprep.subr.mxu0 0.0
        %7270 = vmatpush1.msra.mxu0 0.0
        %7271 = vmatprep.subr.mxu0 0.0
        %7272 = vmatpush1.msra.mxu0 0.0
        %7273 = vmatprep.subr.mxu0 0.0
        %7274 = vmatpush1.msra.mxu0 0.0
        %7275 = vmatprep.subr.mxu0 0.0
        %7276 = vmatpush1.msra.mxu0 0.0
        %7277 = vmatprep.subr.mxu0 0.0
        %7278 = vmatpush1.msra.mxu0 0.0
        %7279 = vmatprep.subr.mxu0 0.0
        %7280 = vmatpush1.msra.mxu0 0.0
        %7281 = vmatprep.subr.mxu0 0.0
        %7282 = vmatpush1.msra.mxu0 0.0
        %7283 = vmatprep.subr.mxu0 0.0
        %7284 = vmatpush1.msra.mxu0 0.0
        %7285 = vmatprep.subr.mxu0 0.0
        %7286 = vmatpush1.msra.mxu0 0.0
        %7287 = vmatprep.subr.mxu0 0.0
        %7288 = vmatpush1.msra.mxu0 0.0
        %7289 = vmatprep.subr.mxu0 0.0
        %7290 = vmatpush1.msra.mxu0 0.0
        %7291 = vmatprep.subr.mxu0 0.0
        %7292 = vmatpush1.msra.mxu0 0.0
        %7293 = vmatprep.subr.mxu0 0.0
        %7294 = vmatpush1.msra.mxu0 0.0
        %7295 = vmatprep.subr.mxu0 0.0
        %7296 = vmatpush1.msra.mxu0 0.0
        %7297 = vmatprep.subr.mxu0 0.0
        %7298 = vmatpush1.msra.mxu0 0.0
        %7299 = vmatprep.subr.mxu0 0.0
        %7300 = vmatpush1.msra.mxu0 0.0
        %7301 = vmatprep.subr.mxu0 0.0
        %7302 = vmatpush1.msra.mxu0 0.0
        %7303 = vmatprep.subr.mxu0 0.0
        %7304 = vmatpush1.msra.mxu0 0.0
        %7305 = vmatprep.subr.mxu0 0.0
        %7306 = vmatpush1.msra.mxu0 0.0
        %7307 = vmatprep.subr.mxu0 0.0
        %7308 = vmatpush1.msra.mxu0 0.0
        %7309 = vmatprep.subr.mxu0 0.0
        %7310 = vmatpush1.msra.mxu0 0.0
        %7311 = vmatprep.subr.mxu0 0.0
        %7312 = vmatpush1.msra.mxu0 0.0
        %7313 = vmatprep.subr.mxu0 0.0
        %7314 = vmatpush1.msra.mxu0 0.0
        %7315 = vmatprep.subr.mxu0 0.0
        %7316 = vmatpush1.msra.mxu0 0.0
        %7317 = vmatprep.mubr.f32.mxu0 0.0
        %7318 = vmatmul.mubr.f32.gmra.mrb[0].mxu0 %v7251
        %v7319 = vpop.f32.mrb[0].mxu0
        %v7320 = vadd.f32 %v7248, %v7319
        %v7321 = vpop.f32.mrb[0].mxu0
        %7322 = vdwg.mxu0
        %v7323 = vadd.f32 %v7149, %v7320
        %v7324 = vsel %vm2450, %v7323, 0.0
        %7325 = vadd.xlane.f32.xlu0 %v7324
        %v7326 = vpop.xlane.xlu0 %7325
        %v7327 = vmul.f32 %v7326, %v3561
        %v7328 = vsub.f32 %v7323, %v7327
        %v7329 = vmul.f32 %v7328, %v7328
        %v7330 = vsel %vm2450, %v7329, 0.0
        %7331 = vadd.xlane.f32.xlu0 %v7330
        %v7332 = vpop.xlane.xlu0 %7331
        %v7333 = vmul.f32 %v7332, %v3561
        %v7334 = vadd.f32 %v7333, 1e-05
        %v7335 = vrsqrt.pop %v7334
        %v7336 = vmul.f32 %v7328, %v7335
        %v7337 = vld [vmem:[%s83] sm:$0x1]
        %v7339 = vlaneseq
        %v7340 = vshrl.u32 %v7339, 7
        %v7341 = vsub.s32 0, %v7340
        %v7342 = vrot.slane %v7337, %v7341
        %v7344 = vmul.f32 %v7336, %v7342
        %v7345 = vld [vmem:[%s81] sm:$0x1]
        %v7347 = vlaneseq
        %v7348 = vshrl.u32 %v7347, 7
        %v7349 = vsub.s32 0, %v7348
        %v7350 = vrot.slane %v7345, %v7349
        %v7352 = vadd.f32 %v7344, %v7350
        %v7353 = vsel %vm2450, %v7352, 0.0
        %7354 = vadd.xlane.f32.xlu0 %v7353
        %v7355 = vpop.xlane.xlu0 %7354
        %v7356 = vmul.f32 %v7355, %v3561
        %v7357 = vsub.f32 %v7352, %v7356
        %v7358 = vmul.f32 %v7357, %v7357
        %v7359 = vsel %vm2450, %v7358, 0.0
        %7360 = vadd.xlane.f32.xlu0 %v7359
        %v7361 = vpop.xlane.xlu0 %7360
        %v7362 = vmul.f32 %v7361, %v3561
        %v7363 = vadd.f32 %v7362, 1e-05
        %v7364 = vrsqrt.pop %v7363
        %v7365 = vmul.f32 %v7357, %v7364
        %v7366 = vld [vmem:[#allocation25] sm:$0x1]
        %v7368 = vlaneseq
        %v7369 = vshrl.u32 %v7368, 7
        %v7370 = vsub.s32 0, %v7369
        %v7371 = vrot.slane %v7366, %v7370
        %v7373 = vmul.f32 %v7365, %v7371
        %v7374 = vld [vmem:[#allocation23] sm:$0x1]
        %v7376 = vlaneseq
        %v7377 = vshrl.u32 %v7376, 7
        %v7378 = vsub.s32 0, %v7377
        %v7379 = vrot.slane %v7374, %v7378
        %v7381 = vadd.f32 %v7373, %v7379
        %v7382 = vld [vmem:[%s3] sm:$0xff]
        %v7383 = vld [vmem:[%s3 + $0x8] sm:$0xff]
        %v7384 = vld [vmem:[%s3 + $0x10] sm:$0xff]
        %v7385 = vld [vmem:[%s3 + $0x18] sm:$0xff]
        %v7386 = vld [vmem:[#allocation5] sm:$0x1]
        %v7388 = vlaneseq
        %v7389 = vshrl.u32 %v7388, 7
        %v7390 = vsub.s32 0, %v7389
        %v7391 = vrot.slane %v7386, %v7390
        %v7394 = vsel %vm2450, %v7381, 0
        %7396 = vmatprep.subr.mxu0 0.0
        %7397 = vmatpush1.msra.mxu0 %v7382
        %7398 = vmatprep.subr.mxu0 0.0
        %7399 = vmatpush1.msra.mxu0 %v7383
        %7400 = vmatprep.subr.mxu0 0.0
        %7401 = vmatpush1.msra.mxu0 %v7384
        %7402 = vmatprep.subr.mxu0 0.0
        %7403 = vmatpush1.msra.mxu0 %v7385
        %7404 = vmatprep.subr.mxu0 0.0
        %7405 = vmatpush1.msra.mxu0 0.0
        %7406 = vmatprep.subr.mxu0 0.0
        %7407 = vmatpush1.msra.mxu0 0.0
        %7408 = vmatprep.subr.mxu0 0.0
        %7409 = vmatpush1.msra.mxu0 0.0
        %7410 = vmatprep.subr.mxu0 0.0
        %7411 = vmatpush1.msra.mxu0 0.0
        %7412 = vmatprep.subr.mxu0 0.0
        %7413 = vmatpush1.msra.mxu0 0.0
        %7414 = vmatprep.subr.mxu0 0.0
        %7415 = vmatpush1.msra.mxu0 0.0
        %7416 = vmatprep.subr.mxu0 0.0
        %7417 = vmatpush1.msra.mxu0 0.0
        %7418 = vmatprep.subr.mxu0 0.0
        %7419 = vmatpush1.msra.mxu0 0.0
        %7420 = vmatprep.subr.mxu0 0.0
        %7421 = vmatpush1.msra.mxu0 0.0
        %7422 = vmatprep.subr.mxu0 0.0
        %7423 = vmatpush1.msra.mxu0 0.0
        %7424 = vmatprep.subr.mxu0 0.0
        %7425 = vmatpush1.msra.mxu0 0.0
        %7426 = vmatprep.subr.mxu0 0.0
        %7427 = vmatpush1.msra.mxu0 0.0
        %7428 = vmatprep.subr.mxu0 0.0
        %7429 = vmatpush1.msra.mxu0 0.0
        %7430 = vmatprep.subr.mxu0 0.0
        %7431 = vmatpush1.msra.mxu0 0.0
        %7432 = vmatprep.subr.mxu0 0.0
        %7433 = vmatpush1.msra.mxu0 0.0
        %7434 = vmatprep.subr.mxu0 0.0
        %7435 = vmatpush1.msra.mxu0 0.0
        %7436 = vmatprep.subr.mxu0 0.0
        %7437 = vmatpush1.msra.mxu0 0.0
        %7438 = vmatprep.subr.mxu0 0.0
        %7439 = vmatpush1.msra.mxu0 0.0
        %7440 = vmatprep.subr.mxu0 0.0
        %7441 = vmatpush1.msra.mxu0 0.0
        %7442 = vmatprep.subr.mxu0 0.0
        %7443 = vmatpush1.msra.mxu0 0.0
        %7444 = vmatprep.subr.mxu0 0.0
        %7445 = vmatpush1.msra.mxu0 0.0
        %7446 = vmatprep.subr.mxu0 0.0
        %7447 = vmatpush1.msra.mxu0 0.0
        %7448 = vmatprep.subr.mxu0 0.0
        %7449 = vmatpush1.msra.mxu0 0.0
        %7450 = vmatprep.subr.mxu0 0.0
        %7451 = vmatpush1.msra.mxu0 0.0
        %7452 = vmatprep.subr.mxu0 0.0
        %7453 = vmatpush1.msra.mxu0 0.0
        %7454 = vmatprep.subr.mxu0 0.0
        %7455 = vmatpush1.msra.mxu0 0.0
        %7456 = vmatprep.subr.mxu0 0.0
        %7457 = vmatpush1.msra.mxu0 0.0
        %7458 = vmatprep.subr.mxu0 0.0
        %7459 = vmatpush1.msra.mxu0 0.0
        %7460 = vmatprep.mubr.f32.mxu0 0.0
        %7461 = vmatmul.mubr.f32.gmra.mrb[0].mxu0 %v7394
        %v7462 = vpop.f32.mrb[0].mxu0
        %v7463 = vadd.f32 %v7391, %v7462
        %v7464 = vpop.f32.mrb[0].mxu0
        %7465 = vdwg.mxu0
        %7466 = vst.msk [vmem:[%s2313] sm:$0xff] %vm2369, %v7463
        %v7467 = vld [vmem:[%s43] sm:$0xff]
        %v7468 = vld [vmem:[%s43 + $0x8] sm:$0xff]
        %v7469 = vld [vmem:[%s43 + $0x10] sm:$0xff]
        %v7470 = vld [vmem:[%s43 + $0x18] sm:$0xff]
        %v7471 = vld [vmem:[#allocation4] sm:$0x1]
        %v7473 = vlaneseq
        %v7474 = vshrl.u32 %v7473, 7
        %v7475 = vsub.s32 0, %v7474
        %v7476 = vrot.slane %v7471, %v7475
        %7478 = vmatprep.subr.mxu0 0.0
        %7479 = vmatpush1.msra.mxu0 %v7467
        %7480 = vmatprep.subr.mxu0 0.0
        %7481 = vmatpush1.msra.mxu0 %v7468
        %7482 = vmatprep.subr.mxu0 0.0
        %7483 = vmatpush1.msra.mxu0 %v7469
        %7484 = vmatprep.subr.mxu0 0.0
        %7485 = vmatpush1.msra.mxu0 %v7470
        %7486 = vmatprep.subr.mxu0 0.0
        %7487 = vmatpush1.msra.mxu0 0.0
        %7488 = vmatprep.subr.mxu0 0.0
        %7489 = vmatpush1.msra.mxu0 0.0
        %7490 = vmatprep.subr.mxu0 0.0
        %7491 = vmatpush1.msra.mxu0 0.0
        %7492 = vmatprep.subr.mxu0 0.0
        %7493 = vmatpush1.msra.mxu0 0.0
        %7494 = vmatprep.subr.mxu0 0.0
        %7495 = vmatpush1.msra.mxu0 0.0
        %7496 = vmatprep.subr.mxu0 0.0
        %7497 = vmatpush1.msra.mxu0 0.0
        %7498 = vmatprep.subr.mxu0 0.0
        %7499 = vmatpush1.msra.mxu0 0.0
        %7500 = vmatprep.subr.mxu0 0.0
        %7501 = vmatpush1.msra.mxu0 0.0
        %7502 = vmatprep.subr.mxu0 0.0
        %7503 = vmatpush1.msra.mxu0 0.0
        %7504 = vmatprep.subr.mxu0 0.0
        %7505 = vmatpush1.msra.mxu0 0.0
        %7506 = vmatprep.subr.mxu0 0.0
        %7507 = vmatpush1.msra.mxu0 0.0
        %7508 = vmatprep.subr.mxu0 0.0
        %7509 = vmatpush1.msra.mxu0 0.0
        %7510 = vmatprep.subr.mxu0 0.0
        %7511 = vmatpush1.msra.mxu0 0.0
        %7512 = vmatprep.subr.mxu0 0.0
        %7513 = vmatpush1.msra.mxu0 0.0
        %7514 = vmatprep.subr.mxu0 0.0
        %7515 = vmatpush1.msra.mxu0 0.0
        %7516 = vmatprep.subr.mxu0 0.0
        %7517 = vmatpush1.msra.mxu0 0.0
        %7518 = vmatprep.subr.mxu0 0.0
        %7519 = vmatpush1.msra.mxu0 0.0
        %7520 = vmatprep.subr.mxu0 0.0
        %7521 = vmatpush1.msra.mxu0 0.0
        %7522 = vmatprep.subr.mxu0 0.0
        %7523 = vmatpush1.msra.mxu0 0.0
        %7524 = vmatprep.subr.mxu0 0.0
        %7525 = vmatpush1.msra.mxu0 0.0
        %7526 = vmatprep.subr.mxu0 0.0
        %7527 = vmatpush1.msra.mxu0 0.0
        %7528 = vmatprep.subr.mxu0 0.0
        %7529 = vmatpush1.msra.mxu0 0.0
        %7530 = vmatprep.subr.mxu0 0.0
        %7531 = vmatpush1.msra.mxu0 0.0
        %7532 = vmatprep.subr.mxu0 0.0
        %7533 = vmatpush1.msra.mxu0 0.0
        %7534 = vmatprep.subr.mxu0 0.0
        %7535 = vmatpush1.msra.mxu0 0.0
        %7536 = vmatprep.subr.mxu0 0.0
        %7537 = vmatpush1.msra.mxu0 0.0
        %7538 = vmatprep.subr.mxu0 0.0
        %7539 = vmatpush1.msra.mxu0 0.0
        %7540 = vmatprep.subr.mxu0 0.0
        %7541 = vmatpush1.msra.mxu0 0.0
        %7542 = vmatprep.mubr.f32.mxu0 0.0
        %7543 = vmatmul.mubr.f32.gmra.mrb[0].mxu0 %v7394
        %v7544 = vpop.f32.mrb[0].mxu0
        %v7545 = vadd.f32 %v7476, %v7544
        %v7546 = vpop.f32.mrb[0].mxu0
        %7547 = vdwg.mxu0
        %vm7548 = vcmask 7168
        %7549 = vst.msk [vmem:[%s2356] sm:$0xff] %vm7548, %v7545
        %s7550 = sand.u32 %s1571, 1
        %s7551 = scalar_lea.sflag [#allocation7], %s7550
        %s7552 = sand.u32 %s1571, 1
        %s7553 = smul.addr %s7552, 8
        %s7554 = scalar_lea.vmem [#allocation38], %s7553
        %p7555 = scmp.lt.s32.totalorder %s168, 1
        %s7556 = scalar_select %p7555, %s168, 1
        %s7557 = smul.addr %s7556, 8
        %s7558 = scalar_lea.vmem %s133, %s7557
        %s7559 = sand.u32 %s168, 1
        %s7560 = scalar_lea.sflag [#allocation40], %s7559
        %s7561 = sand.u32 %s1623, 1
        %s7562 = scalar_lea.vmem [#allocation39], %s7561
        %s7563 = sand.u32 %s168, 1
        %s7564 = scalar_lea.sflag [#allocation40], %s7563
        %s7565 = sand.u32 %s1649, 1
        %s7566 = scalar_lea.vmem [#allocation41], %s7565
        // Predicated region
        $region365: #{_lambda_.1} parent=279 // pred_check
          %p7567 = pneg %p1581
        $region366: #{_lambda_.1} parent=279 // pred_check_branch
          %7569 = sbr.rel (%p7567) target = $region368
        $region367: #{_lambda_.1} parent=279 // pred_region
          %s7571 = ssub.s32 128, 128
          %7572 = vsyncadd %s7551, %s7571
          %s7573 = smul.addr %s168, 128
          %s7574 = scalar_lea.hbm %s131, %s7573
          %s7576 = sshll.u32 %s7554, 4
          %s7577 = int_to_ptr.vmem [resolvable:$true] %s7576
          %7579 = dma.vmem_to_hbm [thread:$0]  %s7577, 128, %s7574, %s7551
        $region368: #{_lambda_.1} parent=279 // pred_fallthru
          _
        // Predicated region
        $region369: #{_lambda_.1} parent=279 // pred_check
          %p7580 = pneg %p1607
        $region370: #{_lambda_.1} parent=279 // pred_check_branch
          %7582 = sbr.rel (%p7580) target = $region372
        $region371: #{_lambda_.1} parent=279 // pred_region
          _
        $region372: #{_lambda_.1} parent=279 // pred_fallthru
          _
        // Predicated region
        $region373: #{_lambda_.1} parent=279 // pred_check
          %p7583 = pneg %p1633
        $region374: #{_lambda_.1} parent=279 // pred_check_branch
          %7585 = sbr.rel (%p7583) target = $region376
        $region375: #{_lambda_.1} parent=279 // pred_region
          %s7587 = ssub.s32 16, 16
          %7588 = vsyncadd %s7560, %s7587
          %s7589 = smul.addr %s168, 16
          %s7590 = scalar_lea.hbm %s135, %s7589
          %s7592 = sshll.u32 %s7562, 4
          %s7593 = int_to_ptr.vmem [resolvable:$true] %s7592
          %7595 = dma.vmem_to_hbm [thread:$0]  %s7593, 16, %s7590, %s7560
        $region376: #{_lambda_.1} parent=279 // pred_fallthru
          _
        // Predicated region
        $region377: #{_lambda_.1} parent=279 // pred_check
          %p7596 = pneg %p1659
        $region378: #{_lambda_.1} parent=279 // pred_check_branch
          %7598 = sbr.rel (%p7596) target = $region380
        $region379: #{_lambda_.1} parent=279 // pred_region
          %s7600 = ssub.s32 16, 16
          %7601 = vsyncadd %s7564, %s7600
          %s7602 = smul.addr %s168, 16
          %s7603 = scalar_lea.hbm %s137, %s7602
          %s7605 = sshll.u32 %s7566, 4
          %s7606 = int_to_ptr.vmem [resolvable:$true] %s7605
          %7608 = dma.vmem_to_hbm [thread:$0]  %s7606, 16, %s7603, %s7564
        $region380: #{_lambda_.1} parent=279 // pred_fallthru
          _
      $region280: #{_lambda_.1} parent=5 // pred_fallthru
        _
      %p7609 = scmp.le.s32.totalorder 2, %s163
      // Predicated region
      $region381: #{_lambda_.1} parent=5 // pred_check
        %p7610 = pneg %p7609
      $region382: #{_lambda_.1} parent=5 // pred_check_branch
        %7612 = sbr.rel (%p7610) target = $region384
      $region383: #{_lambda_.1} parent=5 // pred_region
        %s7613 = ssub.s32 %s163, 2
        // Predicated region
        $region385: #{_lambda_.1} parent=383 // pred_check
          %p7614 = pneg %p1587
        $region386: #{_lambda_.1} parent=383 // pred_check_branch
          %7616 = sbr.rel (%p7614) target = $region388
        $region387: #{_lambda_.1} parent=383 // pred_region
          %s7617 = sand.u32 %s1572, 1
          %s7618 = scalar_lea.sflag [#allocation7], %s7617
          %s7619 = sand.u32 %s1572, 1
          %s7620 = smul.addr %s7619, 8
          %s7621 = scalar_lea.vmem [#allocation38], %s7620
          %7622 = dma.done %s7618, 128
        $region388: #{_lambda_.1} parent=383 // pred_fallthru
          _
        // Predicated region
        $region389: #{_lambda_.1} parent=383 // pred_check
          %p7623 = pneg %p1613
        $region390: #{_lambda_.1} parent=383 // pred_check_branch
          %7625 = sbr.rel (%p7623) target = $region392
        $region391: #{_lambda_.1} parent=383 // pred_region
          %p7626 = scmp.lt.s32.totalorder %s169, 1
          %s7627 = scalar_select %p7626, %s169, 1
          %s7628 = smul.addr %s7627, 8
          %s7629 = scalar_lea.vmem %s133, %s7628
        $region392: #{_lambda_.1} parent=383 // pred_fallthru
          _
        // Predicated region
        $region393: #{_lambda_.1} parent=383 // pred_check
          %p7630 = pneg %p1639
        $region394: #{_lambda_.1} parent=383 // pred_check_branch
          %7632 = sbr.rel (%p7630) target = $region396
        $region395: #{_lambda_.1} parent=383 // pred_region
          %s7633 = sand.u32 %s169, 1
          %s7634 = scalar_lea.sflag [#allocation40], %s7633
          %s7635 = sand.u32 %s1624, 1
          %s7636 = scalar_lea.vmem [#allocation39], %s7635
          %7637 = dma.done %s7634, 16
        $region396: #{_lambda_.1} parent=383 // pred_fallthru
          _
        // Predicated region
        $region397: #{_lambda_.1} parent=383 // pred_check
          %p7638 = pneg %p1665
        $region398: #{_lambda_.1} parent=383 // pred_check_branch
          %7640 = sbr.rel (%p7638) target = $region400
        $region399: #{_lambda_.1} parent=383 // pred_region
          %s7641 = sand.u32 %s169, 1
          %s7642 = scalar_lea.sflag [#allocation40], %s7641
          %s7643 = sand.u32 %s1650, 1
          %s7644 = scalar_lea.vmem [#allocation41], %s7643
          %7645 = dma.done %s7642, 16
        $region400: #{_lambda_.1} parent=383 // pred_fallthru
          _
      $region384: #{_lambda_.1} parent=5 // pred_fallthru
        _
    $region6: #{_lambda_.1} parent=1 // loop_footer
      %s167 = sadd.s32 1, %s163
    $region7: #{_lambda_.1} parent=1 // loop_footer_branch
      %162 = sbr.rel target = $region3
    $region8: #{_lambda_.1} parent=1 // loop_exit
      _
    %7646 = vsyncpa [#allocation6], 1
    %s7647 = scalar_lea.sflag [#allocation6], 1
    %7648 = vsyncpa %s7647, 1
    %7649 = vsyncpa [#allocation9], 1
    %7650 = vsyncpa [#allocation12], 1
    %7651 = vsyncpa [#allocation15], 1
    %7652 = vsyncpa [#allocation18], 1
    %7653 = vsyncpa [#allocation21], 1
    %7654 = vsyncpa [#allocation24], 1
    %7655 = vsyncpa [#allocation27], 1
    %7656 = vsyncpa [#allocation30], 1
    %7657 = vsyncpa [#allocation33], 1
    %7658 = vsyncpa [#allocation36], 1
    %7659 = vsyncpa [#allocation7], 1
    %s7660 = scalar_lea.sflag [#allocation7], 1
    %7661 = vsyncpa %s7660, 1
    %7662 = vsyncpa [#allocation40], 1
    %s7663 = scalar_lea.sflag [#allocation40], 1
    %7664 = vsyncpa %s7663, 1

</llo_original>
